<compile_context>
chip_gen: v7x
topology: tpu7x:2x2x1
jax: 0.10.0
libtpu: 0.0.40
codegen_flags: <defaults>
</compile_context>

<pallas_src>
import numpy as np

import jax
import jax.numpy as jnp
from jax.experimental import pallas as pl
from jax.experimental.pallas import tpu as pltpu


# ----------------------------------------------------------------------------
# Weight packing: per-kernel-row "width-dense" GEMM matrices (built once).
# ----------------------------------------------------------------------------
def _conv_row_mats(w_oihw, in_w, stride):
    """Conv2d weight (Cout,Cin,KH,KW) -> (KH, in_w*Cin, out_w*Cout)."""
    Cout, Cin, KH, KW = w_oihw.shape
    out_w = (in_w - KW) // stride + 1
    w = np.asarray(w_oihw, np.float32)
    A = np.zeros((KH, in_w * Cin, out_w * Cout), np.float32)
    for kh in range(KH):
        for ow in range(out_w):
            for kw in range(KW):
                iw = ow * stride + kw
                A[kh, iw * Cin:(iw + 1) * Cin, ow * Cout:(ow + 1) * Cout] = \
                    w[:, :, kh, kw].T
    return A


def _convT_row_mats(w_iohw, in_w, stride, padding, out_w):
    """ConvTranspose2d weight (Cin,Cout,KH,KW) -> (KH, in_w*Cin, out_w*Cout)."""
    Cin, Cout, KH, KW = w_iohw.shape
    w = np.asarray(w_iohw, np.float32)
    B = np.zeros((KH, in_w * Cin, out_w * Cout), np.float32)
    for kh in range(KH):
        for iw in range(in_w):
            for ow in range(out_w):
                kw = ow - stride * iw + padding
                if 0 <= kw < KW:
                    B[kh, iw * Cin:(iw + 1) * Cin,
                      ow * Cout:(ow + 1) * Cout] = w[:, :, kh, kw]
    return B


# ----------------------------------------------------------------------------
# Fused Pallas kernel (one grid step == one batch sample)
# ----------------------------------------------------------------------------
def _stable_sigmoid(x):
    z = jnp.exp(-jnp.abs(x))
    r = 1.0 / (1.0 + z)
    return jnp.where(x >= 0.0, r, z * r)


def _cnn_vae_kernel(x_ref, eps_ref,
                    a0_ref, ab0_ref, a1_ref, ab1_ref, a2_ref, ab2_ref,
                    a3_ref, ab3_ref, wh_ref, bh_ref, wdl_ref, bdl_ref,
                    t0_ref, tb0_ref, t1_ref, tb1_ref, t2_ref, tb2_ref,
                    t3_ref, tb3_ref,
                    recon_ref, heads_ref):
    f32 = jnp.float32
    bf16 = jnp.bfloat16

    def relu(v):
        return jnp.maximum(v, 0.0)

    def mm(a, w):  # bf16 x bf16 -> f32 accumulation on the MXU.
        return jnp.dot(a.astype(bf16), w, preferred_element_type=f32)

    # ------------------------------ encoder -------------------------------
    x = x_ref[0].astype(f32)                                   # (28, 28*C0)

    # E0: Conv(C0 -> 6, 5x5, stride 2): 28x28 -> 12x12
    r = [mm(x, a0_ref[kh]) for kh in range(5)]                 # 5 x (28, 72)
    rows = []
    for oh in range(12):
        acc = ab0_ref[...]                                     # (1, 72)
        for kh in range(5):
            ih = 2 * oh + kh
            acc = acc + r[kh][ih:ih + 1, :]
        rows.append(relu(acc))
    h0 = jnp.concatenate(rows, axis=0)                         # (12, 72)

    # E1: Conv(6 -> 16, 5x5): 12x12 -> 8x8
    r = [mm(h0, a1_ref[kh]) for kh in range(5)]                # 5 x (12, 128)
    acc = ab1_ref[...]                                         # (1, 128)
    for kh in range(5):
        acc = acc + r[kh][kh:kh + 8, :]
    h1 = relu(acc)                                             # (8, 128)

    # E2: Conv(16 -> 32, 3x3, stride 2): 8x8 -> 3x3
    r = [mm(h1, a2_ref[kh]) for kh in range(3)]                # 3 x (8, 96)
    e2_rows = []
    for oh in range(3):
        acc = ab2_ref[...]                                     # (1, 96)
        for kh in range(3):
            ih = 2 * oh + kh
            acc = acc + r[kh][ih:ih + 1, :]
        e2_rows.append(relu(acc))

    # E3: Conv(32 -> 64, 3x3) on a 3x3 map -> 1x1 (no activation)
    x_enc = ab3_ref[...]                                       # (1, 64)
    for ih in range(3):
        x_enc = x_enc + mm(e2_rows[ih], a3_ref[ih])

    # ---------- latent heads (mu | log_var fused) + reparametrisation ------
    heads = mm(x_enc, wh_ref[...]) + bh_ref[...]               # (1, 64)
    heads_ref[0] = heads
    mu = heads[:, :32]
    log_var = heads[:, 32:]
    z = mu + eps_ref[0] * jnp.exp(log_var * 0.5)               # (1, 32)

    # dec_lin (no activation)
    zd = mm(z, wdl_ref[...]) + bdl_ref[...]                    # (1, 64)

    # ------------------------------ decoder -------------------------------
    # D0: ConvT(64 -> 32, 3x3) on 1x1 -> 3x3
    rows = [relu(mm(zd, t0_ref[kh]) + tb0_ref[...]) for kh in range(3)]
    g0 = jnp.concatenate(rows, axis=0)                         # (3, 96)

    # D1: ConvT(32 -> 16, 5x5, stride 2, pad 1, out_pad 1): 3x3 -> 8x8
    r = [mm(g0, t1_ref[kh]) for kh in range(5)]                # 5 x (3, 128)
    rows = []
    for oh in range(8):
        acc = tb1_ref[...]                                     # (1, 128)
        for ih in range(3):
            kh = oh - 2 * ih + 1
            if 0 <= kh < 5:
                acc = acc + r[kh][ih:ih + 1, :]
        rows.append(relu(acc))
    g1 = jnp.concatenate(rows, axis=0)                         # (8, 128)

    # D2: ConvT(16 -> 6, 5x5): 8x8 -> 12x12
    r = [mm(g1, t2_ref[kh]) for kh in range(5)]                # 5 x (8, 72)
    rows = []
    for oh in range(12):
        acc = tb2_ref[...]                                     # (1, 72)
        for kh in range(5):
            ih = oh - kh
            if 0 <= ih < 8:
                acc = acc + r[kh][ih:ih + 1, :]
        rows.append(relu(acc))
    g2 = jnp.concatenate(rows, axis=0)                         # (12, 72)

    # D3: ConvT(6 -> 1, 5x5, stride 2, out_pad 1): 12x12 -> 28x28, + sigmoid
    r = [mm(g2, t3_ref[kh]) for kh in range(5)]                # 5 x (12, 28)
    rows = []
    for oh in range(28):
        acc = tb3_ref[...]                                     # (1, 28)
        for ih in range(12):
            kh = oh - 2 * ih
            if 0 <= kh < 5:
                acc = acc + r[kh][ih:ih + 1, :]
        rows.append(acc)                                       # row 27: bias only
    logits = jnp.concatenate(rows, axis=0)                     # (28, 28)
    recon_ref[0] = _stable_sigmoid(logits)


# ----------------------------------------------------------------------------
# pallas_call wrapper
# ----------------------------------------------------------------------------
_WEIGHT_ORDER = ("a0", "ab0", "a1", "ab1", "a2", "ab2", "a3", "ab3",
                 "wh", "bh", "wdl", "bdl",
                 "t0", "tb0", "t1", "tb1", "t2", "tb2", "t3", "tb3")


def _fused_vae_call(kp, x_rows, eps):
    B = x_rows.shape[0]

    def per_sample_spec(arr):
        nd = arr.ndim
        blk = (1,) + tuple(arr.shape[1:])
        return pl.BlockSpec(blk, lambda i, _n=nd: (i,) + (0,) * (_n - 1))

    def resident_spec(arr):
        nd = arr.ndim
        return pl.BlockSpec(tuple(arr.shape), lambda i, _n=nd: (0,) * _n)

    weights = [kp[k] for k in _WEIGHT_ORDER]
    in_specs = [per_sample_spec(x_rows), per_sample_spec(eps)]
    in_specs += [resident_spec(w) for w in weights]

    out_shape = (jax.ShapeDtypeStruct((B, 28, 28), jnp.float32),
                 jax.ShapeDtypeStruct((B, 1, 64), jnp.float32))
    out_specs = (pl.BlockSpec((1, 28, 28), lambda i: (i, 0, 0)),
                 pl.BlockSpec((1, 1, 64), lambda i: (i, 0, 0)))

    return pl.pallas_call(
        _cnn_vae_kernel,
        grid=(B,),
        in_specs=in_specs,
        out_specs=out_specs,
        out_shape=out_shape,
        compiler_params=pltpu.CompilerParams(
            dimension_semantics=("parallel",)),
    )(x_rows, eps, *weights)


def cnn_vae_forward(kernel_params, x_nchw, eps_key):
    """Returns (recon (B,1,28,28), z_mu (B,32), z_log_var (B,32))."""
    B, C0, H, W = x_nchw.shape
    # NCHW -> "H rows x (W*C) lanes" layout expected by the kernel.
    x_rows = jnp.transpose(x_nchw, (0, 2, 3, 1)).reshape(B, H, W * C0)
    x_rows = x_rows.astype(jnp.float32)
    # Gaussian noise for the reparametrisation trick (torch.randn_like equiv).
    eps = jax.random.normal(eps_key, (B, 1, 32), jnp.float32)
    recon28, heads = _fused_vae_call(kernel_params, x_rows, eps)
    recon = recon28[:, None, :, :]                             # (B, 1, 28, 28)
    heads = heads[:, 0, :]
    return recon, heads[:, :32], heads[:, 32:]


# ----------------------------------------------------------------------------
# Parameter init (PyTorch-layout tensors) + one-time packing into kernel layout
# ----------------------------------------------------------------------------
def _uniform(key, shape, fan_in):
    bound = 1.0 / float(np.sqrt(float(fan_in)))
    return jax.random.uniform(key, shape, jnp.float32, -bound, bound)


def init_params(key, num_channels):
    ks = jax.random.split(key, 22)
    p = {}
    enc_shapes = [(6, num_channels, 5, 5), (16, 6, 5, 5),
                  (32, 16, 3, 3), (64, 32, 3, 3)]
    for i, s in enumerate(enc_shapes):
        fan_in = s[1] * s[2] * s[3]
        p[f"enc{i}_w"] = _uniform(ks[2 * i], s, fan_in)
        p[f"enc{i}_b"] = _uniform(ks[2 * i + 1], (s[0],), fan_in)
    dec_shapes = [(64, 32, 3, 3), (32, 16, 5, 5), (16, 6, 5, 5), (6, 1, 5, 5)]
    for i, s in enumerate(dec_shapes):
        fan_in = s[1] * s[2] * s[3]   # PyTorch ConvTranspose2d uses out_ch*k*k
        p[f"dec{i}_w"] = _uniform(ks[8 + 2 * i], s, fan_in)
        p[f"dec{i}_b"] = _uniform(ks[9 + 2 * i], (s[1],), fan_in)
    p["mu_w"] = _uniform(ks[16], (32, 64), 64)
    p["mu_b"] = _uniform(ks[17], (32,), 64)
    p["lv_w"] = _uniform(ks[18], (32, 64), 64)
    p["lv_b"] = _uniform(ks[19], (32,), 64)
    p["dl_w"] = _uniform(ks[20], (64, 32), 32)
    p["dl_b"] = _uniform(ks[21], (64,), 32)
    return p


def prepare_params(p, num_channels):
    """Hoisted, one-time re-layout of PyTorch-style params into GEMM form."""
    del num_channels  # implied by enc0_w's shape
    np_p = {k: np.asarray(v, np.float32) for k, v in p.items()}
    bf16, f32 = jnp.bfloat16, jnp.float32

    def brow(b, reps):
        return jnp.asarray(np.tile(b, reps)[None, :], f32)

    kp = {}
    kp["a0"] = jnp.asarray(_conv_row_mats(np_p["enc0_w"], 28, 2), bf16)
    kp["ab0"] = brow(np_p["enc0_b"], 12)
    kp["a1"] = jnp.asarray(_conv_row_mats(np_p["enc1_w"], 12, 1), bf16)
    kp["ab1"] = brow(np_p["enc1_b"], 8)
    kp["a2"] = jnp.asarray(_conv_row_mats(np_p["enc2_w"], 8, 2), bf16)
    kp["ab2"] = brow(np_p["enc2_b"], 3)
    kp["a3"] = jnp.asarray(
        np.transpose(np_p["enc3_w"], (2, 3, 1, 0)).reshape(3, 96, 64), bf16)
    kp["ab3"] = brow(np_p["enc3_b"], 1)
    kp["wh"] = jnp.asarray(
        np.concatenate([np_p["mu_w"].T, np_p["lv_w"].T], axis=1), bf16)
    kp["bh"] = brow(np.concatenate([np_p["mu_b"], np_p["lv_b"]]), 1)
    kp["wdl"] = jnp.asarray(np_p["dl_w"].T, bf16)
    kp["bdl"] = brow(np_p["dl_b"], 1)
    kp["t0"] = jnp.asarray(
        np.transpose(np_p["dec0_w"], (2, 0, 3, 1)).reshape(3, 64, 96), bf16)
    kp["tb0"] = brow(np_p["dec0_b"], 3)
    kp["t1"] = jnp.asarray(_convT_row_mats(np_p["dec1_w"], 3, 2, 1, 8), bf16)
    kp["tb1"] = brow(np_p["dec1_b"], 8)
    kp["t2"] = jnp.asarray(_convT_row_mats(np_p["dec2_w"], 8, 1, 0, 12), bf16)
    kp["tb2"] = brow(np_p["dec2_b"], 12)
    kp["t3"] = jnp.asarray(_convT_row_mats(np_p["dec3_w"], 12, 2, 0, 28), bf16)
    kp["tb3"] = jnp.asarray(
        np.full((1, 28), float(np_p["dec3_b"][0]), np.float32), f32)
    return kp


# ----------------------------------------------------------------------------
if __name__ == "__main__":
    key = jax.random.PRNGKey(0)
    k_param, k_input, k_eps = jax.random.split(key, 3)

    num_channels = 1
    batch = 2
    # 28x28 input is required so the encoder bottleneck is exactly (B,64,1,1),
    # matching the module's .view(-1, 64).
    x = jax.random.uniform(k_input, (batch, num_channels, 28, 28), jnp.float32)

    raw_params = init_params(k_param, num_channels)
    kernel_params = prepare_params(raw_params, num_channels)

    fwd = jax.jit(cnn_vae_forward)
    recon, z_mu, z_log_var = fwd(kernel_params, x, k_eps)
    jax.block_until_ready((recon, z_mu, z_log_var))

    assert recon.shape == (batch, 1, 28, 28), recon.shape
    assert z_mu.shape == (batch, 32), z_mu.shape
    assert z_log_var.shape == (batch, 32), z_log_var.shape
    assert bool(jnp.all(jnp.isfinite(recon)))
    assert bool(jnp.all((recon >= 0.0) & (recon <= 1.0)))

    print("KERNEL_OK")
</pallas_src>

<mosaic_0001>
module attributes {stable_mosaic.version = 11 : i64} {
  func.func @_cnn_vae_kernel(%arg0: i32, %arg1: memref<1x28x28xf32, #tpu.memory_space<vmem>>, %arg2: memref<1x1x32xf32, #tpu.memory_space<vmem>>, %arg3: memref<5x28x72xbf16, #tpu.memory_space<vmem>>, %arg4: memref<1x72xf32, #tpu.memory_space<vmem>>, %arg5: memref<5x72x128xbf16, #tpu.memory_space<vmem>>, %arg6: memref<1x128xf32, #tpu.memory_space<vmem>>, %arg7: memref<3x128x96xbf16, #tpu.memory_space<vmem>>, %arg8: memref<1x96xf32, #tpu.memory_space<vmem>>, %arg9: memref<3x96x64xbf16, #tpu.memory_space<vmem>>, %arg10: memref<1x64xf32, #tpu.memory_space<vmem>>, %arg11: memref<64x64xbf16, #tpu.memory_space<vmem>>, %arg12: memref<1x64xf32, #tpu.memory_space<vmem>>, %arg13: memref<32x64xbf16, #tpu.memory_space<vmem>>, %arg14: memref<1x64xf32, #tpu.memory_space<vmem>>, %arg15: memref<3x64x96xbf16, #tpu.memory_space<vmem>>, %arg16: memref<1x96xf32, #tpu.memory_space<vmem>>, %arg17: memref<5x96x128xbf16, #tpu.memory_space<vmem>>, %arg18: memref<1x128xf32, #tpu.memory_space<vmem>>, %arg19: memref<5x128x72xbf16, #tpu.memory_space<vmem>>, %arg20: memref<1x72xf32, #tpu.memory_space<vmem>>, %arg21: memref<5x72x28xbf16, #tpu.memory_space<vmem>>, %arg22: memref<1x28xf32, #tpu.memory_space<vmem>>, %arg23: memref<1x28x28xf32, #tpu.memory_space<vmem>>, %arg24: memref<1x1x64xf32, #tpu.memory_space<vmem>>) attributes {dimension_semantics = [#tpu.dimension_semantics<parallel>], iteration_bounds = array<i64: 2>, scalar_prefetch = 0 : i64, scratch_operands = 0 : i64, tpu.core_type = #tpu.core_type<tc>, window_params = [{transform_indices = @transform_0, window_bounds = array<i64: 1, 28, 28>}, {transform_indices = @transform_1, window_bounds = array<i64: 1, 1, 32>}, {pipeline_mode = #tpu.pipeline_mode<synchronous>, transform_indices = @transform_2, window_bounds = array<i64: 5, 28, 72>}, {pipeline_mode = #tpu.pipeline_mode<synchronous>, transform_indices = @transform_3, window_bounds = array<i64: 1, 72>}, {pipeline_mode = #tpu.pipeline_mode<synchronous>, transform_indices = @transform_4, window_bounds = array<i64: 5, 72, 128>}, {pipeline_mode = #tpu.pipeline_mode<synchronous>, transform_indices = @transform_5, window_bounds = array<i64: 1, 128>}, {pipeline_mode = #tpu.pipeline_mode<synchronous>, transform_indices = @transform_6, window_bounds = array<i64: 3, 128, 96>}, {pipeline_mode = #tpu.pipeline_mode<synchronous>, transform_indices = @transform_7, window_bounds = array<i64: 1, 96>}, {pipeline_mode = #tpu.pipeline_mode<synchronous>, transform_indices = @transform_8, window_bounds = array<i64: 3, 96, 64>}, {pipeline_mode = #tpu.pipeline_mode<synchronous>, transform_indices = @transform_9, window_bounds = array<i64: 1, 64>}, {pipeline_mode = #tpu.pipeline_mode<synchronous>, transform_indices = @transform_10, window_bounds = array<i64: 64, 64>}, {pipeline_mode = #tpu.pipeline_mode<synchronous>, transform_indices = @transform_11, window_bounds = array<i64: 1, 64>}, {pipeline_mode = #tpu.pipeline_mode<synchronous>, transform_indices = @transform_12, window_bounds = array<i64: 32, 64>}, {pipeline_mode = #tpu.pipeline_mode<synchronous>, transform_indices = @transform_13, window_bounds = array<i64: 1, 64>}, {pipeline_mode = #tpu.pipeline_mode<synchronous>, transform_indices = @transform_14, window_bounds = array<i64: 3, 64, 96>}, {pipeline_mode = #tpu.pipeline_mode<synchronous>, transform_indices = @transform_15, window_bounds = array<i64: 1, 96>}, {pipeline_mode = #tpu.pipeline_mode<synchronous>, transform_indices = @transform_16, window_bounds = array<i64: 5, 96, 128>}, {pipeline_mode = #tpu.pipeline_mode<synchronous>, transform_indices = @transform_17, window_bounds = array<i64: 1, 128>}, {pipeline_mode = #tpu.pipeline_mode<synchronous>, transform_indices = @transform_18, window_bounds = array<i64: 5, 128, 72>}, {pipeline_mode = #tpu.pipeline_mode<synchronous>, transform_indices = @transform_19, window_bounds = array<i64: 1, 72>}, {pipeline_mode = #tpu.pipeline_mode<synchronous>, transform_indices = @transform_20, window_bounds = array<i64: 5, 72, 28>}, {pipeline_mode = #tpu.pipeline_mode<synchronous>, transform_indices = @transform_21, window_bounds = array<i64: 1, 28>}, {transform_indices = @transform_22, window_bounds = array<i64: 1, 28, 28>}, {transform_indices = @transform_23, window_bounds = array<i64: 1, 1, 64>}]} {
    %c0 = arith.constant 0 : index
    %c0_0 = arith.constant 0 : index
    %c0_1 = arith.constant 0 : index
    %0 = vector.load %arg1[%c0, %c0_0, %c0_1] : memref<1x28x28xf32, #tpu.memory_space<vmem>>, vector<1x28x28xf32>
    %1 = vector.shape_cast %0 : vector<1x28x28xf32> to vector<28x28xf32>
    %c0_2 = arith.constant 0 : index
    %c0_3 = arith.constant 0 : index
    %c0_4 = arith.constant 0 : index
    %2 = vector.load %arg3[%c0_2, %c0_3, %c0_4] : memref<5x28x72xbf16, #tpu.memory_space<vmem>>, vector<1x28x72xbf16>
    %3 = vector.shape_cast %2 : vector<1x28x72xbf16> to vector<28x72xbf16>
    %4 = arith.truncf %1 : vector<28x28xf32> to vector<28x28xbf16>
    %cst = arith.constant dense<0.000000e+00> : vector<28x72xf32>
    %5 = tpu.matmul %4, %3, %cst {dimension_numbers = #tpu.dot_dimension_numbers<[1], [0], [0], [1], [0, 0, 1, 1], [], []>} : vector<28x28xbf16>, vector<28x72xbf16>, vector<28x72xf32> -> vector<28x72xf32>
    %c1 = arith.constant 1 : index
    %c0_5 = arith.constant 0 : index
    %c0_6 = arith.constant 0 : index
    %6 = vector.load %arg3[%c1, %c0_5, %c0_6] : memref<5x28x72xbf16, #tpu.memory_space<vmem>>, vector<1x28x72xbf16>
    %7 = vector.shape_cast %6 : vector<1x28x72xbf16> to vector<28x72xbf16>
    %8 = arith.truncf %1 : vector<28x28xf32> to vector<28x28xbf16>
    %cst_7 = arith.constant dense<0.000000e+00> : vector<28x72xf32>
    %9 = tpu.matmul %8, %7, %cst_7 {dimension_numbers = #tpu.dot_dimension_numbers<[1], [0], [0], [1], [0, 0, 1, 1], [], []>} : vector<28x28xbf16>, vector<28x72xbf16>, vector<28x72xf32> -> vector<28x72xf32>
    %c2 = arith.constant 2 : index
    %c0_8 = arith.constant 0 : index
    %c0_9 = arith.constant 0 : index
    %10 = vector.load %arg3[%c2, %c0_8, %c0_9] : memref<5x28x72xbf16, #tpu.memory_space<vmem>>, vector<1x28x72xbf16>
    %11 = vector.shape_cast %10 : vector<1x28x72xbf16> to vector<28x72xbf16>
    %12 = arith.truncf %1 : vector<28x28xf32> to vector<28x28xbf16>
    %cst_10 = arith.constant dense<0.000000e+00> : vector<28x72xf32>
    %13 = tpu.matmul %12, %11, %cst_10 {dimension_numbers = #tpu.dot_dimension_numbers<[1], [0], [0], [1], [0, 0, 1, 1], [], []>} : vector<28x28xbf16>, vector<28x72xbf16>, vector<28x72xf32> -> vector<28x72xf32>
    %c3 = arith.constant 3 : index
    %c0_11 = arith.constant 0 : index
    %c0_12 = arith.constant 0 : index
    %14 = vector.load %arg3[%c3, %c0_11, %c0_12] : memref<5x28x72xbf16, #tpu.memory_space<vmem>>, vector<1x28x72xbf16>
    %15 = vector.shape_cast %14 : vector<1x28x72xbf16> to vector<28x72xbf16>
    %16 = arith.truncf %1 : vector<28x28xf32> to vector<28x28xbf16>
    %cst_13 = arith.constant dense<0.000000e+00> : vector<28x72xf32>
    %17 = tpu.matmul %16, %15, %cst_13 {dimension_numbers = #tpu.dot_dimension_numbers<[1], [0], [0], [1], [0, 0, 1, 1], [], []>} : vector<28x28xbf16>, vector<28x72xbf16>, vector<28x72xf32> -> vector<28x72xf32>
    %c4 = arith.constant 4 : index
    %c0_14 = arith.constant 0 : index
    %c0_15 = arith.constant 0 : index
    %18 = vector.load %arg3[%c4, %c0_14, %c0_15] : memref<5x28x72xbf16, #tpu.memory_space<vmem>>, vector<1x28x72xbf16>
    %19 = vector.shape_cast %18 : vector<1x28x72xbf16> to vector<28x72xbf16>
    %20 = arith.truncf %1 : vector<28x28xf32> to vector<28x28xbf16>
    %cst_16 = arith.constant dense<0.000000e+00> : vector<28x72xf32>
    %21 = tpu.matmul %20, %19, %cst_16 {dimension_numbers = #tpu.dot_dimension_numbers<[1], [0], [0], [1], [0, 0, 1, 1], [], []>} : vector<28x28xbf16>, vector<28x72xbf16>, vector<28x72xf32> -> vector<28x72xf32>
    %c0_17 = arith.constant 0 : index
    %c0_18 = arith.constant 0 : index
    %22 = vector.load %arg4[%c0_17, %c0_18] : memref<1x72xf32, #tpu.memory_space<vmem>>, vector<1x72xf32>
    %23 = vector.extract_strided_slice %5 {offsets = [0, 0], sizes = [1, 72], strides = [1, 1]} : vector<28x72xf32> to vector<1x72xf32>
    %24 = arith.addf %22, %23 : vector<1x72xf32>
    %25 = vector.extract_strided_slice %9 {offsets = [1, 0], sizes = [1, 72], strides = [1, 1]} : vector<28x72xf32> to vector<1x72xf32>
    %26 = arith.addf %24, %25 : vector<1x72xf32>
    %27 = vector.extract_strided_slice %13 {offsets = [2, 0], sizes = [1, 72], strides = [1, 1]} : vector<28x72xf32> to vector<1x72xf32>
    %28 = arith.addf %26, %27 : vector<1x72xf32>
    %29 = vector.extract_strided_slice %17 {offsets = [3, 0], sizes = [1, 72], strides = [1, 1]} : vector<28x72xf32> to vector<1x72xf32>
    %30 = arith.addf %28, %29 : vector<1x72xf32>
    %31 = vector.extract_strided_slice %21 {offsets = [4, 0], sizes = [1, 72], strides = [1, 1]} : vector<28x72xf32> to vector<1x72xf32>
    %32 = arith.addf %30, %31 : vector<1x72xf32>
    %cst_19 = arith.constant 0.000000e+00 : f32
    %33 = vector.broadcast %cst_19 : f32 to vector<1x72xf32>
    %34 = arith.maximumf %32, %33 : vector<1x72xf32>
    %c0_20 = arith.constant 0 : index
    %c0_21 = arith.constant 0 : index
    %35 = vector.load %arg4[%c0_20, %c0_21] : memref<1x72xf32, #tpu.memory_space<vmem>>, vector<1x72xf32>
    %36 = vector.extract_strided_slice %5 {offsets = [2, 0], sizes = [1, 72], strides = [1, 1]} : vector<28x72xf32> to vector<1x72xf32>
    %37 = arith.addf %35, %36 : vector<1x72xf32>
    %38 = vector.extract_strided_slice %9 {offsets = [3, 0], sizes = [1, 72], strides = [1, 1]} : vector<28x72xf32> to vector<1x72xf32>
    %39 = arith.addf %37, %38 : vector<1x72xf32>
    %40 = vector.extract_strided_slice %13 {offsets = [4, 0], sizes = [1, 72], strides = [1, 1]} : vector<28x72xf32> to vector<1x72xf32>
    %41 = arith.addf %39, %40 : vector<1x72xf32>
    %42 = vector.extract_strided_slice %17 {offsets = [5, 0], sizes = [1, 72], strides = [1, 1]} : vector<28x72xf32> to vector<1x72xf32>
    %43 = arith.addf %41, %42 : vector<1x72xf32>
    %44 = vector.extract_strided_slice %21 {offsets = [6, 0], sizes = [1, 72], strides = [1, 1]} : vector<28x72xf32> to vector<1x72xf32>
    %45 = arith.addf %43, %44 : vector<1x72xf32>
    %cst_22 = arith.constant 0.000000e+00 : f32
    %46 = vector.broadcast %cst_22 : f32 to vector<1x72xf32>
    %47 = arith.maximumf %45, %46 : vector<1x72xf32>
    %c0_23 = arith.constant 0 : index
    %c0_24 = arith.constant 0 : index
    %48 = vector.load %arg4[%c0_23, %c0_24] : memref<1x72xf32, #tpu.memory_space<vmem>>, vector<1x72xf32>
    %49 = vector.extract_strided_slice %5 {offsets = [4, 0], sizes = [1, 72], strides = [1, 1]} : vector<28x72xf32> to vector<1x72xf32>
    %50 = arith.addf %48, %49 : vector<1x72xf32>
    %51 = vector.extract_strided_slice %9 {offsets = [5, 0], sizes = [1, 72], strides = [1, 1]} : vector<28x72xf32> to vector<1x72xf32>
    %52 = arith.addf %50, %51 : vector<1x72xf32>
    %53 = vector.extract_strided_slice %13 {offsets = [6, 0], sizes = [1, 72], strides = [1, 1]} : vector<28x72xf32> to vector<1x72xf32>
    %54 = arith.addf %52, %53 : vector<1x72xf32>
    %55 = vector.extract_strided_slice %17 {offsets = [7, 0], sizes = [1, 72], strides = [1, 1]} : vector<28x72xf32> to vector<1x72xf32>
    %56 = arith.addf %54, %55 : vector<1x72xf32>
    %57 = vector.extract_strided_slice %21 {offsets = [8, 0], sizes = [1, 72], strides = [1, 1]} : vector<28x72xf32> to vector<1x72xf32>
    %58 = arith.addf %56, %57 : vector<1x72xf32>
    %cst_25 = arith.constant 0.000000e+00 : f32
    %59 = vector.broadcast %cst_25 : f32 to vector<1x72xf32>
    %60 = arith.maximumf %58, %59 : vector<1x72xf32>
    %c0_26 = arith.constant 0 : index
    %c0_27 = arith.constant 0 : index
    %61 = vector.load %arg4[%c0_26, %c0_27] : memref<1x72xf32, #tpu.memory_space<vmem>>, vector<1x72xf32>
    %62 = vector.extract_strided_slice %5 {offsets = [6, 0], sizes = [1, 72], strides = [1, 1]} : vector<28x72xf32> to vector<1x72xf32>
    %63 = arith.addf %61, %62 : vector<1x72xf32>
    %64 = vector.extract_strided_slice %9 {offsets = [7, 0], sizes = [1, 72], strides = [1, 1]} : vector<28x72xf32> to vector<1x72xf32>
    %65 = arith.addf %63, %64 : vector<1x72xf32>
    %66 = vector.extract_strided_slice %13 {offsets = [8, 0], sizes = [1, 72], strides = [1, 1]} : vector<28x72xf32> to vector<1x72xf32>
    %67 = arith.addf %65, %66 : vector<1x72xf32>
    %68 = vector.extract_strided_slice %17 {offsets = [9, 0], sizes = [1, 72], strides = [1, 1]} : vector<28x72xf32> to vector<1x72xf32>
    %69 = arith.addf %67, %68 : vector<1x72xf32>
    %70 = vector.extract_strided_slice %21 {offsets = [10, 0], sizes = [1, 72], strides = [1, 1]} : vector<28x72xf32> to vector<1x72xf32>
    %71 = arith.addf %69, %70 : vector<1x72xf32>
    %cst_28 = arith.constant 0.000000e+00 : f32
    %72 = vector.broadcast %cst_28 : f32 to vector<1x72xf32>
    %73 = arith.maximumf %71, %72 : vector<1x72xf32>
    %c0_29 = arith.constant 0 : index
    %c0_30 = arith.constant 0 : index
    %74 = vector.load %arg4[%c0_29, %c0_30] : memref<1x72xf32, #tpu.memory_space<vmem>>, vector<1x72xf32>
    %75 = vector.extract_strided_slice %5 {offsets = [8, 0], sizes = [1, 72], strides = [1, 1]} : vector<28x72xf32> to vector<1x72xf32>
    %76 = arith.addf %74, %75 : vector<1x72xf32>
    %77 = vector.extract_strided_slice %9 {offsets = [9, 0], sizes = [1, 72], strides = [1, 1]} : vector<28x72xf32> to vector<1x72xf32>
    %78 = arith.addf %76, %77 : vector<1x72xf32>
    %79 = vector.extract_strided_slice %13 {offsets = [10, 0], sizes = [1, 72], strides = [1, 1]} : vector<28x72xf32> to vector<1x72xf32>
    %80 = arith.addf %78, %79 : vector<1x72xf32>
    %81 = vector.extract_strided_slice %17 {offsets = [11, 0], sizes = [1, 72], strides = [1, 1]} : vector<28x72xf32> to vector<1x72xf32>
    %82 = arith.addf %80, %81 : vector<1x72xf32>
    %83 = vector.extract_strided_slice %21 {offsets = [12, 0], sizes = [1, 72], strides = [1, 1]} : vector<28x72xf32> to vector<1x72xf32>
    %84 = arith.addf %82, %83 : vector<1x72xf32>
    %cst_31 = arith.constant 0.000000e+00 : f32
    %85 = vector.broadcast %cst_31 : f32 to vector<1x72xf32>
    %86 = arith.maximumf %84, %85 : vector<1x72xf32>
    %c0_32 = arith.constant 0 : index
    %c0_33 = arith.constant 0 : index
    %87 = vector.load %arg4[%c0_32, %c0_33] : memref<1x72xf32, #tpu.memory_space<vmem>>, vector<1x72xf32>
    %88 = vector.extract_strided_slice %5 {offsets = [10, 0], sizes = [1, 72], strides = [1, 1]} : vector<28x72xf32> to vector<1x72xf32>
    %89 = arith.addf %87, %88 : vector<1x72xf32>
    %90 = vector.extract_strided_slice %9 {offsets = [11, 0], sizes = [1, 72], strides = [1, 1]} : vector<28x72xf32> to vector<1x72xf32>
    %91 = arith.addf %89, %90 : vector<1x72xf32>
    %92 = vector.extract_strided_slice %13 {offsets = [12, 0], sizes = [1, 72], strides = [1, 1]} : vector<28x72xf32> to vector<1x72xf32>
    %93 = arith.addf %91, %92 : vector<1x72xf32>
    %94 = vector.extract_strided_slice %17 {offsets = [13, 0], sizes = [1, 72], strides = [1, 1]} : vector<28x72xf32> to vector<1x72xf32>
    %95 = arith.addf %93, %94 : vector<1x72xf32>
    %96 = vector.extract_strided_slice %21 {offsets = [14, 0], sizes = [1, 72], strides = [1, 1]} : vector<28x72xf32> to vector<1x72xf32>
    %97 = arith.addf %95, %96 : vector<1x72xf32>
    %cst_34 = arith.constant 0.000000e+00 : f32
    %98 = vector.broadcast %cst_34 : f32 to vector<1x72xf32>
    %99 = arith.maximumf %97, %98 : vector<1x72xf32>
    %c0_35 = arith.constant 0 : index
    %c0_36 = arith.constant 0 : index
    %100 = vector.load %arg4[%c0_35, %c0_36] : memref<1x72xf32, #tpu.memory_space<vmem>>, vector<1x72xf32>
    %101 = vector.extract_strided_slice %5 {offsets = [12, 0], sizes = [1, 72], strides = [1, 1]} : vector<28x72xf32> to vector<1x72xf32>
    %102 = arith.addf %100, %101 : vector<1x72xf32>
    %103 = vector.extract_strided_slice %9 {offsets = [13, 0], sizes = [1, 72], strides = [1, 1]} : vector<28x72xf32> to vector<1x72xf32>
    %104 = arith.addf %102, %103 : vector<1x72xf32>
    %105 = vector.extract_strided_slice %13 {offsets = [14, 0], sizes = [1, 72], strides = [1, 1]} : vector<28x72xf32> to vector<1x72xf32>
    %106 = arith.addf %104, %105 : vector<1x72xf32>
    %107 = vector.extract_strided_slice %17 {offsets = [15, 0], sizes = [1, 72], strides = [1, 1]} : vector<28x72xf32> to vector<1x72xf32>
    %108 = arith.addf %106, %107 : vector<1x72xf32>
    %109 = vector.extract_strided_slice %21 {offsets = [16, 0], sizes = [1, 72], strides = [1, 1]} : vector<28x72xf32> to vector<1x72xf32>
    %110 = arith.addf %108, %109 : vector<1x72xf32>
    %cst_37 = arith.constant 0.000000e+00 : f32
    %111 = vector.broadcast %cst_37 : f32 to vector<1x72xf32>
    %112 = arith.maximumf %110, %111 : vector<1x72xf32>
    %c0_38 = arith.constant 0 : index
    %c0_39 = arith.constant 0 : index
    %113 = vector.load %arg4[%c0_38, %c0_39] : memref<1x72xf32, #tpu.memory_space<vmem>>, vector<1x72xf32>
    %114 = vector.extract_strided_slice %5 {offsets = [14, 0], sizes = [1, 72], strides = [1, 1]} : vector<28x72xf32> to vector<1x72xf32>
    %115 = arith.addf %113, %114 : vector<1x72xf32>
    %116 = vector.extract_strided_slice %9 {offsets = [15, 0], sizes = [1, 72], strides = [1, 1]} : vector<28x72xf32> to vector<1x72xf32>
    %117 = arith.addf %115, %116 : vector<1x72xf32>
    %118 = vector.extract_strided_slice %13 {offsets = [16, 0], sizes = [1, 72], strides = [1, 1]} : vector<28x72xf32> to vector<1x72xf32>
    %119 = arith.addf %117, %118 : vector<1x72xf32>
    %120 = vector.extract_strided_slice %17 {offsets = [17, 0], sizes = [1, 72], strides = [1, 1]} : vector<28x72xf32> to vector<1x72xf32>
    %121 = arith.addf %119, %120 : vector<1x72xf32>
    %122 = vector.extract_strided_slice %21 {offsets = [18, 0], sizes = [1, 72], strides = [1, 1]} : vector<28x72xf32> to vector<1x72xf32>
    %123 = arith.addf %121, %122 : vector<1x72xf32>
    %cst_40 = arith.constant 0.000000e+00 : f32
    %124 = vector.broadcast %cst_40 : f32 to vector<1x72xf32>
    %125 = arith.maximumf %123, %124 : vector<1x72xf32>
    %c0_41 = arith.constant 0 : index
    %c0_42 = arith.constant 0 : index
    %126 = vector.load %arg4[%c0_41, %c0_42] : memref<1x72xf32, #tpu.memory_space<vmem>>, vector<1x72xf32>
    %127 = vector.extract_strided_slice %5 {offsets = [16, 0], sizes = [1, 72], strides = [1, 1]} : vector<28x72xf32> to vector<1x72xf32>
    %128 = arith.addf %126, %127 : vector<1x72xf32>
    %129 = vector.extract_strided_slice %9 {offsets = [17, 0], sizes = [1, 72], strides = [1, 1]} : vector<28x72xf32> to vector<1x72xf32>
    %130 = arith.addf %128, %129 : vector<1x72xf32>
    %131 = vector.extract_strided_slice %13 {offsets = [18, 0], sizes = [1, 72], strides = [1, 1]} : vector<28x72xf32> to vector<1x72xf32>
    %132 = arith.addf %130, %131 : vector<1x72xf32>
    %133 = vector.extract_strided_slice %17 {offsets = [19, 0], sizes = [1, 72], strides = [1, 1]} : vector<28x72xf32> to vector<1x72xf32>
    %134 = arith.addf %132, %133 : vector<1x72xf32>
    %135 = vector.extract_strided_slice %21 {offsets = [20, 0], sizes = [1, 72], strides = [1, 1]} : vector<28x72xf32> to vector<1x72xf32>
    %136 = arith.addf %134, %135 : vector<1x72xf32>
    %cst_43 = arith.constant 0.000000e+00 : f32
    %137 = vector.broadcast %cst_43 : f32 to vector<1x72xf32>
    %138 = arith.maximumf %136, %137 : vector<1x72xf32>
    %c0_44 = arith.constant 0 : index
    %c0_45 = arith.constant 0 : index
    %139 = vector.load %arg4[%c0_44, %c0_45] : memref<1x72xf32, #tpu.memory_space<vmem>>, vector<1x72xf32>
    %140 = vector.extract_strided_slice %5 {offsets = [18, 0], sizes = [1, 72], strides = [1, 1]} : vector<28x72xf32> to vector<1x72xf32>
    %141 = arith.addf %139, %140 : vector<1x72xf32>
    %142 = vector.extract_strided_slice %9 {offsets = [19, 0], sizes = [1, 72], strides = [1, 1]} : vector<28x72xf32> to vector<1x72xf32>
    %143 = arith.addf %141, %142 : vector<1x72xf32>
    %144 = vector.extract_strided_slice %13 {offsets = [20, 0], sizes = [1, 72], strides = [1, 1]} : vector<28x72xf32> to vector<1x72xf32>
    %145 = arith.addf %143, %144 : vector<1x72xf32>
    %146 = vector.extract_strided_slice %17 {offsets = [21, 0], sizes = [1, 72], strides = [1, 1]} : vector<28x72xf32> to vector<1x72xf32>
    %147 = arith.addf %145, %146 : vector<1x72xf32>
    %148 = vector.extract_strided_slice %21 {offsets = [22, 0], sizes = [1, 72], strides = [1, 1]} : vector<28x72xf32> to vector<1x72xf32>
    %149 = arith.addf %147, %148 : vector<1x72xf32>
    %cst_46 = arith.constant 0.000000e+00 : f32
    %150 = vector.broadcast %cst_46 : f32 to vector<1x72xf32>
    %151 = arith.maximumf %149, %150 : vector<1x72xf32>
    %c0_47 = arith.constant 0 : index
    %c0_48 = arith.constant 0 : index
    %152 = vector.load %arg4[%c0_47, %c0_48] : memref<1x72xf32, #tpu.memory_space<vmem>>, vector<1x72xf32>
    %153 = vector.extract_strided_slice %5 {offsets = [20, 0], sizes = [1, 72], strides = [1, 1]} : vector<28x72xf32> to vector<1x72xf32>
    %154 = arith.addf %152, %153 : vector<1x72xf32>
    %155 = vector.extract_strided_slice %9 {offsets = [21, 0], sizes = [1, 72], strides = [1, 1]} : vector<28x72xf32> to vector<1x72xf32>
    %156 = arith.addf %154, %155 : vector<1x72xf32>
    %157 = vector.extract_strided_slice %13 {offsets = [22, 0], sizes = [1, 72], strides = [1, 1]} : vector<28x72xf32> to vector<1x72xf32>
    %158 = arith.addf %156, %157 : vector<1x72xf32>
    %159 = vector.extract_strided_slice %17 {offsets = [23, 0], sizes = [1, 72], strides = [1, 1]} : vector<28x72xf32> to vector<1x72xf32>
    %160 = arith.addf %158, %159 : vector<1x72xf32>
    %161 = vector.extract_strided_slice %21 {offsets = [24, 0], sizes = [1, 72], strides = [1, 1]} : vector<28x72xf32> to vector<1x72xf32>
    %162 = arith.addf %160, %161 : vector<1x72xf32>
    %cst_49 = arith.constant 0.000000e+00 : f32
    %163 = vector.broadcast %cst_49 : f32 to vector<1x72xf32>
    %164 = arith.maximumf %162, %163 : vector<1x72xf32>
    %c0_50 = arith.constant 0 : index
    %c0_51 = arith.constant 0 : index
    %165 = vector.load %arg4[%c0_50, %c0_51] : memref<1x72xf32, #tpu.memory_space<vmem>>, vector<1x72xf32>
    %166 = vector.extract_strided_slice %5 {offsets = [22, 0], sizes = [1, 72], strides = [1, 1]} : vector<28x72xf32> to vector<1x72xf32>
    %167 = arith.addf %165, %166 : vector<1x72xf32>
    %168 = vector.extract_strided_slice %9 {offsets = [23, 0], sizes = [1, 72], strides = [1, 1]} : vector<28x72xf32> to vector<1x72xf32>
    %169 = arith.addf %167, %168 : vector<1x72xf32>
    %170 = vector.extract_strided_slice %13 {offsets = [24, 0], sizes = [1, 72], strides = [1, 1]} : vector<28x72xf32> to vector<1x72xf32>
    %171 = arith.addf %169, %170 : vector<1x72xf32>
    %172 = vector.extract_strided_slice %17 {offsets = [25, 0], sizes = [1, 72], strides = [1, 1]} : vector<28x72xf32> to vector<1x72xf32>
    %173 = arith.addf %171, %172 : vector<1x72xf32>
    %174 = vector.extract_strided_slice %21 {offsets = [26, 0], sizes = [1, 72], strides = [1, 1]} : vector<28x72xf32> to vector<1x72xf32>
    %175 = arith.addf %173, %174 : vector<1x72xf32>
    %cst_52 = arith.constant 0.000000e+00 : f32
    %176 = vector.broadcast %cst_52 : f32 to vector<1x72xf32>
    %177 = arith.maximumf %175, %176 : vector<1x72xf32>
    %178 = tpu.concatenate %34, %47, %60, %73, %86, %99, %112, %125, %138, %151, %164, %177 in 0 : vector<1x72xf32>, vector<1x72xf32>, vector<1x72xf32>, vector<1x72xf32>, vector<1x72xf32>, vector<1x72xf32>, vector<1x72xf32>, vector<1x72xf32>, vector<1x72xf32>, vector<1x72xf32>, vector<1x72xf32>, vector<1x72xf32> -> vector<12x72xf32>
    %c0_53 = arith.constant 0 : index
    %c0_54 = arith.constant 0 : index
    %c0_55 = arith.constant 0 : index
    %179 = vector.load %arg5[%c0_53, %c0_54, %c0_55] : memref<5x72x128xbf16, #tpu.memory_space<vmem>>, vector<1x72x128xbf16>
    %180 = vector.shape_cast %179 : vector<1x72x128xbf16> to vector<72x128xbf16>
    %181 = arith.truncf %178 : vector<12x72xf32> to vector<12x72xbf16>
    %cst_56 = arith.constant dense<0.000000e+00> : vector<12x128xf32>
    %182 = tpu.matmul %181, %180, %cst_56 {dimension_numbers = #tpu.dot_dimension_numbers<[1], [0], [0], [1], [0, 0, 1, 1], [], []>} : vector<12x72xbf16>, vector<72x128xbf16>, vector<12x128xf32> -> vector<12x128xf32>
    %c1_57 = arith.constant 1 : index
    %c0_58 = arith.constant 0 : index
    %c0_59 = arith.constant 0 : index
    %183 = vector.load %arg5[%c1_57, %c0_58, %c0_59] : memref<5x72x128xbf16, #tpu.memory_space<vmem>>, vector<1x72x128xbf16>
    %184 = vector.shape_cast %183 : vector<1x72x128xbf16> to vector<72x128xbf16>
    %185 = arith.truncf %178 : vector<12x72xf32> to vector<12x72xbf16>
    %cst_60 = arith.constant dense<0.000000e+00> : vector<12x128xf32>
    %186 = tpu.matmul %185, %184, %cst_60 {dimension_numbers = #tpu.dot_dimension_numbers<[1], [0], [0], [1], [0, 0, 1, 1], [], []>} : vector<12x72xbf16>, vector<72x128xbf16>, vector<12x128xf32> -> vector<12x128xf32>
    %c2_61 = arith.constant 2 : index
    %c0_62 = arith.constant 0 : index
    %c0_63 = arith.constant 0 : index
    %187 = vector.load %arg5[%c2_61, %c0_62, %c0_63] : memref<5x72x128xbf16, #tpu.memory_space<vmem>>, vector<1x72x128xbf16>
    %188 = vector.shape_cast %187 : vector<1x72x128xbf16> to vector<72x128xbf16>
    %189 = arith.truncf %178 : vector<12x72xf32> to vector<12x72xbf16>
    %cst_64 = arith.constant dense<0.000000e+00> : vector<12x128xf32>
    %190 = tpu.matmul %189, %188, %cst_64 {dimension_numbers = #tpu.dot_dimension_numbers<[1], [0], [0], [1], [0, 0, 1, 1], [], []>} : vector<12x72xbf16>, vector<72x128xbf16>, vector<12x128xf32> -> vector<12x128xf32>
    %c3_65 = arith.constant 3 : index
    %c0_66 = arith.constant 0 : index
    %c0_67 = arith.constant 0 : index
    %191 = vector.load %arg5[%c3_65, %c0_66, %c0_67] : memref<5x72x128xbf16, #tpu.memory_space<vmem>>, vector<1x72x128xbf16>
    %192 = vector.shape_cast %191 : vector<1x72x128xbf16> to vector<72x128xbf16>
    %193 = arith.truncf %178 : vector<12x72xf32> to vector<12x72xbf16>
    %cst_68 = arith.constant dense<0.000000e+00> : vector<12x128xf32>
    %194 = tpu.matmul %193, %192, %cst_68 {dimension_numbers = #tpu.dot_dimension_numbers<[1], [0], [0], [1], [0, 0, 1, 1], [], []>} : vector<12x72xbf16>, vector<72x128xbf16>, vector<12x128xf32> -> vector<12x128xf32>
    %c4_69 = arith.constant 4 : index
    %c0_70 = arith.constant 0 : index
    %c0_71 = arith.constant 0 : index
    %195 = vector.load %arg5[%c4_69, %c0_70, %c0_71] : memref<5x72x128xbf16, #tpu.memory_space<vmem>>, vector<1x72x128xbf16>
    %196 = vector.shape_cast %195 : vector<1x72x128xbf16> to vector<72x128xbf16>
    %197 = arith.truncf %178 : vector<12x72xf32> to vector<12x72xbf16>
    %cst_72 = arith.constant dense<0.000000e+00> : vector<12x128xf32>
    %198 = tpu.matmul %197, %196, %cst_72 {dimension_numbers = #tpu.dot_dimension_numbers<[1], [0], [0], [1], [0, 0, 1, 1], [], []>} : vector<12x72xbf16>, vector<72x128xbf16>, vector<12x128xf32> -> vector<12x128xf32>
    %c0_73 = arith.constant 0 : index
    %c0_74 = arith.constant 0 : index
    %199 = vector.load %arg6[%c0_73, %c0_74] : memref<1x128xf32, #tpu.memory_space<vmem>>, vector<1x128xf32>
    %200 = vector.extract_strided_slice %182 {offsets = [0, 0], sizes = [8, 128], strides = [1, 1]} : vector<12x128xf32> to vector<8x128xf32>
    %201 = vector.broadcast %199 : vector<1x128xf32> to vector<8x128xf32>
    %202 = arith.addf %201, %200 : vector<8x128xf32>
    %203 = vector.extract_strided_slice %186 {offsets = [1, 0], sizes = [8, 128], strides = [1, 1]} : vector<12x128xf32> to vector<8x128xf32>
    %204 = arith.addf %202, %203 : vector<8x128xf32>
    %205 = vector.extract_strided_slice %190 {offsets = [2, 0], sizes = [8, 128], strides = [1, 1]} : vector<12x128xf32> to vector<8x128xf32>
    %206 = arith.addf %204, %205 : vector<8x128xf32>
    %207 = vector.extract_strided_slice %194 {offsets = [3, 0], sizes = [8, 128], strides = [1, 1]} : vector<12x128xf32> to vector<8x128xf32>
    %208 = arith.addf %206, %207 : vector<8x128xf32>
    %209 = vector.extract_strided_slice %198 {offsets = [4, 0], sizes = [8, 128], strides = [1, 1]} : vector<12x128xf32> to vector<8x128xf32>
    %210 = arith.addf %208, %209 : vector<8x128xf32>
    %cst_75 = arith.constant 0.000000e+00 : f32
    %211 = vector.broadcast %cst_75 : f32 to vector<8x128xf32>
    %212 = arith.maximumf %210, %211 : vector<8x128xf32>
    %c0_76 = arith.constant 0 : index
    %c0_77 = arith.constant 0 : index
    %c0_78 = arith.constant 0 : index
    %213 = vector.load %arg7[%c0_76, %c0_77, %c0_78] : memref<3x128x96xbf16, #tpu.memory_space<vmem>>, vector<1x128x96xbf16>
    %214 = vector.shape_cast %213 : vector<1x128x96xbf16> to vector<128x96xbf16>
    %215 = arith.truncf %212 : vector<8x128xf32> to vector<8x128xbf16>
    %cst_79 = arith.constant dense<0.000000e+00> : vector<8x96xf32>
    %216 = tpu.matmul %215, %214, %cst_79 {dimension_numbers = #tpu.dot_dimension_numbers<[1], [0], [0], [1], [0, 0, 1, 1], [], []>} : vector<8x128xbf16>, vector<128x96xbf16>, vector<8x96xf32> -> vector<8x96xf32>
    %c1_80 = arith.constant 1 : index
    %c0_81 = arith.constant 0 : index
    %c0_82 = arith.constant 0 : index
    %217 = vector.load %arg7[%c1_80, %c0_81, %c0_82] : memref<3x128x96xbf16, #tpu.memory_space<vmem>>, vector<1x128x96xbf16>
    %218 = vector.shape_cast %217 : vector<1x128x96xbf16> to vector<128x96xbf16>
    %219 = arith.truncf %212 : vector<8x128xf32> to vector<8x128xbf16>
    %cst_83 = arith.constant dense<0.000000e+00> : vector<8x96xf32>
    %220 = tpu.matmul %219, %218, %cst_83 {dimension_numbers = #tpu.dot_dimension_numbers<[1], [0], [0], [1], [0, 0, 1, 1], [], []>} : vector<8x128xbf16>, vector<128x96xbf16>, vector<8x96xf32> -> vector<8x96xf32>
    %c2_84 = arith.constant 2 : index
    %c0_85 = arith.constant 0 : index
    %c0_86 = arith.constant 0 : index
    %221 = vector.load %arg7[%c2_84, %c0_85, %c0_86] : memref<3x128x96xbf16, #tpu.memory_space<vmem>>, vector<1x128x96xbf16>
    %222 = vector.shape_cast %221 : vector<1x128x96xbf16> to vector<128x96xbf16>
    %223 = arith.truncf %212 : vector<8x128xf32> to vector<8x128xbf16>
    %cst_87 = arith.constant dense<0.000000e+00> : vector<8x96xf32>
    %224 = tpu.matmul %223, %222, %cst_87 {dimension_numbers = #tpu.dot_dimension_numbers<[1], [0], [0], [1], [0, 0, 1, 1], [], []>} : vector<8x128xbf16>, vector<128x96xbf16>, vector<8x96xf32> -> vector<8x96xf32>
    %c0_88 = arith.constant 0 : index
    %c0_89 = arith.constant 0 : index
    %225 = vector.load %arg8[%c0_88, %c0_89] : memref<1x96xf32, #tpu.memory_space<vmem>>, vector<1x96xf32>
    %226 = vector.extract_strided_slice %216 {offsets = [0, 0], sizes = [1, 96], strides = [1, 1]} : vector<8x96xf32> to vector<1x96xf32>
    %227 = arith.addf %225, %226 : vector<1x96xf32>
    %228 = vector.extract_strided_slice %220 {offsets = [1, 0], sizes = [1, 96], strides = [1, 1]} : vector<8x96xf32> to vector<1x96xf32>
    %229 = arith.addf %227, %228 : vector<1x96xf32>
    %230 = vector.extract_strided_slice %224 {offsets = [2, 0], sizes = [1, 96], strides = [1, 1]} : vector<8x96xf32> to vector<1x96xf32>
    %231 = arith.addf %229, %230 : vector<1x96xf32>
    %cst_90 = arith.constant 0.000000e+00 : f32
    %232 = vector.broadcast %cst_90 : f32 to vector<1x96xf32>
    %233 = arith.maximumf %231, %232 : vector<1x96xf32>
    %c0_91 = arith.constant 0 : index
    %c0_92 = arith.constant 0 : index
    %234 = vector.load %arg8[%c0_91, %c0_92] : memref<1x96xf32, #tpu.memory_space<vmem>>, vector<1x96xf32>
    %235 = vector.extract_strided_slice %216 {offsets = [2, 0], sizes = [1, 96], strides = [1, 1]} : vector<8x96xf32> to vector<1x96xf32>
    %236 = arith.addf %234, %235 : vector<1x96xf32>
    %237 = vector.extract_strided_slice %220 {offsets = [3, 0], sizes = [1, 96], strides = [1, 1]} : vector<8x96xf32> to vector<1x96xf32>
    %238 = arith.addf %236, %237 : vector<1x96xf32>
    %239 = vector.extract_strided_slice %224 {offsets = [4, 0], sizes = [1, 96], strides = [1, 1]} : vector<8x96xf32> to vector<1x96xf32>
    %240 = arith.addf %238, %239 : vector<1x96xf32>
    %cst_93 = arith.constant 0.000000e+00 : f32
    %241 = vector.broadcast %cst_93 : f32 to vector<1x96xf32>
    %242 = arith.maximumf %240, %241 : vector<1x96xf32>
    %c0_94 = arith.constant 0 : index
    %c0_95 = arith.constant 0 : index
    %243 = vector.load %arg8[%c0_94, %c0_95] : memref<1x96xf32, #tpu.memory_space<vmem>>, vector<1x96xf32>
    %244 = vector.extract_strided_slice %216 {offsets = [4, 0], sizes = [1, 96], strides = [1, 1]} : vector<8x96xf32> to vector<1x96xf32>
    %245 = arith.addf %243, %244 : vector<1x96xf32>
    %246 = vector.extract_strided_slice %220 {offsets = [5, 0], sizes = [1, 96], strides = [1, 1]} : vector<8x96xf32> to vector<1x96xf32>
    %247 = arith.addf %245, %246 : vector<1x96xf32>
    %248 = vector.extract_strided_slice %224 {offsets = [6, 0], sizes = [1, 96], strides = [1, 1]} : vector<8x96xf32> to vector<1x96xf32>
    %249 = arith.addf %247, %248 : vector<1x96xf32>
    %cst_96 = arith.constant 0.000000e+00 : f32
    %250 = vector.broadcast %cst_96 : f32 to vector<1x96xf32>
    %251 = arith.maximumf %249, %250 : vector<1x96xf32>
    %c0_97 = arith.constant 0 : index
    %c0_98 = arith.constant 0 : index
    %252 = vector.load %arg10[%c0_97, %c0_98] : memref<1x64xf32, #tpu.memory_space<vmem>>, vector<1x64xf32>
    %c0_99 = arith.constant 0 : index
    %c0_100 = arith.constant 0 : index
    %c0_101 = arith.constant 0 : index
    %253 = vector.load %arg9[%c0_99, %c0_100, %c0_101] : memref<3x96x64xbf16, #tpu.memory_space<vmem>>, vector<1x96x64xbf16>
    %254 = vector.shape_cast %253 : vector<1x96x64xbf16> to vector<96x64xbf16>
    %255 = arith.truncf %233 : vector<1x96xf32> to vector<1x96xbf16>
    %cst_102 = arith.constant dense<0.000000e+00> : vector<1x64xf32>
    %256 = tpu.matmul %255, %254, %cst_102 {dimension_numbers = #tpu.dot_dimension_numbers<[1], [0], [0], [1], [0, 0, 1, 1], [], []>} : vector<1x96xbf16>, vector<96x64xbf16>, vector<1x64xf32> -> vector<1x64xf32>
    %257 = arith.addf %252, %256 : vector<1x64xf32>
    %c1_103 = arith.constant 1 : index
    %c0_104 = arith.constant 0 : index
    %c0_105 = arith.constant 0 : index
    %258 = vector.load %arg9[%c1_103, %c0_104, %c0_105] : memref<3x96x64xbf16, #tpu.memory_space<vmem>>, vector<1x96x64xbf16>
    %259 = vector.shape_cast %258 : vector<1x96x64xbf16> to vector<96x64xbf16>
    %260 = arith.truncf %242 : vector<1x96xf32> to vector<1x96xbf16>
    %cst_106 = arith.constant dense<0.000000e+00> : vector<1x64xf32>
    %261 = tpu.matmul %260, %259, %cst_106 {dimension_numbers = #tpu.dot_dimension_numbers<[1], [0], [0], [1], [0, 0, 1, 1], [], []>} : vector<1x96xbf16>, vector<96x64xbf16>, vector<1x64xf32> -> vector<1x64xf32>
    %262 = arith.addf %257, %261 : vector<1x64xf32>
    %c2_107 = arith.constant 2 : index
    %c0_108 = arith.constant 0 : index
    %c0_109 = arith.constant 0 : index
    %263 = vector.load %arg9[%c2_107, %c0_108, %c0_109] : memref<3x96x64xbf16, #tpu.memory_space<vmem>>, vector<1x96x64xbf16>
    %264 = vector.shape_cast %263 : vector<1x96x64xbf16> to vector<96x64xbf16>
    %265 = arith.truncf %251 : vector<1x96xf32> to vector<1x96xbf16>
    %cst_110 = arith.constant dense<0.000000e+00> : vector<1x64xf32>
    %266 = tpu.matmul %265, %264, %cst_110 {dimension_numbers = #tpu.dot_dimension_numbers<[1], [0], [0], [1], [0, 0, 1, 1], [], []>} : vector<1x96xbf16>, vector<96x64xbf16>, vector<1x64xf32> -> vector<1x64xf32>
    %267 = arith.addf %262, %266 : vector<1x64xf32>
    %c0_111 = arith.constant 0 : index
    %c0_112 = arith.constant 0 : index
    %268 = vector.load %arg11[%c0_111, %c0_112] : memref<64x64xbf16, #tpu.memory_space<vmem>>, vector<64x64xbf16>
    %269 = arith.truncf %267 : vector<1x64xf32> to vector<1x64xbf16>
    %cst_113 = arith.constant dense<0.000000e+00> : vector<1x64xf32>
    %270 = tpu.matmul %269, %268, %cst_113 {dimension_numbers = #tpu.dot_dimension_numbers<[1], [0], [0], [1], [0, 0, 1, 1], [], []>} : vector<1x64xbf16>, vector<64x64xbf16>, vector<1x64xf32> -> vector<1x64xf32>
    %c0_114 = arith.constant 0 : index
    %c0_115 = arith.constant 0 : index
    %271 = vector.load %arg12[%c0_114, %c0_115] : memref<1x64xf32, #tpu.memory_space<vmem>>, vector<1x64xf32>
    %272 = arith.addf %270, %271 : vector<1x64xf32>
    %c0_116 = arith.constant 0 : index
    %c0_117 = arith.constant 0 : index
    %c0_118 = arith.constant 0 : index
    %273 = vector.load %arg24[%c0_116, %c0_117, %c0_118] : memref<1x1x64xf32, #tpu.memory_space<vmem>>, vector<1x1x64xf32>
    %274 = vector.shape_cast %273 : vector<1x1x64xf32> to vector<1x64xf32>
    %275 = vector.shape_cast %272 : vector<1x64xf32> to vector<1x1x64xf32>
    tpu.vector_store %arg24[%c0_116, %c0_117, %c0_118], %275 {strides = array<i32>} : memref<1x1x64xf32, #tpu.memory_space<vmem>>, vector<1x1x64xf32>,
    %276 = vector.extract_strided_slice %272 {offsets = [0, 0], sizes = [1, 32], strides = [1, 1]} : vector<1x64xf32> to vector<1x32xf32>
    %277 = vector.extract_strided_slice %272 {offsets = [0, 32], sizes = [1, 32], strides = [1, 1]} : vector<1x64xf32> to vector<1x32xf32>
    %c0_119 = arith.constant 0 : index
    %c0_120 = arith.constant 0 : index
    %c0_121 = arith.constant 0 : index
    %278 = vector.load %arg2[%c0_119, %c0_120, %c0_121] : memref<1x1x32xf32, #tpu.memory_space<vmem>>, vector<1x1x32xf32>
    %279 = vector.shape_cast %278 : vector<1x1x32xf32> to vector<1x32xf32>
    %cst_122 = arith.constant 5.000000e-01 : f32
    %280 = vector.broadcast %cst_122 : f32 to vector<1x32xf32>
    %281 = arith.mulf %277, %280 : vector<1x32xf32>
    %282 = math.exp %281 : vector<1x32xf32>
    %283 = arith.mulf %279, %282 : vector<1x32xf32>
    %284 = arith.addf %276, %283 : vector<1x32xf32>
    %c0_123 = arith.constant 0 : index
    %c0_124 = arith.constant 0 : index
    %285 = vector.load %arg13[%c0_123, %c0_124] : memref<32x64xbf16, #tpu.memory_space<vmem>>, vector<32x64xbf16>
    %286 = arith.truncf %284 : vector<1x32xf32> to vector<1x32xbf16>
    %cst_125 = arith.constant dense<0.000000e+00> : vector<1x64xf32>
    %287 = tpu.matmul %286, %285, %cst_125 {dimension_numbers = #tpu.dot_dimension_numbers<[1], [0], [0], [1], [0, 0, 1, 1], [], []>} : vector<1x32xbf16>, vector<32x64xbf16>, vector<1x64xf32> -> vector<1x64xf32>
    %c0_126 = arith.constant 0 : index
    %c0_127 = arith.constant 0 : index
    %288 = vector.load %arg14[%c0_126, %c0_127] : memref<1x64xf32, #tpu.memory_space<vmem>>, vector<1x64xf32>
    %289 = arith.addf %287, %288 : vector<1x64xf32>
    %c0_128 = arith.constant 0 : index
    %c0_129 = arith.constant 0 : index
    %c0_130 = arith.constant 0 : index
    %290 = vector.load %arg15[%c0_128, %c0_129, %c0_130] : memref<3x64x96xbf16, #tpu.memory_space<vmem>>, vector<1x64x96xbf16>
    %291 = vector.shape_cast %290 : vector<1x64x96xbf16> to vector<64x96xbf16>
    %292 = arith.truncf %289 : vector<1x64xf32> to vector<1x64xbf16>
    %cst_131 = arith.constant dense<0.000000e+00> : vector<1x96xf32>
    %293 = tpu.matmul %292, %291, %cst_131 {dimension_numbers = #tpu.dot_dimension_numbers<[1], [0], [0], [1], [0, 0, 1, 1], [], []>} : vector<1x64xbf16>, vector<64x96xbf16>, vector<1x96xf32> -> vector<1x96xf32>
    %c0_132 = arith.constant 0 : index
    %c0_133 = arith.constant 0 : index
    %294 = vector.load %arg16[%c0_132, %c0_133] : memref<1x96xf32, #tpu.memory_space<vmem>>, vector<1x96xf32>
    %295 = arith.addf %293, %294 : vector<1x96xf32>
    %cst_134 = arith.constant 0.000000e+00 : f32
    %296 = vector.broadcast %cst_134 : f32 to vector<1x96xf32>
    %297 = arith.maximumf %295, %296 : vector<1x96xf32>
    %c1_135 = arith.constant 1 : index
    %c0_136 = arith.constant 0 : index
    %c0_137 = arith.constant 0 : index
    %298 = vector.load %arg15[%c1_135, %c0_136, %c0_137] : memref<3x64x96xbf16, #tpu.memory_space<vmem>>, vector<1x64x96xbf16>
    %299 = vector.shape_cast %298 : vector<1x64x96xbf16> to vector<64x96xbf16>
    %300 = arith.truncf %289 : vector<1x64xf32> to vector<1x64xbf16>
    %cst_138 = arith.constant dense<0.000000e+00> : vector<1x96xf32>
    %301 = tpu.matmul %300, %299, %cst_138 {dimension_numbers = #tpu.dot_dimension_numbers<[1], [0], [0], [1], [0, 0, 1, 1], [], []>} : vector<1x64xbf16>, vector<64x96xbf16>, vector<1x96xf32> -> vector<1x96xf32>
    %c0_139 = arith.constant 0 : index
    %c0_140 = arith.constant 0 : index
    %302 = vector.load %arg16[%c0_139, %c0_140] : memref<1x96xf32, #tpu.memory_space<vmem>>, vector<1x96xf32>
    %303 = arith.addf %301, %302 : vector<1x96xf32>
    %cst_141 = arith.constant 0.000000e+00 : f32
    %304 = vector.broadcast %cst_141 : f32 to vector<1x96xf32>
    %305 = arith.maximumf %303, %304 : vector<1x96xf32>
    %c2_142 = arith.constant 2 : index
    %c0_143 = arith.constant 0 : index
    %c0_144 = arith.constant 0 : index
    %306 = vector.load %arg15[%c2_142, %c0_143, %c0_144] : memref<3x64x96xbf16, #tpu.memory_space<vmem>>, vector<1x64x96xbf16>
    %307 = vector.shape_cast %306 : vector<1x64x96xbf16> to vector<64x96xbf16>
    %308 = arith.truncf %289 : vector<1x64xf32> to vector<1x64xbf16>
    %cst_145 = arith.constant dense<0.000000e+00> : vector<1x96xf32>
    %309 = tpu.matmul %308, %307, %cst_145 {dimension_numbers = #tpu.dot_dimension_numbers<[1], [0], [0], [1], [0, 0, 1, 1], [], []>} : vector<1x64xbf16>, vector<64x96xbf16>, vector<1x96xf32> -> vector<1x96xf32>
    %c0_146 = arith.constant 0 : index
    %c0_147 = arith.constant 0 : index
    %310 = vector.load %arg16[%c0_146, %c0_147] : memref<1x96xf32, #tpu.memory_space<vmem>>, vector<1x96xf32>
    %311 = arith.addf %309, %310 : vector<1x96xf32>
    %cst_148 = arith.constant 0.000000e+00 : f32
    %312 = vector.broadcast %cst_148 : f32 to vector<1x96xf32>
    %313 = arith.maximumf %311, %312 : vector<1x96xf32>
    %314 = tpu.concatenate %297, %305, %313 in 0 : vector<1x96xf32>, vector<1x96xf32>, vector<1x96xf32> -> vector<3x96xf32>
    %c0_149 = arith.constant 0 : index
    %c0_150 = arith.constant 0 : index
    %c0_151 = arith.constant 0 : index
    %315 = vector.load %arg17[%c0_149, %c0_150, %c0_151] : memref<5x96x128xbf16, #tpu.memory_space<vmem>>, vector<1x96x128xbf16>
    %316 = vector.shape_cast %315 : vector<1x96x128xbf16> to vector<96x128xbf16>
    %317 = arith.truncf %314 : vector<3x96xf32> to vector<3x96xbf16>
    %cst_152 = arith.constant dense<0.000000e+00> : vector<3x128xf32>
    %318 = tpu.matmul %317, %316, %cst_152 {dimension_numbers = #tpu.dot_dimension_numbers<[1], [0], [0], [1], [0, 0, 1, 1], [], []>} : vector<3x96xbf16>, vector<96x128xbf16>, vector<3x128xf32> -> vector<3x128xf32>
    %c1_153 = arith.constant 1 : index
    %c0_154 = arith.constant 0 : index
    %c0_155 = arith.constant 0 : index
    %319 = vector.load %arg17[%c1_153, %c0_154, %c0_155] : memref<5x96x128xbf16, #tpu.memory_space<vmem>>, vector<1x96x128xbf16>
    %320 = vector.shape_cast %319 : vector<1x96x128xbf16> to vector<96x128xbf16>
    %321 = arith.truncf %314 : vector<3x96xf32> to vector<3x96xbf16>
    %cst_156 = arith.constant dense<0.000000e+00> : vector<3x128xf32>
    %322 = tpu.matmul %321, %320, %cst_156 {dimension_numbers = #tpu.dot_dimension_numbers<[1], [0], [0], [1], [0, 0, 1, 1], [], []>} : vector<3x96xbf16>, vector<96x128xbf16>, vector<3x128xf32> -> vector<3x128xf32>
    %c2_157 = arith.constant 2 : index
    %c0_158 = arith.constant 0 : index
    %c0_159 = arith.constant 0 : index
    %323 = vector.load %arg17[%c2_157, %c0_158, %c0_159] : memref<5x96x128xbf16, #tpu.memory_space<vmem>>, vector<1x96x128xbf16>
    %324 = vector.shape_cast %323 : vector<1x96x128xbf16> to vector<96x128xbf16>
    %325 = arith.truncf %314 : vector<3x96xf32> to vector<3x96xbf16>
    %cst_160 = arith.constant dense<0.000000e+00> : vector<3x128xf32>
    %326 = tpu.matmul %325, %324, %cst_160 {dimension_numbers = #tpu.dot_dimension_numbers<[1], [0], [0], [1], [0, 0, 1, 1], [], []>} : vector<3x96xbf16>, vector<96x128xbf16>, vector<3x128xf32> -> vector<3x128xf32>
    %c3_161 = arith.constant 3 : index
    %c0_162 = arith.constant 0 : index
    %c0_163 = arith.constant 0 : index
    %327 = vector.load %arg17[%c3_161, %c0_162, %c0_163] : memref<5x96x128xbf16, #tpu.memory_space<vmem>>, vector<1x96x128xbf16>
    %328 = vector.shape_cast %327 : vector<1x96x128xbf16> to vector<96x128xbf16>
    %329 = arith.truncf %314 : vector<3x96xf32> to vector<3x96xbf16>
    %cst_164 = arith.constant dense<0.000000e+00> : vector<3x128xf32>
    %330 = tpu.matmul %329, %328, %cst_164 {dimension_numbers = #tpu.dot_dimension_numbers<[1], [0], [0], [1], [0, 0, 1, 1], [], []>} : vector<3x96xbf16>, vector<96x128xbf16>, vector<3x128xf32> -> vector<3x128xf32>
    %c4_165 = arith.constant 4 : index
    %c0_166 = arith.constant 0 : index
    %c0_167 = arith.constant 0 : index
    %331 = vector.load %arg17[%c4_165, %c0_166, %c0_167] : memref<5x96x128xbf16, #tpu.memory_space<vmem>>, vector<1x96x128xbf16>
    %332 = vector.shape_cast %331 : vector<1x96x128xbf16> to vector<96x128xbf16>
    %333 = arith.truncf %314 : vector<3x96xf32> to vector<3x96xbf16>
    %cst_168 = arith.constant dense<0.000000e+00> : vector<3x128xf32>
    %334 = tpu.matmul %333, %332, %cst_168 {dimension_numbers = #tpu.dot_dimension_numbers<[1], [0], [0], [1], [0, 0, 1, 1], [], []>} : vector<3x96xbf16>, vector<96x128xbf16>, vector<3x128xf32> -> vector<3x128xf32>
    %c0_169 = arith.constant 0 : index
    %c0_170 = arith.constant 0 : index
    %335 = vector.load %arg18[%c0_169, %c0_170] : memref<1x128xf32, #tpu.memory_space<vmem>>, vector<1x128xf32>
    %336 = vector.extract_strided_slice %322 {offsets = [0, 0], sizes = [1, 128], strides = [1, 1]} : vector<3x128xf32> to vector<1x128xf32>
    %337 = arith.addf %335, %336 : vector<1x128xf32>
    %cst_171 = arith.constant 0.000000e+00 : f32
    %338 = vector.broadcast %cst_171 : f32 to vector<1x128xf32>
    %339 = arith.maximumf %337, %338 : vector<1x128xf32>
    %c0_172 = arith.constant 0 : index
    %c0_173 = arith.constant 0 : index
    %340 = vector.load %arg18[%c0_172, %c0_173] : memref<1x128xf32, #tpu.memory_space<vmem>>, vector<1x128xf32>
    %341 = vector.extract_strided_slice %326 {offsets = [0, 0], sizes = [1, 128], strides = [1, 1]} : vector<3x128xf32> to vector<1x128xf32>
    %342 = arith.addf %340, %341 : vector<1x128xf32>
    %343 = vector.extract_strided_slice %318 {offsets = [1, 0], sizes = [1, 128], strides = [1, 1]} : vector<3x128xf32> to vector<1x128xf32>
    %344 = arith.addf %342, %343 : vector<1x128xf32>
    %cst_174 = arith.constant 0.000000e+00 : f32
    %345 = vector.broadcast %cst_174 : f32 to vector<1x128xf32>
    %346 = arith.maximumf %344, %345 : vector<1x128xf32>
    %c0_175 = arith.constant 0 : index
    %c0_176 = arith.constant 0 : index
    %347 = vector.load %arg18[%c0_175, %c0_176] : memref<1x128xf32, #tpu.memory_space<vmem>>, vector<1x128xf32>
    %348 = vector.extract_strided_slice %330 {offsets = [0, 0], sizes = [1, 128], strides = [1, 1]} : vector<3x128xf32> to vector<1x128xf32>
    %349 = arith.addf %347, %348 : vector<1x128xf32>
    %350 = vector.extract_strided_slice %322 {offsets = [1, 0], sizes = [1, 128], strides = [1, 1]} : vector<3x128xf32> to vector<1x128xf32>
    %351 = arith.addf %349, %350 : vector<1x128xf32>
    %cst_177 = arith.constant 0.000000e+00 : f32
    %352 = vector.broadcast %cst_177 : f32 to vector<1x128xf32>
    %353 = arith.maximumf %351, %352 : vector<1x128xf32>
    %c0_178 = arith.constant 0 : index
    %c0_179 = arith.constant 0 : index
    %354 = vector.load %arg18[%c0_178, %c0_179] : memref<1x128xf32, #tpu.memory_space<vmem>>, vector<1x128xf32>
    %355 = vector.extract_strided_slice %334 {offsets = [0, 0], sizes = [1, 128], strides = [1, 1]} : vector<3x128xf32> to vector<1x128xf32>
    %356 = arith.addf %354, %355 : vector<1x128xf32>
    %357 = vector.extract_strided_slice %326 {offsets = [1, 0], sizes = [1, 128], strides = [1, 1]} : vector<3x128xf32> to vector<1x128xf32>
    %358 = arith.addf %356, %357 : vector<1x128xf32>
    %359 = vector.extract_strided_slice %318 {offsets = [2, 0], sizes = [1, 128], strides = [1, 1]} : vector<3x128xf32> to vector<1x128xf32>
    %360 = arith.addf %358, %359 : vector<1x128xf32>
    %cst_180 = arith.constant 0.000000e+00 : f32
    %361 = vector.broadcast %cst_180 : f32 to vector<1x128xf32>
    %362 = arith.maximumf %360, %361 : vector<1x128xf32>
    %c0_181 = arith.constant 0 : index
    %c0_182 = arith.constant 0 : index
    %363 = vector.load %arg18[%c0_181, %c0_182] : memref<1x128xf32, #tpu.memory_space<vmem>>, vector<1x128xf32>
    %364 = vector.extract_strided_slice %330 {offsets = [1, 0], sizes = [1, 128], strides = [1, 1]} : vector<3x128xf32> to vector<1x128xf32>
    %365 = arith.addf %363, %364 : vector<1x128xf32>
    %366 = vector.extract_strided_slice %322 {offsets = [2, 0], sizes = [1, 128], strides = [1, 1]} : vector<3x128xf32> to vector<1x128xf32>
    %367 = arith.addf %365, %366 : vector<1x128xf32>
    %cst_183 = arith.constant 0.000000e+00 : f32
    %368 = vector.broadcast %cst_183 : f32 to vector<1x128xf32>
    %369 = arith.maximumf %367, %368 : vector<1x128xf32>
    %c0_184 = arith.constant 0 : index
    %c0_185 = arith.constant 0 : index
    %370 = vector.load %arg18[%c0_184, %c0_185] : memref<1x128xf32, #tpu.memory_space<vmem>>, vector<1x128xf32>
    %371 = vector.extract_strided_slice %334 {offsets = [1, 0], sizes = [1, 128], strides = [1, 1]} : vector<3x128xf32> to vector<1x128xf32>
    %372 = arith.addf %370, %371 : vector<1x128xf32>
    %373 = vector.extract_strided_slice %326 {offsets = [2, 0], sizes = [1, 128], strides = [1, 1]} : vector<3x128xf32> to vector<1x128xf32>
    %374 = arith.addf %372, %373 : vector<1x128xf32>
    %cst_186 = arith.constant 0.000000e+00 : f32
    %375 = vector.broadcast %cst_186 : f32 to vector<1x128xf32>
    %376 = arith.maximumf %374, %375 : vector<1x128xf32>
    %c0_187 = arith.constant 0 : index
    %c0_188 = arith.constant 0 : index
    %377 = vector.load %arg18[%c0_187, %c0_188] : memref<1x128xf32, #tpu.memory_space<vmem>>, vector<1x128xf32>
    %378 = vector.extract_strided_slice %330 {offsets = [2, 0], sizes = [1, 128], strides = [1, 1]} : vector<3x128xf32> to vector<1x128xf32>
    %379 = arith.addf %377, %378 : vector<1x128xf32>
    %cst_189 = arith.constant 0.000000e+00 : f32
    %380 = vector.broadcast %cst_189 : f32 to vector<1x128xf32>
    %381 = arith.maximumf %379, %380 : vector<1x128xf32>
    %c0_190 = arith.constant 0 : index
    %c0_191 = arith.constant 0 : index
    %382 = vector.load %arg18[%c0_190, %c0_191] : memref<1x128xf32, #tpu.memory_space<vmem>>, vector<1x128xf32>
    %383 = vector.extract_strided_slice %334 {offsets = [2, 0], sizes = [1, 128], strides = [1, 1]} : vector<3x128xf32> to vector<1x128xf32>
    %384 = arith.addf %382, %383 : vector<1x128xf32>
    %cst_192 = arith.constant 0.000000e+00 : f32
    %385 = vector.broadcast %cst_192 : f32 to vector<1x128xf32>
    %386 = arith.maximumf %384, %385 : vector<1x128xf32>
    %387 = tpu.concatenate %339, %346, %353, %362, %369, %376, %381, %386 in 0 : vector<1x128xf32>, vector<1x128xf32>, vector<1x128xf32>, vector<1x128xf32>, vector<1x128xf32>, vector<1x128xf32>, vector<1x128xf32>, vector<1x128xf32> -> vector<8x128xf32>
    %c0_193 = arith.constant 0 : index
    %c0_194 = arith.constant 0 : index
    %c0_195 = arith.constant 0 : index
    %388 = vector.load %arg19[%c0_193, %c0_194, %c0_195] : memref<5x128x72xbf16, #tpu.memory_space<vmem>>, vector<1x128x72xbf16>
    %389 = vector.shape_cast %388 : vector<1x128x72xbf16> to vector<128x72xbf16>
    %390 = arith.truncf %387 : vector<8x128xf32> to vector<8x128xbf16>
    %cst_196 = arith.constant dense<0.000000e+00> : vector<8x72xf32>
    %391 = tpu.matmul %390, %389, %cst_196 {dimension_numbers = #tpu.dot_dimension_numbers<[1], [0], [0], [1], [0, 0, 1, 1], [], []>} : vector<8x128xbf16>, vector<128x72xbf16>, vector<8x72xf32> -> vector<8x72xf32>
    %c1_197 = arith.constant 1 : index
    %c0_198 = arith.constant 0 : index
    %c0_199 = arith.constant 0 : index
    %392 = vector.load %arg19[%c1_197, %c0_198, %c0_199] : memref<5x128x72xbf16, #tpu.memory_space<vmem>>, vector<1x128x72xbf16>
    %393 = vector.shape_cast %392 : vector<1x128x72xbf16> to vector<128x72xbf16>
    %394 = arith.truncf %387 : vector<8x128xf32> to vector<8x128xbf16>
    %cst_200 = arith.constant dense<0.000000e+00> : vector<8x72xf32>
    %395 = tpu.matmul %394, %393, %cst_200 {dimension_numbers = #tpu.dot_dimension_numbers<[1], [0], [0], [1], [0, 0, 1, 1], [], []>} : vector<8x128xbf16>, vector<128x72xbf16>, vector<8x72xf32> -> vector<8x72xf32>
    %c2_201 = arith.constant 2 : index
    %c0_202 = arith.constant 0 : index
    %c0_203 = arith.constant 0 : index
    %396 = vector.load %arg19[%c2_201, %c0_202, %c0_203] : memref<5x128x72xbf16, #tpu.memory_space<vmem>>, vector<1x128x72xbf16>
    %397 = vector.shape_cast %396 : vector<1x128x72xbf16> to vector<128x72xbf16>
    %398 = arith.truncf %387 : vector<8x128xf32> to vector<8x128xbf16>
    %cst_204 = arith.constant dense<0.000000e+00> : vector<8x72xf32>
    %399 = tpu.matmul %398, %397, %cst_204 {dimension_numbers = #tpu.dot_dimension_numbers<[1], [0], [0], [1], [0, 0, 1, 1], [], []>} : vector<8x128xbf16>, vector<128x72xbf16>, vector<8x72xf32> -> vector<8x72xf32>
    %c3_205 = arith.constant 3 : index
    %c0_206 = arith.constant 0 : index
    %c0_207 = arith.constant 0 : index
    %400 = vector.load %arg19[%c3_205, %c0_206, %c0_207] : memref<5x128x72xbf16, #tpu.memory_space<vmem>>, vector<1x128x72xbf16>
    %401 = vector.shape_cast %400 : vector<1x128x72xbf16> to vector<128x72xbf16>
    %402 = arith.truncf %387 : vector<8x128xf32> to vector<8x128xbf16>
    %cst_208 = arith.constant dense<0.000000e+00> : vector<8x72xf32>
    %403 = tpu.matmul %402, %401, %cst_208 {dimension_numbers = #tpu.dot_dimension_numbers<[1], [0], [0], [1], [0, 0, 1, 1], [], []>} : vector<8x128xbf16>, vector<128x72xbf16>, vector<8x72xf32> -> vector<8x72xf32>
    %c4_209 = arith.constant 4 : index
    %c0_210 = arith.constant 0 : index
    %c0_211 = arith.constant 0 : index
    %404 = vector.load %arg19[%c4_209, %c0_210, %c0_211] : memref<5x128x72xbf16, #tpu.memory_space<vmem>>, vector<1x128x72xbf16>
    %405 = vector.shape_cast %404 : vector<1x128x72xbf16> to vector<128x72xbf16>
    %406 = arith.truncf %387 : vector<8x128xf32> to vector<8x128xbf16>
    %cst_212 = arith.constant dense<0.000000e+00> : vector<8x72xf32>
    %407 = tpu.matmul %406, %405, %cst_212 {dimension_numbers = #tpu.dot_dimension_numbers<[1], [0], [0], [1], [0, 0, 1, 1], [], []>} : vector<8x128xbf16>, vector<128x72xbf16>, vector<8x72xf32> -> vector<8x72xf32>
    %c0_213 = arith.constant 0 : index
    %c0_214 = arith.constant 0 : index
    %408 = vector.load %arg20[%c0_213, %c0_214] : memref<1x72xf32, #tpu.memory_space<vmem>>, vector<1x72xf32>
    %409 = vector.extract_strided_slice %391 {offsets = [0, 0], sizes = [1, 72], strides = [1, 1]} : vector<8x72xf32> to vector<1x72xf32>
    %410 = arith.addf %408, %409 : vector<1x72xf32>
    %cst_215 = arith.constant 0.000000e+00 : f32
    %411 = vector.broadcast %cst_215 : f32 to vector<1x72xf32>
    %412 = arith.maximumf %410, %411 : vector<1x72xf32>
    %c0_216 = arith.constant 0 : index
    %c0_217 = arith.constant 0 : index
    %413 = vector.load %arg20[%c0_216, %c0_217] : memref<1x72xf32, #tpu.memory_space<vmem>>, vector<1x72xf32>
    %414 = vector.extract_strided_slice %391 {offsets = [1, 0], sizes = [1, 72], strides = [1, 1]} : vector<8x72xf32> to vector<1x72xf32>
    %415 = arith.addf %413, %414 : vector<1x72xf32>
    %416 = vector.extract_strided_slice %395 {offsets = [0, 0], sizes = [1, 72], strides = [1, 1]} : vector<8x72xf32> to vector<1x72xf32>
    %417 = arith.addf %415, %416 : vector<1x72xf32>
    %cst_218 = arith.constant 0.000000e+00 : f32
    %418 = vector.broadcast %cst_218 : f32 to vector<1x72xf32>
    %419 = arith.maximumf %417, %418 : vector<1x72xf32>
    %c0_219 = arith.constant 0 : index
    %c0_220 = arith.constant 0 : index
    %420 = vector.load %arg20[%c0_219, %c0_220] : memref<1x72xf32, #tpu.memory_space<vmem>>, vector<1x72xf32>
    %421 = vector.extract_strided_slice %391 {offsets = [2, 0], sizes = [1, 72], strides = [1, 1]} : vector<8x72xf32> to vector<1x72xf32>
    %422 = arith.addf %420, %421 : vector<1x72xf32>
    %423 = vector.extract_strided_slice %395 {offsets = [1, 0], sizes = [1, 72], strides = [1, 1]} : vector<8x72xf32> to vector<1x72xf32>
    %424 = arith.addf %422, %423 : vector<1x72xf32>
    %425 = vector.extract_strided_slice %399 {offsets = [0, 0], sizes = [1, 72], strides = [1, 1]} : vector<8x72xf32> to vector<1x72xf32>
    %426 = arith.addf %424, %425 : vector<1x72xf32>
    %cst_221 = arith.constant 0.000000e+00 : f32
    %427 = vector.broadcast %cst_221 : f32 to vector<1x72xf32>
    %428 = arith.maximumf %426, %427 : vector<1x72xf32>
    %c0_222 = arith.constant 0 : index
    %c0_223 = arith.constant 0 : index
    %429 = vector.load %arg20[%c0_222, %c0_223] : memref<1x72xf32, #tpu.memory_space<vmem>>, vector<1x72xf32>
    %430 = vector.extract_strided_slice %391 {offsets = [3, 0], sizes = [1, 72], strides = [1, 1]} : vector<8x72xf32> to vector<1x72xf32>
    %431 = arith.addf %429, %430 : vector<1x72xf32>
    %432 = vector.extract_strided_slice %395 {offsets = [2, 0], sizes = [1, 72], strides = [1, 1]} : vector<8x72xf32> to vector<1x72xf32>
    %433 = arith.addf %431, %432 : vector<1x72xf32>
    %434 = vector.extract_strided_slice %399 {offsets = [1, 0], sizes = [1, 72], strides = [1, 1]} : vector<8x72xf32> to vector<1x72xf32>
    %435 = arith.addf %433, %434 : vector<1x72xf32>
    %436 = vector.extract_strided_slice %403 {offsets = [0, 0], sizes = [1, 72], strides = [1, 1]} : vector<8x72xf32> to vector<1x72xf32>
    %437 = arith.addf %435, %436 : vector<1x72xf32>
    %cst_224 = arith.constant 0.000000e+00 : f32
    %438 = vector.broadcast %cst_224 : f32 to vector<1x72xf32>
    %439 = arith.maximumf %437, %438 : vector<1x72xf32>
    %c0_225 = arith.constant 0 : index
    %c0_226 = arith.constant 0 : index
    %440 = vector.load %arg20[%c0_225, %c0_226] : memref<1x72xf32, #tpu.memory_space<vmem>>, vector<1x72xf32>
    %441 = vector.extract_strided_slice %391 {offsets = [4, 0], sizes = [1, 72], strides = [1, 1]} : vector<8x72xf32> to vector<1x72xf32>
    %442 = arith.addf %440, %441 : vector<1x72xf32>
    %443 = vector.extract_strided_slice %395 {offsets = [3, 0], sizes = [1, 72], strides = [1, 1]} : vector<8x72xf32> to vector<1x72xf32>
    %444 = arith.addf %442, %443 : vector<1x72xf32>
    %445 = vector.extract_strided_slice %399 {offsets = [2, 0], sizes = [1, 72], strides = [1, 1]} : vector<8x72xf32> to vector<1x72xf32>
    %446 = arith.addf %444, %445 : vector<1x72xf32>
    %447 = vector.extract_strided_slice %403 {offsets = [1, 0], sizes = [1, 72], strides = [1, 1]} : vector<8x72xf32> to vector<1x72xf32>
    %448 = arith.addf %446, %447 : vector<1x72xf32>
    %449 = vector.extract_strided_slice %407 {offsets = [0, 0], sizes = [1, 72], strides = [1, 1]} : vector<8x72xf32> to vector<1x72xf32>
    %450 = arith.addf %448, %449 : vector<1x72xf32>
    %cst_227 = arith.constant 0.000000e+00 : f32
    %451 = vector.broadcast %cst_227 : f32 to vector<1x72xf32>
    %452 = arith.maximumf %450, %451 : vector<1x72xf32>
    %c0_228 = arith.constant 0 : index
    %c0_229 = arith.constant 0 : index
    %453 = vector.load %arg20[%c0_228, %c0_229] : memref<1x72xf32, #tpu.memory_space<vmem>>, vector<1x72xf32>
    %454 = vector.extract_strided_slice %391 {offsets = [5, 0], sizes = [1, 72], strides = [1, 1]} : vector<8x72xf32> to vector<1x72xf32>
    %455 = arith.addf %453, %454 : vector<1x72xf32>
    %456 = vector.extract_strided_slice %395 {offsets = [4, 0], sizes = [1, 72], strides = [1, 1]} : vector<8x72xf32> to vector<1x72xf32>
    %457 = arith.addf %455, %456 : vector<1x72xf32>
    %458 = vector.extract_strided_slice %399 {offsets = [3, 0], sizes = [1, 72], strides = [1, 1]} : vector<8x72xf32> to vector<1x72xf32>
    %459 = arith.addf %457, %458 : vector<1x72xf32>
    %460 = vector.extract_strided_slice %403 {offsets = [2, 0], sizes = [1, 72], strides = [1, 1]} : vector<8x72xf32> to vector<1x72xf32>
    %461 = arith.addf %459, %460 : vector<1x72xf32>
    %462 = vector.extract_strided_slice %407 {offsets = [1, 0], sizes = [1, 72], strides = [1, 1]} : vector<8x72xf32> to vector<1x72xf32>
    %463 = arith.addf %461, %462 : vector<1x72xf32>
    %cst_230 = arith.constant 0.000000e+00 : f32
    %464 = vector.broadcast %cst_230 : f32 to vector<1x72xf32>
    %465 = arith.maximumf %463, %464 : vector<1x72xf32>
    %c0_231 = arith.constant 0 : index
    %c0_232 = arith.constant 0 : index
    %466 = vector.load %arg20[%c0_231, %c0_232] : memref<1x72xf32, #tpu.memory_space<vmem>>, vector<1x72xf32>
    %467 = vector.extract_strided_slice %391 {offsets = [6, 0], sizes = [1, 72], strides = [1, 1]} : vector<8x72xf32> to vector<1x72xf32>
    %468 = arith.addf %466, %467 : vector<1x72xf32>
    %469 = vector.extract_strided_slice %395 {offsets = [5, 0], sizes = [1, 72], strides = [1, 1]} : vector<8x72xf32> to vector<1x72xf32>
    %470 = arith.addf %468, %469 : vector<1x72xf32>
    %471 = vector.extract_strided_slice %399 {offsets = [4, 0], sizes = [1, 72], strides = [1, 1]} : vector<8x72xf32> to vector<1x72xf32>
    %472 = arith.addf %470, %471 : vector<1x72xf32>
    %473 = vector.extract_strided_slice %403 {offsets = [3, 0], sizes = [1, 72], strides = [1, 1]} : vector<8x72xf32> to vector<1x72xf32>
    %474 = arith.addf %472, %473 : vector<1x72xf32>
    %475 = vector.extract_strided_slice %407 {offsets = [2, 0], sizes = [1, 72], strides = [1, 1]} : vector<8x72xf32> to vector<1x72xf32>
    %476 = arith.addf %474, %475 : vector<1x72xf32>
    %cst_233 = arith.constant 0.000000e+00 : f32
    %477 = vector.broadcast %cst_233 : f32 to vector<1x72xf32>
    %478 = arith.maximumf %476, %477 : vector<1x72xf32>
    %c0_234 = arith.constant 0 : index
    %c0_235 = arith.constant 0 : index
    %479 = vector.load %arg20[%c0_234, %c0_235] : memref<1x72xf32, #tpu.memory_space<vmem>>, vector<1x72xf32>
    %480 = vector.extract_strided_slice %391 {offsets = [7, 0], sizes = [1, 72], strides = [1, 1]} : vector<8x72xf32> to vector<1x72xf32>
    %481 = arith.addf %479, %480 : vector<1x72xf32>
    %482 = vector.extract_strided_slice %395 {offsets = [6, 0], sizes = [1, 72], strides = [1, 1]} : vector<8x72xf32> to vector<1x72xf32>
    %483 = arith.addf %481, %482 : vector<1x72xf32>
    %484 = vector.extract_strided_slice %399 {offsets = [5, 0], sizes = [1, 72], strides = [1, 1]} : vector<8x72xf32> to vector<1x72xf32>
    %485 = arith.addf %483, %484 : vector<1x72xf32>
    %486 = vector.extract_strided_slice %403 {offsets = [4, 0], sizes = [1, 72], strides = [1, 1]} : vector<8x72xf32> to vector<1x72xf32>
    %487 = arith.addf %485, %486 : vector<1x72xf32>
    %488 = vector.extract_strided_slice %407 {offsets = [3, 0], sizes = [1, 72], strides = [1, 1]} : vector<8x72xf32> to vector<1x72xf32>
    %489 = arith.addf %487, %488 : vector<1x72xf32>
    %cst_236 = arith.constant 0.000000e+00 : f32
    %490 = vector.broadcast %cst_236 : f32 to vector<1x72xf32>
    %491 = arith.maximumf %489, %490 : vector<1x72xf32>
    %c0_237 = arith.constant 0 : index
    %c0_238 = arith.constant 0 : index
    %492 = vector.load %arg20[%c0_237, %c0_238] : memref<1x72xf32, #tpu.memory_space<vmem>>, vector<1x72xf32>
    %493 = vector.extract_strided_slice %395 {offsets = [7, 0], sizes = [1, 72], strides = [1, 1]} : vector<8x72xf32> to vector<1x72xf32>
    %494 = arith.addf %492, %493 : vector<1x72xf32>
    %495 = vector.extract_strided_slice %399 {offsets = [6, 0], sizes = [1, 72], strides = [1, 1]} : vector<8x72xf32> to vector<1x72xf32>
    %496 = arith.addf %494, %495 : vector<1x72xf32>
    %497 = vector.extract_strided_slice %403 {offsets = [5, 0], sizes = [1, 72], strides = [1, 1]} : vector<8x72xf32> to vector<1x72xf32>
    %498 = arith.addf %496, %497 : vector<1x72xf32>
    %499 = vector.extract_strided_slice %407 {offsets = [4, 0], sizes = [1, 72], strides = [1, 1]} : vector<8x72xf32> to vector<1x72xf32>
    %500 = arith.addf %498, %499 : vector<1x72xf32>
    %cst_239 = arith.constant 0.000000e+00 : f32
    %501 = vector.broadcast %cst_239 : f32 to vector<1x72xf32>
    %502 = arith.maximumf %500, %501 : vector<1x72xf32>
    %c0_240 = arith.constant 0 : index
    %c0_241 = arith.constant 0 : index
    %503 = vector.load %arg20[%c0_240, %c0_241] : memref<1x72xf32, #tpu.memory_space<vmem>>, vector<1x72xf32>
    %504 = vector.extract_strided_slice %399 {offsets = [7, 0], sizes = [1, 72], strides = [1, 1]} : vector<8x72xf32> to vector<1x72xf32>
    %505 = arith.addf %503, %504 : vector<1x72xf32>
    %506 = vector.extract_strided_slice %403 {offsets = [6, 0], sizes = [1, 72], strides = [1, 1]} : vector<8x72xf32> to vector<1x72xf32>
    %507 = arith.addf %505, %506 : vector<1x72xf32>
    %508 = vector.extract_strided_slice %407 {offsets = [5, 0], sizes = [1, 72], strides = [1, 1]} : vector<8x72xf32> to vector<1x72xf32>
    %509 = arith.addf %507, %508 : vector<1x72xf32>
    %cst_242 = arith.constant 0.000000e+00 : f32
    %510 = vector.broadcast %cst_242 : f32 to vector<1x72xf32>
    %511 = arith.maximumf %509, %510 : vector<1x72xf32>
    %c0_243 = arith.constant 0 : index
    %c0_244 = arith.constant 0 : index
    %512 = vector.load %arg20[%c0_243, %c0_244] : memref<1x72xf32, #tpu.memory_space<vmem>>, vector<1x72xf32>
    %513 = vector.extract_strided_slice %403 {offsets = [7, 0], sizes = [1, 72], strides = [1, 1]} : vector<8x72xf32> to vector<1x72xf32>
    %514 = arith.addf %512, %513 : vector<1x72xf32>
    %515 = vector.extract_strided_slice %407 {offsets = [6, 0], sizes = [1, 72], strides = [1, 1]} : vector<8x72xf32> to vector<1x72xf32>
    %516 = arith.addf %514, %515 : vector<1x72xf32>
    %cst_245 = arith.constant 0.000000e+00 : f32
    %517 = vector.broadcast %cst_245 : f32 to vector<1x72xf32>
    %518 = arith.maximumf %516, %517 : vector<1x72xf32>
    %c0_246 = arith.constant 0 : index
    %c0_247 = arith.constant 0 : index
    %519 = vector.load %arg20[%c0_246, %c0_247] : memref<1x72xf32, #tpu.memory_space<vmem>>, vector<1x72xf32>
    %520 = vector.extract_strided_slice %407 {offsets = [7, 0], sizes = [1, 72], strides = [1, 1]} : vector<8x72xf32> to vector<1x72xf32>
    %521 = arith.addf %519, %520 : vector<1x72xf32>
    %cst_248 = arith.constant 0.000000e+00 : f32
    %522 = vector.broadcast %cst_248 : f32 to vector<1x72xf32>
    %523 = arith.maximumf %521, %522 : vector<1x72xf32>
    %524 = tpu.concatenate %412, %419, %428, %439, %452, %465, %478, %491, %502, %511, %518, %523 in 0 : vector<1x72xf32>, vector<1x72xf32>, vector<1x72xf32>, vector<1x72xf32>, vector<1x72xf32>, vector<1x72xf32>, vector<1x72xf32>, vector<1x72xf32>, vector<1x72xf32>, vector<1x72xf32>, vector<1x72xf32>, vector<1x72xf32> -> vector<12x72xf32>
    %c0_249 = arith.constant 0 : index
    %c0_250 = arith.constant 0 : index
    %c0_251 = arith.constant 0 : index
    %525 = vector.load %arg21[%c0_249, %c0_250, %c0_251] : memref<5x72x28xbf16, #tpu.memory_space<vmem>>, vector<1x72x28xbf16>
    %526 = vector.shape_cast %525 : vector<1x72x28xbf16> to vector<72x28xbf16>
    %527 = arith.truncf %524 : vector<12x72xf32> to vector<12x72xbf16>
    %cst_252 = arith.constant dense<0.000000e+00> : vector<12x28xf32>
    %528 = tpu.matmul %527, %526, %cst_252 {dimension_numbers = #tpu.dot_dimension_numbers<[1], [0], [0], [1], [0, 0, 1, 1], [], []>} : vector<12x72xbf16>, vector<72x28xbf16>, vector<12x28xf32> -> vector<12x28xf32>
    %c1_253 = arith.constant 1 : index
    %c0_254 = arith.constant 0 : index
    %c0_255 = arith.constant 0 : index
    %529 = vector.load %arg21[%c1_253, %c0_254, %c0_255] : memref<5x72x28xbf16, #tpu.memory_space<vmem>>, vector<1x72x28xbf16>
    %530 = vector.shape_cast %529 : vector<1x72x28xbf16> to vector<72x28xbf16>
    %531 = arith.truncf %524 : vector<12x72xf32> to vector<12x72xbf16>
    %cst_256 = arith.constant dense<0.000000e+00> : vector<12x28xf32>
    %532 = tpu.matmul %531, %530, %cst_256 {dimension_numbers = #tpu.dot_dimension_numbers<[1], [0], [0], [1], [0, 0, 1, 1], [], []>} : vector<12x72xbf16>, vector<72x28xbf16>, vector<12x28xf32> -> vector<12x28xf32>
    %c2_257 = arith.constant 2 : index
    %c0_258 = arith.constant 0 : index
    %c0_259 = arith.constant 0 : index
    %533 = vector.load %arg21[%c2_257, %c0_258, %c0_259] : memref<5x72x28xbf16, #tpu.memory_space<vmem>>, vector<1x72x28xbf16>
    %534 = vector.shape_cast %533 : vector<1x72x28xbf16> to vector<72x28xbf16>
    %535 = arith.truncf %524 : vector<12x72xf32> to vector<12x72xbf16>
    %cst_260 = arith.constant dense<0.000000e+00> : vector<12x28xf32>
    %536 = tpu.matmul %535, %534, %cst_260 {dimension_numbers = #tpu.dot_dimension_numbers<[1], [0], [0], [1], [0, 0, 1, 1], [], []>} : vector<12x72xbf16>, vector<72x28xbf16>, vector<12x28xf32> -> vector<12x28xf32>
    %c3_261 = arith.constant 3 : index
    %c0_262 = arith.constant 0 : index
    %c0_263 = arith.constant 0 : index
    %537 = vector.load %arg21[%c3_261, %c0_262, %c0_263] : memref<5x72x28xbf16, #tpu.memory_space<vmem>>, vector<1x72x28xbf16>
    %538 = vector.shape_cast %537 : vector<1x72x28xbf16> to vector<72x28xbf16>
    %539 = arith.truncf %524 : vector<12x72xf32> to vector<12x72xbf16>
    %cst_264 = arith.constant dense<0.000000e+00> : vector<12x28xf32>
    %540 = tpu.matmul %539, %538, %cst_264 {dimension_numbers = #tpu.dot_dimension_numbers<[1], [0], [0], [1], [0, 0, 1, 1], [], []>} : vector<12x72xbf16>, vector<72x28xbf16>, vector<12x28xf32> -> vector<12x28xf32>
    %c4_265 = arith.constant 4 : index
    %c0_266 = arith.constant 0 : index
    %c0_267 = arith.constant 0 : index
    %541 = vector.load %arg21[%c4_265, %c0_266, %c0_267] : memref<5x72x28xbf16, #tpu.memory_space<vmem>>, vector<1x72x28xbf16>
    %542 = vector.shape_cast %541 : vector<1x72x28xbf16> to vector<72x28xbf16>
    %543 = arith.truncf %524 : vector<12x72xf32> to vector<12x72xbf16>
    %cst_268 = arith.constant dense<0.000000e+00> : vector<12x28xf32>
    %544 = tpu.matmul %543, %542, %cst_268 {dimension_numbers = #tpu.dot_dimension_numbers<[1], [0], [0], [1], [0, 0, 1, 1], [], []>} : vector<12x72xbf16>, vector<72x28xbf16>, vector<12x28xf32> -> vector<12x28xf32>
    %c0_269 = arith.constant 0 : index
    %c0_270 = arith.constant 0 : index
    %545 = vector.load %arg22[%c0_269, %c0_270] : memref<1x28xf32, #tpu.memory_space<vmem>>, vector<1x28xf32>
    %546 = vector.extract_strided_slice %528 {offsets = [0, 0], sizes = [1, 28], strides = [1, 1]} : vector<12x28xf32> to vector<1x28xf32>
    %547 = arith.addf %545, %546 : vector<1x28xf32>
    %c0_271 = arith.constant 0 : index
    %c0_272 = arith.constant 0 : index
    %548 = vector.load %arg22[%c0_271, %c0_272] : memref<1x28xf32, #tpu.memory_space<vmem>>, vector<1x28xf32>
    %549 = vector.extract_strided_slice %532 {offsets = [0, 0], sizes = [1, 28], strides = [1, 1]} : vector<12x28xf32> to vector<1x28xf32>
    %550 = arith.addf %548, %549 : vector<1x28xf32>
    %c0_273 = arith.constant 0 : index
    %c0_274 = arith.constant 0 : index
    %551 = vector.load %arg22[%c0_273, %c0_274] : memref<1x28xf32, #tpu.memory_space<vmem>>, vector<1x28xf32>
    %552 = vector.extract_strided_slice %536 {offsets = [0, 0], sizes = [1, 28], strides = [1, 1]} : vector<12x28xf32> to vector<1x28xf32>
    %553 = arith.addf %551, %552 : vector<1x28xf32>
    %554 = vector.extract_strided_slice %528 {offsets = [1, 0], sizes = [1, 28], strides = [1, 1]} : vector<12x28xf32> to vector<1x28xf32>
    %555 = arith.addf %553, %554 : vector<1x28xf32>
    %c0_275 = arith.constant 0 : index
    %c0_276 = arith.constant 0 : index
    %556 = vector.load %arg22[%c0_275, %c0_276] : memref<1x28xf32, #tpu.memory_space<vmem>>, vector<1x28xf32>
    %557 = vector.extract_strided_slice %540 {offsets = [0, 0], sizes = [1, 28], strides = [1, 1]} : vector<12x28xf32> to vector<1x28xf32>
    %558 = arith.addf %556, %557 : vector<1x28xf32>
    %559 = vector.extract_strided_slice %532 {offsets = [1, 0], sizes = [1, 28], strides = [1, 1]} : vector<12x28xf32> to vector<1x28xf32>
    %560 = arith.addf %558, %559 : vector<1x28xf32>
    %c0_277 = arith.constant 0 : index
    %c0_278 = arith.constant 0 : index
    %561 = vector.load %arg22[%c0_277, %c0_278] : memref<1x28xf32, #tpu.memory_space<vmem>>, vector<1x28xf32>
    %562 = vector.extract_strided_slice %544 {offsets = [0, 0], sizes = [1, 28], strides = [1, 1]} : vector<12x28xf32> to vector<1x28xf32>
    %563 = arith.addf %561, %562 : vector<1x28xf32>
    %564 = vector.extract_strided_slice %536 {offsets = [1, 0], sizes = [1, 28], strides = [1, 1]} : vector<12x28xf32> to vector<1x28xf32>
    %565 = arith.addf %563, %564 : vector<1x28xf32>
    %566 = vector.extract_strided_slice %528 {offsets = [2, 0], sizes = [1, 28], strides = [1, 1]} : vector<12x28xf32> to vector<1x28xf32>
    %567 = arith.addf %565, %566 : vector<1x28xf32>
    %c0_279 = arith.constant 0 : index
    %c0_280 = arith.constant 0 : index
    %568 = vector.load %arg22[%c0_279, %c0_280] : memref<1x28xf32, #tpu.memory_space<vmem>>, vector<1x28xf32>
    %569 = vector.extract_strided_slice %540 {offsets = [1, 0], sizes = [1, 28], strides = [1, 1]} : vector<12x28xf32> to vector<1x28xf32>
    %570 = arith.addf %568, %569 : vector<1x28xf32>
    %571 = vector.extract_strided_slice %532 {offsets = [2, 0], sizes = [1, 28], strides = [1, 1]} : vector<12x28xf32> to vector<1x28xf32>
    %572 = arith.addf %570, %571 : vector<1x28xf32>
    %c0_281 = arith.constant 0 : index
    %c0_282 = arith.constant 0 : index
    %573 = vector.load %arg22[%c0_281, %c0_282] : memref<1x28xf32, #tpu.memory_space<vmem>>, vector<1x28xf32>
    %574 = vector.extract_strided_slice %544 {offsets = [1, 0], sizes = [1, 28], strides = [1, 1]} : vector<12x28xf32> to vector<1x28xf32>
    %575 = arith.addf %573, %574 : vector<1x28xf32>
    %576 = vector.extract_strided_slice %536 {offsets = [2, 0], sizes = [1, 28], strides = [1, 1]} : vector<12x28xf32> to vector<1x28xf32>
    %577 = arith.addf %575, %576 : vector<1x28xf32>
    %578 = vector.extract_strided_slice %528 {offsets = [3, 0], sizes = [1, 28], strides = [1, 1]} : vector<12x28xf32> to vector<1x28xf32>
    %579 = arith.addf %577, %578 : vector<1x28xf32>
    %c0_283 = arith.constant 0 : index
    %c0_284 = arith.constant 0 : index
    %580 = vector.load %arg22[%c0_283, %c0_284] : memref<1x28xf32, #tpu.memory_space<vmem>>, vector<1x28xf32>
    %581 = vector.extract_strided_slice %540 {offsets = [2, 0], sizes = [1, 28], strides = [1, 1]} : vector<12x28xf32> to vector<1x28xf32>
    %582 = arith.addf %580, %581 : vector<1x28xf32>
    %583 = vector.extract_strided_slice %532 {offsets = [3, 0], sizes = [1, 28], strides = [1, 1]} : vector<12x28xf32> to vector<1x28xf32>
    %584 = arith.addf %582, %583 : vector<1x28xf32>
    %c0_285 = arith.constant 0 : index
    %c0_286 = arith.constant 0 : index
    %585 = vector.load %arg22[%c0_285, %c0_286] : memref<1x28xf32, #tpu.memory_space<vmem>>, vector<1x28xf32>
    %586 = vector.extract_strided_slice %544 {offsets = [2, 0], sizes = [1, 28], strides = [1, 1]} : vector<12x28xf32> to vector<1x28xf32>
    %587 = arith.addf %585, %586 : vector<1x28xf32>
    %588 = vector.extract_strided_slice %536 {offsets = [3, 0], sizes = [1, 28], strides = [1, 1]} : vector<12x28xf32> to vector<1x28xf32>
    %589 = arith.addf %587, %588 : vector<1x28xf32>
    %590 = vector.extract_strided_slice %528 {offsets = [4, 0], sizes = [1, 28], strides = [1, 1]} : vector<12x28xf32> to vector<1x28xf32>
    %591 = arith.addf %589, %590 : vector<1x28xf32>
    %c0_287 = arith.constant 0 : index
    %c0_288 = arith.constant 0 : index
    %592 = vector.load %arg22[%c0_287, %c0_288] : memref<1x28xf32, #tpu.memory_space<vmem>>, vector<1x28xf32>
    %593 = vector.extract_strided_slice %540 {offsets = [3, 0], sizes = [1, 28], strides = [1, 1]} : vector<12x28xf32> to vector<1x28xf32>
    %594 = arith.addf %592, %593 : vector<1x28xf32>
    %595 = vector.extract_strided_slice %532 {offsets = [4, 0], sizes = [1, 28], strides = [1, 1]} : vector<12x28xf32> to vector<1x28xf32>
    %596 = arith.addf %594, %595 : vector<1x28xf32>
    %c0_289 = arith.constant 0 : index
    %c0_290 = arith.constant 0 : index
    %597 = vector.load %arg22[%c0_289, %c0_290] : memref<1x28xf32, #tpu.memory_space<vmem>>, vector<1x28xf32>
    %598 = vector.extract_strided_slice %544 {offsets = [3, 0], sizes = [1, 28], strides = [1, 1]} : vector<12x28xf32> to vector<1x28xf32>
    %599 = arith.addf %597, %598 : vector<1x28xf32>
    %600 = vector.extract_strided_slice %536 {offsets = [4, 0], sizes = [1, 28], strides = [1, 1]} : vector<12x28xf32> to vector<1x28xf32>
    %601 = arith.addf %599, %600 : vector<1x28xf32>
    %602 = vector.extract_strided_slice %528 {offsets = [5, 0], sizes = [1, 28], strides = [1, 1]} : vector<12x28xf32> to vector<1x28xf32>
    %603 = arith.addf %601, %602 : vector<1x28xf32>
    %c0_291 = arith.constant 0 : index
    %c0_292 = arith.constant 0 : index
    %604 = vector.load %arg22[%c0_291, %c0_292] : memref<1x28xf32, #tpu.memory_space<vmem>>, vector<1x28xf32>
    %605 = vector.extract_strided_slice %540 {offsets = [4, 0], sizes = [1, 28], strides = [1, 1]} : vector<12x28xf32> to vector<1x28xf32>
    %606 = arith.addf %604, %605 : vector<1x28xf32>
    %607 = vector.extract_strided_slice %532 {offsets = [5, 0], sizes = [1, 28], strides = [1, 1]} : vector<12x28xf32> to vector<1x28xf32>
    %608 = arith.addf %606, %607 : vector<1x28xf32>
    %c0_293 = arith.constant 0 : index
    %c0_294 = arith.constant 0 : index
    %609 = vector.load %arg22[%c0_293, %c0_294] : memref<1x28xf32, #tpu.memory_space<vmem>>, vector<1x28xf32>
    %610 = vector.extract_strided_slice %544 {offsets = [4, 0], sizes = [1, 28], strides = [1, 1]} : vector<12x28xf32> to vector<1x28xf32>
    %611 = arith.addf %609, %610 : vector<1x28xf32>
    %612 = vector.extract_strided_slice %536 {offsets = [5, 0], sizes = [1, 28], strides = [1, 1]} : vector<12x28xf32> to vector<1x28xf32>
    %613 = arith.addf %611, %612 : vector<1x28xf32>
    %614 = vector.extract_strided_slice %528 {offsets = [6, 0], sizes = [1, 28], strides = [1, 1]} : vector<12x28xf32> to vector<1x28xf32>
    %615 = arith.addf %613, %614 : vector<1x28xf32>
    %c0_295 = arith.constant 0 : index
    %c0_296 = arith.constant 0 : index
    %616 = vector.load %arg22[%c0_295, %c0_296] : memref<1x28xf32, #tpu.memory_space<vmem>>, vector<1x28xf32>
    %617 = vector.extract_strided_slice %540 {offsets = [5, 0], sizes = [1, 28], strides = [1, 1]} : vector<12x28xf32> to vector<1x28xf32>
    %618 = arith.addf %616, %617 : vector<1x28xf32>
    %619 = vector.extract_strided_slice %532 {offsets = [6, 0], sizes = [1, 28], strides = [1, 1]} : vector<12x28xf32> to vector<1x28xf32>
    %620 = arith.addf %618, %619 : vector<1x28xf32>
    %c0_297 = arith.constant 0 : index
    %c0_298 = arith.constant 0 : index
    %621 = vector.load %arg22[%c0_297, %c0_298] : memref<1x28xf32, #tpu.memory_space<vmem>>, vector<1x28xf32>
    %622 = vector.extract_strided_slice %544 {offsets = [5, 0], sizes = [1, 28], strides = [1, 1]} : vector<12x28xf32> to vector<1x28xf32>
    %623 = arith.addf %621, %622 : vector<1x28xf32>
    %624 = vector.extract_strided_slice %536 {offsets = [6, 0], sizes = [1, 28], strides = [1, 1]} : vector<12x28xf32> to vector<1x28xf32>
    %625 = arith.addf %623, %624 : vector<1x28xf32>
    %626 = vector.extract_strided_slice %528 {offsets = [7, 0], sizes = [1, 28], strides = [1, 1]} : vector<12x28xf32> to vector<1x28xf32>
    %627 = arith.addf %625, %626 : vector<1x28xf32>
    %c0_299 = arith.constant 0 : index
    %c0_300 = arith.constant 0 : index
    %628 = vector.load %arg22[%c0_299, %c0_300] : memref<1x28xf32, #tpu.memory_space<vmem>>, vector<1x28xf32>
    %629 = vector.extract_strided_slice %540 {offsets = [6, 0], sizes = [1, 28], strides = [1, 1]} : vector<12x28xf32> to vector<1x28xf32>
    %630 = arith.addf %628, %629 : vector<1x28xf32>
    %631 = vector.extract_strided_slice %532 {offsets = [7, 0], sizes = [1, 28], strides = [1, 1]} : vector<12x28xf32> to vector<1x28xf32>
    %632 = arith.addf %630, %631 : vector<1x28xf32>
    %c0_301 = arith.constant 0 : index
    %c0_302 = arith.constant 0 : index
    %633 = vector.load %arg22[%c0_301, %c0_302] : memref<1x28xf32, #tpu.memory_space<vmem>>, vector<1x28xf32>
    %634 = vector.extract_strided_slice %544 {offsets = [6, 0], sizes = [1, 28], strides = [1, 1]} : vector<12x28xf32> to vector<1x28xf32>
    %635 = arith.addf %633, %634 : vector<1x28xf32>
    %636 = vector.extract_strided_slice %536 {offsets = [7, 0], sizes = [1, 28], strides = [1, 1]} : vector<12x28xf32> to vector<1x28xf32>
    %637 = arith.addf %635, %636 : vector<1x28xf32>
    %638 = vector.extract_strided_slice %528 {offsets = [8, 0], sizes = [1, 28], strides = [1, 1]} : vector<12x28xf32> to vector<1x28xf32>
    %639 = arith.addf %637, %638 : vector<1x28xf32>
    %c0_303 = arith.constant 0 : index
    %c0_304 = arith.constant 0 : index
    %640 = vector.load %arg22[%c0_303, %c0_304] : memref<1x28xf32, #tpu.memory_space<vmem>>, vector<1x28xf32>
    %641 = vector.extract_strided_slice %540 {offsets = [7, 0], sizes = [1, 28], strides = [1, 1]} : vector<12x28xf32> to vector<1x28xf32>
    %642 = arith.addf %640, %641 : vector<1x28xf32>
    %643 = vector.extract_strided_slice %532 {offsets = [8, 0], sizes = [1, 28], strides = [1, 1]} : vector<12x28xf32> to vector<1x28xf32>
    %644 = arith.addf %642, %643 : vector<1x28xf32>
    %c0_305 = arith.constant 0 : index
    %c0_306 = arith.constant 0 : index
    %645 = vector.load %arg22[%c0_305, %c0_306] : memref<1x28xf32, #tpu.memory_space<vmem>>, vector<1x28xf32>
    %646 = vector.extract_strided_slice %544 {offsets = [7, 0], sizes = [1, 28], strides = [1, 1]} : vector<12x28xf32> to vector<1x28xf32>
    %647 = arith.addf %645, %646 : vector<1x28xf32>
    %648 = vector.extract_strided_slice %536 {offsets = [8, 0], sizes = [1, 28], strides = [1, 1]} : vector<12x28xf32> to vector<1x28xf32>
    %649 = arith.addf %647, %648 : vector<1x28xf32>
    %650 = vector.extract_strided_slice %528 {offsets = [9, 0], sizes = [1, 28], strides = [1, 1]} : vector<12x28xf32> to vector<1x28xf32>
    %651 = arith.addf %649, %650 : vector<1x28xf32>
    %c0_307 = arith.constant 0 : index
    %c0_308 = arith.constant 0 : index
    %652 = vector.load %arg22[%c0_307, %c0_308] : memref<1x28xf32, #tpu.memory_space<vmem>>, vector<1x28xf32>
    %653 = vector.extract_strided_slice %540 {offsets = [8, 0], sizes = [1, 28], strides = [1, 1]} : vector<12x28xf32> to vector<1x28xf32>
    %654 = arith.addf %652, %653 : vector<1x28xf32>
    %655 = vector.extract_strided_slice %532 {offsets = [9, 0], sizes = [1, 28], strides = [1, 1]} : vector<12x28xf32> to vector<1x28xf32>
    %656 = arith.addf %654, %655 : vector<1x28xf32>
    %c0_309 = arith.constant 0 : index
    %c0_310 = arith.constant 0 : index
    %657 = vector.load %arg22[%c0_309, %c0_310] : memref<1x28xf32, #tpu.memory_space<vmem>>, vector<1x28xf32>
    %658 = vector.extract_strided_slice %544 {offsets = [8, 0], sizes = [1, 28], strides = [1, 1]} : vector<12x28xf32> to vector<1x28xf32>
    %659 = arith.addf %657, %658 : vector<1x28xf32>
    %660 = vector.extract_strided_slice %536 {offsets = [9, 0], sizes = [1, 28], strides = [1, 1]} : vector<12x28xf32> to vector<1x28xf32>
    %661 = arith.addf %659, %660 : vector<1x28xf32>
    %662 = vector.extract_strided_slice %528 {offsets = [10, 0], sizes = [1, 28], strides = [1, 1]} : vector<12x28xf32> to vector<1x28xf32>
    %663 = arith.addf %661, %662 : vector<1x28xf32>
    %c0_311 = arith.constant 0 : index
    %c0_312 = arith.constant 0 : index
    %664 = vector.load %arg22[%c0_311, %c0_312] : memref<1x28xf32, #tpu.memory_space<vmem>>, vector<1x28xf32>
    %665 = vector.extract_strided_slice %540 {offsets = [9, 0], sizes = [1, 28], strides = [1, 1]} : vector<12x28xf32> to vector<1x28xf32>
    %666 = arith.addf %664, %665 : vector<1x28xf32>
    %667 = vector.extract_strided_slice %532 {offsets = [10, 0], sizes = [1, 28], strides = [1, 1]} : vector<12x28xf32> to vector<1x28xf32>
    %668 = arith.addf %666, %667 : vector<1x28xf32>
    %c0_313 = arith.constant 0 : index
    %c0_314 = arith.constant 0 : index
    %669 = vector.load %arg22[%c0_313, %c0_314] : memref<1x28xf32, #tpu.memory_space<vmem>>, vector<1x28xf32>
    %670 = vector.extract_strided_slice %544 {offsets = [9, 0], sizes = [1, 28], strides = [1, 1]} : vector<12x28xf32> to vector<1x28xf32>
    %671 = arith.addf %669, %670 : vector<1x28xf32>
    %672 = vector.extract_strided_slice %536 {offsets = [10, 0], sizes = [1, 28], strides = [1, 1]} : vector<12x28xf32> to vector<1x28xf32>
    %673 = arith.addf %671, %672 : vector<1x28xf32>
    %674 = vector.extract_strided_slice %528 {offsets = [11, 0], sizes = [1, 28], strides = [1, 1]} : vector<12x28xf32> to vector<1x28xf32>
    %675 = arith.addf %673, %674 : vector<1x28xf32>
    %c0_315 = arith.constant 0 : index
    %c0_316 = arith.constant 0 : index
    %676 = vector.load %arg22[%c0_315, %c0_316] : memref<1x28xf32, #tpu.memory_space<vmem>>, vector<1x28xf32>
    %677 = vector.extract_strided_slice %540 {offsets = [10, 0], sizes = [1, 28], strides = [1, 1]} : vector<12x28xf32> to vector<1x28xf32>
    %678 = arith.addf %676, %677 : vector<1x28xf32>
    %679 = vector.extract_strided_slice %532 {offsets = [11, 0], sizes = [1, 28], strides = [1, 1]} : vector<12x28xf32> to vector<1x28xf32>
    %680 = arith.addf %678, %679 : vector<1x28xf32>
    %c0_317 = arith.constant 0 : index
    %c0_318 = arith.constant 0 : index
    %681 = vector.load %arg22[%c0_317, %c0_318] : memref<1x28xf32, #tpu.memory_space<vmem>>, vector<1x28xf32>
    %682 = vector.extract_strided_slice %544 {offsets = [10, 0], sizes = [1, 28], strides = [1, 1]} : vector<12x28xf32> to vector<1x28xf32>
    %683 = arith.addf %681, %682 : vector<1x28xf32>
    %684 = vector.extract_strided_slice %536 {offsets = [11, 0], sizes = [1, 28], strides = [1, 1]} : vector<12x28xf32> to vector<1x28xf32>
    %685 = arith.addf %683, %684 : vector<1x28xf32>
    %c0_319 = arith.constant 0 : index
    %c0_320 = arith.constant 0 : index
    %686 = vector.load %arg22[%c0_319, %c0_320] : memref<1x28xf32, #tpu.memory_space<vmem>>, vector<1x28xf32>
    %687 = vector.extract_strided_slice %540 {offsets = [11, 0], sizes = [1, 28], strides = [1, 1]} : vector<12x28xf32> to vector<1x28xf32>
    %688 = arith.addf %686, %687 : vector<1x28xf32>
    %c0_321 = arith.constant 0 : index
    %c0_322 = arith.constant 0 : index
    %689 = vector.load %arg22[%c0_321, %c0_322] : memref<1x28xf32, #tpu.memory_space<vmem>>, vector<1x28xf32>
    %690 = vector.extract_strided_slice %544 {offsets = [11, 0], sizes = [1, 28], strides = [1, 1]} : vector<12x28xf32> to vector<1x28xf32>
    %691 = arith.addf %689, %690 : vector<1x28xf32>
    %c0_323 = arith.constant 0 : index
    %c0_324 = arith.constant 0 : index
    %692 = vector.load %arg22[%c0_323, %c0_324] : memref<1x28xf32, #tpu.memory_space<vmem>>, vector<1x28xf32>
    %693 = tpu.concatenate %547, %550, %555, %560, %567, %572, %579, %584, %591, %596, %603, %608, %615, %620, %627, %632 in 0 : vector<1x28xf32>, vector<1x28xf32>, vector<1x28xf32>, vector<1x28xf32>, vector<1x28xf32>, vector<1x28xf32>, vector<1x28xf32>, vector<1x28xf32>, vector<1x28xf32>, vector<1x28xf32>, vector<1x28xf32>, vector<1x28xf32>, vector<1x28xf32>, vector<1x28xf32>, vector<1x28xf32>, vector<1x28xf32> -> vector<16x28xf32>
    %694 = tpu.concatenate %639, %644, %651, %656, %663, %668, %675, %680, %685, %688, %691, %692 in 0 : vector<1x28xf32>, vector<1x28xf32>, vector<1x28xf32>, vector<1x28xf32>, vector<1x28xf32>, vector<1x28xf32>, vector<1x28xf32>, vector<1x28xf32>, vector<1x28xf32>, vector<1x28xf32>, vector<1x28xf32>, vector<1x28xf32> -> vector<12x28xf32>
    %695 = tpu.concatenate %693, %694 in 0 : vector<16x28xf32>, vector<12x28xf32> -> vector<28x28xf32>
    %696 = math.absf %695 : vector<28x28xf32>
    %cst_325 = arith.constant 0.000000e+00 : f32
    %697 = vector.broadcast %cst_325 : f32 to vector<28x28xf32>
    %698 = arith.subf %697, %696 : vector<28x28xf32>
    %699 = math.exp %698 : vector<28x28xf32>
    %cst_326 = arith.constant 1.000000e+00 : f32
    %700 = vector.broadcast %cst_326 : f32 to vector<28x28xf32>
    %701 = arith.addf %700, %699 : vector<28x28xf32>
    %cst_327 = arith.constant 1.000000e+00 : f32
    %702 = vector.broadcast %cst_327 : f32 to vector<28x28xf32>
    %703 = arith.divf %702, %701 : vector<28x28xf32>
    %cst_328 = arith.constant 0.000000e+00 : f32
    %704 = vector.broadcast %cst_328 : f32 to vector<28x28xf32>
    %705 = arith.cmpf oge, %695, %704 : vector<28x28xf32>
    %706 = arith.mulf %699, %703 : vector<28x28xf32>
    %707 = arith.select %705, %703, %706 : vector<28x28xi1>, vector<28x28xf32>
    %c0_329 = arith.constant 0 : index
    %c0_330 = arith.constant 0 : index
    %c0_331 = arith.constant 0 : index
    %708 = vector.load %arg23[%c0_329, %c0_330, %c0_331] : memref<1x28x28xf32, #tpu.memory_space<vmem>>, vector<1x28x28xf32>
    %709 = vector.shape_cast %708 : vector<1x28x28xf32> to vector<28x28xf32>
    %710 = vector.shape_cast %707 : vector<28x28xf32> to vector<1x28x28xf32>
    tpu.vector_store %arg23[%c0_329, %c0_330, %c0_331], %710 {strides = array<i32>} : memref<1x28x28xf32, #tpu.memory_space<vmem>>, vector<1x28x28xf32>,
    return
  }
  func.func @transform_0(%arg0: i32) -> (i32, i32, i32) {
    %c0_i32 = arith.constant 0 : i32
    %c0_i32_0 = arith.constant 0 : i32
    %c0_i32_1 = arith.constant 0 : i32
    return %arg0, %c0_i32, %c0_i32_0 : i32, i32, i32
  }
  func.func @transform_1(%arg0: i32) -> (i32, i32, i32) {
    %c0_i32 = arith.constant 0 : i32
    %c0_i32_0 = arith.constant 0 : i32
    %c0_i32_1 = arith.constant 0 : i32
    return %arg0, %c0_i32, %c0_i32_0 : i32, i32, i32
  }
  func.func @transform_2(%arg0: i32) -> (i32, i32, i32) {
    %c0_i32 = arith.constant 0 : i32
    %c0_i32_0 = arith.constant 0 : i32
    %c0_i32_1 = arith.constant 0 : i32
    %c0_i32_2 = arith.constant 0 : i32
    return %c0_i32, %c0_i32_0, %c0_i32_1 : i32, i32, i32
  }
  func.func @transform_3(%arg0: i32) -> (i32, i32) {
    %c0_i32 = arith.constant 0 : i32
    %c0_i32_0 = arith.constant 0 : i32
    %c0_i32_1 = arith.constant 0 : i32
    return %c0_i32, %c0_i32_0 : i32, i32
  }
  func.func @transform_4(%arg0: i32) -> (i32, i32, i32) {
    %c0_i32 = arith.constant 0 : i32
    %c0_i32_0 = arith.constant 0 : i32
    %c0_i32_1 = arith.constant 0 : i32
    %c0_i32_2 = arith.constant 0 : i32
    return %c0_i32, %c0_i32_0, %c0_i32_1 : i32, i32, i32
  }
  func.func @transform_5(%arg0: i32) -> (i32, i32) {
    %c0_i32 = arith.constant 0 : i32
    %c0_i32_0 = arith.constant 0 : i32
    %c0_i32_1 = arith.constant 0 : i32
    return %c0_i32, %c0_i32_0 : i32, i32
  }
  func.func @transform_6(%arg0: i32) -> (i32, i32, i32) {
    %c0_i32 = arith.constant 0 : i32
    %c0_i32_0 = arith.constant 0 : i32
    %c0_i32_1 = arith.constant 0 : i32
    %c0_i32_2 = arith.constant 0 : i32
    return %c0_i32, %c0_i32_0, %c0_i32_1 : i32, i32, i32
  }
  func.func @transform_7(%arg0: i32) -> (i32, i32) {
    %c0_i32 = arith.constant 0 : i32
    %c0_i32_0 = arith.constant 0 : i32
    %c0_i32_1 = arith.constant 0 : i32
    return %c0_i32, %c0_i32_0 : i32, i32
  }
  func.func @transform_8(%arg0: i32) -> (i32, i32, i32) {
    %c0_i32 = arith.constant 0 : i32
    %c0_i32_0 = arith.constant 0 : i32
    %c0_i32_1 = arith.constant 0 : i32
    %c0_i32_2 = arith.constant 0 : i32
    return %c0_i32, %c0_i32_0, %c0_i32_1 : i32, i32, i32
  }
  func.func @transform_9(%arg0: i32) -> (i32, i32) {
    %c0_i32 = arith.constant 0 : i32
    %c0_i32_0 = arith.constant 0 : i32
    %c0_i32_1 = arith.constant 0 : i32
    return %c0_i32, %c0_i32_0 : i32, i32
  }
  func.func @transform_10(%arg0: i32) -> (i32, i32) {
    %c0_i32 = arith.constant 0 : i32
    %c0_i32_0 = arith.constant 0 : i32
    %c0_i32_1 = arith.constant 0 : i32
    return %c0_i32, %c0_i32_0 : i32, i32
  }
  func.func @transform_11(%arg0: i32) -> (i32, i32) {
    %c0_i32 = arith.constant 0 : i32
    %c0_i32_0 = arith.constant 0 : i32
    %c0_i32_1 = arith.constant 0 : i32
    return %c0_i32, %c0_i32_0 : i32, i32
  }
  func.func @transform_12(%arg0: i32) -> (i32, i32) {
    %c0_i32 = arith.constant 0 : i32
    %c0_i32_0 = arith.constant 0 : i32
    %c0_i32_1 = arith.constant 0 : i32
    return %c0_i32, %c0_i32_0 : i32, i32
  }
  func.func @transform_13(%arg0: i32) -> (i32, i32) {
    %c0_i32 = arith.constant 0 : i32
    %c0_i32_0 = arith.constant 0 : i32
    %c0_i32_1 = arith.constant 0 : i32
    return %c0_i32, %c0_i32_0 : i32, i32
  }
  func.func @transform_14(%arg0: i32) -> (i32, i32, i32) {
    %c0_i32 = arith.constant 0 : i32
    %c0_i32_0 = arith.constant 0 : i32
    %c0_i32_1 = arith.constant 0 : i32
    %c0_i32_2 = arith.constant 0 : i32
    return %c0_i32, %c0_i32_0, %c0_i32_1 : i32, i32, i32
  }
  func.func @transform_15(%arg0: i32) -> (i32, i32) {
    %c0_i32 = arith.constant 0 : i32
    %c0_i32_0 = arith.constant 0 : i32
    %c0_i32_1 = arith.constant 0 : i32
    return %c0_i32, %c0_i32_0 : i32, i32
  }
  func.func @transform_16(%arg0: i32) -> (i32, i32, i32) {
    %c0_i32 = arith.constant 0 : i32
    %c0_i32_0 = arith.constant 0 : i32
    %c0_i32_1 = arith.constant 0 : i32
    %c0_i32_2 = arith.constant 0 : i32
    return %c0_i32, %c0_i32_0, %c0_i32_1 : i32, i32, i32
  }
  func.func @transform_17(%arg0: i32) -> (i32, i32) {
    %c0_i32 = arith.constant 0 : i32
    %c0_i32_0 = arith.constant 0 : i32
    %c0_i32_1 = arith.constant 0 : i32
    return %c0_i32, %c0_i32_0 : i32, i32
  }
  func.func @transform_18(%arg0: i32) -> (i32, i32, i32) {
    %c0_i32 = arith.constant 0 : i32
    %c0_i32_0 = arith.constant 0 : i32
    %c0_i32_1 = arith.constant 0 : i32
    %c0_i32_2 = arith.constant 0 : i32
    return %c0_i32, %c0_i32_0, %c0_i32_1 : i32, i32, i32
  }
  func.func @transform_19(%arg0: i32) -> (i32, i32) {
    %c0_i32 = arith.constant 0 : i32
    %c0_i32_0 = arith.constant 0 : i32
    %c0_i32_1 = arith.constant 0 : i32
    return %c0_i32, %c0_i32_0 : i32, i32
  }
  func.func @transform_20(%arg0: i32) -> (i32, i32, i32) {
    %c0_i32 = arith.constant 0 : i32
    %c0_i32_0 = arith.constant 0 : i32
    %c0_i32_1 = arith.constant 0 : i32
    %c0_i32_2 = arith.constant 0 : i32
    return %c0_i32, %c0_i32_0, %c0_i32_1 : i32, i32, i32
  }
  func.func @transform_21(%arg0: i32) -> (i32, i32) {
    %c0_i32 = arith.constant 0 : i32
    %c0_i32_0 = arith.constant 0 : i32
    %c0_i32_1 = arith.constant 0 : i32
    return %c0_i32, %c0_i32_0 : i32, i32
  }
  func.func @transform_22(%arg0: i32) -> (i32, i32, i32) {
    %c0_i32 = arith.constant 0 : i32
    %c0_i32_0 = arith.constant 0 : i32
    %c0_i32_1 = arith.constant 0 : i32
    return %arg0, %c0_i32, %c0_i32_0 : i32, i32, i32
  }
  func.func @transform_23(%arg0: i32) -> (i32, i32, i32) {
    %c0_i32 = arith.constant 0 : i32
    %c0_i32_0 = arith.constant 0 : i32
    %c0_i32_1 = arith.constant 0 : i32
    return %arg0, %c0_i32, %c0_i32_0 : i32, i32, i32
  }
}

</mosaic_0001>

<llo_original>
// kernel: cnn_vae_forward.1
$region0: #{cnn_vae_forward.1}
  #allocation0 [shape = 'u32[]', space=smem, size = 0x4, offset = 0x4, fixed_abs, tag = 'smem constant byte address 0x4 - core index']
  #allocation1 [shape = 'u32[144,128]{1,0:T(1,128)}', space=vmem, size = 0x12000, scoped, tag = 'internal scratch']
  %s0 = inlined_call_operand.vmem [shape: f32[2,28,28], index: 0, kind: input, shape index: {}]
  %s1 = inlined_call_operand.vmem [shape: f32[2,1,32], index: 1, kind: input, shape index: {}]
  %s2 = inlined_call_operand.vmem [shape: bf16[5,28,72], index: 2, kind: input, shape index: {}]
  %s3 = inlined_call_operand.vmem [shape: f32[1,72], index: 3, kind: input, shape index: {}]
  %s4 = inlined_call_operand.vmem [shape: bf16[5,72,128], index: 4, kind: input, shape index: {}]
  %s5 = inlined_call_operand.vmem [shape: f32[1,128], index: 5, kind: input, shape index: {}]
  %s6 = inlined_call_operand.vmem [shape: bf16[3,128,96], index: 6, kind: input, shape index: {}]
  %s7 = inlined_call_operand.vmem [shape: f32[1,96], index: 7, kind: input, shape index: {}]
  %s8 = inlined_call_operand.vmem [shape: bf16[3,96,64], index: 8, kind: input, shape index: {}]
  %s9 = inlined_call_operand.vmem [shape: f32[1,64], index: 9, kind: input, shape index: {}]
  %s10 = inlined_call_operand.vmem [shape: bf16[64,64], index: 10, kind: input, shape index: {}]
  %s11 = inlined_call_operand.vmem [shape: f32[1,64], index: 11, kind: input, shape index: {}]
  %s12 = inlined_call_operand.vmem [shape: bf16[32,64], index: 12, kind: input, shape index: {}]
  %s13 = inlined_call_operand.vmem [shape: f32[1,64], index: 13, kind: input, shape index: {}]
  %s14 = inlined_call_operand.vmem [shape: bf16[3,64,96], index: 14, kind: input, shape index: {}]
  %s15 = inlined_call_operand.vmem [shape: f32[1,96], index: 15, kind: input, shape index: {}]
  %s16 = inlined_call_operand.vmem [shape: bf16[5,96,128], index: 16, kind: input, shape index: {}]
  %s17 = inlined_call_operand.vmem [shape: f32[1,128], index: 17, kind: input, shape index: {}]
  %s18 = inlined_call_operand.vmem [shape: bf16[5,128,72], index: 18, kind: input, shape index: {}]
  %s19 = inlined_call_operand.vmem [shape: f32[1,72], index: 19, kind: input, shape index: {}]
  %s20 = inlined_call_operand.vmem [shape: bf16[5,72,28], index: 20, kind: input, shape index: {}]
  %s21 = inlined_call_operand.vmem [shape: f32[1,28], index: 21, kind: input, shape index: {}]
  %s22 = inlined_call_operand.vmem [shape: f32[2,28,28], index: 22, kind: output, shape index: {0}]
  %s23 = inlined_call_operand.vmem [shape: f32[2,1,64], index: 23, kind: output, shape index: {1}]
  %24 = xla_tuple %s22, %s23
  %s25 = sld [smem:[#allocation0]]
  $region129: #{cnn_vae_forward.1} parent=0
    _
  %s27 = ssub.s32 1, %s25
  %s28 = scalar_select 0, %s27, %s25
  loop: start=0, step=1, limit=4
  $region2: #{cnn_vae_forward.1} parent=0 // loop_pre_header
    _
  $region3: #{cnn_vae_forward.1} parent=0 // loop_header
    %s30 = sphi 0, %s34
    %p31 = scmp.ge.s32.totalorder %s30, 4
    %s40 = sphi 0, %s42
    %s43 = sphi 0, %s40
    %s44 = sphi 0, %s43
    %s60 = sphi 0, %s44
    %s66 = sphi 0, %s68
    %s69 = sphi 0, %s66
    %s70 = sphi 0, %s69
    %s86 = sphi 0, %s70
    %s90 = sphi 0, %s90
    %s92 = sphi 0, %s90
    %s93 = sphi 0, %s92
    %s107 = sphi 0, %s93
    %s111 = sphi 0, %s111
    %s113 = sphi 0, %s111
    %s114 = sphi 0, %s113
    %s128 = sphi 0, %s114
    %s132 = sphi 0, %s132
    %s134 = sphi 0, %s132
    %s135 = sphi 0, %s134
    %s149 = sphi 0, %s135
    %s153 = sphi 0, %s153
    %s155 = sphi 0, %s153
    %s156 = sphi 0, %s155
    %s170 = sphi 0, %s156
    %s174 = sphi 0, %s174
    %s176 = sphi 0, %s174
    %s177 = sphi 0, %s176
    %s191 = sphi 0, %s177
    %s195 = sphi 0, %s195
    %s197 = sphi 0, %s195
    %s198 = sphi 0, %s197
    %s212 = sphi 0, %s198
    %s216 = sphi 0, %s216
    %s218 = sphi 0, %s216
    %s219 = sphi 0, %s218
    %s233 = sphi 0, %s219
    %s237 = sphi 0, %s237
    %s239 = sphi 0, %s237
    %s240 = sphi 0, %s239
    %s254 = sphi 0, %s240
    %s258 = sphi 0, %s258
    %s260 = sphi 0, %s258
    %s261 = sphi 0, %s260
    %s275 = sphi 0, %s261
    %s279 = sphi 0, %s279
    %s281 = sphi 0, %s279
    %s282 = sphi 0, %s281
    %s296 = sphi 0, %s282
    %s300 = sphi 0, %s300
    %s302 = sphi 0, %s300
    %s303 = sphi 0, %s302
    %s317 = sphi 0, %s303
    %s321 = sphi 0, %s321
    %s323 = sphi 0, %s321
    %s324 = sphi 0, %s323
    %s338 = sphi 0, %s324
    %s342 = sphi 0, %s342
    %s344 = sphi 0, %s342
    %s345 = sphi 0, %s344
    %s359 = sphi 0, %s345
    %s363 = sphi 0, %s363
    %s365 = sphi 0, %s363
    %s366 = sphi 0, %s365
    %s380 = sphi 0, %s366
    %s384 = sphi 0, %s384
    %s386 = sphi 0, %s384
    %s387 = sphi 0, %s386
    %s401 = sphi 0, %s387
    %s405 = sphi 0, %s405
    %s407 = sphi 0, %s405
    %s408 = sphi 0, %s407
    %s422 = sphi 0, %s408
    %s426 = sphi 0, %s426
    %s428 = sphi 0, %s426
    %s429 = sphi 0, %s428
    %s443 = sphi 0, %s429
    %s447 = sphi 0, %s447
    %s449 = sphi 0, %s447
    %s450 = sphi 0, %s449
    %s464 = sphi 0, %s450
    %s468 = sphi 0, %s468
    %s470 = sphi 0, %s468
    %s471 = sphi 0, %s470
    %s485 = sphi 0, %s471
    %s489 = sphi 0, %s489
    %s491 = sphi 0, %s489
    %s492 = sphi 0, %s491
    %s506 = sphi 0, %s492
    %s512 = sphi 0, %s514
    %s515 = sphi 0, %s512
    %s516 = sphi 0, %s515
    %s532 = sphi 0, %s516
    %s538 = sphi 0, %s540
    %s541 = sphi 0, %s538
    %s542 = sphi 0, %s541
    %s558 = sphi 0, %s542
  $region4: #{cnn_vae_forward.1} parent=0 // loop_header_branch
    %33 = sbr.rel (%p31) target = $region8
  $region5: #{cnn_vae_forward.1} parent=0 // loop_body
    %s35 = ssub.s32 %s30, 1
    %s36 = ssub.s32 %s30, 2
    %s37 = sadd.s32 %s30, 1
    %s38 = ssub.s32 %s30, %s37
    %p39 = scmp.eq.s32.totalorder %s38, 0
    %s41 = sadd.s32 %s40, 1
    %s42 = scalar_select %p39, %s40, %s41
    %p45 = pneg %p39
    %p46 = scmp.eq.s32.totalorder %s30, 1
    %p47 = por %p45, %p46
    %p48 = scmp.ne.s32.totalorder %s40, %s43
    %p49 = scmp.eq.s32.totalorder %s30, 0
    %p50 = por %p48, %p49
    %p51 = scmp.ne.s32.totalorder %s40, %s43
    %p52 = scmp.eq.s32.totalorder %s35, 1
    %p53 = por %p51, %p52
    %p54 = scmp.ne.s32.totalorder %s43, %s44
    %p55 = scmp.eq.s32.totalorder %s35, 0
    %p56 = por %p54, %p55
    %p57 = scmp.ne.s32.totalorder %s43, %s44
    %p58 = scmp.eq.s32.totalorder %s36, 1
    %p59 = por %p57, %p58
    %p61 = scmp.ne.s32.totalorder %s44, %s60
    %p62 = scmp.eq.s32.totalorder %s36, 0
    %p63 = por %p61, %p62
    %s64 = ssub.s32 %s30, %s37
    %p65 = scmp.eq.s32.totalorder %s64, 0
    %s67 = sadd.s32 %s66, 1
    %s68 = scalar_select %p65, %s66, %s67
    %p71 = pneg %p65
    %p72 = scmp.eq.s32.totalorder %s30, 1
    %p73 = por %p71, %p72
    %p74 = scmp.ne.s32.totalorder %s66, %s69
    %p75 = scmp.eq.s32.totalorder %s30, 0
    %p76 = por %p74, %p75
    %p77 = scmp.ne.s32.totalorder %s66, %s69
    %p78 = scmp.eq.s32.totalorder %s35, 1
    %p79 = por %p77, %p78
    %p80 = scmp.ne.s32.totalorder %s69, %s70
    %p81 = scmp.eq.s32.totalorder %s35, 0
    %p82 = por %p80, %p81
    %p83 = scmp.ne.s32.totalorder %s69, %s70
    %p84 = scmp.eq.s32.totalorder %s36, 1
    %p85 = por %p83, %p84
    %p87 = scmp.ne.s32.totalorder %s70, %s86
    %p88 = scmp.eq.s32.totalorder %s36, 0
    %p89 = por %p87, %p88
    %s91 = sadd.s32 %s90, 1
    %p94 = scmp.eq.s32.totalorder %s30, 1
    %p95 = scmp.ne.s32.totalorder %s90, %s92
    %p96 = scmp.eq.s32.totalorder %s30, 0
    %p97 = por %p95, %p96
    %p98 = scmp.ne.s32.totalorder %s90, %s92
    %p99 = scmp.eq.s32.totalorder %s35, 1
    %p100 = por %p98, %p99
    %p101 = scmp.ne.s32.totalorder %s92, %s93
    %p102 = scmp.eq.s32.totalorder %s35, 0
    %p103 = por %p101, %p102
    %p104 = scmp.ne.s32.totalorder %s92, %s93
    %p105 = scmp.eq.s32.totalorder %s36, 1
    %p106 = por %p104, %p105
    %p108 = scmp.ne.s32.totalorder %s93, %s107
    %p109 = scmp.eq.s32.totalorder %s36, 0
    %p110 = por %p108, %p109
    %s112 = sadd.s32 %s111, 1
    %p115 = scmp.eq.s32.totalorder %s30, 1
    %p116 = scmp.ne.s32.totalorder %s111, %s113
    %p117 = scmp.eq.s32.totalorder %s30, 0
    %p118 = por %p116, %p117
    %p119 = scmp.ne.s32.totalorder %s111, %s113
    %p120 = scmp.eq.s32.totalorder %s35, 1
    %p121 = por %p119, %p120
    %p122 = scmp.ne.s32.totalorder %s113, %s114
    %p123 = scmp.eq.s32.totalorder %s35, 0
    %p124 = por %p122, %p123
    %p125 = scmp.ne.s32.totalorder %s113, %s114
    %p126 = scmp.eq.s32.totalorder %s36, 1
    %p127 = por %p125, %p126
    %p129 = scmp.ne.s32.totalorder %s114, %s128
    %p130 = scmp.eq.s32.totalorder %s36, 0
    %p131 = por %p129, %p130
    %s133 = sadd.s32 %s132, 1
    %p136 = scmp.eq.s32.totalorder %s30, 1
    %p137 = scmp.ne.s32.totalorder %s132, %s134
    %p138 = scmp.eq.s32.totalorder %s30, 0
    %p139 = por %p137, %p138
    %p140 = scmp.ne.s32.totalorder %s132, %s134
    %p141 = scmp.eq.s32.totalorder %s35, 1
    %p142 = por %p140, %p141
    %p143 = scmp.ne.s32.totalorder %s134, %s135
    %p144 = scmp.eq.s32.totalorder %s35, 0
    %p145 = por %p143, %p144
    %p146 = scmp.ne.s32.totalorder %s134, %s135
    %p147 = scmp.eq.s32.totalorder %s36, 1
    %p148 = por %p146, %p147
    %p150 = scmp.ne.s32.totalorder %s135, %s149
    %p151 = scmp.eq.s32.totalorder %s36, 0
    %p152 = por %p150, %p151
    %s154 = sadd.s32 %s153, 1
    %p157 = scmp.eq.s32.totalorder %s30, 1
    %p158 = scmp.ne.s32.totalorder %s153, %s155
    %p159 = scmp.eq.s32.totalorder %s30, 0
    %p160 = por %p158, %p159
    %p161 = scmp.ne.s32.totalorder %s153, %s155
    %p162 = scmp.eq.s32.totalorder %s35, 1
    %p163 = por %p161, %p162
    %p164 = scmp.ne.s32.totalorder %s155, %s156
    %p165 = scmp.eq.s32.totalorder %s35, 0
    %p166 = por %p164, %p165
    %p167 = scmp.ne.s32.totalorder %s155, %s156
    %p168 = scmp.eq.s32.totalorder %s36, 1
    %p169 = por %p167, %p168
    %p171 = scmp.ne.s32.totalorder %s156, %s170
    %p172 = scmp.eq.s32.totalorder %s36, 0
    %p173 = por %p171, %p172
    %s175 = sadd.s32 %s174, 1
    %p178 = scmp.eq.s32.totalorder %s30, 1
    %p179 = scmp.ne.s32.totalorder %s174, %s176
    %p180 = scmp.eq.s32.totalorder %s30, 0
    %p181 = por %p179, %p180
    %p182 = scmp.ne.s32.totalorder %s174, %s176
    %p183 = scmp.eq.s32.totalorder %s35, 1
    %p184 = por %p182, %p183
    %p185 = scmp.ne.s32.totalorder %s176, %s177
    %p186 = scmp.eq.s32.totalorder %s35, 0
    %p187 = por %p185, %p186
    %p188 = scmp.ne.s32.totalorder %s176, %s177
    %p189 = scmp.eq.s32.totalorder %s36, 1
    %p190 = por %p188, %p189
    %p192 = scmp.ne.s32.totalorder %s177, %s191
    %p193 = scmp.eq.s32.totalorder %s36, 0
    %p194 = por %p192, %p193
    %s196 = sadd.s32 %s195, 1
    %p199 = scmp.eq.s32.totalorder %s30, 1
    %p200 = scmp.ne.s32.totalorder %s195, %s197
    %p201 = scmp.eq.s32.totalorder %s30, 0
    %p202 = por %p200, %p201
    %p203 = scmp.ne.s32.totalorder %s195, %s197
    %p204 = scmp.eq.s32.totalorder %s35, 1
    %p205 = por %p203, %p204
    %p206 = scmp.ne.s32.totalorder %s197, %s198
    %p207 = scmp.eq.s32.totalorder %s35, 0
    %p208 = por %p206, %p207
    %p209 = scmp.ne.s32.totalorder %s197, %s198
    %p210 = scmp.eq.s32.totalorder %s36, 1
    %p211 = por %p209, %p210
    %p213 = scmp.ne.s32.totalorder %s198, %s212
    %p214 = scmp.eq.s32.totalorder %s36, 0
    %p215 = por %p213, %p214
    %s217 = sadd.s32 %s216, 1
    %p220 = scmp.eq.s32.totalorder %s30, 1
    %p221 = scmp.ne.s32.totalorder %s216, %s218
    %p222 = scmp.eq.s32.totalorder %s30, 0
    %p223 = por %p221, %p222
    %p224 = scmp.ne.s32.totalorder %s216, %s218
    %p225 = scmp.eq.s32.totalorder %s35, 1
    %p226 = por %p224, %p225
    %p227 = scmp.ne.s32.totalorder %s218, %s219
    %p228 = scmp.eq.s32.totalorder %s35, 0
    %p229 = por %p227, %p228
    %p230 = scmp.ne.s32.totalorder %s218, %s219
    %p231 = scmp.eq.s32.totalorder %s36, 1
    %p232 = por %p230, %p231
    %p234 = scmp.ne.s32.totalorder %s219, %s233
    %p235 = scmp.eq.s32.totalorder %s36, 0
    %p236 = por %p234, %p235
    %s238 = sadd.s32 %s237, 1
    %p241 = scmp.eq.s32.totalorder %s30, 1
    %p242 = scmp.ne.s32.totalorder %s237, %s239
    %p243 = scmp.eq.s32.totalorder %s30, 0
    %p244 = por %p242, %p243
    %p245 = scmp.ne.s32.totalorder %s237, %s239
    %p246 = scmp.eq.s32.totalorder %s35, 1
    %p247 = por %p245, %p246
    %p248 = scmp.ne.s32.totalorder %s239, %s240
    %p249 = scmp.eq.s32.totalorder %s35, 0
    %p250 = por %p248, %p249
    %p251 = scmp.ne.s32.totalorder %s239, %s240
    %p252 = scmp.eq.s32.totalorder %s36, 1
    %p253 = por %p251, %p252
    %p255 = scmp.ne.s32.totalorder %s240, %s254
    %p256 = scmp.eq.s32.totalorder %s36, 0
    %p257 = por %p255, %p256
    %s259 = sadd.s32 %s258, 1
    %p262 = scmp.eq.s32.totalorder %s30, 1
    %p263 = scmp.ne.s32.totalorder %s258, %s260
    %p264 = scmp.eq.s32.totalorder %s30, 0
    %p265 = por %p263, %p264
    %p266 = scmp.ne.s32.totalorder %s258, %s260
    %p267 = scmp.eq.s32.totalorder %s35, 1
    %p268 = por %p266, %p267
    %p269 = scmp.ne.s32.totalorder %s260, %s261
    %p270 = scmp.eq.s32.totalorder %s35, 0
    %p271 = por %p269, %p270
    %p272 = scmp.ne.s32.totalorder %s260, %s261
    %p273 = scmp.eq.s32.totalorder %s36, 1
    %p274 = por %p272, %p273
    %p276 = scmp.ne.s32.totalorder %s261, %s275
    %p277 = scmp.eq.s32.totalorder %s36, 0
    %p278 = por %p276, %p277
    %s280 = sadd.s32 %s279, 1
    %p283 = scmp.eq.s32.totalorder %s30, 1
    %p284 = scmp.ne.s32.totalorder %s279, %s281
    %p285 = scmp.eq.s32.totalorder %s30, 0
    %p286 = por %p284, %p285
    %p287 = scmp.ne.s32.totalorder %s279, %s281
    %p288 = scmp.eq.s32.totalorder %s35, 1
    %p289 = por %p287, %p288
    %p290 = scmp.ne.s32.totalorder %s281, %s282
    %p291 = scmp.eq.s32.totalorder %s35, 0
    %p292 = por %p290, %p291
    %p293 = scmp.ne.s32.totalorder %s281, %s282
    %p294 = scmp.eq.s32.totalorder %s36, 1
    %p295 = por %p293, %p294
    %p297 = scmp.ne.s32.totalorder %s282, %s296
    %p298 = scmp.eq.s32.totalorder %s36, 0
    %p299 = por %p297, %p298
    %s301 = sadd.s32 %s300, 1
    %p304 = scmp.eq.s32.totalorder %s30, 1
    %p305 = scmp.ne.s32.totalorder %s300, %s302
    %p306 = scmp.eq.s32.totalorder %s30, 0
    %p307 = por %p305, %p306
    %p308 = scmp.ne.s32.totalorder %s300, %s302
    %p309 = scmp.eq.s32.totalorder %s35, 1
    %p310 = por %p308, %p309
    %p311 = scmp.ne.s32.totalorder %s302, %s303
    %p312 = scmp.eq.s32.totalorder %s35, 0
    %p313 = por %p311, %p312
    %p314 = scmp.ne.s32.totalorder %s302, %s303
    %p315 = scmp.eq.s32.totalorder %s36, 1
    %p316 = por %p314, %p315
    %p318 = scmp.ne.s32.totalorder %s303, %s317
    %p319 = scmp.eq.s32.totalorder %s36, 0
    %p320 = por %p318, %p319
    %s322 = sadd.s32 %s321, 1
    %p325 = scmp.eq.s32.totalorder %s30, 1
    %p326 = scmp.ne.s32.totalorder %s321, %s323
    %p327 = scmp.eq.s32.totalorder %s30, 0
    %p328 = por %p326, %p327
    %p329 = scmp.ne.s32.totalorder %s321, %s323
    %p330 = scmp.eq.s32.totalorder %s35, 1
    %p331 = por %p329, %p330
    %p332 = scmp.ne.s32.totalorder %s323, %s324
    %p333 = scmp.eq.s32.totalorder %s35, 0
    %p334 = por %p332, %p333
    %p335 = scmp.ne.s32.totalorder %s323, %s324
    %p336 = scmp.eq.s32.totalorder %s36, 1
    %p337 = por %p335, %p336
    %p339 = scmp.ne.s32.totalorder %s324, %s338
    %p340 = scmp.eq.s32.totalorder %s36, 0
    %p341 = por %p339, %p340
    %s343 = sadd.s32 %s342, 1
    %p346 = scmp.eq.s32.totalorder %s30, 1
    %p347 = scmp.ne.s32.totalorder %s342, %s344
    %p348 = scmp.eq.s32.totalorder %s30, 0
    %p349 = por %p347, %p348
    %p350 = scmp.ne.s32.totalorder %s342, %s344
    %p351 = scmp.eq.s32.totalorder %s35, 1
    %p352 = por %p350, %p351
    %p353 = scmp.ne.s32.totalorder %s344, %s345
    %p354 = scmp.eq.s32.totalorder %s35, 0
    %p355 = por %p353, %p354
    %p356 = scmp.ne.s32.totalorder %s344, %s345
    %p357 = scmp.eq.s32.totalorder %s36, 1
    %p358 = por %p356, %p357
    %p360 = scmp.ne.s32.totalorder %s345, %s359
    %p361 = scmp.eq.s32.totalorder %s36, 0
    %p362 = por %p360, %p361
    %s364 = sadd.s32 %s363, 1
    %p367 = scmp.eq.s32.totalorder %s30, 1
    %p368 = scmp.ne.s32.totalorder %s363, %s365
    %p369 = scmp.eq.s32.totalorder %s30, 0
    %p370 = por %p368, %p369
    %p371 = scmp.ne.s32.totalorder %s363, %s365
    %p372 = scmp.eq.s32.totalorder %s35, 1
    %p373 = por %p371, %p372
    %p374 = scmp.ne.s32.totalorder %s365, %s366
    %p375 = scmp.eq.s32.totalorder %s35, 0
    %p376 = por %p374, %p375
    %p377 = scmp.ne.s32.totalorder %s365, %s366
    %p378 = scmp.eq.s32.totalorder %s36, 1
    %p379 = por %p377, %p378
    %p381 = scmp.ne.s32.totalorder %s366, %s380
    %p382 = scmp.eq.s32.totalorder %s36, 0
    %p383 = por %p381, %p382
    %s385 = sadd.s32 %s384, 1
    %p388 = scmp.eq.s32.totalorder %s30, 1
    %p389 = scmp.ne.s32.totalorder %s384, %s386
    %p390 = scmp.eq.s32.totalorder %s30, 0
    %p391 = por %p389, %p390
    %p392 = scmp.ne.s32.totalorder %s384, %s386
    %p393 = scmp.eq.s32.totalorder %s35, 1
    %p394 = por %p392, %p393
    %p395 = scmp.ne.s32.totalorder %s386, %s387
    %p396 = scmp.eq.s32.totalorder %s35, 0
    %p397 = por %p395, %p396
    %p398 = scmp.ne.s32.totalorder %s386, %s387
    %p399 = scmp.eq.s32.totalorder %s36, 1
    %p400 = por %p398, %p399
    %p402 = scmp.ne.s32.totalorder %s387, %s401
    %p403 = scmp.eq.s32.totalorder %s36, 0
    %p404 = por %p402, %p403
    %s406 = sadd.s32 %s405, 1
    %p409 = scmp.eq.s32.totalorder %s30, 1
    %p410 = scmp.ne.s32.totalorder %s405, %s407
    %p411 = scmp.eq.s32.totalorder %s30, 0
    %p412 = por %p410, %p411
    %p413 = scmp.ne.s32.totalorder %s405, %s407
    %p414 = scmp.eq.s32.totalorder %s35, 1
    %p415 = por %p413, %p414
    %p416 = scmp.ne.s32.totalorder %s407, %s408
    %p417 = scmp.eq.s32.totalorder %s35, 0
    %p418 = por %p416, %p417
    %p419 = scmp.ne.s32.totalorder %s407, %s408
    %p420 = scmp.eq.s32.totalorder %s36, 1
    %p421 = por %p419, %p420
    %p423 = scmp.ne.s32.totalorder %s408, %s422
    %p424 = scmp.eq.s32.totalorder %s36, 0
    %p425 = por %p423, %p424
    %s427 = sadd.s32 %s426, 1
    %p430 = scmp.eq.s32.totalorder %s30, 1
    %p431 = scmp.ne.s32.totalorder %s426, %s428
    %p432 = scmp.eq.s32.totalorder %s30, 0
    %p433 = por %p431, %p432
    %p434 = scmp.ne.s32.totalorder %s426, %s428
    %p435 = scmp.eq.s32.totalorder %s35, 1
    %p436 = por %p434, %p435
    %p437 = scmp.ne.s32.totalorder %s428, %s429
    %p438 = scmp.eq.s32.totalorder %s35, 0
    %p439 = por %p437, %p438
    %p440 = scmp.ne.s32.totalorder %s428, %s429
    %p441 = scmp.eq.s32.totalorder %s36, 1
    %p442 = por %p440, %p441
    %p444 = scmp.ne.s32.totalorder %s429, %s443
    %p445 = scmp.eq.s32.totalorder %s36, 0
    %p446 = por %p444, %p445
    %s448 = sadd.s32 %s447, 1
    %p451 = scmp.eq.s32.totalorder %s30, 1
    %p452 = scmp.ne.s32.totalorder %s447, %s449
    %p453 = scmp.eq.s32.totalorder %s30, 0
    %p454 = por %p452, %p453
    %p455 = scmp.ne.s32.totalorder %s447, %s449
    %p456 = scmp.eq.s32.totalorder %s35, 1
    %p457 = por %p455, %p456
    %p458 = scmp.ne.s32.totalorder %s449, %s450
    %p459 = scmp.eq.s32.totalorder %s35, 0
    %p460 = por %p458, %p459
    %p461 = scmp.ne.s32.totalorder %s449, %s450
    %p462 = scmp.eq.s32.totalorder %s36, 1
    %p463 = por %p461, %p462
    %p465 = scmp.ne.s32.totalorder %s450, %s464
    %p466 = scmp.eq.s32.totalorder %s36, 0
    %p467 = por %p465, %p466
    %s469 = sadd.s32 %s468, 1
    %p472 = scmp.eq.s32.totalorder %s30, 1
    %p473 = scmp.ne.s32.totalorder %s468, %s470
    %p474 = scmp.eq.s32.totalorder %s30, 0
    %p475 = por %p473, %p474
    %p476 = scmp.ne.s32.totalorder %s468, %s470
    %p477 = scmp.eq.s32.totalorder %s35, 1
    %p478 = por %p476, %p477
    %p479 = scmp.ne.s32.totalorder %s470, %s471
    %p480 = scmp.eq.s32.totalorder %s35, 0
    %p481 = por %p479, %p480
    %p482 = scmp.ne.s32.totalorder %s470, %s471
    %p483 = scmp.eq.s32.totalorder %s36, 1
    %p484 = por %p482, %p483
    %p486 = scmp.ne.s32.totalorder %s471, %s485
    %p487 = scmp.eq.s32.totalorder %s36, 0
    %p488 = por %p486, %p487
    %s490 = sadd.s32 %s489, 1
    %p493 = scmp.eq.s32.totalorder %s30, 1
    %p494 = scmp.ne.s32.totalorder %s489, %s491
    %p495 = scmp.eq.s32.totalorder %s30, 0
    %p496 = por %p494, %p495
    %p497 = scmp.ne.s32.totalorder %s489, %s491
    %p498 = scmp.eq.s32.totalorder %s35, 1
    %p499 = por %p497, %p498
    %p500 = scmp.ne.s32.totalorder %s491, %s492
    %p501 = scmp.eq.s32.totalorder %s35, 0
    %p502 = por %p500, %p501
    %p503 = scmp.ne.s32.totalorder %s491, %s492
    %p504 = scmp.eq.s32.totalorder %s36, 1
    %p505 = por %p503, %p504
    %p507 = scmp.ne.s32.totalorder %s492, %s506
    %p508 = scmp.eq.s32.totalorder %s36, 0
    %p509 = por %p507, %p508
    %s510 = ssub.s32 %s30, %s37
    %p511 = scmp.eq.s32.totalorder %s510, 0
    %s513 = sadd.s32 %s512, 1
    %s514 = scalar_select %p511, %s512, %s513
    %p517 = pneg %p511
    %p518 = scmp.eq.s32.totalorder %s30, 1
    %p519 = por %p517, %p518
    %p520 = scmp.ne.s32.totalorder %s512, %s515
    %p521 = scmp.eq.s32.totalorder %s30, 0
    %p522 = por %p520, %p521
    %p523 = scmp.ne.s32.totalorder %s512, %s515
    %p524 = scmp.eq.s32.totalorder %s35, 1
    %p525 = por %p523, %p524
    %p526 = scmp.ne.s32.totalorder %s515, %s516
    %p527 = scmp.eq.s32.totalorder %s35, 0
    %p528 = por %p526, %p527
    %p529 = scmp.ne.s32.totalorder %s515, %s516
    %p530 = scmp.eq.s32.totalorder %s36, 1
    %p531 = por %p529, %p530
    %p533 = scmp.ne.s32.totalorder %s516, %s532
    %p534 = scmp.eq.s32.totalorder %s36, 0
    %p535 = por %p533, %p534
    %s536 = ssub.s32 %s30, %s37
    %p537 = scmp.eq.s32.totalorder %s536, 0
    %s539 = sadd.s32 %s538, 1
    %s540 = scalar_select %p537, %s538, %s539
    %p543 = pneg %p537
    %p544 = scmp.eq.s32.totalorder %s30, 1
    %p545 = por %p543, %p544
    %p546 = scmp.ne.s32.totalorder %s538, %s541
    %p547 = scmp.eq.s32.totalorder %s30, 0
    %p548 = por %p546, %p547
    %p549 = scmp.ne.s32.totalorder %s538, %s541
    %p550 = scmp.eq.s32.totalorder %s35, 1
    %p551 = por %p549, %p550
    %p552 = scmp.ne.s32.totalorder %s541, %s542
    %p553 = scmp.eq.s32.totalorder %s35, 0
    %p554 = por %p552, %p553
    %p555 = scmp.ne.s32.totalorder %s541, %s542
    %p556 = scmp.eq.s32.totalorder %s36, 1
    %p557 = por %p555, %p556
    %p559 = scmp.ne.s32.totalorder %s542, %s558
    %p560 = scmp.eq.s32.totalorder %s36, 0
    %p561 = por %p559, %p560
    %p562 = scmp.le.s32.totalorder 1, %s30
    %p563 = scmp.lt.s32.totalorder %s30, 3
    %p564 = pnand %p562, %p563
    %p565 = pneg %p564
    // Predicated region
    $region9: #{cnn_vae_forward.1} parent=5 // pred_check
      _
    $region10: #{cnn_vae_forward.1} parent=5 // pred_check_branch
      %567 = sbr.rel (%p564) target = $region12
    $region11: #{cnn_vae_forward.1} parent=5 // pred_region
      %s568 = ssub.s32 %s30, 1
      // Predicated region
      $region13: #{cnn_vae_forward.1} parent=11 // pred_check
        %p569 = pneg %p103
      $region14: #{cnn_vae_forward.1} parent=11 // pred_check_branch
        %571 = sbr.rel (%p569) target = $region16
      $region15: #{cnn_vae_forward.1} parent=11 // pred_region
        _
      $region16: #{cnn_vae_forward.1} parent=11 // pred_fallthru
        _
      // Predicated region
      $region17: #{cnn_vae_forward.1} parent=11 // pred_check
        %p572 = pneg %p124
      $region18: #{cnn_vae_forward.1} parent=11 // pred_check_branch
        %574 = sbr.rel (%p572) target = $region20
      $region19: #{cnn_vae_forward.1} parent=11 // pred_region
        _
      $region20: #{cnn_vae_forward.1} parent=11 // pred_fallthru
        _
      // Predicated region
      $region21: #{cnn_vae_forward.1} parent=11 // pred_check
        %p575 = pneg %p145
      $region22: #{cnn_vae_forward.1} parent=11 // pred_check_branch
        %577 = sbr.rel (%p575) target = $region24
      $region23: #{cnn_vae_forward.1} parent=11 // pred_region
        _
      $region24: #{cnn_vae_forward.1} parent=11 // pred_fallthru
        _
      // Predicated region
      $region25: #{cnn_vae_forward.1} parent=11 // pred_check
        %p578 = pneg %p166
      $region26: #{cnn_vae_forward.1} parent=11 // pred_check_branch
        %580 = sbr.rel (%p578) target = $region28
      $region27: #{cnn_vae_forward.1} parent=11 // pred_region
        _
      $region28: #{cnn_vae_forward.1} parent=11 // pred_fallthru
        _
      // Predicated region
      $region29: #{cnn_vae_forward.1} parent=11 // pred_check
        %p581 = pneg %p187
      $region30: #{cnn_vae_forward.1} parent=11 // pred_check_branch
        %583 = sbr.rel (%p581) target = $region32
      $region31: #{cnn_vae_forward.1} parent=11 // pred_region
        _
      $region32: #{cnn_vae_forward.1} parent=11 // pred_fallthru
        _
      // Predicated region
      $region33: #{cnn_vae_forward.1} parent=11 // pred_check
        %p584 = pneg %p208
      $region34: #{cnn_vae_forward.1} parent=11 // pred_check_branch
        %586 = sbr.rel (%p584) target = $region36
      $region35: #{cnn_vae_forward.1} parent=11 // pred_region
        _
      $region36: #{cnn_vae_forward.1} parent=11 // pred_fallthru
        _
      // Predicated region
      $region37: #{cnn_vae_forward.1} parent=11 // pred_check
        %p587 = pneg %p229
      $region38: #{cnn_vae_forward.1} parent=11 // pred_check_branch
        %589 = sbr.rel (%p587) target = $region40
      $region39: #{cnn_vae_forward.1} parent=11 // pred_region
        _
      $region40: #{cnn_vae_forward.1} parent=11 // pred_fallthru
        _
      // Predicated region
      $region41: #{cnn_vae_forward.1} parent=11 // pred_check
        %p590 = pneg %p250
      $region42: #{cnn_vae_forward.1} parent=11 // pred_check_branch
        %592 = sbr.rel (%p590) target = $region44
      $region43: #{cnn_vae_forward.1} parent=11 // pred_region
        _
      $region44: #{cnn_vae_forward.1} parent=11 // pred_fallthru
        _
      // Predicated region
      $region45: #{cnn_vae_forward.1} parent=11 // pred_check
        %p593 = pneg %p271
      $region46: #{cnn_vae_forward.1} parent=11 // pred_check_branch
        %595 = sbr.rel (%p593) target = $region48
      $region47: #{cnn_vae_forward.1} parent=11 // pred_region
        _
      $region48: #{cnn_vae_forward.1} parent=11 // pred_fallthru
        _
      // Predicated region
      $region49: #{cnn_vae_forward.1} parent=11 // pred_check
        %p596 = pneg %p292
      $region50: #{cnn_vae_forward.1} parent=11 // pred_check_branch
        %598 = sbr.rel (%p596) target = $region52
      $region51: #{cnn_vae_forward.1} parent=11 // pred_region
        _
      $region52: #{cnn_vae_forward.1} parent=11 // pred_fallthru
        _
      // Predicated region
      $region53: #{cnn_vae_forward.1} parent=11 // pred_check
        %p599 = pneg %p313
      $region54: #{cnn_vae_forward.1} parent=11 // pred_check_branch
        %601 = sbr.rel (%p599) target = $region56
      $region55: #{cnn_vae_forward.1} parent=11 // pred_region
        _
      $region56: #{cnn_vae_forward.1} parent=11 // pred_fallthru
        _
      // Predicated region
      $region57: #{cnn_vae_forward.1} parent=11 // pred_check
        %p602 = pneg %p334
      $region58: #{cnn_vae_forward.1} parent=11 // pred_check_branch
        %604 = sbr.rel (%p602) target = $region60
      $region59: #{cnn_vae_forward.1} parent=11 // pred_region
        _
      $region60: #{cnn_vae_forward.1} parent=11 // pred_fallthru
        _
      // Predicated region
      $region61: #{cnn_vae_forward.1} parent=11 // pred_check
        %p605 = pneg %p355
      $region62: #{cnn_vae_forward.1} parent=11 // pred_check_branch
        %607 = sbr.rel (%p605) target = $region64
      $region63: #{cnn_vae_forward.1} parent=11 // pred_region
        _
      $region64: #{cnn_vae_forward.1} parent=11 // pred_fallthru
        _
      // Predicated region
      $region65: #{cnn_vae_forward.1} parent=11 // pred_check
        %p608 = pneg %p376
      $region66: #{cnn_vae_forward.1} parent=11 // pred_check_branch
        %610 = sbr.rel (%p608) target = $region68
      $region67: #{cnn_vae_forward.1} parent=11 // pred_region
        _
      $region68: #{cnn_vae_forward.1} parent=11 // pred_fallthru
        _
      // Predicated region
      $region69: #{cnn_vae_forward.1} parent=11 // pred_check
        %p611 = pneg %p397
      $region70: #{cnn_vae_forward.1} parent=11 // pred_check_branch
        %613 = sbr.rel (%p611) target = $region72
      $region71: #{cnn_vae_forward.1} parent=11 // pred_region
        _
      $region72: #{cnn_vae_forward.1} parent=11 // pred_fallthru
        _
      // Predicated region
      $region73: #{cnn_vae_forward.1} parent=11 // pred_check
        %p614 = pneg %p418
      $region74: #{cnn_vae_forward.1} parent=11 // pred_check_branch
        %616 = sbr.rel (%p614) target = $region76
      $region75: #{cnn_vae_forward.1} parent=11 // pred_region
        _
      $region76: #{cnn_vae_forward.1} parent=11 // pred_fallthru
        _
      // Predicated region
      $region77: #{cnn_vae_forward.1} parent=11 // pred_check
        %p617 = pneg %p439
      $region78: #{cnn_vae_forward.1} parent=11 // pred_check_branch
        %619 = sbr.rel (%p617) target = $region80
      $region79: #{cnn_vae_forward.1} parent=11 // pred_region
        _
      $region80: #{cnn_vae_forward.1} parent=11 // pred_fallthru
        _
      // Predicated region
      $region81: #{cnn_vae_forward.1} parent=11 // pred_check
        %p620 = pneg %p460
      $region82: #{cnn_vae_forward.1} parent=11 // pred_check_branch
        %622 = sbr.rel (%p620) target = $region84
      $region83: #{cnn_vae_forward.1} parent=11 // pred_region
        _
      $region84: #{cnn_vae_forward.1} parent=11 // pred_fallthru
        _
      // Predicated region
      $region85: #{cnn_vae_forward.1} parent=11 // pred_check
        %p623 = pneg %p481
      $region86: #{cnn_vae_forward.1} parent=11 // pred_check_branch
        %625 = sbr.rel (%p623) target = $region88
      $region87: #{cnn_vae_forward.1} parent=11 // pred_region
        _
      $region88: #{cnn_vae_forward.1} parent=11 // pred_fallthru
        _
      // Predicated region
      $region89: #{cnn_vae_forward.1} parent=11 // pred_check
        %p626 = pneg %p502
      $region90: #{cnn_vae_forward.1} parent=11 // pred_check_branch
        %628 = sbr.rel (%p626) target = $region92
      $region91: #{cnn_vae_forward.1} parent=11 // pred_region
        _
      $region92: #{cnn_vae_forward.1} parent=11 // pred_fallthru
        _
    $region12: #{cnn_vae_forward.1} parent=5 // pred_fallthru
      _
    %p629 = scmp.lt.s32.totalorder %s30, 2
    // Predicated region
    $region93: #{cnn_vae_forward.1} parent=5 // pred_check
      %p630 = pneg %p629
    $region94: #{cnn_vae_forward.1} parent=5 // pred_check_branch
      %632 = sbr.rel (%p630) target = $region96
    $region95: #{cnn_vae_forward.1} parent=5 // pred_region
      // Predicated region
      $region97: #{cnn_vae_forward.1} parent=95 // pred_check
        %p633 = pneg %p50
      $region98: #{cnn_vae_forward.1} parent=95 // pred_check_branch
        %635 = sbr.rel (%p633) target = $region100
      $region99: #{cnn_vae_forward.1} parent=95 // pred_region
        %p636 = scmp.lt.s32.totalorder %s30, 1
        %s637 = scalar_select %p636, %s30, 1
        %s638 = smul.addr %s637, 4
        %s639 = smul.addr %s638, 8
        %s640 = scalar_lea.vmem %s0, %s639
      $region100: #{cnn_vae_forward.1} parent=95 // pred_fallthru
        _
      // Predicated region
      $region101: #{cnn_vae_forward.1} parent=95 // pred_check
        %p641 = pneg %p76
      $region102: #{cnn_vae_forward.1} parent=95 // pred_check_branch
        %643 = sbr.rel (%p641) target = $region104
      $region103: #{cnn_vae_forward.1} parent=95 // pred_region
        %p644 = scmp.lt.s32.totalorder %s30, 1
        %s645 = scalar_select %p644, %s30, 1
        %s646 = scalar_lea.vmem %s1, %s645
      $region104: #{cnn_vae_forward.1} parent=95 // pred_fallthru
        _
    $region96: #{cnn_vae_forward.1} parent=5 // pred_fallthru
      _
    %p647 = scmp.le.s32.totalorder 1, %s30
    %p648 = scmp.lt.s32.totalorder %s30, 3
    %p649 = pnand %p647, %p648
    %p650 = pneg %p649
    // Predicated region
    $region105: #{cnn_vae_forward.1} parent=5 // pred_check
      _
    $region106: #{cnn_vae_forward.1} parent=5 // pred_check_branch
      %652 = sbr.rel (%p649) target = $region108
    $region107: #{cnn_vae_forward.1} parent=5 // pred_region
      %s653 = ssub.s32 %s30, 1
      %p654 = scmp.lt.s32.totalorder %s35, 1
      %s655 = scalar_select %p654, %s35, 1
      %s656 = smul.addr %s655, 4
      %s657 = smul.addr %s656, 8
      %s658 = scalar_lea.vmem %s0, %s657
      %p659 = pneg %p56
      %p660 = pneg %p53
      %p661 = scmp.lt.s32.totalorder %s35, 1
      %s662 = scalar_select %p661, %s35, 1
      %s663 = scalar_lea.vmem %s1, %s662
      %p664 = pneg %p82
      %p665 = pneg %p79
      %p666 = pneg %p103
      %p667 = pneg %p100
      %p668 = pneg %p124
      %p669 = pneg %p121
      %p670 = pneg %p145
      %p671 = pneg %p142
      %p672 = pneg %p166
      %p673 = pneg %p163
      %p674 = pneg %p187
      %p675 = pneg %p184
      %p676 = pneg %p208
      %p677 = pneg %p205
      %p678 = pneg %p229
      %p679 = pneg %p226
      %p680 = pneg %p250
      %p681 = pneg %p247
      %p682 = pneg %p271
      %p683 = pneg %p268
      %p684 = pneg %p292
      %p685 = pneg %p289
      %p686 = pneg %p313
      %p687 = pneg %p310
      %p688 = pneg %p334
      %p689 = pneg %p331
      %p690 = pneg %p355
      %p691 = pneg %p352
      %p692 = pneg %p376
      %p693 = pneg %p373
      %p694 = pneg %p397
      %p695 = pneg %p394
      %p696 = pneg %p418
      %p697 = pneg %p415
      %p698 = pneg %p439
      %p699 = pneg %p436
      %p700 = pneg %p460
      %p701 = pneg %p457
      %p702 = pneg %p481
      %p703 = pneg %p478
      %p704 = pneg %p502
      %p705 = pneg %p499
      %p706 = pneg %p528
      %p707 = pneg %p525
      %p708 = scmp.lt.s32.totalorder %s35, 1
      %s709 = scalar_select %p708, %s35, 1
      %s710 = smul.addr %s709, 4
      %s711 = smul.addr %s710, 8
      %s712 = scalar_lea.vmem %s22, %s711
      %p713 = pneg %p554
      %p714 = pneg %p551
      %p715 = scmp.lt.s32.totalorder %s35, 1
      %s716 = scalar_select %p715, %s35, 1
      %s717 = scalar_lea.vmem %s23, %s716
      %p718 = scmp.lt.s32.totalorder %s35, 1
      %s719 = scalar_select %p718, %s35, 1
      %s720 = smul.addr %s719, 4
      %s721 = smul.addr %s720, 8
      %s722 = scalar_lea.vmem %s0, %s721
      %p723 = scmp.lt.s32.totalorder %s35, 1
      %s724 = scalar_select %p723, %s35, 1
      %s725 = scalar_lea.vmem %s1, %s724
      %p726 = scmp.lt.s32.totalorder %s35, 1
      %s727 = scalar_select %p726, %s35, 1
      %s728 = smul.addr %s727, 4
      %s729 = smul.addr %s728, 8
      %s730 = scalar_lea.vmem %s22, %s729
      %p731 = scmp.lt.s32.totalorder %s35, 1
      %s732 = scalar_select %p731, %s35, 1
      %s733 = scalar_lea.vmem %s23, %s732
      %v735 = vld [vmem:[%s722] sm:$0xff]
      %v736 = vld [vmem:[%s722 + $0x8] sm:$0xff]
      %v737 = vld [vmem:[%s722 + $0x10] sm:$0xff]
      %v738 = vld [vmem:[%s722 + $0x18] sm:$0xf]
      %v739 = vld [vmem:[%s2] sm:$0xf]
      %v740 = vld [vmem:[%s2 + $0x4] sm:$0xf]
      %v741 = vld [vmem:[%s2 + $0x8] sm:$0xf]
      %v742 = vld [vmem:[%s2 + $0xc] sm:$0x3]
      %v743 = vpack.c.bf16 %v736, %v735
      %v744 = vpack.c.bf16 %v738, %v737
      %v749 = vunpack.c.l.b16 %v739
      %v750 = vunpack.c.l.b16 %v740
      %v751 = vunpack.c.l.b16 %v741
      %v752 = vunpack.c.l.b16 %v742
      %v753 = vpack.c.b16 %v750, %v749
      %v754 = vpack.c.b16 %v752, %v751
      %vm756 = vcmask 228352
      %v758 = vsel %vm756, %v743, 0
      %v761 = vsel %vm756, %v744, 0
      %vm763 = vcmask 1045504
      %v765 = vsel %vm763, %v754, 0
      %767 = vmatprep.subr.bf16.mxu0 0
      %768 = vmatpush1.bf16.msra.mxu0 %v753
      %769 = vmatprep.subr.bf16.mxu0 0
      %770 = vmatpush1.bf16.msra.mxu0 %v765
      %771 = vmatprep.subr.bf16.mxu0 0
      %772 = vmatpush1.bf16.msra.mxu0 0
      %773 = vmatprep.subr.bf16.mxu0 0
      %774 = vmatpush1.bf16.msra.mxu0 0
      %775 = vmatprep.subr.bf16.mxu0 0
      %776 = vmatpush1.bf16.msra.mxu0 0
      %777 = vmatprep.subr.bf16.mxu0 0
      %778 = vmatpush1.bf16.msra.mxu0 0
      %779 = vmatprep.subr.bf16.mxu0 0
      %780 = vmatpush1.bf16.msra.mxu0 0
      %781 = vmatprep.subr.bf16.mxu0 0
      %782 = vmatpush1.bf16.msra.mxu0 0
      %783 = vmatprep.subr.bf16.mxu0 0
      %784 = vmatpush1.bf16.msra.mxu0 0
      %785 = vmatprep.subr.bf16.mxu0 0
      %786 = vmatpush1.bf16.msra.mxu0 0
      %787 = vmatprep.subr.bf16.mxu0 0
      %788 = vmatpush1.bf16.msra.mxu0 0
      %789 = vmatprep.subr.bf16.mxu0 0
      %790 = vmatpush1.bf16.msra.mxu0 0
      %791 = vmatprep.subr.bf16.mxu0 0
      %792 = vmatpush1.bf16.msra.mxu0 0
      %793 = vmatprep.subr.bf16.mxu0 0
      %794 = vmatpush1.bf16.msra.mxu0 0
      %795 = vmatprep.subr.bf16.mxu0 0
      %796 = vmatpush1.bf16.msra.mxu0 0
      %797 = vmatprep.subr.bf16.mxu0 0
      %798 = vmatpush1.bf16.msra.mxu0 0
      %799 = vmatprep.mubr.bf16.mxu0 0
      %800 = vmatmul.mubr.bf16.gmra.mrb[0].mxu0 %v758
      %v801 = vpop.f32.mrb[0].mxu0
      %v802 = vadd.f32 0.0, %v801
      %v803 = vpop.f32.mrb[0].mxu0
      %v804 = vpop.f32.mrb[0].mxu0
      %v805 = vadd.f32 0.0, %v804
      %v806 = vpop.f32.mrb[0].mxu0
      %807 = vmatprep.mubr.bf16.mxu0 0
      %808 = vmatmul.mubr.bf16.gmra.mrb[0].mxu0 %v761
      %v809 = vpop.f32.mrb[0].mxu0
      %v810 = vadd.f32 0.0, %v809
      %v811 = vpop.f32.mrb[0].mxu0
      %v812 = vpop.f32.mrb[0].mxu0
      %v813 = vpop.f32.mrb[0].mxu0
      %814 = vdwg.mxu0
      %s815 = scalar_lea.vmem %s2, 16
      %v816 = vld [vmem:[%s815] sm:$0xf]
      %v817 = vld [vmem:[%s815 + $0x4] sm:$0xf]
      %v818 = vld [vmem:[%s815 + $0x8] sm:$0xf]
      %v819 = vld [vmem:[%s815 + $0xc] sm:$0x3]
      %v824 = vunpack.c.l.b16 %v816
      %v825 = vunpack.c.l.b16 %v817
      %v826 = vunpack.c.l.b16 %v818
      %v827 = vunpack.c.l.b16 %v819
      %v828 = vpack.c.b16 %v825, %v824
      %v829 = vpack.c.b16 %v827, %v826
      %v832 = vsel %vm763, %v829, 0
      %834 = vmatprep.subr.bf16.mxu0 0
      %835 = vmatpush1.bf16.msra.mxu0 %v828
      %836 = vmatprep.subr.bf16.mxu0 0
      %837 = vmatpush1.bf16.msra.mxu0 %v832
      %838 = vmatprep.subr.bf16.mxu0 0
      %839 = vmatpush1.bf16.msra.mxu0 0
      %840 = vmatprep.subr.bf16.mxu0 0
      %841 = vmatpush1.bf16.msra.mxu0 0
      %842 = vmatprep.subr.bf16.mxu0 0
      %843 = vmatpush1.bf16.msra.mxu0 0
      %844 = vmatprep.subr.bf16.mxu0 0
      %845 = vmatpush1.bf16.msra.mxu0 0
      %846 = vmatprep.subr.bf16.mxu0 0
      %847 = vmatpush1.bf16.msra.mxu0 0
      %848 = vmatprep.subr.bf16.mxu0 0
      %849 = vmatpush1.bf16.msra.mxu0 0
      %850 = vmatprep.subr.bf16.mxu0 0
      %851 = vmatpush1.bf16.msra.mxu0 0
      %852 = vmatprep.subr.bf16.mxu0 0
      %853 = vmatpush1.bf16.msra.mxu0 0
      %854 = vmatprep.subr.bf16.mxu0 0
      %855 = vmatpush1.bf16.msra.mxu0 0
      %856 = vmatprep.subr.bf16.mxu0 0
      %857 = vmatpush1.bf16.msra.mxu0 0
      %858 = vmatprep.subr.bf16.mxu0 0
      %859 = vmatpush1.bf16.msra.mxu0 0
      %860 = vmatprep.subr.bf16.mxu0 0
      %861 = vmatpush1.bf16.msra.mxu0 0
      %862 = vmatprep.subr.bf16.mxu0 0
      %863 = vmatpush1.bf16.msra.mxu0 0
      %864 = vmatprep.subr.bf16.mxu0 0
      %865 = vmatpush1.bf16.msra.mxu0 0
      %866 = vmatprep.mubr.bf16.mxu0 0
      %867 = vmatmul.mubr.bf16.gmra.mrb[0].mxu0 %v758
      %v868 = vpop.f32.mrb[0].mxu0
      %v869 = vadd.f32 0.0, %v868
      %v870 = vpop.f32.mrb[0].mxu0
      %v871 = vpop.f32.mrb[0].mxu0
      %v872 = vadd.f32 0.0, %v871
      %v873 = vpop.f32.mrb[0].mxu0
      %874 = vmatprep.mubr.bf16.mxu0 0
      %875 = vmatmul.mubr.bf16.gmra.mrb[0].mxu0 %v761
      %v876 = vpop.f32.mrb[0].mxu0
      %v877 = vadd.f32 0.0, %v876
      %v878 = vpop.f32.mrb[0].mxu0
      %v879 = vpop.f32.mrb[0].mxu0
      %v880 = vpop.f32.mrb[0].mxu0
      %881 = vdwg.mxu0
      %s882 = scalar_lea.vmem %s2, 32
      %v883 = vld [vmem:[%s882] sm:$0xf]
      %v884 = vld [vmem:[%s882 + $0x4] sm:$0xf]
      %v885 = vld [vmem:[%s882 + $0x8] sm:$0xf]
      %v886 = vld [vmem:[%s882 + $0xc] sm:$0x3]
      %v891 = vunpack.c.l.b16 %v883
      %v892 = vunpack.c.l.b16 %v884
      %v893 = vunpack.c.l.b16 %v885
      %v894 = vunpack.c.l.b16 %v886
      %v895 = vpack.c.b16 %v892, %v891
      %v896 = vpack.c.b16 %v894, %v893
      %v899 = vsel %vm763, %v896, 0
      %901 = vmatprep.subr.bf16.mxu0 0
      %902 = vmatpush1.bf16.msra.mxu0 %v895
      %903 = vmatprep.subr.bf16.mxu0 0
      %904 = vmatpush1.bf16.msra.mxu0 %v899
      %905 = vmatprep.subr.bf16.mxu0 0
      %906 = vmatpush1.bf16.msra.mxu0 0
      %907 = vmatprep.subr.bf16.mxu0 0
      %908 = vmatpush1.bf16.msra.mxu0 0
      %909 = vmatprep.subr.bf16.mxu0 0
      %910 = vmatpush1.bf16.msra.mxu0 0
      %911 = vmatprep.subr.bf16.mxu0 0
      %912 = vmatpush1.bf16.msra.mxu0 0
      %913 = vmatprep.subr.bf16.mxu0 0
      %914 = vmatpush1.bf16.msra.mxu0 0
      %915 = vmatprep.subr.bf16.mxu0 0
      %916 = vmatpush1.bf16.msra.mxu0 0
      %917 = vmatprep.subr.bf16.mxu0 0
      %918 = vmatpush1.bf16.msra.mxu0 0
      %919 = vmatprep.subr.bf16.mxu0 0
      %920 = vmatpush1.bf16.msra.mxu0 0
      %921 = vmatprep.subr.bf16.mxu0 0
      %922 = vmatpush1.bf16.msra.mxu0 0
      %923 = vmatprep.subr.bf16.mxu0 0
      %924 = vmatpush1.bf16.msra.mxu0 0
      %925 = vmatprep.subr.bf16.mxu0 0
      %926 = vmatpush1.bf16.msra.mxu0 0
      %927 = vmatprep.subr.bf16.mxu0 0
      %928 = vmatpush1.bf16.msra.mxu0 0
      %929 = vmatprep.subr.bf16.mxu0 0
      %930 = vmatpush1.bf16.msra.mxu0 0
      %931 = vmatprep.subr.bf16.mxu0 0
      %932 = vmatpush1.bf16.msra.mxu0 0
      %933 = vmatprep.mubr.bf16.mxu0 0
      %934 = vmatmul.mubr.bf16.gmra.mrb[0].mxu0 %v758
      %v935 = vpop.f32.mrb[0].mxu0
      %v936 = vadd.f32 0.0, %v935
      %v937 = vpop.f32.mrb[0].mxu0
      %v938 = vpop.f32.mrb[0].mxu0
      %v939 = vadd.f32 0.0, %v938
      %v940 = vpop.f32.mrb[0].mxu0
      %941 = vmatprep.mubr.bf16.mxu0 0
      %942 = vmatmul.mubr.bf16.gmra.mrb[0].mxu0 %v761
      %v943 = vpop.f32.mrb[0].mxu0
      %v944 = vadd.f32 0.0, %v943
      %v945 = vpop.f32.mrb[0].mxu0
      %v946 = vpop.f32.mrb[0].mxu0
      %v947 = vadd.f32 0.0, %v946
      %v948 = vpop.f32.mrb[0].mxu0
      %949 = vdwg.mxu0
      %s950 = scalar_lea.vmem %s2, 48
      %v951 = vld [vmem:[%s950] sm:$0xf]
      %v952 = vld [vmem:[%s950 + $0x4] sm:$0xf]
      %v953 = vld [vmem:[%s950 + $0x8] sm:$0xf]
      %v954 = vld [vmem:[%s950 + $0xc] sm:$0x3]
      %v959 = vunpack.c.l.b16 %v951
      %v960 = vunpack.c.l.b16 %v952
      %v961 = vunpack.c.l.b16 %v953
      %v962 = vunpack.c.l.b16 %v954
      %v963 = vpack.c.b16 %v960, %v959
      %v964 = vpack.c.b16 %v962, %v961
      %v967 = vsel %vm763, %v964, 0
      %969 = vmatprep.subr.bf16.mxu0 0
      %970 = vmatpush1.bf16.msra.mxu0 %v963
      %971 = vmatprep.subr.bf16.mxu0 0
      %972 = vmatpush1.bf16.msra.mxu0 %v967
      %973 = vmatprep.subr.bf16.mxu0 0
      %974 = vmatpush1.bf16.msra.mxu0 0
      %975 = vmatprep.subr.bf16.mxu0 0
      %976 = vmatpush1.bf16.msra.mxu0 0
      %977 = vmatprep.subr.bf16.mxu0 0
      %978 = vmatpush1.bf16.msra.mxu0 0
      %979 = vmatprep.subr.bf16.mxu0 0
      %980 = vmatpush1.bf16.msra.mxu0 0
      %981 = vmatprep.subr.bf16.mxu0 0
      %982 = vmatpush1.bf16.msra.mxu0 0
      %983 = vmatprep.subr.bf16.mxu0 0
      %984 = vmatpush1.bf16.msra.mxu0 0
      %985 = vmatprep.subr.bf16.mxu0 0
      %986 = vmatpush1.bf16.msra.mxu0 0
      %987 = vmatprep.subr.bf16.mxu0 0
      %988 = vmatpush1.bf16.msra.mxu0 0
      %989 = vmatprep.subr.bf16.mxu0 0
      %990 = vmatpush1.bf16.msra.mxu0 0
      %991 = vmatprep.subr.bf16.mxu0 0
      %992 = vmatpush1.bf16.msra.mxu0 0
      %993 = vmatprep.subr.bf16.mxu0 0
      %994 = vmatpush1.bf16.msra.mxu0 0
      %995 = vmatprep.subr.bf16.mxu0 0
      %996 = vmatpush1.bf16.msra.mxu0 0
      %997 = vmatprep.subr.bf16.mxu0 0
      %998 = vmatpush1.bf16.msra.mxu0 0
      %999 = vmatprep.subr.bf16.mxu0 0
      %1000 = vmatpush1.bf16.msra.mxu0 0
      %1001 = vmatprep.mubr.bf16.mxu0 0
      %1002 = vmatmul.mubr.bf16.gmra.mrb[0].mxu0 %v758
      %v1003 = vpop.f32.mrb[0].mxu0
      %v1004 = vadd.f32 0.0, %v1003
      %v1005 = vpop.f32.mrb[0].mxu0
      %v1006 = vpop.f32.mrb[0].mxu0
      %v1007 = vadd.f32 0.0, %v1006
      %v1008 = vpop.f32.mrb[0].mxu0
      %1009 = vmatprep.mubr.bf16.mxu0 0
      %1010 = vmatmul.mubr.bf16.gmra.mrb[0].mxu0 %v761
      %v1011 = vpop.f32.mrb[0].mxu0
      %v1012 = vadd.f32 0.0, %v1011
      %v1013 = vpop.f32.mrb[0].mxu0
      %v1014 = vpop.f32.mrb[0].mxu0
      %v1015 = vadd.f32 0.0, %v1014
      %v1016 = vpop.f32.mrb[0].mxu0
      %1017 = vdwg.mxu0
      %s1018 = scalar_lea.vmem %s2, 64
      %v1019 = vld [vmem:[%s1018] sm:$0xf]
      %v1020 = vld [vmem:[%s1018 + $0x4] sm:$0xf]
      %v1021 = vld [vmem:[%s1018 + $0x8] sm:$0xf]
      %v1022 = vld [vmem:[%s1018 + $0xc] sm:$0x3]
      %v1027 = vunpack.c.l.b16 %v1019
      %v1028 = vunpack.c.l.b16 %v1020
      %v1029 = vunpack.c.l.b16 %v1021
      %v1030 = vunpack.c.l.b16 %v1022
      %v1031 = vpack.c.b16 %v1028, %v1027
      %v1032 = vpack.c.b16 %v1030, %v1029
      %v1035 = vsel %vm763, %v1032, 0
      %1037 = vmatprep.subr.bf16.mxu0 0
      %1038 = vmatpush1.bf16.msra.mxu0 %v1031
      %1039 = vmatprep.subr.bf16.mxu0 0
      %1040 = vmatpush1.bf16.msra.mxu0 %v1035
      %1041 = vmatprep.subr.bf16.mxu0 0
      %1042 = vmatpush1.bf16.msra.mxu0 0
      %1043 = vmatprep.subr.bf16.mxu0 0
      %1044 = vmatpush1.bf16.msra.mxu0 0
      %1045 = vmatprep.subr.bf16.mxu0 0
      %1046 = vmatpush1.bf16.msra.mxu0 0
      %1047 = vmatprep.subr.bf16.mxu0 0
      %1048 = vmatpush1.bf16.msra.mxu0 0
      %1049 = vmatprep.subr.bf16.mxu0 0
      %1050 = vmatpush1.bf16.msra.mxu0 0
      %1051 = vmatprep.subr.bf16.mxu0 0
      %1052 = vmatpush1.bf16.msra.mxu0 0
      %1053 = vmatprep.subr.bf16.mxu0 0
      %1054 = vmatpush1.bf16.msra.mxu0 0
      %1055 = vmatprep.subr.bf16.mxu0 0
      %1056 = vmatpush1.bf16.msra.mxu0 0
      %1057 = vmatprep.subr.bf16.mxu0 0
      %1058 = vmatpush1.bf16.msra.mxu0 0
      %1059 = vmatprep.subr.bf16.mxu0 0
      %1060 = vmatpush1.bf16.msra.mxu0 0
      %1061 = vmatprep.subr.bf16.mxu0 0
      %1062 = vmatpush1.bf16.msra.mxu0 0
      %1063 = vmatprep.subr.bf16.mxu0 0
      %1064 = vmatpush1.bf16.msra.mxu0 0
      %1065 = vmatprep.subr.bf16.mxu0 0
      %1066 = vmatpush1.bf16.msra.mxu0 0
      %1067 = vmatprep.subr.bf16.mxu0 0
      %1068 = vmatpush1.bf16.msra.mxu0 0
      %1069 = vmatprep.mubr.bf16.mxu0 0
      %1070 = vmatmul.mubr.bf16.gmra.mrb[0].mxu0 %v758
      %v1071 = vpop.f32.mrb[0].mxu0
      %v1072 = vadd.f32 0.0, %v1071
      %v1073 = vpop.f32.mrb[0].mxu0
      %v1074 = vpop.f32.mrb[0].mxu0
      %v1075 = vadd.f32 0.0, %v1074
      %v1076 = vpop.f32.mrb[0].mxu0
      %1077 = vmatprep.mubr.bf16.mxu0 0
      %1078 = vmatmul.mubr.bf16.gmra.mrb[0].mxu0 %v761
      %v1079 = vpop.f32.mrb[0].mxu0
      %v1080 = vadd.f32 0.0, %v1079
      %v1081 = vpop.f32.mrb[0].mxu0
      %v1082 = vpop.f32.mrb[0].mxu0
      %v1083 = vadd.f32 0.0, %v1082
      %v1084 = vpop.f32.mrb[0].mxu0
      %1085 = vdwg.mxu0
      %v1086 = vld [vmem:[%s3] sm:$0x1]
      %v1087 = vadd.f32 %v1086, %v802
      %v1090 = vunpack.c.l.s4 1966171168
      %v1091 = vunpack.c.0.s8 %v1090
      %v1092 = vlaneseq
      %v1093 = vshrl.u32 %v1092, 7
      %v1094 = vsub.s32 %v1091, %v1093
      %v1095 = vrot.slane %v869, %v1094
      %v1096 = vcombine.high %v1095, %v1095
      %v1098 = vunpack.c.l.s4 1966171168
      %v1099 = vunpack.c.0.s8 %v1098
      %v1100 = vlaneseq
      %v1101 = vshrl.u32 %v1100, 7
      %v1102 = vsub.s32 %v1099, %v1101
      %v1103 = vrot.slane %v1096, %v1102
      %v1105 = vadd.f32 %v1087, %v1103
      %v1108 = vunpack.c.l.s4 1966171168
      %v1109 = vunpack.c.0.s8 %v1108
      %v1110 = vlaneseq
      %v1111 = vshrl.u32 %v1110, 7
      %v1112 = vsub.s32 %v1109, %v1111
      %v1113 = vrot.slane %v936, %v1112
      %v1115 = vunpack.c.l.s4 1966171168
      %v1116 = vunpack.c.0.s8 %v1115
      %v1117 = vlaneseq
      %v1118 = vshrl.u32 %v1117, 7
      %v1119 = vsub.s32 %v1116, %v1118
      %v1120 = vrot.slane %v1113, %v1119
      %v1121 = vcombine.high %v1120, %v1120
      %v1123 = vadd.f32 %v1105, %v1121
      %v1126 = vunpack.c.l.s4 1966171168
      %v1127 = vunpack.c.0.s8 %v1126
      %v1128 = vlaneseq
      %v1129 = vshrl.u32 %v1128, 7
      %v1130 = vsub.s32 %v1127, %v1129
      %v1131 = vrot.slane %v1004, %v1130
      %v1132 = vcombine.high %v1131, %v1131
      %v1134 = vunpack.c.l.s4 1966171168
      %v1135 = vunpack.c.0.s8 %v1134
      %v1136 = vlaneseq
      %v1137 = vshrl.u32 %v1136, 7
      %v1138 = vsub.s32 %v1135, %v1137
      %v1139 = vrot.slane %v1132, %v1138
      %v1140 = vcombine.high %v1139, %v1139
      %v1142 = vadd.f32 %v1123, %v1140
      %v1144 = vcombine.high %v1072, %v1072
      %v1146 = vunpack.c.l.s4 1966171168
      %v1147 = vunpack.c.0.s8 %v1146
      %v1148 = vlaneseq
      %v1149 = vshrl.u32 %v1148, 7
      %v1150 = vsub.s32 %v1147, %v1149
      %v1151 = vrot.slane %v1144, %v1150
      %v1153 = vunpack.c.l.s4 1966171168
      %v1154 = vunpack.c.0.s8 %v1153
      %v1155 = vlaneseq
      %v1156 = vshrl.u32 %v1155, 7
      %v1157 = vsub.s32 %v1154, %v1156
      %v1158 = vrot.slane %v1151, %v1157
      %v1160 = vadd.f32 %v1142, %v1158
      %v1161 = vmax.f32 %v1160, 0.0
      %v1164 = vunpack.c.l.s4 1966171168
      %v1165 = vunpack.c.0.s8 %v1164
      %v1166 = vlaneseq
      %v1167 = vshrl.u32 %v1166, 7
      %v1168 = vsub.s32 %v1165, %v1167
      %v1169 = vrot.slane %v802, %v1168
      %v1171 = vunpack.c.l.s4 1966171168
      %v1172 = vunpack.c.0.s8 %v1171
      %v1173 = vlaneseq
      %v1174 = vshrl.u32 %v1173, 7
      %v1175 = vsub.s32 %v1172, %v1174
      %v1176 = vrot.slane %v1169, %v1175
      %v1177 = vcombine.high %v1176, %v1176
      %v1179 = vadd.f32 %v1086, %v1177
      %v1180 = vcombine.high %v1103, %v1103
      %v1182 = vadd.f32 %v1179, %v1180
      %v1183 = vcombine.high %v936, %v936
      %v1185 = vunpack.c.l.s4 1966171168
      %v1186 = vunpack.c.0.s8 %v1185
      %v1187 = vlaneseq
      %v1188 = vshrl.u32 %v1187, 7
      %v1189 = vsub.s32 %v1186, %v1188
      %v1190 = vrot.slane %v1183, %v1189
      %v1192 = vunpack.c.l.s4 1966171168
      %v1193 = vunpack.c.0.s8 %v1192
      %v1194 = vlaneseq
      %v1195 = vshrl.u32 %v1194, 7
      %v1196 = vsub.s32 %v1193, %v1195
      %v1197 = vrot.slane %v1190, %v1196
      %v1199 = vadd.f32 %v1182, %v1197
      %v1200 = vcombine.high %v1004, %v1004
      %v1202 = vunpack.c.l.s4 1966171168
      %v1203 = vunpack.c.0.s8 %v1202
      %v1204 = vlaneseq
      %v1205 = vshrl.u32 %v1204, 7
      %v1206 = vsub.s32 %v1203, %v1205
      %v1207 = vrot.slane %v1200, %v1206
      %v1208 = vcombine.high %v1207, %v1207
      %v1210 = vunpack.c.l.s4 1966171168
      %v1211 = vunpack.c.0.s8 %v1210
      %v1212 = vlaneseq
      %v1213 = vshrl.u32 %v1212, 7
      %v1214 = vsub.s32 %v1211, %v1213
      %v1215 = vrot.slane %v1208, %v1214
      %v1217 = vadd.f32 %v1199, %v1215
      %v1218 = vcombine.high %v1158, %v1158
      %v1220 = vadd.f32 %v1217, %v1218
      %v1221 = vmax.f32 %v1220, 0.0
      %v1222 = vcombine.high %v802, %v802
      %v1224 = vunpack.c.l.s4 1966171168
      %v1225 = vunpack.c.0.s8 %v1224
      %v1226 = vlaneseq
      %v1227 = vshrl.u32 %v1226, 7
      %v1228 = vsub.s32 %v1225, %v1227
      %v1229 = vrot.slane %v1222, %v1228
      %v1231 = vunpack.c.l.s4 1966171168
      %v1232 = vunpack.c.0.s8 %v1231
      %v1233 = vlaneseq
      %v1234 = vshrl.u32 %v1233, 7
      %v1235 = vsub.s32 %v1232, %v1234
      %v1236 = vrot.slane %v1229, %v1235
      %v1238 = vadd.f32 %v1086, %v1236
      %v1239 = vcombine.high %v869, %v869
      %v1241 = vunpack.c.l.s4 1966171168
      %v1242 = vunpack.c.0.s8 %v1241
      %v1243 = vlaneseq
      %v1244 = vshrl.u32 %v1243, 7
      %v1245 = vsub.s32 %v1242, %v1244
      %v1246 = vrot.slane %v1239, %v1245
      %v1247 = vcombine.high %v1246, %v1246
      %v1249 = vunpack.c.l.s4 1966171168
      %v1250 = vunpack.c.0.s8 %v1249
      %v1251 = vlaneseq
      %v1252 = vshrl.u32 %v1251, 7
      %v1253 = vsub.s32 %v1250, %v1252
      %v1254 = vrot.slane %v1247, %v1253
      %v1256 = vadd.f32 %v1238, %v1254
      %v1257 = vcombine.high %v1197, %v1197
      %v1259 = vadd.f32 %v1256, %v1257
      %v1260 = vcombine.high %v1215, %v1215
      %v1262 = vadd.f32 %v1259, %v1260
      %v1263 = vadd.f32 %v1262, %v1075
      %v1264 = vmax.f32 %v1263, 0.0
      %v1265 = vcombine.high %v1236, %v1236
      %v1267 = vadd.f32 %v1086, %v1265
      %v1268 = vcombine.high %v1254, %v1254
      %v1270 = vadd.f32 %v1267, %v1268
      %v1271 = vadd.f32 %v1270, %v939
      %v1274 = vunpack.c.l.s4 1966171168
      %v1275 = vunpack.c.0.s8 %v1274
      %v1276 = vlaneseq
      %v1277 = vshrl.u32 %v1276, 7
      %v1278 = vsub.s32 %v1275, %v1277
      %v1279 = vrot.slane %v1007, %v1278
      %v1280 = vcombine.high %v1279, %v1279
      %v1282 = vunpack.c.l.s4 1966171168
      %v1283 = vunpack.c.0.s8 %v1282
      %v1284 = vlaneseq
      %v1285 = vshrl.u32 %v1284, 7
      %v1286 = vsub.s32 %v1283, %v1285
      %v1287 = vrot.slane %v1280, %v1286
      %v1289 = vadd.f32 %v1271, %v1287
      %v1292 = vunpack.c.l.s4 1966171168
      %v1293 = vunpack.c.0.s8 %v1292
      %v1294 = vlaneseq
      %v1295 = vshrl.u32 %v1294, 7
      %v1296 = vsub.s32 %v1293, %v1295
      %v1297 = vrot.slane %v1075, %v1296
      %v1299 = vunpack.c.l.s4 1966171168
      %v1300 = vunpack.c.0.s8 %v1299
      %v1301 = vlaneseq
      %v1302 = vshrl.u32 %v1301, 7
      %v1303 = vsub.s32 %v1300, %v1302
      %v1304 = vrot.slane %v1297, %v1303
      %v1305 = vcombine.high %v1304, %v1304
      %v1307 = vadd.f32 %v1289, %v1305
      %v1308 = vmax.f32 %v1307, 0.0
      %v1309 = vadd.f32 %v1086, %v805
      %v1312 = vunpack.c.l.s4 1966171168
      %v1313 = vunpack.c.0.s8 %v1312
      %v1314 = vlaneseq
      %v1315 = vshrl.u32 %v1314, 7
      %v1316 = vsub.s32 %v1313, %v1315
      %v1317 = vrot.slane %v872, %v1316
      %v1318 = vcombine.high %v1317, %v1317
      %v1320 = vunpack.c.l.s4 1966171168
      %v1321 = vunpack.c.0.s8 %v1320
      %v1322 = vlaneseq
      %v1323 = vshrl.u32 %v1322, 7
      %v1324 = vsub.s32 %v1321, %v1323
      %v1325 = vrot.slane %v1318, %v1324
      %v1327 = vadd.f32 %v1309, %v1325
      %v1330 = vunpack.c.l.s4 1966171168
      %v1331 = vunpack.c.0.s8 %v1330
      %v1332 = vlaneseq
      %v1333 = vshrl.u32 %v1332, 7
      %v1334 = vsub.s32 %v1331, %v1333
      %v1335 = vrot.slane %v939, %v1334
      %v1337 = vunpack.c.l.s4 1966171168
      %v1338 = vunpack.c.0.s8 %v1337
      %v1339 = vlaneseq
      %v1340 = vshrl.u32 %v1339, 7
      %v1341 = vsub.s32 %v1338, %v1340
      %v1342 = vrot.slane %v1335, %v1341
      %v1343 = vcombine.high %v1342, %v1342
      %v1345 = vadd.f32 %v1327, %v1343
      %v1346 = vcombine.high %v1287, %v1287
      %v1348 = vadd.f32 %v1345, %v1346
      %v1349 = vcombine.high %v1075, %v1075
      %v1351 = vunpack.c.l.s4 1966171168
      %v1352 = vunpack.c.0.s8 %v1351
      %v1353 = vlaneseq
      %v1354 = vshrl.u32 %v1353, 7
      %v1355 = vsub.s32 %v1352, %v1354
      %v1356 = vrot.slane %v1349, %v1355
      %v1358 = vunpack.c.l.s4 1966171168
      %v1359 = vunpack.c.0.s8 %v1358
      %v1360 = vlaneseq
      %v1361 = vshrl.u32 %v1360, 7
      %v1362 = vsub.s32 %v1359, %v1361
      %v1363 = vrot.slane %v1356, %v1362
      %v1365 = vadd.f32 %v1348, %v1363
      %v1366 = vmax.f32 %v1365, 0.0
      %v1369 = vunpack.c.l.s4 1966171168
      %v1370 = vunpack.c.0.s8 %v1369
      %v1371 = vlaneseq
      %v1372 = vshrl.u32 %v1371, 7
      %v1373 = vsub.s32 %v1370, %v1372
      %v1374 = vrot.slane %v805, %v1373
      %v1376 = vunpack.c.l.s4 1966171168
      %v1377 = vunpack.c.0.s8 %v1376
      %v1378 = vlaneseq
      %v1379 = vshrl.u32 %v1378, 7
      %v1380 = vsub.s32 %v1377, %v1379
      %v1381 = vrot.slane %v1374, %v1380
      %v1382 = vcombine.high %v1381, %v1381
      %v1384 = vadd.f32 %v1086, %v1382
      %v1385 = vcombine.high %v1325, %v1325
      %v1387 = vadd.f32 %v1384, %v1385
      %v1388 = vcombine.high %v939, %v939
      %v1390 = vunpack.c.l.s4 1966171168
      %v1391 = vunpack.c.0.s8 %v1390
      %v1392 = vlaneseq
      %v1393 = vshrl.u32 %v1392, 7
      %v1394 = vsub.s32 %v1391, %v1393
      %v1395 = vrot.slane %v1388, %v1394
      %v1397 = vunpack.c.l.s4 1966171168
      %v1398 = vunpack.c.0.s8 %v1397
      %v1399 = vlaneseq
      %v1400 = vshrl.u32 %v1399, 7
      %v1401 = vsub.s32 %v1398, %v1400
      %v1402 = vrot.slane %v1395, %v1401
      %v1404 = vadd.f32 %v1387, %v1402
      %v1405 = vcombine.high %v1007, %v1007
      %v1407 = vunpack.c.l.s4 1966171168
      %v1408 = vunpack.c.0.s8 %v1407
      %v1409 = vlaneseq
      %v1410 = vshrl.u32 %v1409, 7
      %v1411 = vsub.s32 %v1408, %v1410
      %v1412 = vrot.slane %v1405, %v1411
      %v1413 = vcombine.high %v1412, %v1412
      %v1415 = vunpack.c.l.s4 1966171168
      %v1416 = vunpack.c.0.s8 %v1415
      %v1417 = vlaneseq
      %v1418 = vshrl.u32 %v1417, 7
      %v1419 = vsub.s32 %v1416, %v1418
      %v1420 = vrot.slane %v1413, %v1419
      %v1422 = vadd.f32 %v1404, %v1420
      %v1423 = vcombine.high %v1363, %v1363
      %v1425 = vadd.f32 %v1422, %v1423
      %v1426 = vmax.f32 %v1425, 0.0
      %v1427 = vcombine.high %v805, %v805
      %v1429 = vunpack.c.l.s4 1966171168
      %v1430 = vunpack.c.0.s8 %v1429
      %v1431 = vlaneseq
      %v1432 = vshrl.u32 %v1431, 7
      %v1433 = vsub.s32 %v1430, %v1432
      %v1434 = vrot.slane %v1427, %v1433
      %v1436 = vunpack.c.l.s4 1966171168
      %v1437 = vunpack.c.0.s8 %v1436
      %v1438 = vlaneseq
      %v1439 = vshrl.u32 %v1438, 7
      %v1440 = vsub.s32 %v1437, %v1439
      %v1441 = vrot.slane %v1434, %v1440
      %v1443 = vadd.f32 %v1086, %v1441
      %v1444 = vcombine.high %v872, %v872
      %v1446 = vunpack.c.l.s4 1966171168
      %v1447 = vunpack.c.0.s8 %v1446
      %v1448 = vlaneseq
      %v1449 = vshrl.u32 %v1448, 7
      %v1450 = vsub.s32 %v1447, %v1449
      %v1451 = vrot.slane %v1444, %v1450
      %v1452 = vcombine.high %v1451, %v1451
      %v1454 = vunpack.c.l.s4 1966171168
      %v1455 = vunpack.c.0.s8 %v1454
      %v1456 = vlaneseq
      %v1457 = vshrl.u32 %v1456, 7
      %v1458 = vsub.s32 %v1455, %v1457
      %v1459 = vrot.slane %v1452, %v1458
      %v1461 = vadd.f32 %v1443, %v1459
      %v1462 = vcombine.high %v1402, %v1402
      %v1464 = vadd.f32 %v1461, %v1462
      %v1465 = vcombine.high %v1420, %v1420
      %v1467 = vadd.f32 %v1464, %v1465
      %v1468 = vadd.f32 %v1467, %v1080
      %v1469 = vmax.f32 %v1468, 0.0
      %v1470 = vcombine.high %v1441, %v1441
      %v1472 = vadd.f32 %v1086, %v1470
      %v1473 = vcombine.high %v1459, %v1459
      %v1475 = vadd.f32 %v1472, %v1473
      %v1476 = vadd.f32 %v1475, %v944
      %v1479 = vunpack.c.l.s4 1966171168
      %v1480 = vunpack.c.0.s8 %v1479
      %v1481 = vlaneseq
      %v1482 = vshrl.u32 %v1481, 7
      %v1483 = vsub.s32 %v1480, %v1482
      %v1484 = vrot.slane %v1012, %v1483
      %v1485 = vcombine.high %v1484, %v1484
      %v1487 = vunpack.c.l.s4 1966171168
      %v1488 = vunpack.c.0.s8 %v1487
      %v1489 = vlaneseq
      %v1490 = vshrl.u32 %v1489, 7
      %v1491 = vsub.s32 %v1488, %v1490
      %v1492 = vrot.slane %v1485, %v1491
      %v1494 = vadd.f32 %v1476, %v1492
      %v1497 = vunpack.c.l.s4 1966171168
      %v1498 = vunpack.c.0.s8 %v1497
      %v1499 = vlaneseq
      %v1500 = vshrl.u32 %v1499, 7
      %v1501 = vsub.s32 %v1498, %v1500
      %v1502 = vrot.slane %v1080, %v1501
      %v1504 = vunpack.c.l.s4 1966171168
      %v1505 = vunpack.c.0.s8 %v1504
      %v1506 = vlaneseq
      %v1507 = vshrl.u32 %v1506, 7
      %v1508 = vsub.s32 %v1505, %v1507
      %v1509 = vrot.slane %v1502, %v1508
      %v1510 = vcombine.high %v1509, %v1509
      %v1512 = vadd.f32 %v1494, %v1510
      %v1513 = vmax.f32 %v1512, 0.0
      %v1514 = vadd.f32 %v1086, %v810
      %v1517 = vunpack.c.l.s4 1966171168
      %v1518 = vunpack.c.0.s8 %v1517
      %v1519 = vlaneseq
      %v1520 = vshrl.u32 %v1519, 7
      %v1521 = vsub.s32 %v1518, %v1520
      %v1522 = vrot.slane %v877, %v1521
      %v1523 = vcombine.high %v1522, %v1522
      %v1525 = vunpack.c.l.s4 1966171168
      %v1526 = vunpack.c.0.s8 %v1525
      %v1527 = vlaneseq
      %v1528 = vshrl.u32 %v1527, 7
      %v1529 = vsub.s32 %v1526, %v1528
      %v1530 = vrot.slane %v1523, %v1529
      %v1532 = vadd.f32 %v1514, %v1530
      %v1535 = vunpack.c.l.s4 1966171168
      %v1536 = vunpack.c.0.s8 %v1535
      %v1537 = vlaneseq
      %v1538 = vshrl.u32 %v1537, 7
      %v1539 = vsub.s32 %v1536, %v1538
      %v1540 = vrot.slane %v944, %v1539
      %v1542 = vunpack.c.l.s4 1966171168
      %v1543 = vunpack.c.0.s8 %v1542
      %v1544 = vlaneseq
      %v1545 = vshrl.u32 %v1544, 7
      %v1546 = vsub.s32 %v1543, %v1545
      %v1547 = vrot.slane %v1540, %v1546
      %v1548 = vcombine.high %v1547, %v1547
      %v1550 = vadd.f32 %v1532, %v1548
      %v1551 = vcombine.high %v1492, %v1492
      %v1553 = vadd.f32 %v1550, %v1551
      %v1554 = vcombine.high %v1080, %v1080
      %v1556 = vunpack.c.l.s4 1966171168
      %v1557 = vunpack.c.0.s8 %v1556
      %v1558 = vlaneseq
      %v1559 = vshrl.u32 %v1558, 7
      %v1560 = vsub.s32 %v1557, %v1559
      %v1561 = vrot.slane %v1554, %v1560
      %v1563 = vunpack.c.l.s4 1966171168
      %v1564 = vunpack.c.0.s8 %v1563
      %v1565 = vlaneseq
      %v1566 = vshrl.u32 %v1565, 7
      %v1567 = vsub.s32 %v1564, %v1566
      %v1568 = vrot.slane %v1561, %v1567
      %v1570 = vadd.f32 %v1553, %v1568
      %v1571 = vmax.f32 %v1570, 0.0
      %v1574 = vunpack.c.l.s4 1966171168
      %v1575 = vunpack.c.0.s8 %v1574
      %v1576 = vlaneseq
      %v1577 = vshrl.u32 %v1576, 7
      %v1578 = vsub.s32 %v1575, %v1577
      %v1579 = vrot.slane %v810, %v1578
      %v1581 = vunpack.c.l.s4 1966171168
      %v1582 = vunpack.c.0.s8 %v1581
      %v1583 = vlaneseq
      %v1584 = vshrl.u32 %v1583, 7
      %v1585 = vsub.s32 %v1582, %v1584
      %v1586 = vrot.slane %v1579, %v1585
      %v1587 = vcombine.high %v1586, %v1586
      %v1589 = vadd.f32 %v1086, %v1587
      %v1590 = vcombine.high %v1530, %v1530
      %v1592 = vadd.f32 %v1589, %v1590
      %v1593 = vcombine.high %v944, %v944
      %v1595 = vunpack.c.l.s4 1966171168
      %v1596 = vunpack.c.0.s8 %v1595
      %v1597 = vlaneseq
      %v1598 = vshrl.u32 %v1597, 7
      %v1599 = vsub.s32 %v1596, %v1598
      %v1600 = vrot.slane %v1593, %v1599
      %v1602 = vunpack.c.l.s4 1966171168
      %v1603 = vunpack.c.0.s8 %v1602
      %v1604 = vlaneseq
      %v1605 = vshrl.u32 %v1604, 7
      %v1606 = vsub.s32 %v1603, %v1605
      %v1607 = vrot.slane %v1600, %v1606
      %v1609 = vadd.f32 %v1592, %v1607
      %v1610 = vcombine.high %v1012, %v1012
      %v1612 = vunpack.c.l.s4 1966171168
      %v1613 = vunpack.c.0.s8 %v1612
      %v1614 = vlaneseq
      %v1615 = vshrl.u32 %v1614, 7
      %v1616 = vsub.s32 %v1613, %v1615
      %v1617 = vrot.slane %v1610, %v1616
      %v1618 = vcombine.high %v1617, %v1617
      %v1620 = vunpack.c.l.s4 1966171168
      %v1621 = vunpack.c.0.s8 %v1620
      %v1622 = vlaneseq
      %v1623 = vshrl.u32 %v1622, 7
      %v1624 = vsub.s32 %v1621, %v1623
      %v1625 = vrot.slane %v1618, %v1624
      %v1627 = vadd.f32 %v1609, %v1625
      %v1628 = vcombine.high %v1568, %v1568
      %v1630 = vadd.f32 %v1627, %v1628
      %v1631 = vmax.f32 %v1630, 0.0
      %v1632 = vcombine.high %v810, %v810
      %v1634 = vunpack.c.l.s4 1966171168
      %v1635 = vunpack.c.0.s8 %v1634
      %v1636 = vlaneseq
      %v1637 = vshrl.u32 %v1636, 7
      %v1638 = vsub.s32 %v1635, %v1637
      %v1639 = vrot.slane %v1632, %v1638
      %v1641 = vunpack.c.l.s4 1966171168
      %v1642 = vunpack.c.0.s8 %v1641
      %v1643 = vlaneseq
      %v1644 = vshrl.u32 %v1643, 7
      %v1645 = vsub.s32 %v1642, %v1644
      %v1646 = vrot.slane %v1639, %v1645
      %v1648 = vadd.f32 %v1086, %v1646
      %v1649 = vcombine.high %v877, %v877
      %v1651 = vunpack.c.l.s4 1966171168
      %v1652 = vunpack.c.0.s8 %v1651
      %v1653 = vlaneseq
      %v1654 = vshrl.u32 %v1653, 7
      %v1655 = vsub.s32 %v1652, %v1654
      %v1656 = vrot.slane %v1649, %v1655
      %v1657 = vcombine.high %v1656, %v1656
      %v1659 = vunpack.c.l.s4 1966171168
      %v1660 = vunpack.c.0.s8 %v1659
      %v1661 = vlaneseq
      %v1662 = vshrl.u32 %v1661, 7
      %v1663 = vsub.s32 %v1660, %v1662
      %v1664 = vrot.slane %v1657, %v1663
      %v1666 = vadd.f32 %v1648, %v1664
      %v1667 = vcombine.high %v1607, %v1607
      %v1669 = vadd.f32 %v1666, %v1667
      %v1670 = vcombine.high %v1625, %v1625
      %v1672 = vadd.f32 %v1669, %v1670
      %v1673 = vadd.f32 %v1672, %v1083
      %v1674 = vmax.f32 %v1673, 0.0
      %v1675 = vcombine.high %v1646, %v1646
      %v1677 = vadd.f32 %v1086, %v1675
      %v1678 = vcombine.high %v1664, %v1664
      %v1680 = vadd.f32 %v1677, %v1678
      %v1681 = vadd.f32 %v1680, %v947
      %v1684 = vunpack.c.l.s4 1966171168
      %v1685 = vunpack.c.0.s8 %v1684
      %v1686 = vlaneseq
      %v1687 = vshrl.u32 %v1686, 7
      %v1688 = vsub.s32 %v1685, %v1687
      %v1689 = vrot.slane %v1015, %v1688
      %v1690 = vcombine.high %v1689, %v1689
      %v1692 = vunpack.c.l.s4 1966171168
      %v1693 = vunpack.c.0.s8 %v1692
      %v1694 = vlaneseq
      %v1695 = vshrl.u32 %v1694, 7
      %v1696 = vsub.s32 %v1693, %v1695
      %v1697 = vrot.slane %v1690, %v1696
      %v1699 = vadd.f32 %v1681, %v1697
      %v1702 = vunpack.c.l.s4 1966171168
      %v1703 = vunpack.c.0.s8 %v1702
      %v1704 = vlaneseq
      %v1705 = vshrl.u32 %v1704, 7
      %v1706 = vsub.s32 %v1703, %v1705
      %v1707 = vrot.slane %v1083, %v1706
      %v1709 = vunpack.c.l.s4 1966171168
      %v1710 = vunpack.c.0.s8 %v1709
      %v1711 = vlaneseq
      %v1712 = vshrl.u32 %v1711, 7
      %v1713 = vsub.s32 %v1710, %v1712
      %v1714 = vrot.slane %v1707, %v1713
      %v1715 = vcombine.high %v1714, %v1714
      %v1717 = vadd.f32 %v1699, %v1715
      %v1718 = vmax.f32 %v1717, 0.0
      %v1720 = vlaneseq
      %v1721 = vshrl.u32 %v1720, 7
      %v1722 = vsub.s32 0, %v1721
      %v1723 = vrot.slane %v1221, %v1722
      %v1726 = vlaneseq
      %v1727 = vshrl.u32 %v1726, 7
      %v1728 = vsub.s32 0, %v1727
      %v1729 = vrot.slane %v1264, %v1728
      %v1732 = vlaneseq
      %v1733 = vshrl.u32 %v1732, 7
      %v1734 = vsub.s32 0, %v1733
      %v1735 = vrot.slane %v1308, %v1734
      %v1738 = vlaneseq
      %v1739 = vshrl.u32 %v1738, 7
      %v1740 = vsub.s32 0, %v1739
      %v1741 = vrot.slane %v1366, %v1740
      %v1744 = vlaneseq
      %v1745 = vshrl.u32 %v1744, 7
      %v1746 = vsub.s32 0, %v1745
      %v1747 = vrot.slane %v1426, %v1746
      %v1750 = vlaneseq
      %v1751 = vshrl.u32 %v1750, 7
      %v1752 = vsub.s32 0, %v1751
      %v1753 = vrot.slane %v1469, %v1752
      %v1756 = vlaneseq
      %v1757 = vshrl.u32 %v1756, 7
      %v1758 = vsub.s32 0, %v1757
      %v1759 = vrot.slane %v1513, %v1758
      %v1762 = vlaneseq
      %v1763 = vshrl.u32 %v1762, 7
      %v1764 = vsub.s32 0, %v1763
      %v1765 = vrot.slane %v1631, %v1764
      %v1768 = vlaneseq
      %v1769 = vshrl.u32 %v1768, 7
      %v1770 = vsub.s32 0, %v1769
      %v1771 = vrot.slane %v1674, %v1770
      %v1774 = vlaneseq
      %v1775 = vshrl.u32 %v1774, 7
      %v1776 = vsub.s32 0, %v1775
      %v1777 = vrot.slane %v1718, %v1776
      %vm1779 = vcmask 1040384
      %v1780 = vsel %vm1779, %v1161, %v1723
      %vm1781 = vcmask 1041408
      %v1782 = vsel %vm1781, %v1780, %v1729
      %vm1783 = vcmask 1042432
      %v1784 = vsel %vm1783, %v1782, %v1735
      %vm1785 = vcmask 1043456
      %v1786 = vsel %vm1785, %v1784, %v1741
      %vm1787 = vcmask 1044480
      %v1788 = vsel %vm1787, %v1786, %v1747
      %v1789 = vsel %vm763, %v1788, %v1753
      %vm1790 = vcmask 1046528
      %v1791 = vsel %vm1790, %v1789, %v1759
      %v1792 = vsel %vm1779, %v1571, %v1765
      %v1793 = vsel %vm1781, %v1792, %v1771
      %v1794 = vsel %vm1783, %v1793, %v1777
      %v1795 = vld [vmem:[%s4] sm:$0xf]
      %v1796 = vld [vmem:[%s4 + $0x4] sm:$0xf]
      %v1797 = vld [vmem:[%s4 + $0x8] sm:$0xf]
      %v1798 = vld [vmem:[%s4 + $0xc] sm:$0xf]
      %v1799 = vld [vmem:[%s4 + $0x10] sm:$0xf]
      %v1800 = vld [vmem:[%s4 + $0x14] sm:$0xf]
      %v1801 = vld [vmem:[%s4 + $0x18] sm:$0xf]
      %v1802 = vld [vmem:[%s4 + $0x1c] sm:$0xf]
      %v1803 = vld [vmem:[%s4 + $0x20] sm:$0xf]
      %v1804 = vpack.c.bf16 %v1794, %v1791
      %v1814 = vunpack.c.l.b16 %v1795
      %v1815 = vunpack.c.l.b16 %v1796
      %v1816 = vunpack.c.l.b16 %v1797
      %v1817 = vunpack.c.l.b16 %v1798
      %v1818 = vunpack.c.l.b16 %v1799
      %v1819 = vunpack.c.l.b16 %v1800
      %v1820 = vunpack.c.l.b16 %v1801
      %v1821 = vunpack.c.l.b16 %v1802
      %v1822 = vunpack.c.l.b16 %v1803
      %v1823 = vpack.c.b16 %v1815, %v1814
      %v1824 = vpack.c.b16 %v1817, %v1816
      %v1825 = vpack.c.b16 %v1819, %v1818
      %v1826 = vpack.c.b16 %v1821, %v1820
      %v1827 = vpack.c.b16 %v1822, %v1822
      %vm1832 = vcmask 588800
      %v1834 = vsel %vm1832, %v1804, 0
      %v1837 = vsel %vm1785, %v1827, 0
      %1839 = vmatprep.subr.bf16.mxu0 0
      %1840 = vmatpush1.bf16.msra.mxu0 %v1823
      %1841 = vmatprep.subr.bf16.mxu0 0
      %1842 = vmatpush1.bf16.msra.mxu0 %v1824
      %1843 = vmatprep.subr.bf16.mxu0 0
      %1844 = vmatpush1.bf16.msra.mxu0 %v1825
      %1845 = vmatprep.subr.bf16.mxu0 0
      %1846 = vmatpush1.bf16.msra.mxu0 %v1826
      %1847 = vmatprep.subr.bf16.mxu0 0
      %1848 = vmatpush1.bf16.msra.mxu0 %v1837
      %1849 = vmatprep.subr.bf16.mxu0 0
      %1850 = vmatpush1.bf16.msra.mxu0 0
      %1851 = vmatprep.subr.bf16.mxu0 0
      %1852 = vmatpush1.bf16.msra.mxu0 0
      %1853 = vmatprep.subr.bf16.mxu0 0
      %1854 = vmatpush1.bf16.msra.mxu0 0
      %1855 = vmatprep.subr.bf16.mxu0 0
      %1856 = vmatpush1.bf16.msra.mxu0 0
      %1857 = vmatprep.subr.bf16.mxu0 0
      %1858 = vmatpush1.bf16.msra.mxu0 0
      %1859 = vmatprep.subr.bf16.mxu0 0
      %1860 = vmatpush1.bf16.msra.mxu0 0
      %1861 = vmatprep.subr.bf16.mxu0 0
      %1862 = vmatpush1.bf16.msra.mxu0 0
      %1863 = vmatprep.subr.bf16.mxu0 0
      %1864 = vmatpush1.bf16.msra.mxu0 0
      %1865 = vmatprep.subr.bf16.mxu0 0
      %1866 = vmatpush1.bf16.msra.mxu0 0
      %1867 = vmatprep.subr.bf16.mxu0 0
      %1868 = vmatpush1.bf16.msra.mxu0 0
      %1869 = vmatprep.subr.bf16.mxu0 0
      %1870 = vmatpush1.bf16.msra.mxu0 0
      %1871 = vmatprep.mubr.bf16.mxu0 0
      %1872 = vmatmul.mubr.bf16.gmra.mrb[0].mxu0 %v1834
      %v1873 = vpop.f32.mrb[0].mxu0
      %v1874 = vadd.f32 0.0, %v1873
      %v1875 = vpop.f32.mrb[0].mxu0
      %v1876 = vpop.f32.mrb[0].mxu0
      %v1877 = vpop.f32.mrb[0].mxu0
      %1878 = vdwg.mxu0
      %s1879 = scalar_lea.vmem %s4, 36
      %v1880 = vld [vmem:[%s1879] sm:$0xf]
      %v1881 = vld [vmem:[%s1879 + $0x4] sm:$0xf]
      %v1882 = vld [vmem:[%s1879 + $0x8] sm:$0xf]
      %v1883 = vld [vmem:[%s1879 + $0xc] sm:$0xf]
      %v1884 = vld [vmem:[%s1879 + $0x10] sm:$0xf]
      %v1885 = vld [vmem:[%s1879 + $0x14] sm:$0xf]
      %v1886 = vld [vmem:[%s1879 + $0x18] sm:$0xf]
      %v1887 = vld [vmem:[%s1879 + $0x1c] sm:$0xf]
      %v1888 = vld [vmem:[%s1879 + $0x20] sm:$0xf]
      %v1898 = vunpack.c.l.b16 %v1880
      %v1899 = vunpack.c.l.b16 %v1881
      %v1900 = vunpack.c.l.b16 %v1882
      %v1901 = vunpack.c.l.b16 %v1883
      %v1902 = vunpack.c.l.b16 %v1884
      %v1903 = vunpack.c.l.b16 %v1885
      %v1904 = vunpack.c.l.b16 %v1886
      %v1905 = vunpack.c.l.b16 %v1887
      %v1906 = vunpack.c.l.b16 %v1888
      %v1907 = vpack.c.b16 %v1899, %v1898
      %v1908 = vpack.c.b16 %v1901, %v1900
      %v1909 = vpack.c.b16 %v1903, %v1902
      %v1910 = vpack.c.b16 %v1905, %v1904
      %v1911 = vpack.c.b16 %v1906, %v1906
      %v1917 = vsel %vm1785, %v1911, 0
      %1919 = vmatprep.subr.bf16.mxu0 0
      %1920 = vmatpush1.bf16.msra.mxu0 %v1907
      %1921 = vmatprep.subr.bf16.mxu0 0
      %1922 = vmatpush1.bf16.msra.mxu0 %v1908
      %1923 = vmatprep.subr.bf16.mxu0 0
      %1924 = vmatpush1.bf16.msra.mxu0 %v1909
      %1925 = vmatprep.subr.bf16.mxu0 0
      %1926 = vmatpush1.bf16.msra.mxu0 %v1910
      %1927 = vmatprep.subr.bf16.mxu0 0
      %1928 = vmatpush1.bf16.msra.mxu0 %v1917
      %1929 = vmatprep.subr.bf16.mxu0 0
      %1930 = vmatpush1.bf16.msra.mxu0 0
      %1931 = vmatprep.subr.bf16.mxu0 0
      %1932 = vmatpush1.bf16.msra.mxu0 0
      %1933 = vmatprep.subr.bf16.mxu0 0
      %1934 = vmatpush1.bf16.msra.mxu0 0
      %1935 = vmatprep.subr.bf16.mxu0 0
      %1936 = vmatpush1.bf16.msra.mxu0 0
      %1937 = vmatprep.subr.bf16.mxu0 0
      %1938 = vmatpush1.bf16.msra.mxu0 0
      %1939 = vmatprep.subr.bf16.mxu0 0
      %1940 = vmatpush1.bf16.msra.mxu0 0
      %1941 = vmatprep.subr.bf16.mxu0 0
      %1942 = vmatpush1.bf16.msra.mxu0 0
      %1943 = vmatprep.subr.bf16.mxu0 0
      %1944 = vmatpush1.bf16.msra.mxu0 0
      %1945 = vmatprep.subr.bf16.mxu0 0
      %1946 = vmatpush1.bf16.msra.mxu0 0
      %1947 = vmatprep.subr.bf16.mxu0 0
      %1948 = vmatpush1.bf16.msra.mxu0 0
      %1949 = vmatprep.subr.bf16.mxu0 0
      %1950 = vmatpush1.bf16.msra.mxu0 0
      %1951 = vmatprep.mubr.bf16.mxu0 0
      %1952 = vmatmul.mubr.bf16.gmra.mrb[0].mxu0 %v1834
      %v1953 = vpop.f32.mrb[0].mxu0
      %v1954 = vadd.f32 0.0, %v1953
      %v1955 = vpop.f32.mrb[0].mxu0
      %v1956 = vpop.f32.mrb[0].mxu0
      %v1957 = vadd.f32 0.0, %v1956
      %v1958 = vpop.f32.mrb[0].mxu0
      %1959 = vdwg.mxu0
      %s1960 = scalar_lea.vmem %s4, 72
      %v1961 = vld [vmem:[%s1960] sm:$0xf]
      %v1962 = vld [vmem:[%s1960 + $0x4] sm:$0xf]
      %v1963 = vld [vmem:[%s1960 + $0x8] sm:$0xf]
      %v1964 = vld [vmem:[%s1960 + $0xc] sm:$0xf]
      %v1965 = vld [vmem:[%s1960 + $0x10] sm:$0xf]
      %v1966 = vld [vmem:[%s1960 + $0x14] sm:$0xf]
      %v1967 = vld [vmem:[%s1960 + $0x18] sm:$0xf]
      %v1968 = vld [vmem:[%s1960 + $0x1c] sm:$0xf]
      %v1969 = vld [vmem:[%s1960 + $0x20] sm:$0xf]
      %v1979 = vunpack.c.l.b16 %v1961
      %v1980 = vunpack.c.l.b16 %v1962
      %v1981 = vunpack.c.l.b16 %v1963
      %v1982 = vunpack.c.l.b16 %v1964
      %v1983 = vunpack.c.l.b16 %v1965
      %v1984 = vunpack.c.l.b16 %v1966
      %v1985 = vunpack.c.l.b16 %v1967
      %v1986 = vunpack.c.l.b16 %v1968
      %v1987 = vunpack.c.l.b16 %v1969
      %v1988 = vpack.c.b16 %v1980, %v1979
      %v1989 = vpack.c.b16 %v1982, %v1981
      %v1990 = vpack.c.b16 %v1984, %v1983
      %v1991 = vpack.c.b16 %v1986, %v1985
      %v1992 = vpack.c.b16 %v1987, %v1987
      %v1998 = vsel %vm1785, %v1992, 0
      %2000 = vmatprep.subr.bf16.mxu0 0
      %2001 = vmatpush1.bf16.msra.mxu0 %v1988
      %2002 = vmatprep.subr.bf16.mxu0 0
      %2003 = vmatpush1.bf16.msra.mxu0 %v1989
      %2004 = vmatprep.subr.bf16.mxu0 0
      %2005 = vmatpush1.bf16.msra.mxu0 %v1990
      %2006 = vmatprep.subr.bf16.mxu0 0
      %2007 = vmatpush1.bf16.msra.mxu0 %v1991
      %2008 = vmatprep.subr.bf16.mxu0 0
      %2009 = vmatpush1.bf16.msra.mxu0 %v1998
      %2010 = vmatprep.subr.bf16.mxu0 0
      %2011 = vmatpush1.bf16.msra.mxu0 0
      %2012 = vmatprep.subr.bf16.mxu0 0
      %2013 = vmatpush1.bf16.msra.mxu0 0
      %2014 = vmatprep.subr.bf16.mxu0 0
      %2015 = vmatpush1.bf16.msra.mxu0 0
      %2016 = vmatprep.subr.bf16.mxu0 0
      %2017 = vmatpush1.bf16.msra.mxu0 0
      %2018 = vmatprep.subr.bf16.mxu0 0
      %2019 = vmatpush1.bf16.msra.mxu0 0
      %2020 = vmatprep.subr.bf16.mxu0 0
      %2021 = vmatpush1.bf16.msra.mxu0 0
      %2022 = vmatprep.subr.bf16.mxu0 0
      %2023 = vmatpush1.bf16.msra.mxu0 0
      %2024 = vmatprep.subr.bf16.mxu0 0
      %2025 = vmatpush1.bf16.msra.mxu0 0
      %2026 = vmatprep.subr.bf16.mxu0 0
      %2027 = vmatpush1.bf16.msra.mxu0 0
      %2028 = vmatprep.subr.bf16.mxu0 0
      %2029 = vmatpush1.bf16.msra.mxu0 0
      %2030 = vmatprep.subr.bf16.mxu0 0
      %2031 = vmatpush1.bf16.msra.mxu0 0
      %2032 = vmatprep.mubr.bf16.mxu0 0
      %2033 = vmatmul.mubr.bf16.gmra.mrb[0].mxu0 %v1834
      %v2034 = vpop.f32.mrb[0].mxu0
      %v2035 = vadd.f32 0.0, %v2034
      %v2036 = vpop.f32.mrb[0].mxu0
      %v2037 = vpop.f32.mrb[0].mxu0
      %v2038 = vadd.f32 0.0, %v2037
      %v2039 = vpop.f32.mrb[0].mxu0
      %2040 = vdwg.mxu0
      %s2041 = scalar_lea.vmem %s4, 108
      %v2042 = vld [vmem:[%s2041] sm:$0xf]
      %v2043 = vld [vmem:[%s2041 + $0x4] sm:$0xf]
      %v2044 = vld [vmem:[%s2041 + $0x8] sm:$0xf]
      %v2045 = vld [vmem:[%s2041 + $0xc] sm:$0xf]
      %v2046 = vld [vmem:[%s2041 + $0x10] sm:$0xf]
      %v2047 = vld [vmem:[%s2041 + $0x14] sm:$0xf]
      %v2048 = vld [vmem:[%s2041 + $0x18] sm:$0xf]
      %v2049 = vld [vmem:[%s2041 + $0x1c] sm:$0xf]
      %v2050 = vld [vmem:[%s2041 + $0x20] sm:$0xf]
      %v2060 = vunpack.c.l.b16 %v2042
      %v2061 = vunpack.c.l.b16 %v2043
      %v2062 = vunpack.c.l.b16 %v2044
      %v2063 = vunpack.c.l.b16 %v2045
      %v2064 = vunpack.c.l.b16 %v2046
      %v2065 = vunpack.c.l.b16 %v2047
      %v2066 = vunpack.c.l.b16 %v2048
      %v2067 = vunpack.c.l.b16 %v2049
      %v2068 = vunpack.c.l.b16 %v2050
      %v2069 = vpack.c.b16 %v2061, %v2060
      %v2070 = vpack.c.b16 %v2063, %v2062
      %v2071 = vpack.c.b16 %v2065, %v2064
      %v2072 = vpack.c.b16 %v2067, %v2066
      %v2073 = vpack.c.b16 %v2068, %v2068
      %v2079 = vsel %vm1785, %v2073, 0
      %2081 = vmatprep.subr.bf16.mxu0 0
      %2082 = vmatpush1.bf16.msra.mxu0 %v2069
      %2083 = vmatprep.subr.bf16.mxu0 0
      %2084 = vmatpush1.bf16.msra.mxu0 %v2070
      %2085 = vmatprep.subr.bf16.mxu0 0
      %2086 = vmatpush1.bf16.msra.mxu0 %v2071
      %2087 = vmatprep.subr.bf16.mxu0 0
      %2088 = vmatpush1.bf16.msra.mxu0 %v2072
      %2089 = vmatprep.subr.bf16.mxu0 0
      %2090 = vmatpush1.bf16.msra.mxu0 %v2079
      %2091 = vmatprep.subr.bf16.mxu0 0
      %2092 = vmatpush1.bf16.msra.mxu0 0
      %2093 = vmatprep.subr.bf16.mxu0 0
      %2094 = vmatpush1.bf16.msra.mxu0 0
      %2095 = vmatprep.subr.bf16.mxu0 0
      %2096 = vmatpush1.bf16.msra.mxu0 0
      %2097 = vmatprep.subr.bf16.mxu0 0
      %2098 = vmatpush1.bf16.msra.mxu0 0
      %2099 = vmatprep.subr.bf16.mxu0 0
      %2100 = vmatpush1.bf16.msra.mxu0 0
      %2101 = vmatprep.subr.bf16.mxu0 0
      %2102 = vmatpush1.bf16.msra.mxu0 0
      %2103 = vmatprep.subr.bf16.mxu0 0
      %2104 = vmatpush1.bf16.msra.mxu0 0
      %2105 = vmatprep.subr.bf16.mxu0 0
      %2106 = vmatpush1.bf16.msra.mxu0 0
      %2107 = vmatprep.subr.bf16.mxu0 0
      %2108 = vmatpush1.bf16.msra.mxu0 0
      %2109 = vmatprep.subr.bf16.mxu0 0
      %2110 = vmatpush1.bf16.msra.mxu0 0
      %2111 = vmatprep.subr.bf16.mxu0 0
      %2112 = vmatpush1.bf16.msra.mxu0 0
      %2113 = vmatprep.mubr.bf16.mxu0 0
      %2114 = vmatmul.mubr.bf16.gmra.mrb[0].mxu0 %v1834
      %v2115 = vpop.f32.mrb[0].mxu0
      %v2116 = vadd.f32 0.0, %v2115
      %v2117 = vpop.f32.mrb[0].mxu0
      %v2118 = vpop.f32.mrb[0].mxu0
      %v2119 = vadd.f32 0.0, %v2118
      %v2120 = vpop.f32.mrb[0].mxu0
      %2121 = vdwg.mxu0
      %s2122 = scalar_lea.vmem %s4, 144
      %v2123 = vld [vmem:[%s2122] sm:$0xf]
      %v2124 = vld [vmem:[%s2122 + $0x4] sm:$0xf]
      %v2125 = vld [vmem:[%s2122 + $0x8] sm:$0xf]
      %v2126 = vld [vmem:[%s2122 + $0xc] sm:$0xf]
      %v2127 = vld [vmem:[%s2122 + $0x10] sm:$0xf]
      %v2128 = vld [vmem:[%s2122 + $0x14] sm:$0xf]
      %v2129 = vld [vmem:[%s2122 + $0x18] sm:$0xf]
      %v2130 = vld [vmem:[%s2122 + $0x1c] sm:$0xf]
      %v2131 = vld [vmem:[%s2122 + $0x20] sm:$0xf]
      %v2141 = vunpack.c.l.b16 %v2123
      %v2142 = vunpack.c.l.b16 %v2124
      %v2143 = vunpack.c.l.b16 %v2125
      %v2144 = vunpack.c.l.b16 %v2126
      %v2145 = vunpack.c.l.b16 %v2127
      %v2146 = vunpack.c.l.b16 %v2128
      %v2147 = vunpack.c.l.b16 %v2129
      %v2148 = vunpack.c.l.b16 %v2130
      %v2149 = vunpack.c.l.b16 %v2131
      %v2150 = vpack.c.b16 %v2142, %v2141
      %v2151 = vpack.c.b16 %v2144, %v2143
      %v2152 = vpack.c.b16 %v2146, %v2145
      %v2153 = vpack.c.b16 %v2148, %v2147
      %v2154 = vpack.c.b16 %v2149, %v2149
      %v2160 = vsel %vm1785, %v2154, 0
      %2162 = vmatprep.subr.bf16.mxu0 0
      %2163 = vmatpush1.bf16.msra.mxu0 %v2150
      %2164 = vmatprep.subr.bf16.mxu0 0
      %2165 = vmatpush1.bf16.msra.mxu0 %v2151
      %2166 = vmatprep.subr.bf16.mxu0 0
      %2167 = vmatpush1.bf16.msra.mxu0 %v2152
      %2168 = vmatprep.subr.bf16.mxu0 0
      %2169 = vmatpush1.bf16.msra.mxu0 %v2153
      %2170 = vmatprep.subr.bf16.mxu0 0
      %2171 = vmatpush1.bf16.msra.mxu0 %v2160
      %2172 = vmatprep.subr.bf16.mxu0 0
      %2173 = vmatpush1.bf16.msra.mxu0 0
      %2174 = vmatprep.subr.bf16.mxu0 0
      %2175 = vmatpush1.bf16.msra.mxu0 0
      %2176 = vmatprep.subr.bf16.mxu0 0
      %2177 = vmatpush1.bf16.msra.mxu0 0
      %2178 = vmatprep.subr.bf16.mxu0 0
      %2179 = vmatpush1.bf16.msra.mxu0 0
      %2180 = vmatprep.subr.bf16.mxu0 0
      %2181 = vmatpush1.bf16.msra.mxu0 0
      %2182 = vmatprep.subr.bf16.mxu0 0
      %2183 = vmatpush1.bf16.msra.mxu0 0
      %2184 = vmatprep.subr.bf16.mxu0 0
      %2185 = vmatpush1.bf16.msra.mxu0 0
      %2186 = vmatprep.subr.bf16.mxu0 0
      %2187 = vmatpush1.bf16.msra.mxu0 0
      %2188 = vmatprep.subr.bf16.mxu0 0
      %2189 = vmatpush1.bf16.msra.mxu0 0
      %2190 = vmatprep.subr.bf16.mxu0 0
      %2191 = vmatpush1.bf16.msra.mxu0 0
      %2192 = vmatprep.subr.bf16.mxu0 0
      %2193 = vmatpush1.bf16.msra.mxu0 0
      %2194 = vmatprep.mubr.bf16.mxu0 0
      %2195 = vmatmul.mubr.bf16.gmra.mrb[0].mxu0 %v1834
      %v2196 = vpop.f32.mrb[0].mxu0
      %v2197 = vadd.f32 0.0, %v2196
      %v2198 = vpop.f32.mrb[0].mxu0
      %v2199 = vpop.f32.mrb[0].mxu0
      %v2200 = vadd.f32 0.0, %v2199
      %v2201 = vpop.f32.mrb[0].mxu0
      %2202 = vdwg.mxu0
      %v2203 = vld [vmem:[%s5] sm:$0x1]
      %v2205 = vlaneseq
      %v2206 = vshrl.u32 %v2205, 7
      %v2207 = vsub.s32 0, %v2206
      %v2208 = vrot.slane %v2203, %v2207
      %v2210 = vadd.f32 %v2208, %v1874
      %v2213 = vrot.slane %v1954, 1
      %v2214 = vrot.slane %v1957, 1
      %v2215 = vsel %vm1790, %v2213, %v2214
      %v2217 = vadd.f32 %v2210, %v2215
      %v2220 = vrot.slane %v2035, 2
      %v2221 = vrot.slane %v2038, 2
      %v2222 = vsel %vm763, %v2220, %v2221
      %v2224 = vadd.f32 %v2217, %v2222
      %v2227 = vrot.slane %v2116, 3
      %v2228 = vrot.slane %v2119, 3
      %v2229 = vsel %vm1787, %v2227, %v2228
      %v2231 = vadd.f32 %v2224, %v2229
      %v2234 = vrot.slane %v2197, 4
      %v2235 = vrot.slane %v2200, 4
      %v2236 = vsel %vm1785, %v2234, %v2235
      %v2238 = vadd.f32 %v2231, %v2236
      %v2239 = vmax.f32 %v2238, 0.0
      %v2240 = vld [vmem:[%s6] sm:$0xf]
      %v2241 = vld [vmem:[%s6 + $0x4] sm:$0xf]
      %v2242 = vld [vmem:[%s6 + $0x8] sm:$0xf]
      %v2243 = vld [vmem:[%s6 + $0xc] sm:$0xf]
      %v2244 = vld [vmem:[%s6 + $0x10] sm:$0xf]
      %v2245 = vld [vmem:[%s6 + $0x14] sm:$0xf]
      %v2246 = vld [vmem:[%s6 + $0x18] sm:$0xf]
      %v2247 = vld [vmem:[%s6 + $0x1c] sm:$0xf]
      %v2248 = vld [vmem:[%s6 + $0x20] sm:$0xf]
      %v2249 = vld [vmem:[%s6 + $0x24] sm:$0xf]
      %v2250 = vld [vmem:[%s6 + $0x28] sm:$0xf]
      %v2251 = vld [vmem:[%s6 + $0x2c] sm:$0xf]
      %v2252 = vld [vmem:[%s6 + $0x30] sm:$0xf]
      %v2253 = vld [vmem:[%s6 + $0x34] sm:$0xf]
      %v2254 = vld [vmem:[%s6 + $0x38] sm:$0xf]
      %v2255 = vld [vmem:[%s6 + $0x3c] sm:$0xf]
      %v2256 = vpack.c.bf16 %v2239, %v2239
      %v2273 = vunpack.c.l.b16 %v2240
      %v2274 = vunpack.c.l.b16 %v2241
      %v2275 = vunpack.c.l.b16 %v2242
      %v2276 = vunpack.c.l.b16 %v2243
      %v2277 = vunpack.c.l.b16 %v2244
      %v2278 = vunpack.c.l.b16 %v2245
      %v2279 = vunpack.c.l.b16 %v2246
      %v2280 = vunpack.c.l.b16 %v2247
      %v2281 = vunpack.c.l.b16 %v2248
      %v2282 = vunpack.c.l.b16 %v2249
      %v2283 = vunpack.c.l.b16 %v2250
      %v2284 = vunpack.c.l.b16 %v2251
      %v2285 = vunpack.c.l.b16 %v2252
      %v2286 = vunpack.c.l.b16 %v2253
      %v2287 = vunpack.c.l.b16 %v2254
      %v2288 = vunpack.c.l.b16 %v2255
      %v2289 = vpack.c.b16 %v2274, %v2273
      %v2290 = vpack.c.b16 %v2276, %v2275
      %v2291 = vpack.c.b16 %v2278, %v2277
      %v2292 = vpack.c.b16 %v2280, %v2279
      %v2293 = vpack.c.b16 %v2282, %v2281
      %v2294 = vpack.c.b16 %v2284, %v2283
      %v2295 = vpack.c.b16 %v2286, %v2285
      %v2296 = vpack.c.b16 %v2288, %v2287
      %2305 = vmatprep.subr.bf16.mxu0 0
      %2306 = vmatpush1.bf16.msra.mxu0 %v2289
      %2307 = vmatprep.subr.bf16.mxu0 0
      %2308 = vmatpush1.bf16.msra.mxu0 %v2290
      %2309 = vmatprep.subr.bf16.mxu0 0
      %2310 = vmatpush1.bf16.msra.mxu0 %v2291
      %2311 = vmatprep.subr.bf16.mxu0 0
      %2312 = vmatpush1.bf16.msra.mxu0 %v2292
      %2313 = vmatprep.subr.bf16.mxu0 0
      %2314 = vmatpush1.bf16.msra.mxu0 %v2293
      %2315 = vmatprep.subr.bf16.mxu0 0
      %2316 = vmatpush1.bf16.msra.mxu0 %v2294
      %2317 = vmatprep.subr.bf16.mxu0 0
      %2318 = vmatpush1.bf16.msra.mxu0 %v2295
      %2319 = vmatprep.subr.bf16.mxu0 0
      %2320 = vmatpush1.bf16.msra.mxu0 %v2296
      %2321 = vmatprep.subr.bf16.mxu0 0
      %2322 = vmatpush1.bf16.msra.mxu0 0
      %2323 = vmatprep.subr.bf16.mxu0 0
      %2324 = vmatpush1.bf16.msra.mxu0 0
      %2325 = vmatprep.subr.bf16.mxu0 0
      %2326 = vmatpush1.bf16.msra.mxu0 0
      %2327 = vmatprep.subr.bf16.mxu0 0
      %2328 = vmatpush1.bf16.msra.mxu0 0
      %2329 = vmatprep.subr.bf16.mxu0 0
      %2330 = vmatpush1.bf16.msra.mxu0 0
      %2331 = vmatprep.subr.bf16.mxu0 0
      %2332 = vmatpush1.bf16.msra.mxu0 0
      %2333 = vmatprep.subr.bf16.mxu0 0
      %2334 = vmatpush1.bf16.msra.mxu0 0
      %2335 = vmatprep.subr.bf16.mxu0 0
      %2336 = vmatpush1.bf16.msra.mxu0 0
      %2337 = vmatprep.mubr.bf16.mxu0 0
      %2338 = vmatmul.mubr.bf16.gmra.mrb[0].mxu0 %v2256
      %v2339 = vpop.f32.mrb[0].mxu0
      %v2340 = vadd.f32 0.0, %v2339
      %v2341 = vpop.f32.mrb[0].mxu0
      %v2342 = vpop.f32.mrb[0].mxu0
      %v2343 = vpop.f32.mrb[0].mxu0
      %2344 = vdwg.mxu0
      %s2345 = scalar_lea.vmem %s6, 64
      %v2346 = vld [vmem:[%s2345] sm:$0xf]
      %v2347 = vld [vmem:[%s2345 + $0x4] sm:$0xf]
      %v2348 = vld [vmem:[%s2345 + $0x8] sm:$0xf]
      %v2349 = vld [vmem:[%s2345 + $0xc] sm:$0xf]
      %v2350 = vld [vmem:[%s2345 + $0x10] sm:$0xf]
      %v2351 = vld [vmem:[%s2345 + $0x14] sm:$0xf]
      %v2352 = vld [vmem:[%s2345 + $0x18] sm:$0xf]
      %v2353 = vld [vmem:[%s2345 + $0x1c] sm:$0xf]
      %v2354 = vld [vmem:[%s2345 + $0x20] sm:$0xf]
      %v2355 = vld [vmem:[%s2345 + $0x24] sm:$0xf]
      %v2356 = vld [vmem:[%s2345 + $0x28] sm:$0xf]
      %v2357 = vld [vmem:[%s2345 + $0x2c] sm:$0xf]
      %v2358 = vld [vmem:[%s2345 + $0x30] sm:$0xf]
      %v2359 = vld [vmem:[%s2345 + $0x34] sm:$0xf]
      %v2360 = vld [vmem:[%s2345 + $0x38] sm:$0xf]
      %v2361 = vld [vmem:[%s2345 + $0x3c] sm:$0xf]
      %v2378 = vunpack.c.l.b16 %v2346
      %v2379 = vunpack.c.l.b16 %v2347
      %v2380 = vunpack.c.l.b16 %v2348
      %v2381 = vunpack.c.l.b16 %v2349
      %v2382 = vunpack.c.l.b16 %v2350
      %v2383 = vunpack.c.l.b16 %v2351
      %v2384 = vunpack.c.l.b16 %v2352
      %v2385 = vunpack.c.l.b16 %v2353
      %v2386 = vunpack.c.l.b16 %v2354
      %v2387 = vunpack.c.l.b16 %v2355
      %v2388 = vunpack.c.l.b16 %v2356
      %v2389 = vunpack.c.l.b16 %v2357
      %v2390 = vunpack.c.l.b16 %v2358
      %v2391 = vunpack.c.l.b16 %v2359
      %v2392 = vunpack.c.l.b16 %v2360
      %v2393 = vunpack.c.l.b16 %v2361
      %v2394 = vpack.c.b16 %v2379, %v2378
      %v2395 = vpack.c.b16 %v2381, %v2380
      %v2396 = vpack.c.b16 %v2383, %v2382
      %v2397 = vpack.c.b16 %v2385, %v2384
      %v2398 = vpack.c.b16 %v2387, %v2386
      %v2399 = vpack.c.b16 %v2389, %v2388
      %v2400 = vpack.c.b16 %v2391, %v2390
      %v2401 = vpack.c.b16 %v2393, %v2392
      %2410 = vmatprep.subr.bf16.mxu0 0
      %2411 = vmatpush1.bf16.msra.mxu0 %v2394
      %2412 = vmatprep.subr.bf16.mxu0 0
      %2413 = vmatpush1.bf16.msra.mxu0 %v2395
      %2414 = vmatprep.subr.bf16.mxu0 0
      %2415 = vmatpush1.bf16.msra.mxu0 %v2396
      %2416 = vmatprep.subr.bf16.mxu0 0
      %2417 = vmatpush1.bf16.msra.mxu0 %v2397
      %2418 = vmatprep.subr.bf16.mxu0 0
      %2419 = vmatpush1.bf16.msra.mxu0 %v2398
      %2420 = vmatprep.subr.bf16.mxu0 0
      %2421 = vmatpush1.bf16.msra.mxu0 %v2399
      %2422 = vmatprep.subr.bf16.mxu0 0
      %2423 = vmatpush1.bf16.msra.mxu0 %v2400
      %2424 = vmatprep.subr.bf16.mxu0 0
      %2425 = vmatpush1.bf16.msra.mxu0 %v2401
      %2426 = vmatprep.subr.bf16.mxu0 0
      %2427 = vmatpush1.bf16.msra.mxu0 0
      %2428 = vmatprep.subr.bf16.mxu0 0
      %2429 = vmatpush1.bf16.msra.mxu0 0
      %2430 = vmatprep.subr.bf16.mxu0 0
      %2431 = vmatpush1.bf16.msra.mxu0 0
      %2432 = vmatprep.subr.bf16.mxu0 0
      %2433 = vmatpush1.bf16.msra.mxu0 0
      %2434 = vmatprep.subr.bf16.mxu0 0
      %2435 = vmatpush1.bf16.msra.mxu0 0
      %2436 = vmatprep.subr.bf16.mxu0 0
      %2437 = vmatpush1.bf16.msra.mxu0 0
      %2438 = vmatprep.subr.bf16.mxu0 0
      %2439 = vmatpush1.bf16.msra.mxu0 0
      %2440 = vmatprep.subr.bf16.mxu0 0
      %2441 = vmatpush1.bf16.msra.mxu0 0
      %2442 = vmatprep.mubr.bf16.mxu0 0
      %2443 = vmatmul.mubr.bf16.gmra.mrb[0].mxu0 %v2256
      %v2444 = vpop.f32.mrb[0].mxu0
      %v2445 = vadd.f32 0.0, %v2444
      %v2446 = vpop.f32.mrb[0].mxu0
      %v2447 = vpop.f32.mrb[0].mxu0
      %v2448 = vpop.f32.mrb[0].mxu0
      %2449 = vdwg.mxu0
      %s2450 = scalar_lea.vmem %s6, 128
      %v2451 = vld [vmem:[%s2450] sm:$0xf]
      %v2452 = vld [vmem:[%s2450 + $0x4] sm:$0xf]
      %v2453 = vld [vmem:[%s2450 + $0x8] sm:$0xf]
      %v2454 = vld [vmem:[%s2450 + $0xc] sm:$0xf]
      %v2455 = vld [vmem:[%s2450 + $0x10] sm:$0xf]
      %v2456 = vld [vmem:[%s2450 + $0x14] sm:$0xf]
      %v2457 = vld [vmem:[%s2450 + $0x18] sm:$0xf]
      %v2458 = vld [vmem:[%s2450 + $0x1c] sm:$0xf]
      %v2459 = vld [vmem:[%s2450 + $0x20] sm:$0xf]
      %v2460 = vld [vmem:[%s2450 + $0x24] sm:$0xf]
      %v2461 = vld [vmem:[%s2450 + $0x28] sm:$0xf]
      %v2462 = vld [vmem:[%s2450 + $0x2c] sm:$0xf]
      %v2463 = vld [vmem:[%s2450 + $0x30] sm:$0xf]
      %v2464 = vld [vmem:[%s2450 + $0x34] sm:$0xf]
      %v2465 = vld [vmem:[%s2450 + $0x38] sm:$0xf]
      %v2466 = vld [vmem:[%s2450 + $0x3c] sm:$0xf]
      %v2483 = vunpack.c.l.b16 %v2451
      %v2484 = vunpack.c.l.b16 %v2452
      %v2485 = vunpack.c.l.b16 %v2453
      %v2486 = vunpack.c.l.b16 %v2454
      %v2487 = vunpack.c.l.b16 %v2455
      %v2488 = vunpack.c.l.b16 %v2456
      %v2489 = vunpack.c.l.b16 %v2457
      %v2490 = vunpack.c.l.b16 %v2458
      %v2491 = vunpack.c.l.b16 %v2459
      %v2492 = vunpack.c.l.b16 %v2460
      %v2493 = vunpack.c.l.b16 %v2461
      %v2494 = vunpack.c.l.b16 %v2462
      %v2495 = vunpack.c.l.b16 %v2463
      %v2496 = vunpack.c.l.b16 %v2464
      %v2497 = vunpack.c.l.b16 %v2465
      %v2498 = vunpack.c.l.b16 %v2466
      %v2499 = vpack.c.b16 %v2484, %v2483
      %v2500 = vpack.c.b16 %v2486, %v2485
      %v2501 = vpack.c.b16 %v2488, %v2487
      %v2502 = vpack.c.b16 %v2490, %v2489
      %v2503 = vpack.c.b16 %v2492, %v2491
      %v2504 = vpack.c.b16 %v2494, %v2493
      %v2505 = vpack.c.b16 %v2496, %v2495
      %v2506 = vpack.c.b16 %v2498, %v2497
      %2515 = vmatprep.subr.bf16.mxu0 0
      %2516 = vmatpush1.bf16.msra.mxu0 %v2499
      %2517 = vmatprep.subr.bf16.mxu0 0
      %2518 = vmatpush1.bf16.msra.mxu0 %v2500
      %2519 = vmatprep.subr.bf16.mxu0 0
      %2520 = vmatpush1.bf16.msra.mxu0 %v2501
      %2521 = vmatprep.subr.bf16.mxu0 0
      %2522 = vmatpush1.bf16.msra.mxu0 %v2502
      %2523 = vmatprep.subr.bf16.mxu0 0
      %2524 = vmatpush1.bf16.msra.mxu0 %v2503
      %2525 = vmatprep.subr.bf16.mxu0 0
      %2526 = vmatpush1.bf16.msra.mxu0 %v2504
      %2527 = vmatprep.subr.bf16.mxu0 0
      %2528 = vmatpush1.bf16.msra.mxu0 %v2505
      %2529 = vmatprep.subr.bf16.mxu0 0
      %2530 = vmatpush1.bf16.msra.mxu0 %v2506
      %2531 = vmatprep.subr.bf16.mxu0 0
      %2532 = vmatpush1.bf16.msra.mxu0 0
      %2533 = vmatprep.subr.bf16.mxu0 0
      %2534 = vmatpush1.bf16.msra.mxu0 0
      %2535 = vmatprep.subr.bf16.mxu0 0
      %2536 = vmatpush1.bf16.msra.mxu0 0
      %2537 = vmatprep.subr.bf16.mxu0 0
      %2538 = vmatpush1.bf16.msra.mxu0 0
      %2539 = vmatprep.subr.bf16.mxu0 0
      %2540 = vmatpush1.bf16.msra.mxu0 0
      %2541 = vmatprep.subr.bf16.mxu0 0
      %2542 = vmatpush1.bf16.msra.mxu0 0
      %2543 = vmatprep.subr.bf16.mxu0 0
      %2544 = vmatpush1.bf16.msra.mxu0 0
      %2545 = vmatprep.subr.bf16.mxu0 0
      %2546 = vmatpush1.bf16.msra.mxu0 0
      %2547 = vmatprep.mubr.bf16.mxu0 0
      %2548 = vmatmul.mubr.bf16.gmra.mrb[0].mxu0 %v2256
      %v2549 = vpop.f32.mrb[0].mxu0
      %v2550 = vadd.f32 0.0, %v2549
      %v2551 = vpop.f32.mrb[0].mxu0
      %v2552 = vpop.f32.mrb[0].mxu0
      %v2553 = vpop.f32.mrb[0].mxu0
      %2554 = vdwg.mxu0
      %v2555 = vld [vmem:[%s7] sm:$0x1]
      %v2556 = vadd.f32 %v2555, %v2340
      %v2559 = vunpack.c.l.s4 1966171168
      %v2560 = vunpack.c.0.s8 %v2559
      %v2561 = vlaneseq
      %v2562 = vshrl.u32 %v2561, 7
      %v2563 = vsub.s32 %v2560, %v2562
      %v2564 = vrot.slane %v2445, %v2563
      %v2565 = vcombine.high %v2564, %v2564
      %v2567 = vunpack.c.l.s4 1966171168
      %v2568 = vunpack.c.0.s8 %v2567
      %v2569 = vlaneseq
      %v2570 = vshrl.u32 %v2569, 7
      %v2571 = vsub.s32 %v2568, %v2570
      %v2572 = vrot.slane %v2565, %v2571
      %v2574 = vadd.f32 %v2556, %v2572
      %v2577 = vunpack.c.l.s4 1966171168
      %v2578 = vunpack.c.0.s8 %v2577
      %v2579 = vlaneseq
      %v2580 = vshrl.u32 %v2579, 7
      %v2581 = vsub.s32 %v2578, %v2580
      %v2582 = vrot.slane %v2550, %v2581
      %v2584 = vunpack.c.l.s4 1966171168
      %v2585 = vunpack.c.0.s8 %v2584
      %v2586 = vlaneseq
      %v2587 = vshrl.u32 %v2586, 7
      %v2588 = vsub.s32 %v2585, %v2587
      %v2589 = vrot.slane %v2582, %v2588
      %v2590 = vcombine.high %v2589, %v2589
      %v2592 = vadd.f32 %v2574, %v2590
      %v2593 = vmax.f32 %v2592, 0.0
      %v2596 = vunpack.c.l.s4 1966171168
      %v2597 = vunpack.c.0.s8 %v2596
      %v2598 = vlaneseq
      %v2599 = vshrl.u32 %v2598, 7
      %v2600 = vsub.s32 %v2597, %v2599
      %v2601 = vrot.slane %v2340, %v2600
      %v2603 = vunpack.c.l.s4 1966171168
      %v2604 = vunpack.c.0.s8 %v2603
      %v2605 = vlaneseq
      %v2606 = vshrl.u32 %v2605, 7
      %v2607 = vsub.s32 %v2604, %v2606
      %v2608 = vrot.slane %v2601, %v2607
      %v2609 = vcombine.high %v2608, %v2608
      %v2611 = vadd.f32 %v2555, %v2609
      %v2612 = vcombine.high %v2572, %v2572
      %v2614 = vadd.f32 %v2611, %v2612
      %v2615 = vcombine.high %v2550, %v2550
      %v2617 = vunpack.c.l.s4 1966171168
      %v2618 = vunpack.c.0.s8 %v2617
      %v2619 = vlaneseq
      %v2620 = vshrl.u32 %v2619, 7
      %v2621 = vsub.s32 %v2618, %v2620
      %v2622 = vrot.slane %v2615, %v2621
      %v2624 = vunpack.c.l.s4 1966171168
      %v2625 = vunpack.c.0.s8 %v2624
      %v2626 = vlaneseq
      %v2627 = vshrl.u32 %v2626, 7
      %v2628 = vsub.s32 %v2625, %v2627
      %v2629 = vrot.slane %v2622, %v2628
      %v2631 = vadd.f32 %v2614, %v2629
      %v2632 = vmax.f32 %v2631, 0.0
      %v2633 = vcombine.high %v2340, %v2340
      %v2635 = vunpack.c.l.s4 1966171168
      %v2636 = vunpack.c.0.s8 %v2635
      %v2637 = vlaneseq
      %v2638 = vshrl.u32 %v2637, 7
      %v2639 = vsub.s32 %v2636, %v2638
      %v2640 = vrot.slane %v2633, %v2639
      %v2642 = vunpack.c.l.s4 1966171168
      %v2643 = vunpack.c.0.s8 %v2642
      %v2644 = vlaneseq
      %v2645 = vshrl.u32 %v2644, 7
      %v2646 = vsub.s32 %v2643, %v2645
      %v2647 = vrot.slane %v2640, %v2646
      %v2649 = vadd.f32 %v2555, %v2647
      %v2650 = vcombine.high %v2445, %v2445
      %v2652 = vunpack.c.l.s4 1966171168
      %v2653 = vunpack.c.0.s8 %v2652
      %v2654 = vlaneseq
      %v2655 = vshrl.u32 %v2654, 7
      %v2656 = vsub.s32 %v2653, %v2655
      %v2657 = vrot.slane %v2650, %v2656
      %v2658 = vcombine.high %v2657, %v2657
      %v2660 = vunpack.c.l.s4 1966171168
      %v2661 = vunpack.c.0.s8 %v2660
      %v2662 = vlaneseq
      %v2663 = vshrl.u32 %v2662, 7
      %v2664 = vsub.s32 %v2661, %v2663
      %v2665 = vrot.slane %v2658, %v2664
      %v2667 = vadd.f32 %v2649, %v2665
      %v2668 = vcombine.high %v2629, %v2629
      %v2670 = vadd.f32 %v2667, %v2668
      %v2671 = vmax.f32 %v2670, 0.0
      %v2672 = vld [vmem:[%s9] sm:$0x1]
      %v2673 = vld [vmem:[%s8] sm:$0xf]
      %v2674 = vld [vmem:[%s8 + $0x4] sm:$0xf]
      %v2675 = vld [vmem:[%s8 + $0x8] sm:$0xf]
      %v2676 = vld [vmem:[%s8 + $0xc] sm:$0xf]
      %v2677 = vld [vmem:[%s8 + $0x10] sm:$0xf]
      %v2678 = vld [vmem:[%s8 + $0x14] sm:$0xf]
      %v2679 = vld [vmem:[%s8 + $0x18] sm:$0xf]
      %v2680 = vld [vmem:[%s8 + $0x1c] sm:$0xf]
      %v2681 = vld [vmem:[%s8 + $0x20] sm:$0xf]
      %v2682 = vld [vmem:[%s8 + $0x24] sm:$0xf]
      %v2683 = vld [vmem:[%s8 + $0x28] sm:$0xf]
      %v2684 = vld [vmem:[%s8 + $0x2c] sm:$0xf]
      %v2685 = vpack.c.bf16 %v2593, %v2593
      %v2698 = vunpack.c.l.b16 %v2673
      %v2699 = vunpack.c.l.b16 %v2674
      %v2700 = vunpack.c.l.b16 %v2675
      %v2701 = vunpack.c.l.b16 %v2676
      %v2702 = vunpack.c.l.b16 %v2677
      %v2703 = vunpack.c.l.b16 %v2678
      %v2704 = vunpack.c.l.b16 %v2679
      %v2705 = vunpack.c.l.b16 %v2680
      %v2706 = vunpack.c.l.b16 %v2681
      %v2707 = vunpack.c.l.b16 %v2682
      %v2708 = vunpack.c.l.b16 %v2683
      %v2709 = vunpack.c.l.b16 %v2684
      %v2710 = vpack.c.b16 %v2699, %v2698
      %v2711 = vpack.c.b16 %v2701, %v2700
      %v2712 = vpack.c.b16 %v2703, %v2702
      %v2713 = vpack.c.b16 %v2705, %v2704
      %v2714 = vpack.c.b16 %v2707, %v2706
      %v2715 = vpack.c.b16 %v2709, %v2708
      %vm2722 = vcmask 785408
      %v2724 = vsel %vm2722, %v2685, 0
      %2726 = vmatprep.subr.bf16.mxu0 0
      %2727 = vmatpush1.bf16.msra.mxu0 %v2710
      %2728 = vmatprep.subr.bf16.mxu0 0
      %2729 = vmatpush1.bf16.msra.mxu0 %v2711
      %2730 = vmatprep.subr.bf16.mxu0 0
      %2731 = vmatpush1.bf16.msra.mxu0 %v2712
      %2732 = vmatprep.subr.bf16.mxu0 0
      %2733 = vmatpush1.bf16.msra.mxu0 %v2713
      %2734 = vmatprep.subr.bf16.mxu0 0
      %2735 = vmatpush1.bf16.msra.mxu0 %v2714
      %2736 = vmatprep.subr.bf16.mxu0 0
      %2737 = vmatpush1.bf16.msra.mxu0 %v2715
      %2738 = vmatprep.subr.bf16.mxu0 0
      %2739 = vmatpush1.bf16.msra.mxu0 0
      %2740 = vmatprep.subr.bf16.mxu0 0
      %2741 = vmatpush1.bf16.msra.mxu0 0
      %2742 = vmatprep.subr.bf16.mxu0 0
      %2743 = vmatpush1.bf16.msra.mxu0 0
      %2744 = vmatprep.subr.bf16.mxu0 0
      %2745 = vmatpush1.bf16.msra.mxu0 0
      %2746 = vmatprep.subr.bf16.mxu0 0
      %2747 = vmatpush1.bf16.msra.mxu0 0
      %2748 = vmatprep.subr.bf16.mxu0 0
      %2749 = vmatpush1.bf16.msra.mxu0 0
      %2750 = vmatprep.subr.bf16.mxu0 0
      %2751 = vmatpush1.bf16.msra.mxu0 0
      %2752 = vmatprep.subr.bf16.mxu0 0
      %2753 = vmatpush1.bf16.msra.mxu0 0
      %2754 = vmatprep.subr.bf16.mxu0 0
      %2755 = vmatpush1.bf16.msra.mxu0 0
      %2756 = vmatprep.subr.bf16.mxu0 0
      %2757 = vmatpush1.bf16.msra.mxu0 0
      %2758 = vmatprep.mubr.bf16.mxu0 0
      %2759 = vmatmul.mubr.bf16.gmra.mrb[0].mxu0 %v2724
      %v2760 = vpop.f32.mrb[0].mxu0
      %v2761 = vadd.f32 0.0, %v2760
      %v2762 = vpop.f32.mrb[0].mxu0
      %v2763 = vpop.f32.mrb[0].mxu0
      %v2764 = vpop.f32.mrb[0].mxu0
      %2765 = vdwg.mxu0
      %v2766 = vadd.f32 %v2672, %v2761
      %s2767 = scalar_lea.vmem %s8, 48
      %v2768 = vld [vmem:[%s2767] sm:$0xf]
      %v2769 = vld [vmem:[%s2767 + $0x4] sm:$0xf]
      %v2770 = vld [vmem:[%s2767 + $0x8] sm:$0xf]
      %v2771 = vld [vmem:[%s2767 + $0xc] sm:$0xf]
      %v2772 = vld [vmem:[%s2767 + $0x10] sm:$0xf]
      %v2773 = vld [vmem:[%s2767 + $0x14] sm:$0xf]
      %v2774 = vld [vmem:[%s2767 + $0x18] sm:$0xf]
      %v2775 = vld [vmem:[%s2767 + $0x1c] sm:$0xf]
      %v2776 = vld [vmem:[%s2767 + $0x20] sm:$0xf]
      %v2777 = vld [vmem:[%s2767 + $0x24] sm:$0xf]
      %v2778 = vld [vmem:[%s2767 + $0x28] sm:$0xf]
      %v2779 = vld [vmem:[%s2767 + $0x2c] sm:$0xf]
      %v2780 = vpack.c.bf16 %v2632, %v2632
      %v2793 = vunpack.c.l.b16 %v2768
      %v2794 = vunpack.c.l.b16 %v2769
      %v2795 = vunpack.c.l.b16 %v2770
      %v2796 = vunpack.c.l.b16 %v2771
      %v2797 = vunpack.c.l.b16 %v2772
      %v2798 = vunpack.c.l.b16 %v2773
      %v2799 = vunpack.c.l.b16 %v2774
      %v2800 = vunpack.c.l.b16 %v2775
      %v2801 = vunpack.c.l.b16 %v2776
      %v2802 = vunpack.c.l.b16 %v2777
      %v2803 = vunpack.c.l.b16 %v2778
      %v2804 = vunpack.c.l.b16 %v2779
      %v2805 = vpack.c.b16 %v2794, %v2793
      %v2806 = vpack.c.b16 %v2796, %v2795
      %v2807 = vpack.c.b16 %v2798, %v2797
      %v2808 = vpack.c.b16 %v2800, %v2799
      %v2809 = vpack.c.b16 %v2802, %v2801
      %v2810 = vpack.c.b16 %v2804, %v2803
      %v2818 = vsel %vm2722, %v2780, 0
      %2820 = vmatprep.subr.bf16.mxu0 0
      %2821 = vmatpush1.bf16.msra.mxu0 %v2805
      %2822 = vmatprep.subr.bf16.mxu0 0
      %2823 = vmatpush1.bf16.msra.mxu0 %v2806
      %2824 = vmatprep.subr.bf16.mxu0 0
      %2825 = vmatpush1.bf16.msra.mxu0 %v2807
      %2826 = vmatprep.subr.bf16.mxu0 0
      %2827 = vmatpush1.bf16.msra.mxu0 %v2808
      %2828 = vmatprep.subr.bf16.mxu0 0
      %2829 = vmatpush1.bf16.msra.mxu0 %v2809
      %2830 = vmatprep.subr.bf16.mxu0 0
      %2831 = vmatpush1.bf16.msra.mxu0 %v2810
      %2832 = vmatprep.subr.bf16.mxu0 0
      %2833 = vmatpush1.bf16.msra.mxu0 0
      %2834 = vmatprep.subr.bf16.mxu0 0
      %2835 = vmatpush1.bf16.msra.mxu0 0
      %2836 = vmatprep.subr.bf16.mxu0 0
      %2837 = vmatpush1.bf16.msra.mxu0 0
      %2838 = vmatprep.subr.bf16.mxu0 0
      %2839 = vmatpush1.bf16.msra.mxu0 0
      %2840 = vmatprep.subr.bf16.mxu0 0
      %2841 = vmatpush1.bf16.msra.mxu0 0
      %2842 = vmatprep.subr.bf16.mxu0 0
      %2843 = vmatpush1.bf16.msra.mxu0 0
      %2844 = vmatprep.subr.bf16.mxu0 0
      %2845 = vmatpush1.bf16.msra.mxu0 0
      %2846 = vmatprep.subr.bf16.mxu0 0
      %2847 = vmatpush1.bf16.msra.mxu0 0
      %2848 = vmatprep.subr.bf16.mxu0 0
      %2849 = vmatpush1.bf16.msra.mxu0 0
      %2850 = vmatprep.subr.bf16.mxu0 0
      %2851 = vmatpush1.bf16.msra.mxu0 0
      %2852 = vmatprep.mubr.bf16.mxu0 0
      %2853 = vmatmul.mubr.bf16.gmra.mrb[0].mxu0 %v2818
      %v2854 = vpop.f32.mrb[0].mxu0
      %v2855 = vadd.f32 0.0, %v2854
      %v2856 = vpop.f32.mrb[0].mxu0
      %v2857 = vpop.f32.mrb[0].mxu0
      %v2858 = vpop.f32.mrb[0].mxu0
      %2859 = vdwg.mxu0
      %v2860 = vadd.f32 %v2766, %v2855
      %s2861 = scalar_lea.vmem %s8, 96
      %v2862 = vld [vmem:[%s2861] sm:$0xf]
      %v2863 = vld [vmem:[%s2861 + $0x4] sm:$0xf]
      %v2864 = vld [vmem:[%s2861 + $0x8] sm:$0xf]
      %v2865 = vld [vmem:[%s2861 + $0xc] sm:$0xf]
      %v2866 = vld [vmem:[%s2861 + $0x10] sm:$0xf]
      %v2867 = vld [vmem:[%s2861 + $0x14] sm:$0xf]
      %v2868 = vld [vmem:[%s2861 + $0x18] sm:$0xf]
      %v2869 = vld [vmem:[%s2861 + $0x1c] sm:$0xf]
      %v2870 = vld [vmem:[%s2861 + $0x20] sm:$0xf]
      %v2871 = vld [vmem:[%s2861 + $0x24] sm:$0xf]
      %v2872 = vld [vmem:[%s2861 + $0x28] sm:$0xf]
      %v2873 = vld [vmem:[%s2861 + $0x2c] sm:$0xf]
      %v2874 = vpack.c.bf16 %v2671, %v2671
      %v2887 = vunpack.c.l.b16 %v2862
      %v2888 = vunpack.c.l.b16 %v2863
      %v2889 = vunpack.c.l.b16 %v2864
      %v2890 = vunpack.c.l.b16 %v2865
      %v2891 = vunpack.c.l.b16 %v2866
      %v2892 = vunpack.c.l.b16 %v2867
      %v2893 = vunpack.c.l.b16 %v2868
      %v2894 = vunpack.c.l.b16 %v2869
      %v2895 = vunpack.c.l.b16 %v2870
      %v2896 = vunpack.c.l.b16 %v2871
      %v2897 = vunpack.c.l.b16 %v2872
      %v2898 = vunpack.c.l.b16 %v2873
      %v2899 = vpack.c.b16 %v2888, %v2887
      %v2900 = vpack.c.b16 %v2890, %v2889
      %v2901 = vpack.c.b16 %v2892, %v2891
      %v2902 = vpack.c.b16 %v2894, %v2893
      %v2903 = vpack.c.b16 %v2896, %v2895
      %v2904 = vpack.c.b16 %v2898, %v2897
      %v2912 = vsel %vm2722, %v2874, 0
      %2914 = vmatprep.subr.bf16.mxu0 0
      %2915 = vmatpush1.bf16.msra.mxu0 %v2899
      %2916 = vmatprep.subr.bf16.mxu0 0
      %2917 = vmatpush1.bf16.msra.mxu0 %v2900
      %2918 = vmatprep.subr.bf16.mxu0 0
      %2919 = vmatpush1.bf16.msra.mxu0 %v2901
      %2920 = vmatprep.subr.bf16.mxu0 0
      %2921 = vmatpush1.bf16.msra.mxu0 %v2902
      %2922 = vmatprep.subr.bf16.mxu0 0
      %2923 = vmatpush1.bf16.msra.mxu0 %v2903
      %2924 = vmatprep.subr.bf16.mxu0 0
      %2925 = vmatpush1.bf16.msra.mxu0 %v2904
      %2926 = vmatprep.subr.bf16.mxu0 0
      %2927 = vmatpush1.bf16.msra.mxu0 0
      %2928 = vmatprep.subr.bf16.mxu0 0
      %2929 = vmatpush1.bf16.msra.mxu0 0
      %2930 = vmatprep.subr.bf16.mxu0 0
      %2931 = vmatpush1.bf16.msra.mxu0 0
      %2932 = vmatprep.subr.bf16.mxu0 0
      %2933 = vmatpush1.bf16.msra.mxu0 0
      %2934 = vmatprep.subr.bf16.mxu0 0
      %2935 = vmatpush1.bf16.msra.mxu0 0
      %2936 = vmatprep.subr.bf16.mxu0 0
      %2937 = vmatpush1.bf16.msra.mxu0 0
      %2938 = vmatprep.subr.bf16.mxu0 0
      %2939 = vmatpush1.bf16.msra.mxu0 0
      %2940 = vmatprep.subr.bf16.mxu0 0
      %2941 = vmatpush1.bf16.msra.mxu0 0
      %2942 = vmatprep.subr.bf16.mxu0 0
      %2943 = vmatpush1.bf16.msra.mxu0 0
      %2944 = vmatprep.subr.bf16.mxu0 0
      %2945 = vmatpush1.bf16.msra.mxu0 0
      %2946 = vmatprep.mubr.bf16.mxu0 0
      %2947 = vmatmul.mubr.bf16.gmra.mrb[0].mxu0 %v2912
      %v2948 = vpop.f32.mrb[0].mxu0
      %v2949 = vadd.f32 0.0, %v2948
      %v2950 = vpop.f32.mrb[0].mxu0
      %v2951 = vpop.f32.mrb[0].mxu0
      %v2952 = vpop.f32.mrb[0].mxu0
      %2953 = vdwg.mxu0
      %v2954 = vadd.f32 %v2860, %v2949
      %v2955 = vld [vmem:[%s10] sm:$0xf]
      %v2956 = vld [vmem:[%s10 + $0x4] sm:$0xf]
      %v2957 = vld [vmem:[%s10 + $0x8] sm:$0xf]
      %v2958 = vld [vmem:[%s10 + $0xc] sm:$0xf]
      %v2959 = vld [vmem:[%s10 + $0x10] sm:$0xf]
      %v2960 = vld [vmem:[%s10 + $0x14] sm:$0xf]
      %v2961 = vld [vmem:[%s10 + $0x18] sm:$0xf]
      %v2962 = vld [vmem:[%s10 + $0x1c] sm:$0xf]
      %v2963 = vpack.c.bf16 %v2954, %v2954
      %v2964 = vld [vmem:[%s11] sm:$0x1]
      %v2973 = vunpack.c.l.b16 %v2955
      %v2974 = vunpack.c.l.b16 %v2956
      %v2975 = vunpack.c.l.b16 %v2957
      %v2976 = vunpack.c.l.b16 %v2958
      %v2977 = vunpack.c.l.b16 %v2959
      %v2978 = vunpack.c.l.b16 %v2960
      %v2979 = vunpack.c.l.b16 %v2961
      %v2980 = vunpack.c.l.b16 %v2962
      %v2981 = vpack.c.b16 %v2974, %v2973
      %v2982 = vpack.c.b16 %v2976, %v2975
      %v2983 = vpack.c.b16 %v2978, %v2977
      %v2984 = vpack.c.b16 %v2980, %v2979
      %vm2989 = vcmask 523264
      %v2991 = vsel %vm2989, %v2963, 0
      %2993 = vmatprep.subr.bf16.mxu0 0
      %2994 = vmatpush1.bf16.msra.mxu0 %v2981
      %2995 = vmatprep.subr.bf16.mxu0 0
      %2996 = vmatpush1.bf16.msra.mxu0 %v2982
      %2997 = vmatprep.subr.bf16.mxu0 0
      %2998 = vmatpush1.bf16.msra.mxu0 %v2983
      %2999 = vmatprep.subr.bf16.mxu0 0
      %3000 = vmatpush1.bf16.msra.mxu0 %v2984
      %3001 = vmatprep.subr.bf16.mxu0 0
      %3002 = vmatpush1.bf16.msra.mxu0 0
      %3003 = vmatprep.subr.bf16.mxu0 0
      %3004 = vmatpush1.bf16.msra.mxu0 0
      %3005 = vmatprep.subr.bf16.mxu0 0
      %3006 = vmatpush1.bf16.msra.mxu0 0
      %3007 = vmatprep.subr.bf16.mxu0 0
      %3008 = vmatpush1.bf16.msra.mxu0 0
      %3009 = vmatprep.subr.bf16.mxu0 0
      %3010 = vmatpush1.bf16.msra.mxu0 0
      %3011 = vmatprep.subr.bf16.mxu0 0
      %3012 = vmatpush1.bf16.msra.mxu0 0
      %3013 = vmatprep.subr.bf16.mxu0 0
      %3014 = vmatpush1.bf16.msra.mxu0 0
      %3015 = vmatprep.subr.bf16.mxu0 0
      %3016 = vmatpush1.bf16.msra.mxu0 0
      %3017 = vmatprep.subr.bf16.mxu0 0
      %3018 = vmatpush1.bf16.msra.mxu0 0
      %3019 = vmatprep.subr.bf16.mxu0 0
      %3020 = vmatpush1.bf16.msra.mxu0 0
      %3021 = vmatprep.subr.bf16.mxu0 0
      %3022 = vmatpush1.bf16.msra.mxu0 0
      %3023 = vmatprep.subr.bf16.mxu0 0
      %3024 = vmatpush1.bf16.msra.mxu0 0
      %3025 = vmatprep.mubr.bf16.mxu0 0
      %3026 = vmatmul.mubr.bf16.gmra.mrb[0].mxu0 %v2991
      %v3027 = vpop.f32.mrb[0].mxu0
      %v3028 = vadd.f32 %v2964, %v3027
      %v3029 = vpop.f32.mrb[0].mxu0
      %v3030 = vpop.f32.mrb[0].mxu0
      %v3031 = vpop.f32.mrb[0].mxu0
      %3032 = vdwg.mxu0
      %vm3033 = vcmask 516096
      %3034 = vst.msk [vmem:[%s733] sm:$0x1] %vm3033, %v3028
      %v3035 = vld [vmem:[%s725] sm:$0x1]
      %v3036 = vmul.f32 %v3028, 0.5
      %v3037 = vmul.f32 %v3036, 1.442695
      %v3038 = vpow.pop %v3037
      %v3041 = vunpack.c.l.s4 1966171168
      %v3042 = vunpack.c.0.s8 %v3041
      %v3043 = vlaneseq
      %v3044 = vshrl.u32 %v3043, 7
      %v3045 = vsub.s32 %v3042, %v3044
      %v3046 = vrot.slane %v3038, %v3045
      %v3048 = vunpack.c.l.s4 1966171168
      %v3049 = vunpack.c.0.s8 %v3048
      %v3050 = vlaneseq
      %v3051 = vshrl.u32 %v3050, 7
      %v3052 = vsub.s32 %v3049, %v3051
      %v3053 = vrot.slane %v3046, %v3052
      %3054 = vrot.lane.b32.xlu0 %v3053, 96
      %v3055 = vpop.permute.xlu0 %3054
      %v3057 = vmul.f32 %v3035, %v3055
      %v3058 = vadd.f32 %v3028, %v3057
      %v3059 = vld [vmem:[%s12] sm:$0xf]
      %v3060 = vld [vmem:[%s12 + $0x4] sm:$0xf]
      %v3061 = vld [vmem:[%s12 + $0x8] sm:$0xf]
      %v3062 = vld [vmem:[%s12 + $0xc] sm:$0xf]
      %v3063 = vpack.c.bf16 %v3058, %v3058
      %v3064 = vld [vmem:[%s13] sm:$0x1]
      %v3069 = vunpack.c.l.b16 %v3059
      %v3070 = vunpack.c.l.b16 %v3060
      %v3071 = vunpack.c.l.b16 %v3061
      %v3072 = vunpack.c.l.b16 %v3062
      %v3073 = vpack.c.b16 %v3070, %v3069
      %v3074 = vpack.c.b16 %v3072, %v3071
      %vm3077 = vcmask 261120
      %v3079 = vsel %vm3077, %v3063, 0
      %3081 = vmatprep.subr.bf16.mxu0 0
      %3082 = vmatpush1.bf16.msra.mxu0 %v3073
      %3083 = vmatprep.subr.bf16.mxu0 0
      %3084 = vmatpush1.bf16.msra.mxu0 %v3074
      %3085 = vmatprep.subr.bf16.mxu0 0
      %3086 = vmatpush1.bf16.msra.mxu0 0
      %3087 = vmatprep.subr.bf16.mxu0 0
      %3088 = vmatpush1.bf16.msra.mxu0 0
      %3089 = vmatprep.subr.bf16.mxu0 0
      %3090 = vmatpush1.bf16.msra.mxu0 0
      %3091 = vmatprep.subr.bf16.mxu0 0
      %3092 = vmatpush1.bf16.msra.mxu0 0
      %3093 = vmatprep.subr.bf16.mxu0 0
      %3094 = vmatpush1.bf16.msra.mxu0 0
      %3095 = vmatprep.subr.bf16.mxu0 0
      %3096 = vmatpush1.bf16.msra.mxu0 0
      %3097 = vmatprep.subr.bf16.mxu0 0
      %3098 = vmatpush1.bf16.msra.mxu0 0
      %3099 = vmatprep.subr.bf16.mxu0 0
      %3100 = vmatpush1.bf16.msra.mxu0 0
      %3101 = vmatprep.subr.bf16.mxu0 0
      %3102 = vmatpush1.bf16.msra.mxu0 0
      %3103 = vmatprep.subr.bf16.mxu0 0
      %3104 = vmatpush1.bf16.msra.mxu0 0
      %3105 = vmatprep.subr.bf16.mxu0 0
      %3106 = vmatpush1.bf16.msra.mxu0 0
      %3107 = vmatprep.subr.bf16.mxu0 0
      %3108 = vmatpush1.bf16.msra.mxu0 0
      %3109 = vmatprep.subr.bf16.mxu0 0
      %3110 = vmatpush1.bf16.msra.mxu0 0
      %3111 = vmatprep.subr.bf16.mxu0 0
      %3112 = vmatpush1.bf16.msra.mxu0 0
      %3113 = vmatprep.mubr.bf16.mxu0 0
      %3114 = vmatmul.mubr.bf16.gmra.mrb[0].mxu0 %v3079
      %v3115 = vpop.f32.mrb[0].mxu0
      %v3116 = vadd.f32 %v3064, %v3115
      %v3117 = vpop.f32.mrb[0].mxu0
      %v3118 = vpop.f32.mrb[0].mxu0
      %v3119 = vpop.f32.mrb[0].mxu0
      %3120 = vdwg.mxu0
      %v3121 = vld [vmem:[%s14] sm:$0xf]
      %v3122 = vld [vmem:[%s14 + $0x4] sm:$0xf]
      %v3123 = vld [vmem:[%s14 + $0x8] sm:$0xf]
      %v3124 = vld [vmem:[%s14 + $0xc] sm:$0xf]
      %v3125 = vld [vmem:[%s14 + $0x10] sm:$0xf]
      %v3126 = vld [vmem:[%s14 + $0x14] sm:$0xf]
      %v3127 = vld [vmem:[%s14 + $0x18] sm:$0xf]
      %v3128 = vld [vmem:[%s14 + $0x1c] sm:$0xf]
      %v3129 = vpack.c.bf16 %v3116, %v3116
      %v3130 = vld [vmem:[%s15] sm:$0x1]
      %v3139 = vunpack.c.l.b16 %v3121
      %v3140 = vunpack.c.l.b16 %v3122
      %v3141 = vunpack.c.l.b16 %v3123
      %v3142 = vunpack.c.l.b16 %v3124
      %v3143 = vunpack.c.l.b16 %v3125
      %v3144 = vunpack.c.l.b16 %v3126
      %v3145 = vunpack.c.l.b16 %v3127
      %v3146 = vunpack.c.l.b16 %v3128
      %v3147 = vpack.c.b16 %v3140, %v3139
      %v3148 = vpack.c.b16 %v3142, %v3141
      %v3149 = vpack.c.b16 %v3144, %v3143
      %v3150 = vpack.c.b16 %v3146, %v3145
      %v3156 = vsel %vm2989, %v3129, 0
      %3158 = vmatprep.subr.bf16.mxu0 0
      %3159 = vmatpush1.bf16.msra.mxu0 %v3147
      %3160 = vmatprep.subr.bf16.mxu0 0
      %3161 = vmatpush1.bf16.msra.mxu0 %v3148
      %3162 = vmatprep.subr.bf16.mxu0 0
      %3163 = vmatpush1.bf16.msra.mxu0 %v3149
      %3164 = vmatprep.subr.bf16.mxu0 0
      %3165 = vmatpush1.bf16.msra.mxu0 %v3150
      %3166 = vmatprep.subr.bf16.mxu0 0
      %3167 = vmatpush1.bf16.msra.mxu0 0
      %3168 = vmatprep.subr.bf16.mxu0 0
      %3169 = vmatpush1.bf16.msra.mxu0 0
      %3170 = vmatprep.subr.bf16.mxu0 0
      %3171 = vmatpush1.bf16.msra.mxu0 0
      %3172 = vmatprep.subr.bf16.mxu0 0
      %3173 = vmatpush1.bf16.msra.mxu0 0
      %3174 = vmatprep.subr.bf16.mxu0 0
      %3175 = vmatpush1.bf16.msra.mxu0 0
      %3176 = vmatprep.subr.bf16.mxu0 0
      %3177 = vmatpush1.bf16.msra.mxu0 0
      %3178 = vmatprep.subr.bf16.mxu0 0
      %3179 = vmatpush1.bf16.msra.mxu0 0
      %3180 = vmatprep.subr.bf16.mxu0 0
      %3181 = vmatpush1.bf16.msra.mxu0 0
      %3182 = vmatprep.subr.bf16.mxu0 0
      %3183 = vmatpush1.bf16.msra.mxu0 0
      %3184 = vmatprep.subr.bf16.mxu0 0
      %3185 = vmatpush1.bf16.msra.mxu0 0
      %3186 = vmatprep.subr.bf16.mxu0 0
      %3187 = vmatpush1.bf16.msra.mxu0 0
      %3188 = vmatprep.subr.bf16.mxu0 0
      %3189 = vmatpush1.bf16.msra.mxu0 0
      %3190 = vmatprep.mubr.bf16.mxu0 0
      %3191 = vmatmul.mubr.bf16.gmra.mrb[0].mxu0 %v3156
      %v3192 = vpop.f32.mrb[0].mxu0
      %v3193 = vadd.f32 %v3130, %v3192
      %v3194 = vpop.f32.mrb[0].mxu0
      %v3195 = vpop.f32.mrb[0].mxu0
      %v3196 = vpop.f32.mrb[0].mxu0
      %3197 = vdwg.mxu0
      %v3198 = vmax.f32 %v3193, 0.0
      %s3199 = scalar_lea.vmem %s14, 32
      %v3200 = vld [vmem:[%s3199] sm:$0xf]
      %v3201 = vld [vmem:[%s3199 + $0x4] sm:$0xf]
      %v3202 = vld [vmem:[%s3199 + $0x8] sm:$0xf]
      %v3203 = vld [vmem:[%s3199 + $0xc] sm:$0xf]
      %v3204 = vld [vmem:[%s3199 + $0x10] sm:$0xf]
      %v3205 = vld [vmem:[%s3199 + $0x14] sm:$0xf]
      %v3206 = vld [vmem:[%s3199 + $0x18] sm:$0xf]
      %v3207 = vld [vmem:[%s3199 + $0x1c] sm:$0xf]
      %v3216 = vunpack.c.l.b16 %v3200
      %v3217 = vunpack.c.l.b16 %v3201
      %v3218 = vunpack.c.l.b16 %v3202
      %v3219 = vunpack.c.l.b16 %v3203
      %v3220 = vunpack.c.l.b16 %v3204
      %v3221 = vunpack.c.l.b16 %v3205
      %v3222 = vunpack.c.l.b16 %v3206
      %v3223 = vunpack.c.l.b16 %v3207
      %v3224 = vpack.c.b16 %v3217, %v3216
      %v3225 = vpack.c.b16 %v3219, %v3218
      %v3226 = vpack.c.b16 %v3221, %v3220
      %v3227 = vpack.c.b16 %v3223, %v3222
      %3232 = vmatprep.subr.bf16.mxu0 0
      %3233 = vmatpush1.bf16.msra.mxu0 %v3224
      %3234 = vmatprep.subr.bf16.mxu0 0
      %3235 = vmatpush1.bf16.msra.mxu0 %v3225
      %3236 = vmatprep.subr.bf16.mxu0 0
      %3237 = vmatpush1.bf16.msra.mxu0 %v3226
      %3238 = vmatprep.subr.bf16.mxu0 0
      %3239 = vmatpush1.bf16.msra.mxu0 %v3227
      %3240 = vmatprep.subr.bf16.mxu0 0
      %3241 = vmatpush1.bf16.msra.mxu0 0
      %3242 = vmatprep.subr.bf16.mxu0 0
      %3243 = vmatpush1.bf16.msra.mxu0 0
      %3244 = vmatprep.subr.bf16.mxu0 0
      %3245 = vmatpush1.bf16.msra.mxu0 0
      %3246 = vmatprep.subr.bf16.mxu0 0
      %3247 = vmatpush1.bf16.msra.mxu0 0
      %3248 = vmatprep.subr.bf16.mxu0 0
      %3249 = vmatpush1.bf16.msra.mxu0 0
      %3250 = vmatprep.subr.bf16.mxu0 0
      %3251 = vmatpush1.bf16.msra.mxu0 0
      %3252 = vmatprep.subr.bf16.mxu0 0
      %3253 = vmatpush1.bf16.msra.mxu0 0
      %3254 = vmatprep.subr.bf16.mxu0 0
      %3255 = vmatpush1.bf16.msra.mxu0 0
      %3256 = vmatprep.subr.bf16.mxu0 0
      %3257 = vmatpush1.bf16.msra.mxu0 0
      %3258 = vmatprep.subr.bf16.mxu0 0
      %3259 = vmatpush1.bf16.msra.mxu0 0
      %3260 = vmatprep.subr.bf16.mxu0 0
      %3261 = vmatpush1.bf16.msra.mxu0 0
      %3262 = vmatprep.subr.bf16.mxu0 0
      %3263 = vmatpush1.bf16.msra.mxu0 0
      %3264 = vmatprep.mubr.bf16.mxu0 0
      %3265 = vmatmul.mubr.bf16.gmra.mrb[0].mxu0 %v3156
      %v3266 = vpop.f32.mrb[0].mxu0
      %v3267 = vadd.f32 %v3130, %v3266
      %v3268 = vpop.f32.mrb[0].mxu0
      %v3269 = vpop.f32.mrb[0].mxu0
      %v3270 = vpop.f32.mrb[0].mxu0
      %3271 = vdwg.mxu0
      %v3272 = vmax.f32 %v3267, 0.0
      %s3273 = scalar_lea.vmem %s14, 64
      %v3274 = vld [vmem:[%s3273] sm:$0xf]
      %v3275 = vld [vmem:[%s3273 + $0x4] sm:$0xf]
      %v3276 = vld [vmem:[%s3273 + $0x8] sm:$0xf]
      %v3277 = vld [vmem:[%s3273 + $0xc] sm:$0xf]
      %v3278 = vld [vmem:[%s3273 + $0x10] sm:$0xf]
      %v3279 = vld [vmem:[%s3273 + $0x14] sm:$0xf]
      %v3280 = vld [vmem:[%s3273 + $0x18] sm:$0xf]
      %v3281 = vld [vmem:[%s3273 + $0x1c] sm:$0xf]
      %v3290 = vunpack.c.l.b16 %v3274
      %v3291 = vunpack.c.l.b16 %v3275
      %v3292 = vunpack.c.l.b16 %v3276
      %v3293 = vunpack.c.l.b16 %v3277
      %v3294 = vunpack.c.l.b16 %v3278
      %v3295 = vunpack.c.l.b16 %v3279
      %v3296 = vunpack.c.l.b16 %v3280
      %v3297 = vunpack.c.l.b16 %v3281
      %v3298 = vpack.c.b16 %v3291, %v3290
      %v3299 = vpack.c.b16 %v3293, %v3292
      %v3300 = vpack.c.b16 %v3295, %v3294
      %v3301 = vpack.c.b16 %v3297, %v3296
      %3306 = vmatprep.subr.bf16.mxu0 0
      %3307 = vmatpush1.bf16.msra.mxu0 %v3298
      %3308 = vmatprep.subr.bf16.mxu0 0
      %3309 = vmatpush1.bf16.msra.mxu0 %v3299
      %3310 = vmatprep.subr.bf16.mxu0 0
      %3311 = vmatpush1.bf16.msra.mxu0 %v3300
      %3312 = vmatprep.subr.bf16.mxu0 0
      %3313 = vmatpush1.bf16.msra.mxu0 %v3301
      %3314 = vmatprep.subr.bf16.mxu0 0
      %3315 = vmatpush1.bf16.msra.mxu0 0
      %3316 = vmatprep.subr.bf16.mxu0 0
      %3317 = vmatpush1.bf16.msra.mxu0 0
      %3318 = vmatprep.subr.bf16.mxu0 0
      %3319 = vmatpush1.bf16.msra.mxu0 0
      %3320 = vmatprep.subr.bf16.mxu0 0
      %3321 = vmatpush1.bf16.msra.mxu0 0
      %3322 = vmatprep.subr.bf16.mxu0 0
      %3323 = vmatpush1.bf16.msra.mxu0 0
      %3324 = vmatprep.subr.bf16.mxu0 0
      %3325 = vmatpush1.bf16.msra.mxu0 0
      %3326 = vmatprep.subr.bf16.mxu0 0
      %3327 = vmatpush1.bf16.msra.mxu0 0
      %3328 = vmatprep.subr.bf16.mxu0 0
      %3329 = vmatpush1.bf16.msra.mxu0 0
      %3330 = vmatprep.subr.bf16.mxu0 0
      %3331 = vmatpush1.bf16.msra.mxu0 0
      %3332 = vmatprep.subr.bf16.mxu0 0
      %3333 = vmatpush1.bf16.msra.mxu0 0
      %3334 = vmatprep.subr.bf16.mxu0 0
      %3335 = vmatpush1.bf16.msra.mxu0 0
      %3336 = vmatprep.subr.bf16.mxu0 0
      %3337 = vmatpush1.bf16.msra.mxu0 0
      %3338 = vmatprep.mubr.bf16.mxu0 0
      %3339 = vmatmul.mubr.bf16.gmra.mrb[0].mxu0 %v3156
      %v3340 = vpop.f32.mrb[0].mxu0
      %v3341 = vadd.f32 %v3130, %v3340
      %v3342 = vpop.f32.mrb[0].mxu0
      %v3343 = vpop.f32.mrb[0].mxu0
      %v3344 = vpop.f32.mrb[0].mxu0
      %3345 = vdwg.mxu0
      %v3346 = vmax.f32 %v3341, 0.0
      %v3348 = vrot.slane %v3272, 7
      %v3351 = vrot.slane %v3346, 6
      %v3353 = vsel %vm1779, %v3198, %v3348
      %v3354 = vsel %vm1781, %v3353, %v3351
      %v3355 = vld [vmem:[%s16] sm:$0xf]
      %v3356 = vld [vmem:[%s16 + $0x4] sm:$0xf]
      %v3357 = vld [vmem:[%s16 + $0x8] sm:$0xf]
      %v3358 = vld [vmem:[%s16 + $0xc] sm:$0xf]
      %v3359 = vld [vmem:[%s16 + $0x10] sm:$0xf]
      %v3360 = vld [vmem:[%s16 + $0x14] sm:$0xf]
      %v3361 = vld [vmem:[%s16 + $0x18] sm:$0xf]
      %v3362 = vld [vmem:[%s16 + $0x1c] sm:$0xf]
      %v3363 = vld [vmem:[%s16 + $0x20] sm:$0xf]
      %v3364 = vld [vmem:[%s16 + $0x24] sm:$0xf]
      %v3365 = vld [vmem:[%s16 + $0x28] sm:$0xf]
      %v3366 = vld [vmem:[%s16 + $0x2c] sm:$0xf]
      %v3367 = vpack.c.bf16 %v3354, %v3354
      %v3380 = vunpack.c.l.b16 %v3355
      %v3381 = vunpack.c.l.b16 %v3356
      %v3382 = vunpack.c.l.b16 %v3357
      %v3383 = vunpack.c.l.b16 %v3358
      %v3384 = vunpack.c.l.b16 %v3359
      %v3385 = vunpack.c.l.b16 %v3360
      %v3386 = vunpack.c.l.b16 %v3361
      %v3387 = vunpack.c.l.b16 %v3362
      %v3388 = vunpack.c.l.b16 %v3363
      %v3389 = vunpack.c.l.b16 %v3364
      %v3390 = vunpack.c.l.b16 %v3365
      %v3391 = vunpack.c.l.b16 %v3366
      %v3392 = vpack.c.b16 %v3381, %v3380
      %v3393 = vpack.c.b16 %v3383, %v3382
      %v3394 = vpack.c.b16 %v3385, %v3384
      %v3395 = vpack.c.b16 %v3387, %v3386
      %v3396 = vpack.c.b16 %v3389, %v3388
      %v3397 = vpack.c.b16 %v3391, %v3390
      %v3405 = vsel %vm2722, %v3367, 0
      %3407 = vmatprep.subr.bf16.mxu0 0
      %3408 = vmatpush1.bf16.msra.mxu0 %v3392
      %3409 = vmatprep.subr.bf16.mxu0 0
      %3410 = vmatpush1.bf16.msra.mxu0 %v3393
      %3411 = vmatprep.subr.bf16.mxu0 0
      %3412 = vmatpush1.bf16.msra.mxu0 %v3394
      %3413 = vmatprep.subr.bf16.mxu0 0
      %3414 = vmatpush1.bf16.msra.mxu0 %v3395
      %3415 = vmatprep.subr.bf16.mxu0 0
      %3416 = vmatpush1.bf16.msra.mxu0 %v3396
      %3417 = vmatprep.subr.bf16.mxu0 0
      %3418 = vmatpush1.bf16.msra.mxu0 %v3397
      %3419 = vmatprep.subr.bf16.mxu0 0
      %3420 = vmatpush1.bf16.msra.mxu0 0
      %3421 = vmatprep.subr.bf16.mxu0 0
      %3422 = vmatpush1.bf16.msra.mxu0 0
      %3423 = vmatprep.subr.bf16.mxu0 0
      %3424 = vmatpush1.bf16.msra.mxu0 0
      %3425 = vmatprep.subr.bf16.mxu0 0
      %3426 = vmatpush1.bf16.msra.mxu0 0
      %3427 = vmatprep.subr.bf16.mxu0 0
      %3428 = vmatpush1.bf16.msra.mxu0 0
      %3429 = vmatprep.subr.bf16.mxu0 0
      %3430 = vmatpush1.bf16.msra.mxu0 0
      %3431 = vmatprep.subr.bf16.mxu0 0
      %3432 = vmatpush1.bf16.msra.mxu0 0
      %3433 = vmatprep.subr.bf16.mxu0 0
      %3434 = vmatpush1.bf16.msra.mxu0 0
      %3435 = vmatprep.subr.bf16.mxu0 0
      %3436 = vmatpush1.bf16.msra.mxu0 0
      %3437 = vmatprep.subr.bf16.mxu0 0
      %3438 = vmatpush1.bf16.msra.mxu0 0
      %3439 = vmatprep.mubr.bf16.mxu0 0
      %3440 = vmatmul.mubr.bf16.gmra.mrb[0].mxu0 %v3405
      %v3441 = vpop.f32.mrb[0].mxu0
      %v3442 = vadd.f32 0.0, %v3441
      %v3443 = vpop.f32.mrb[0].mxu0
      %v3444 = vpop.f32.mrb[0].mxu0
      %v3445 = vpop.f32.mrb[0].mxu0
      %3446 = vdwg.mxu0
      %s3447 = scalar_lea.vmem %s16, 48
      %v3448 = vld [vmem:[%s3447] sm:$0xf]
      %v3449 = vld [vmem:[%s3447 + $0x4] sm:$0xf]
      %v3450 = vld [vmem:[%s3447 + $0x8] sm:$0xf]
      %v3451 = vld [vmem:[%s3447 + $0xc] sm:$0xf]
      %v3452 = vld [vmem:[%s3447 + $0x10] sm:$0xf]
      %v3453 = vld [vmem:[%s3447 + $0x14] sm:$0xf]
      %v3454 = vld [vmem:[%s3447 + $0x18] sm:$0xf]
      %v3455 = vld [vmem:[%s3447 + $0x1c] sm:$0xf]
      %v3456 = vld [vmem:[%s3447 + $0x20] sm:$0xf]
      %v3457 = vld [vmem:[%s3447 + $0x24] sm:$0xf]
      %v3458 = vld [vmem:[%s3447 + $0x28] sm:$0xf]
      %v3459 = vld [vmem:[%s3447 + $0x2c] sm:$0xf]
      %v3472 = vunpack.c.l.b16 %v3448
      %v3473 = vunpack.c.l.b16 %v3449
      %v3474 = vunpack.c.l.b16 %v3450
      %v3475 = vunpack.c.l.b16 %v3451
      %v3476 = vunpack.c.l.b16 %v3452
      %v3477 = vunpack.c.l.b16 %v3453
      %v3478 = vunpack.c.l.b16 %v3454
      %v3479 = vunpack.c.l.b16 %v3455
      %v3480 = vunpack.c.l.b16 %v3456
      %v3481 = vunpack.c.l.b16 %v3457
      %v3482 = vunpack.c.l.b16 %v3458
      %v3483 = vunpack.c.l.b16 %v3459
      %v3484 = vpack.c.b16 %v3473, %v3472
      %v3485 = vpack.c.b16 %v3475, %v3474
      %v3486 = vpack.c.b16 %v3477, %v3476
      %v3487 = vpack.c.b16 %v3479, %v3478
      %v3488 = vpack.c.b16 %v3481, %v3480
      %v3489 = vpack.c.b16 %v3483, %v3482
      %3496 = vmatprep.subr.bf16.mxu0 0
      %3497 = vmatpush1.bf16.msra.mxu0 %v3484
      %3498 = vmatprep.subr.bf16.mxu0 0
      %3499 = vmatpush1.bf16.msra.mxu0 %v3485
      %3500 = vmatprep.subr.bf16.mxu0 0
      %3501 = vmatpush1.bf16.msra.mxu0 %v3486
      %3502 = vmatprep.subr.bf16.mxu0 0
      %3503 = vmatpush1.bf16.msra.mxu0 %v3487
      %3504 = vmatprep.subr.bf16.mxu0 0
      %3505 = vmatpush1.bf16.msra.mxu0 %v3488
      %3506 = vmatprep.subr.bf16.mxu0 0
      %3507 = vmatpush1.bf16.msra.mxu0 %v3489
      %3508 = vmatprep.subr.bf16.mxu0 0
      %3509 = vmatpush1.bf16.msra.mxu0 0
      %3510 = vmatprep.subr.bf16.mxu0 0
      %3511 = vmatpush1.bf16.msra.mxu0 0
      %3512 = vmatprep.subr.bf16.mxu0 0
      %3513 = vmatpush1.bf16.msra.mxu0 0
      %3514 = vmatprep.subr.bf16.mxu0 0
      %3515 = vmatpush1.bf16.msra.mxu0 0
      %3516 = vmatprep.subr.bf16.mxu0 0
      %3517 = vmatpush1.bf16.msra.mxu0 0
      %3518 = vmatprep.subr.bf16.mxu0 0
      %3519 = vmatpush1.bf16.msra.mxu0 0
      %3520 = vmatprep.subr.bf16.mxu0 0
      %3521 = vmatpush1.bf16.msra.mxu0 0
      %3522 = vmatprep.subr.bf16.mxu0 0
      %3523 = vmatpush1.bf16.msra.mxu0 0
      %3524 = vmatprep.subr.bf16.mxu0 0
      %3525 = vmatpush1.bf16.msra.mxu0 0
      %3526 = vmatprep.subr.bf16.mxu0 0
      %3527 = vmatpush1.bf16.msra.mxu0 0
      %3528 = vmatprep.mubr.bf16.mxu0 0
      %3529 = vmatmul.mubr.bf16.gmra.mrb[0].mxu0 %v3405
      %v3530 = vpop.f32.mrb[0].mxu0
      %v3531 = vadd.f32 0.0, %v3530
      %v3532 = vpop.f32.mrb[0].mxu0
      %v3533 = vpop.f32.mrb[0].mxu0
      %v3534 = vpop.f32.mrb[0].mxu0
      %3535 = vdwg.mxu0
      %s3536 = scalar_lea.vmem %s16, 96
      %v3537 = vld [vmem:[%s3536] sm:$0xf]
      %v3538 = vld [vmem:[%s3536 + $0x4] sm:$0xf]
      %v3539 = vld [vmem:[%s3536 + $0x8] sm:$0xf]
      %v3540 = vld [vmem:[%s3536 + $0xc] sm:$0xf]
      %v3541 = vld [vmem:[%s3536 + $0x10] sm:$0xf]
      %v3542 = vld [vmem:[%s3536 + $0x14] sm:$0xf]
      %v3543 = vld [vmem:[%s3536 + $0x18] sm:$0xf]
      %v3544 = vld [vmem:[%s3536 + $0x1c] sm:$0xf]
      %v3545 = vld [vmem:[%s3536 + $0x20] sm:$0xf]
      %v3546 = vld [vmem:[%s3536 + $0x24] sm:$0xf]
      %v3547 = vld [vmem:[%s3536 + $0x28] sm:$0xf]
      %v3548 = vld [vmem:[%s3536 + $0x2c] sm:$0xf]
      %v3561 = vunpack.c.l.b16 %v3537
      %v3562 = vunpack.c.l.b16 %v3538
      %v3563 = vunpack.c.l.b16 %v3539
      %v3564 = vunpack.c.l.b16 %v3540
      %v3565 = vunpack.c.l.b16 %v3541
      %v3566 = vunpack.c.l.b16 %v3542
      %v3567 = vunpack.c.l.b16 %v3543
      %v3568 = vunpack.c.l.b16 %v3544
      %v3569 = vunpack.c.l.b16 %v3545
      %v3570 = vunpack.c.l.b16 %v3546
      %v3571 = vunpack.c.l.b16 %v3547
      %v3572 = vunpack.c.l.b16 %v3548
      %v3573 = vpack.c.b16 %v3562, %v3561
      %v3574 = vpack.c.b16 %v3564, %v3563
      %v3575 = vpack.c.b16 %v3566, %v3565
      %v3576 = vpack.c.b16 %v3568, %v3567
      %v3577 = vpack.c.b16 %v3570, %v3569
      %v3578 = vpack.c.b16 %v3572, %v3571
      %3585 = vmatprep.subr.bf16.mxu0 0
      %3586 = vmatpush1.bf16.msra.mxu0 %v3573
      %3587 = vmatprep.subr.bf16.mxu0 0
      %3588 = vmatpush1.bf16.msra.mxu0 %v3574
      %3589 = vmatprep.subr.bf16.mxu0 0
      %3590 = vmatpush1.bf16.msra.mxu0 %v3575
      %3591 = vmatprep.subr.bf16.mxu0 0
      %3592 = vmatpush1.bf16.msra.mxu0 %v3576
      %3593 = vmatprep.subr.bf16.mxu0 0
      %3594 = vmatpush1.bf16.msra.mxu0 %v3577
      %3595 = vmatprep.subr.bf16.mxu0 0
      %3596 = vmatpush1.bf16.msra.mxu0 %v3578
      %3597 = vmatprep.subr.bf16.mxu0 0
      %3598 = vmatpush1.bf16.msra.mxu0 0
      %3599 = vmatprep.subr.bf16.mxu0 0
      %3600 = vmatpush1.bf16.msra.mxu0 0
      %3601 = vmatprep.subr.bf16.mxu0 0
      %3602 = vmatpush1.bf16.msra.mxu0 0
      %3603 = vmatprep.subr.bf16.mxu0 0
      %3604 = vmatpush1.bf16.msra.mxu0 0
      %3605 = vmatprep.subr.bf16.mxu0 0
      %3606 = vmatpush1.bf16.msra.mxu0 0
      %3607 = vmatprep.subr.bf16.mxu0 0
      %3608 = vmatpush1.bf16.msra.mxu0 0
      %3609 = vmatprep.subr.bf16.mxu0 0
      %3610 = vmatpush1.bf16.msra.mxu0 0
      %3611 = vmatprep.subr.bf16.mxu0 0
      %3612 = vmatpush1.bf16.msra.mxu0 0
      %3613 = vmatprep.subr.bf16.mxu0 0
      %3614 = vmatpush1.bf16.msra.mxu0 0
      %3615 = vmatprep.subr.bf16.mxu0 0
      %3616 = vmatpush1.bf16.msra.mxu0 0
      %3617 = vmatprep.mubr.bf16.mxu0 0
      %3618 = vmatmul.mubr.bf16.gmra.mrb[0].mxu0 %v3405
      %v3619 = vpop.f32.mrb[0].mxu0
      %v3620 = vadd.f32 0.0, %v3619
      %v3621 = vpop.f32.mrb[0].mxu0
      %v3622 = vpop.f32.mrb[0].mxu0
      %v3623 = vpop.f32.mrb[0].mxu0
      %3624 = vdwg.mxu0
      %s3625 = scalar_lea.vmem %s16, 144
      %v3626 = vld [vmem:[%s3625] sm:$0xf]
      %v3627 = vld [vmem:[%s3625 + $0x4] sm:$0xf]
      %v3628 = vld [vmem:[%s3625 + $0x8] sm:$0xf]
      %v3629 = vld [vmem:[%s3625 + $0xc] sm:$0xf]
      %v3630 = vld [vmem:[%s3625 + $0x10] sm:$0xf]
      %v3631 = vld [vmem:[%s3625 + $0x14] sm:$0xf]
      %v3632 = vld [vmem:[%s3625 + $0x18] sm:$0xf]
      %v3633 = vld [vmem:[%s3625 + $0x1c] sm:$0xf]
      %v3634 = vld [vmem:[%s3625 + $0x20] sm:$0xf]
      %v3635 = vld [vmem:[%s3625 + $0x24] sm:$0xf]
      %v3636 = vld [vmem:[%s3625 + $0x28] sm:$0xf]
      %v3637 = vld [vmem:[%s3625 + $0x2c] sm:$0xf]
      %v3650 = vunpack.c.l.b16 %v3626
      %v3651 = vunpack.c.l.b16 %v3627
      %v3652 = vunpack.c.l.b16 %v3628
      %v3653 = vunpack.c.l.b16 %v3629
      %v3654 = vunpack.c.l.b16 %v3630
      %v3655 = vunpack.c.l.b16 %v3631
      %v3656 = vunpack.c.l.b16 %v3632
      %v3657 = vunpack.c.l.b16 %v3633
      %v3658 = vunpack.c.l.b16 %v3634
      %v3659 = vunpack.c.l.b16 %v3635
      %v3660 = vunpack.c.l.b16 %v3636
      %v3661 = vunpack.c.l.b16 %v3637
      %v3662 = vpack.c.b16 %v3651, %v3650
      %v3663 = vpack.c.b16 %v3653, %v3652
      %v3664 = vpack.c.b16 %v3655, %v3654
      %v3665 = vpack.c.b16 %v3657, %v3656
      %v3666 = vpack.c.b16 %v3659, %v3658
      %v3667 = vpack.c.b16 %v3661, %v3660
      %3674 = vmatprep.subr.bf16.mxu0 0
      %3675 = vmatpush1.bf16.msra.mxu0 %v3662
      %3676 = vmatprep.subr.bf16.mxu0 0
      %3677 = vmatpush1.bf16.msra.mxu0 %v3663
      %3678 = vmatprep.subr.bf16.mxu0 0
      %3679 = vmatpush1.bf16.msra.mxu0 %v3664
      %3680 = vmatprep.subr.bf16.mxu0 0
      %3681 = vmatpush1.bf16.msra.mxu0 %v3665
      %3682 = vmatprep.subr.bf16.mxu0 0
      %3683 = vmatpush1.bf16.msra.mxu0 %v3666
      %3684 = vmatprep.subr.bf16.mxu0 0
      %3685 = vmatpush1.bf16.msra.mxu0 %v3667
      %3686 = vmatprep.subr.bf16.mxu0 0
      %3687 = vmatpush1.bf16.msra.mxu0 0
      %3688 = vmatprep.subr.bf16.mxu0 0
      %3689 = vmatpush1.bf16.msra.mxu0 0
      %3690 = vmatprep.subr.bf16.mxu0 0
      %3691 = vmatpush1.bf16.msra.mxu0 0
      %3692 = vmatprep.subr.bf16.mxu0 0
      %3693 = vmatpush1.bf16.msra.mxu0 0
      %3694 = vmatprep.subr.bf16.mxu0 0
      %3695 = vmatpush1.bf16.msra.mxu0 0
      %3696 = vmatprep.subr.bf16.mxu0 0
      %3697 = vmatpush1.bf16.msra.mxu0 0
      %3698 = vmatprep.subr.bf16.mxu0 0
      %3699 = vmatpush1.bf16.msra.mxu0 0
      %3700 = vmatprep.subr.bf16.mxu0 0
      %3701 = vmatpush1.bf16.msra.mxu0 0
      %3702 = vmatprep.subr.bf16.mxu0 0
      %3703 = vmatpush1.bf16.msra.mxu0 0
      %3704 = vmatprep.subr.bf16.mxu0 0
      %3705 = vmatpush1.bf16.msra.mxu0 0
      %3706 = vmatprep.mubr.bf16.mxu0 0
      %3707 = vmatmul.mubr.bf16.gmra.mrb[0].mxu0 %v3405
      %v3708 = vpop.f32.mrb[0].mxu0
      %v3709 = vadd.f32 0.0, %v3708
      %v3710 = vpop.f32.mrb[0].mxu0
      %v3711 = vpop.f32.mrb[0].mxu0
      %v3712 = vpop.f32.mrb[0].mxu0
      %3713 = vdwg.mxu0
      %s3714 = scalar_lea.vmem %s16, 192
      %v3715 = vld [vmem:[%s3714] sm:$0xf]
      %v3716 = vld [vmem:[%s3714 + $0x4] sm:$0xf]
      %v3717 = vld [vmem:[%s3714 + $0x8] sm:$0xf]
      %v3718 = vld [vmem:[%s3714 + $0xc] sm:$0xf]
      %v3719 = vld [vmem:[%s3714 + $0x10] sm:$0xf]
      %v3720 = vld [vmem:[%s3714 + $0x14] sm:$0xf]
      %v3721 = vld [vmem:[%s3714 + $0x18] sm:$0xf]
      %v3722 = vld [vmem:[%s3714 + $0x1c] sm:$0xf]
      %v3723 = vld [vmem:[%s3714 + $0x20] sm:$0xf]
      %v3724 = vld [vmem:[%s3714 + $0x24] sm:$0xf]
      %v3725 = vld [vmem:[%s3714 + $0x28] sm:$0xf]
      %v3726 = vld [vmem:[%s3714 + $0x2c] sm:$0xf]
      %v3739 = vunpack.c.l.b16 %v3715
      %v3740 = vunpack.c.l.b16 %v3716
      %v3741 = vunpack.c.l.b16 %v3717
      %v3742 = vunpack.c.l.b16 %v3718
      %v3743 = vunpack.c.l.b16 %v3719
      %v3744 = vunpack.c.l.b16 %v3720
      %v3745 = vunpack.c.l.b16 %v3721
      %v3746 = vunpack.c.l.b16 %v3722
      %v3747 = vunpack.c.l.b16 %v3723
      %v3748 = vunpack.c.l.b16 %v3724
      %v3749 = vunpack.c.l.b16 %v3725
      %v3750 = vunpack.c.l.b16 %v3726
      %v3751 = vpack.c.b16 %v3740, %v3739
      %v3752 = vpack.c.b16 %v3742, %v3741
      %v3753 = vpack.c.b16 %v3744, %v3743
      %v3754 = vpack.c.b16 %v3746, %v3745
      %v3755 = vpack.c.b16 %v3748, %v3747
      %v3756 = vpack.c.b16 %v3750, %v3749
      %3763 = vmatprep.subr.bf16.mxu0 0
      %3764 = vmatpush1.bf16.msra.mxu0 %v3751
      %3765 = vmatprep.subr.bf16.mxu0 0
      %3766 = vmatpush1.bf16.msra.mxu0 %v3752
      %3767 = vmatprep.subr.bf16.mxu0 0
      %3768 = vmatpush1.bf16.msra.mxu0 %v3753
      %3769 = vmatprep.subr.bf16.mxu0 0
      %3770 = vmatpush1.bf16.msra.mxu0 %v3754
      %3771 = vmatprep.subr.bf16.mxu0 0
      %3772 = vmatpush1.bf16.msra.mxu0 %v3755
      %3773 = vmatprep.subr.bf16.mxu0 0
      %3774 = vmatpush1.bf16.msra.mxu0 %v3756
      %3775 = vmatprep.subr.bf16.mxu0 0
      %3776 = vmatpush1.bf16.msra.mxu0 0
      %3777 = vmatprep.subr.bf16.mxu0 0
      %3778 = vmatpush1.bf16.msra.mxu0 0
      %3779 = vmatprep.subr.bf16.mxu0 0
      %3780 = vmatpush1.bf16.msra.mxu0 0
      %3781 = vmatprep.subr.bf16.mxu0 0
      %3782 = vmatpush1.bf16.msra.mxu0 0
      %3783 = vmatprep.subr.bf16.mxu0 0
      %3784 = vmatpush1.bf16.msra.mxu0 0
      %3785 = vmatprep.subr.bf16.mxu0 0
      %3786 = vmatpush1.bf16.msra.mxu0 0
      %3787 = vmatprep.subr.bf16.mxu0 0
      %3788 = vmatpush1.bf16.msra.mxu0 0
      %3789 = vmatprep.subr.bf16.mxu0 0
      %3790 = vmatpush1.bf16.msra.mxu0 0
      %3791 = vmatprep.subr.bf16.mxu0 0
      %3792 = vmatpush1.bf16.msra.mxu0 0
      %3793 = vmatprep.subr.bf16.mxu0 0
      %3794 = vmatpush1.bf16.msra.mxu0 0
      %3795 = vmatprep.mubr.bf16.mxu0 0
      %3796 = vmatmul.mubr.bf16.gmra.mrb[0].mxu0 %v3405
      %v3797 = vpop.f32.mrb[0].mxu0
      %v3798 = vadd.f32 0.0, %v3797
      %v3799 = vpop.f32.mrb[0].mxu0
      %v3800 = vpop.f32.mrb[0].mxu0
      %v3801 = vpop.f32.mrb[0].mxu0
      %3802 = vdwg.mxu0
      %v3803 = vld [vmem:[%s17] sm:$0x1]
      %v3804 = vadd.f32 %v3803, %v3531
      %v3805 = vmax.f32 %v3804, 0.0
      %v3806 = vadd.f32 %v3803, %v3620
      %v3809 = vunpack.c.l.s4 1966171168
      %v3810 = vunpack.c.0.s8 %v3809
      %v3811 = vlaneseq
      %v3812 = vshrl.u32 %v3811, 7
      %v3813 = vsub.s32 %v3810, %v3812
      %v3814 = vrot.slane %v3442, %v3813
      %v3815 = vcombine.high %v3814, %v3814
      %v3817 = vunpack.c.l.s4 1966171168
      %v3818 = vunpack.c.0.s8 %v3817
      %v3819 = vlaneseq
      %v3820 = vshrl.u32 %v3819, 7
      %v3821 = vsub.s32 %v3818, %v3820
      %v3822 = vrot.slane %v3814, %v3821
      %v3824 = vunpack.c.l.s4 1966171168
      %v3825 = vunpack.c.0.s8 %v3824
      %v3826 = vlaneseq
      %v3827 = vshrl.u32 %v3826, 7
      %v3828 = vsub.s32 %v3825, %v3827
      %v3829 = vrot.slane %v3815, %v3828
      %v3831 = vadd.f32 %v3806, %v3829
      %v3832 = vmax.f32 %v3831, 0.0
      %v3833 = vadd.f32 %v3803, %v3709
      %v3836 = vunpack.c.l.s4 1966171168
      %v3837 = vunpack.c.0.s8 %v3836
      %v3838 = vlaneseq
      %v3839 = vshrl.u32 %v3838, 7
      %v3840 = vsub.s32 %v3837, %v3839
      %v3841 = vrot.slane %v3531, %v3840
      %v3842 = vcombine.high %v3841, %v3841
      %v3844 = vunpack.c.l.s4 1966171168
      %v3845 = vunpack.c.0.s8 %v3844
      %v3846 = vlaneseq
      %v3847 = vshrl.u32 %v3846, 7
      %v3848 = vsub.s32 %v3845, %v3847
      %v3849 = vrot.slane %v3841, %v3848
      %v3851 = vunpack.c.l.s4 1966171168
      %v3852 = vunpack.c.0.s8 %v3851
      %v3853 = vlaneseq
      %v3854 = vshrl.u32 %v3853, 7
      %v3855 = vsub.s32 %v3852, %v3854
      %v3856 = vrot.slane %v3842, %v3855
      %v3858 = vadd.f32 %v3833, %v3856
      %v3859 = vmax.f32 %v3858, 0.0
      %v3860 = vadd.f32 %v3803, %v3798
      %v3863 = vunpack.c.l.s4 1966171168
      %v3864 = vunpack.c.0.s8 %v3863
      %v3865 = vlaneseq
      %v3866 = vshrl.u32 %v3865, 7
      %v3867 = vsub.s32 %v3864, %v3866
      %v3868 = vrot.slane %v3620, %v3867
      %v3869 = vcombine.high %v3868, %v3868
      %v3871 = vunpack.c.l.s4 1966171168
      %v3872 = vunpack.c.0.s8 %v3871
      %v3873 = vlaneseq
      %v3874 = vshrl.u32 %v3873, 7
      %v3875 = vsub.s32 %v3872, %v3874
      %v3876 = vrot.slane %v3868, %v3875
      %v3878 = vunpack.c.l.s4 1966171168
      %v3879 = vunpack.c.0.s8 %v3878
      %v3880 = vlaneseq
      %v3881 = vshrl.u32 %v3880, 7
      %v3882 = vsub.s32 %v3879, %v3881
      %v3883 = vrot.slane %v3869, %v3882
      %v3885 = vadd.f32 %v3860, %v3883
      %v3886 = vcombine.high %v3822, %v3822
      %v3888 = vadd.f32 %v3885, %v3886
      %v3889 = vmax.f32 %v3888, 0.0
      %v3892 = vunpack.c.l.s4 1966171168
      %v3893 = vunpack.c.0.s8 %v3892
      %v3894 = vlaneseq
      %v3895 = vshrl.u32 %v3894, 7
      %v3896 = vsub.s32 %v3893, %v3895
      %v3897 = vrot.slane %v3709, %v3896
      %v3898 = vcombine.high %v3897, %v3897
      %v3900 = vunpack.c.l.s4 1966171168
      %v3901 = vunpack.c.0.s8 %v3900
      %v3902 = vlaneseq
      %v3903 = vshrl.u32 %v3902, 7
      %v3904 = vsub.s32 %v3901, %v3903
      %v3905 = vrot.slane %v3897, %v3904
      %v3907 = vunpack.c.l.s4 1966171168
      %v3908 = vunpack.c.0.s8 %v3907
      %v3909 = vlaneseq
      %v3910 = vshrl.u32 %v3909, 7
      %v3911 = vsub.s32 %v3908, %v3910
      %v3912 = vrot.slane %v3898, %v3911
      %v3914 = vadd.f32 %v3803, %v3912
      %v3915 = vcombine.high %v3849, %v3849
      %v3917 = vadd.f32 %v3914, %v3915
      %v3918 = vmax.f32 %v3917, 0.0
      %v3921 = vunpack.c.l.s4 1966171168
      %v3922 = vunpack.c.0.s8 %v3921
      %v3923 = vlaneseq
      %v3924 = vshrl.u32 %v3923, 7
      %v3925 = vsub.s32 %v3922, %v3924
      %v3926 = vrot.slane %v3798, %v3925
      %v3927 = vcombine.high %v3926, %v3926
      %v3929 = vunpack.c.l.s4 1966171168
      %v3930 = vunpack.c.0.s8 %v3929
      %v3931 = vlaneseq
      %v3932 = vshrl.u32 %v3931, 7
      %v3933 = vsub.s32 %v3930, %v3932
      %v3934 = vrot.slane %v3926, %v3933
      %v3936 = vunpack.c.l.s4 1966171168
      %v3937 = vunpack.c.0.s8 %v3936
      %v3938 = vlaneseq
      %v3939 = vshrl.u32 %v3938, 7
      %v3940 = vsub.s32 %v3937, %v3939
      %v3941 = vrot.slane %v3927, %v3940
      %v3943 = vadd.f32 %v3803, %v3941
      %v3944 = vcombine.high %v3876, %v3876
      %v3946 = vadd.f32 %v3943, %v3944
      %v3947 = vmax.f32 %v3946, 0.0
      %v3948 = vcombine.high %v3905, %v3905
      %v3950 = vadd.f32 %v3803, %v3948
      %v3951 = vmax.f32 %v3950, 0.0
      %v3952 = vcombine.high %v3934, %v3934
      %v3954 = vadd.f32 %v3803, %v3952
      %v3955 = vmax.f32 %v3954, 0.0
      %v3957 = vlaneseq
      %v3958 = vshrl.u32 %v3957, 7
      %v3959 = vsub.s32 0, %v3958
      %v3960 = vrot.slane %v3832, %v3959
      %v3963 = vlaneseq
      %v3964 = vshrl.u32 %v3963, 7
      %v3965 = vsub.s32 0, %v3964
      %v3966 = vrot.slane %v3859, %v3965
      %v3969 = vlaneseq
      %v3970 = vshrl.u32 %v3969, 7
      %v3971 = vsub.s32 0, %v3970
      %v3972 = vrot.slane %v3889, %v3971
      %v3975 = vlaneseq
      %v3976 = vshrl.u32 %v3975, 7
      %v3977 = vsub.s32 0, %v3976
      %v3978 = vrot.slane %v3918, %v3977
      %v3981 = vlaneseq
      %v3982 = vshrl.u32 %v3981, 7
      %v3983 = vsub.s32 0, %v3982
      %v3984 = vrot.slane %v3947, %v3983
      %v3987 = vlaneseq
      %v3988 = vshrl.u32 %v3987, 7
      %v3989 = vsub.s32 0, %v3988
      %v3990 = vrot.slane %v3951, %v3989
      %v3993 = vlaneseq
      %v3994 = vshrl.u32 %v3993, 7
      %v3995 = vsub.s32 0, %v3994
      %v3996 = vrot.slane %v3955, %v3995
      %v3998 = vsel %vm1779, %v3805, %v3960
      %v3999 = vsel %vm1781, %v3998, %v3966
      %v4000 = vsel %vm1783, %v3999, %v3972
      %v4001 = vsel %vm1785, %v4000, %v3978
      %v4002 = vsel %vm1787, %v4001, %v3984
      %v4003 = vsel %vm763, %v4002, %v3990
      %v4004 = vsel %vm1790, %v4003, %v3996
      %v4005 = vld [vmem:[%s18] sm:$0xf]
      %v4006 = vld [vmem:[%s18 + $0x4] sm:$0xf]
      %v4007 = vld [vmem:[%s18 + $0x8] sm:$0xf]
      %v4008 = vld [vmem:[%s18 + $0xc] sm:$0xf]
      %v4009 = vld [vmem:[%s18 + $0x10] sm:$0xf]
      %v4010 = vld [vmem:[%s18 + $0x14] sm:$0xf]
      %v4011 = vld [vmem:[%s18 + $0x18] sm:$0xf]
      %v4012 = vld [vmem:[%s18 + $0x1c] sm:$0xf]
      %v4013 = vld [vmem:[%s18 + $0x20] sm:$0xf]
      %v4014 = vld [vmem:[%s18 + $0x24] sm:$0xf]
      %v4015 = vld [vmem:[%s18 + $0x28] sm:$0xf]
      %v4016 = vld [vmem:[%s18 + $0x2c] sm:$0xf]
      %v4017 = vld [vmem:[%s18 + $0x30] sm:$0xf]
      %v4018 = vld [vmem:[%s18 + $0x34] sm:$0xf]
      %v4019 = vld [vmem:[%s18 + $0x38] sm:$0xf]
      %v4020 = vld [vmem:[%s18 + $0x3c] sm:$0xf]
      %v4021 = vpack.c.bf16 %v4004, %v4004
      %v4038 = vunpack.c.l.b16 %v4005
      %v4039 = vunpack.c.l.b16 %v4006
      %v4040 = vunpack.c.l.b16 %v4007
      %v4041 = vunpack.c.l.b16 %v4008
      %v4042 = vunpack.c.l.b16 %v4009
      %v4043 = vunpack.c.l.b16 %v4010
      %v4044 = vunpack.c.l.b16 %v4011
      %v4045 = vunpack.c.l.b16 %v4012
      %v4046 = vunpack.c.l.b16 %v4013
      %v4047 = vunpack.c.l.b16 %v4014
      %v4048 = vunpack.c.l.b16 %v4015
      %v4049 = vunpack.c.l.b16 %v4016
      %v4050 = vunpack.c.l.b16 %v4017
      %v4051 = vunpack.c.l.b16 %v4018
      %v4052 = vunpack.c.l.b16 %v4019
      %v4053 = vunpack.c.l.b16 %v4020
      %v4054 = vpack.c.b16 %v4039, %v4038
      %v4055 = vpack.c.b16 %v4041, %v4040
      %v4056 = vpack.c.b16 %v4043, %v4042
      %v4057 = vpack.c.b16 %v4045, %v4044
      %v4058 = vpack.c.b16 %v4047, %v4046
      %v4059 = vpack.c.b16 %v4049, %v4048
      %v4060 = vpack.c.b16 %v4051, %v4050
      %v4061 = vpack.c.b16 %v4053, %v4052
      %4070 = vmatprep.subr.bf16.mxu0 0
      %4071 = vmatpush1.bf16.msra.mxu0 %v4054
      %4072 = vmatprep.subr.bf16.mxu0 0
      %4073 = vmatpush1.bf16.msra.mxu0 %v4055
      %4074 = vmatprep.subr.bf16.mxu0 0
      %4075 = vmatpush1.bf16.msra.mxu0 %v4056
      %4076 = vmatprep.subr.bf16.mxu0 0
      %4077 = vmatpush1.bf16.msra.mxu0 %v4057
      %4078 = vmatprep.subr.bf16.mxu0 0
      %4079 = vmatpush1.bf16.msra.mxu0 %v4058
      %4080 = vmatprep.subr.bf16.mxu0 0
      %4081 = vmatpush1.bf16.msra.mxu0 %v4059
      %4082 = vmatprep.subr.bf16.mxu0 0
      %4083 = vmatpush1.bf16.msra.mxu0 %v4060
      %4084 = vmatprep.subr.bf16.mxu0 0
      %4085 = vmatpush1.bf16.msra.mxu0 %v4061
      %4086 = vmatprep.subr.bf16.mxu0 0
      %4087 = vmatpush1.bf16.msra.mxu0 0
      %4088 = vmatprep.subr.bf16.mxu0 0
      %4089 = vmatpush1.bf16.msra.mxu0 0
      %4090 = vmatprep.subr.bf16.mxu0 0
      %4091 = vmatpush1.bf16.msra.mxu0 0
      %4092 = vmatprep.subr.bf16.mxu0 0
      %4093 = vmatpush1.bf16.msra.mxu0 0
      %4094 = vmatprep.subr.bf16.mxu0 0
      %4095 = vmatpush1.bf16.msra.mxu0 0
      %4096 = vmatprep.subr.bf16.mxu0 0
      %4097 = vmatpush1.bf16.msra.mxu0 0
      %4098 = vmatprep.subr.bf16.mxu0 0
      %4099 = vmatpush1.bf16.msra.mxu0 0
      %4100 = vmatprep.subr.bf16.mxu0 0
      %4101 = vmatpush1.bf16.msra.mxu0 0
      %4102 = vmatprep.mubr.bf16.mxu0 0
      %4103 = vmatmul.mubr.bf16.gmra.mrb[0].mxu0 %v4021
      %v4104 = vpop.f32.mrb[0].mxu0
      %v4105 = vadd.f32 0.0, %v4104
      %v4106 = vpop.f32.mrb[0].mxu0
      %v4107 = vpop.f32.mrb[0].mxu0
      %v4108 = vpop.f32.mrb[0].mxu0
      %4109 = vdwg.mxu0
      %s4110 = scalar_lea.vmem %s18, 64
      %v4111 = vld [vmem:[%s4110] sm:$0xf]
      %v4112 = vld [vmem:[%s4110 + $0x4] sm:$0xf]
      %v4113 = vld [vmem:[%s4110 + $0x8] sm:$0xf]
      %v4114 = vld [vmem:[%s4110 + $0xc] sm:$0xf]
      %v4115 = vld [vmem:[%s4110 + $0x10] sm:$0xf]
      %v4116 = vld [vmem:[%s4110 + $0x14] sm:$0xf]
      %v4117 = vld [vmem:[%s4110 + $0x18] sm:$0xf]
      %v4118 = vld [vmem:[%s4110 + $0x1c] sm:$0xf]
      %v4119 = vld [vmem:[%s4110 + $0x20] sm:$0xf]
      %v4120 = vld [vmem:[%s4110 + $0x24] sm:$0xf]
      %v4121 = vld [vmem:[%s4110 + $0x28] sm:$0xf]
      %v4122 = vld [vmem:[%s4110 + $0x2c] sm:$0xf]
      %v4123 = vld [vmem:[%s4110 + $0x30] sm:$0xf]
      %v4124 = vld [vmem:[%s4110 + $0x34] sm:$0xf]
      %v4125 = vld [vmem:[%s4110 + $0x38] sm:$0xf]
      %v4126 = vld [vmem:[%s4110 + $0x3c] sm:$0xf]
      %v4143 = vunpack.c.l.b16 %v4111
      %v4144 = vunpack.c.l.b16 %v4112
      %v4145 = vunpack.c.l.b16 %v4113
      %v4146 = vunpack.c.l.b16 %v4114
      %v4147 = vunpack.c.l.b16 %v4115
      %v4148 = vunpack.c.l.b16 %v4116
      %v4149 = vunpack.c.l.b16 %v4117
      %v4150 = vunpack.c.l.b16 %v4118
      %v4151 = vunpack.c.l.b16 %v4119
      %v4152 = vunpack.c.l.b16 %v4120
      %v4153 = vunpack.c.l.b16 %v4121
      %v4154 = vunpack.c.l.b16 %v4122
      %v4155 = vunpack.c.l.b16 %v4123
      %v4156 = vunpack.c.l.b16 %v4124
      %v4157 = vunpack.c.l.b16 %v4125
      %v4158 = vunpack.c.l.b16 %v4126
      %v4159 = vpack.c.b16 %v4144, %v4143
      %v4160 = vpack.c.b16 %v4146, %v4145
      %v4161 = vpack.c.b16 %v4148, %v4147
      %v4162 = vpack.c.b16 %v4150, %v4149
      %v4163 = vpack.c.b16 %v4152, %v4151
      %v4164 = vpack.c.b16 %v4154, %v4153
      %v4165 = vpack.c.b16 %v4156, %v4155
      %v4166 = vpack.c.b16 %v4158, %v4157
      %4175 = vmatprep.subr.bf16.mxu0 0
      %4176 = vmatpush1.bf16.msra.mxu0 %v4159
      %4177 = vmatprep.subr.bf16.mxu0 0
      %4178 = vmatpush1.bf16.msra.mxu0 %v4160
      %4179 = vmatprep.subr.bf16.mxu0 0
      %4180 = vmatpush1.bf16.msra.mxu0 %v4161
      %4181 = vmatprep.subr.bf16.mxu0 0
      %4182 = vmatpush1.bf16.msra.mxu0 %v4162
      %4183 = vmatprep.subr.bf16.mxu0 0
      %4184 = vmatpush1.bf16.msra.mxu0 %v4163
      %4185 = vmatprep.subr.bf16.mxu0 0
      %4186 = vmatpush1.bf16.msra.mxu0 %v4164
      %4187 = vmatprep.subr.bf16.mxu0 0
      %4188 = vmatpush1.bf16.msra.mxu0 %v4165
      %4189 = vmatprep.subr.bf16.mxu0 0
      %4190 = vmatpush1.bf16.msra.mxu0 %v4166
      %4191 = vmatprep.subr.bf16.mxu0 0
      %4192 = vmatpush1.bf16.msra.mxu0 0
      %4193 = vmatprep.subr.bf16.mxu0 0
      %4194 = vmatpush1.bf16.msra.mxu0 0
      %4195 = vmatprep.subr.bf16.mxu0 0
      %4196 = vmatpush1.bf16.msra.mxu0 0
      %4197 = vmatprep.subr.bf16.mxu0 0
      %4198 = vmatpush1.bf16.msra.mxu0 0
      %4199 = vmatprep.subr.bf16.mxu0 0
      %4200 = vmatpush1.bf16.msra.mxu0 0
      %4201 = vmatprep.subr.bf16.mxu0 0
      %4202 = vmatpush1.bf16.msra.mxu0 0
      %4203 = vmatprep.subr.bf16.mxu0 0
      %4204 = vmatpush1.bf16.msra.mxu0 0
      %4205 = vmatprep.subr.bf16.mxu0 0
      %4206 = vmatpush1.bf16.msra.mxu0 0
      %4207 = vmatprep.mubr.bf16.mxu0 0
      %4208 = vmatmul.mubr.bf16.gmra.mrb[0].mxu0 %v4021
      %v4209 = vpop.f32.mrb[0].mxu0
      %v4210 = vadd.f32 0.0, %v4209
      %v4211 = vpop.f32.mrb[0].mxu0
      %v4212 = vpop.f32.mrb[0].mxu0
      %v4213 = vpop.f32.mrb[0].mxu0
      %4214 = vdwg.mxu0
      %s4215 = scalar_lea.vmem %s18, 128
      %v4216 = vld [vmem:[%s4215] sm:$0xf]
      %v4217 = vld [vmem:[%s4215 + $0x4] sm:$0xf]
      %v4218 = vld [vmem:[%s4215 + $0x8] sm:$0xf]
      %v4219 = vld [vmem:[%s4215 + $0xc] sm:$0xf]
      %v4220 = vld [vmem:[%s4215 + $0x10] sm:$0xf]
      %v4221 = vld [vmem:[%s4215 + $0x14] sm:$0xf]
      %v4222 = vld [vmem:[%s4215 + $0x18] sm:$0xf]
      %v4223 = vld [vmem:[%s4215 + $0x1c] sm:$0xf]
      %v4224 = vld [vmem:[%s4215 + $0x20] sm:$0xf]
      %v4225 = vld [vmem:[%s4215 + $0x24] sm:$0xf]
      %v4226 = vld [vmem:[%s4215 + $0x28] sm:$0xf]
      %v4227 = vld [vmem:[%s4215 + $0x2c] sm:$0xf]
      %v4228 = vld [vmem:[%s4215 + $0x30] sm:$0xf]
      %v4229 = vld [vmem:[%s4215 + $0x34] sm:$0xf]
      %v4230 = vld [vmem:[%s4215 + $0x38] sm:$0xf]
      %v4231 = vld [vmem:[%s4215 + $0x3c] sm:$0xf]
      %v4248 = vunpack.c.l.b16 %v4216
      %v4249 = vunpack.c.l.b16 %v4217
      %v4250 = vunpack.c.l.b16 %v4218
      %v4251 = vunpack.c.l.b16 %v4219
      %v4252 = vunpack.c.l.b16 %v4220
      %v4253 = vunpack.c.l.b16 %v4221
      %v4254 = vunpack.c.l.b16 %v4222
      %v4255 = vunpack.c.l.b16 %v4223
      %v4256 = vunpack.c.l.b16 %v4224
      %v4257 = vunpack.c.l.b16 %v4225
      %v4258 = vunpack.c.l.b16 %v4226
      %v4259 = vunpack.c.l.b16 %v4227
      %v4260 = vunpack.c.l.b16 %v4228
      %v4261 = vunpack.c.l.b16 %v4229
      %v4262 = vunpack.c.l.b16 %v4230
      %v4263 = vunpack.c.l.b16 %v4231
      %v4264 = vpack.c.b16 %v4249, %v4248
      %v4265 = vpack.c.b16 %v4251, %v4250
      %v4266 = vpack.c.b16 %v4253, %v4252
      %v4267 = vpack.c.b16 %v4255, %v4254
      %v4268 = vpack.c.b16 %v4257, %v4256
      %v4269 = vpack.c.b16 %v4259, %v4258
      %v4270 = vpack.c.b16 %v4261, %v4260
      %v4271 = vpack.c.b16 %v4263, %v4262
      %4280 = vmatprep.subr.bf16.mxu0 0
      %4281 = vmatpush1.bf16.msra.mxu0 %v4264
      %4282 = vmatprep.subr.bf16.mxu0 0
      %4283 = vmatpush1.bf16.msra.mxu0 %v4265
      %4284 = vmatprep.subr.bf16.mxu0 0
      %4285 = vmatpush1.bf16.msra.mxu0 %v4266
      %4286 = vmatprep.subr.bf16.mxu0 0
      %4287 = vmatpush1.bf16.msra.mxu0 %v4267
      %4288 = vmatprep.subr.bf16.mxu0 0
      %4289 = vmatpush1.bf16.msra.mxu0 %v4268
      %4290 = vmatprep.subr.bf16.mxu0 0
      %4291 = vmatpush1.bf16.msra.mxu0 %v4269
      %4292 = vmatprep.subr.bf16.mxu0 0
      %4293 = vmatpush1.bf16.msra.mxu0 %v4270
      %4294 = vmatprep.subr.bf16.mxu0 0
      %4295 = vmatpush1.bf16.msra.mxu0 %v4271
      %4296 = vmatprep.subr.bf16.mxu0 0
      %4297 = vmatpush1.bf16.msra.mxu0 0
      %4298 = vmatprep.subr.bf16.mxu0 0
      %4299 = vmatpush1.bf16.msra.mxu0 0
      %4300 = vmatprep.subr.bf16.mxu0 0
      %4301 = vmatpush1.bf16.msra.mxu0 0
      %4302 = vmatprep.subr.bf16.mxu0 0
      %4303 = vmatpush1.bf16.msra.mxu0 0
      %4304 = vmatprep.subr.bf16.mxu0 0
      %4305 = vmatpush1.bf16.msra.mxu0 0
      %4306 = vmatprep.subr.bf16.mxu0 0
      %4307 = vmatpush1.bf16.msra.mxu0 0
      %4308 = vmatprep.subr.bf16.mxu0 0
      %4309 = vmatpush1.bf16.msra.mxu0 0
      %4310 = vmatprep.subr.bf16.mxu0 0
      %4311 = vmatpush1.bf16.msra.mxu0 0
      %4312 = vmatprep.mubr.bf16.mxu0 0
      %4313 = vmatmul.mubr.bf16.gmra.mrb[0].mxu0 %v4021
      %v4314 = vpop.f32.mrb[0].mxu0
      %v4315 = vadd.f32 0.0, %v4314
      %v4316 = vpop.f32.mrb[0].mxu0
      %v4317 = vpop.f32.mrb[0].mxu0
      %v4318 = vpop.f32.mrb[0].mxu0
      %4319 = vdwg.mxu0
      %s4320 = scalar_lea.vmem %s18, 192
      %v4321 = vld [vmem:[%s4320] sm:$0xf]
      %v4322 = vld [vmem:[%s4320 + $0x4] sm:$0xf]
      %v4323 = vld [vmem:[%s4320 + $0x8] sm:$0xf]
      %v4324 = vld [vmem:[%s4320 + $0xc] sm:$0xf]
      %v4325 = vld [vmem:[%s4320 + $0x10] sm:$0xf]
      %v4326 = vld [vmem:[%s4320 + $0x14] sm:$0xf]
      %v4327 = vld [vmem:[%s4320 + $0x18] sm:$0xf]
      %v4328 = vld [vmem:[%s4320 + $0x1c] sm:$0xf]
      %v4329 = vld [vmem:[%s4320 + $0x20] sm:$0xf]
      %v4330 = vld [vmem:[%s4320 + $0x24] sm:$0xf]
      %v4331 = vld [vmem:[%s4320 + $0x28] sm:$0xf]
      %v4332 = vld [vmem:[%s4320 + $0x2c] sm:$0xf]
      %v4333 = vld [vmem:[%s4320 + $0x30] sm:$0xf]
      %v4334 = vld [vmem:[%s4320 + $0x34] sm:$0xf]
      %v4335 = vld [vmem:[%s4320 + $0x38] sm:$0xf]
      %v4336 = vld [vmem:[%s4320 + $0x3c] sm:$0xf]
      %v4353 = vunpack.c.l.b16 %v4321
      %v4354 = vunpack.c.l.b16 %v4322
      %v4355 = vunpack.c.l.b16 %v4323
      %v4356 = vunpack.c.l.b16 %v4324
      %v4357 = vunpack.c.l.b16 %v4325
      %v4358 = vunpack.c.l.b16 %v4326
      %v4359 = vunpack.c.l.b16 %v4327
      %v4360 = vunpack.c.l.b16 %v4328
      %v4361 = vunpack.c.l.b16 %v4329
      %v4362 = vunpack.c.l.b16 %v4330
      %v4363 = vunpack.c.l.b16 %v4331
      %v4364 = vunpack.c.l.b16 %v4332
      %v4365 = vunpack.c.l.b16 %v4333
      %v4366 = vunpack.c.l.b16 %v4334
      %v4367 = vunpack.c.l.b16 %v4335
      %v4368 = vunpack.c.l.b16 %v4336
      %v4369 = vpack.c.b16 %v4354, %v4353
      %v4370 = vpack.c.b16 %v4356, %v4355
      %v4371 = vpack.c.b16 %v4358, %v4357
      %v4372 = vpack.c.b16 %v4360, %v4359
      %v4373 = vpack.c.b16 %v4362, %v4361
      %v4374 = vpack.c.b16 %v4364, %v4363
      %v4375 = vpack.c.b16 %v4366, %v4365
      %v4376 = vpack.c.b16 %v4368, %v4367
      %4385 = vmatprep.subr.bf16.mxu0 0
      %4386 = vmatpush1.bf16.msra.mxu0 %v4369
      %4387 = vmatprep.subr.bf16.mxu0 0
      %4388 = vmatpush1.bf16.msra.mxu0 %v4370
      %4389 = vmatprep.subr.bf16.mxu0 0
      %4390 = vmatpush1.bf16.msra.mxu0 %v4371
      %4391 = vmatprep.subr.bf16.mxu0 0
      %4392 = vmatpush1.bf16.msra.mxu0 %v4372
      %4393 = vmatprep.subr.bf16.mxu0 0
      %4394 = vmatpush1.bf16.msra.mxu0 %v4373
      %4395 = vmatprep.subr.bf16.mxu0 0
      %4396 = vmatpush1.bf16.msra.mxu0 %v4374
      %4397 = vmatprep.subr.bf16.mxu0 0
      %4398 = vmatpush1.bf16.msra.mxu0 %v4375
      %4399 = vmatprep.subr.bf16.mxu0 0
      %4400 = vmatpush1.bf16.msra.mxu0 %v4376
      %4401 = vmatprep.subr.bf16.mxu0 0
      %4402 = vmatpush1.bf16.msra.mxu0 0
      %4403 = vmatprep.subr.bf16.mxu0 0
      %4404 = vmatpush1.bf16.msra.mxu0 0
      %4405 = vmatprep.subr.bf16.mxu0 0
      %4406 = vmatpush1.bf16.msra.mxu0 0
      %4407 = vmatprep.subr.bf16.mxu0 0
      %4408 = vmatpush1.bf16.msra.mxu0 0
      %4409 = vmatprep.subr.bf16.mxu0 0
      %4410 = vmatpush1.bf16.msra.mxu0 0
      %4411 = vmatprep.subr.bf16.mxu0 0
      %4412 = vmatpush1.bf16.msra.mxu0 0
      %4413 = vmatprep.subr.bf16.mxu0 0
      %4414 = vmatpush1.bf16.msra.mxu0 0
      %4415 = vmatprep.subr.bf16.mxu0 0
      %4416 = vmatpush1.bf16.msra.mxu0 0
      %4417 = vmatprep.mubr.bf16.mxu0 0
      %4418 = vmatmul.mubr.bf16.gmra.mrb[0].mxu0 %v4021
      %v4419 = vpop.f32.mrb[0].mxu0
      %v4420 = vadd.f32 0.0, %v4419
      %v4421 = vpop.f32.mrb[0].mxu0
      %v4422 = vpop.f32.mrb[0].mxu0
      %v4423 = vpop.f32.mrb[0].mxu0
      %4424 = vdwg.mxu0
      %s4425 = scalar_lea.vmem %s18, 256
      %v4426 = vld [vmem:[%s4425] sm:$0xf]
      %v4427 = vld [vmem:[%s4425 + $0x4] sm:$0xf]
      %v4428 = vld [vmem:[%s4425 + $0x8] sm:$0xf]
      %v4429 = vld [vmem:[%s4425 + $0xc] sm:$0xf]
      %v4430 = vld [vmem:[%s4425 + $0x10] sm:$0xf]
      %v4431 = vld [vmem:[%s4425 + $0x14] sm:$0xf]
      %v4432 = vld [vmem:[%s4425 + $0x18] sm:$0xf]
      %v4433 = vld [vmem:[%s4425 + $0x1c] sm:$0xf]
      %v4434 = vld [vmem:[%s4425 + $0x20] sm:$0xf]
      %v4435 = vld [vmem:[%s4425 + $0x24] sm:$0xf]
      %v4436 = vld [vmem:[%s4425 + $0x28] sm:$0xf]
      %v4437 = vld [vmem:[%s4425 + $0x2c] sm:$0xf]
      %v4438 = vld [vmem:[%s4425 + $0x30] sm:$0xf]
      %v4439 = vld [vmem:[%s4425 + $0x34] sm:$0xf]
      %v4440 = vld [vmem:[%s4425 + $0x38] sm:$0xf]
      %v4441 = vld [vmem:[%s4425 + $0x3c] sm:$0xf]
      %v4458 = vunpack.c.l.b16 %v4426
      %v4459 = vunpack.c.l.b16 %v4427
      %v4460 = vunpack.c.l.b16 %v4428
      %v4461 = vunpack.c.l.b16 %v4429
      %v4462 = vunpack.c.l.b16 %v4430
      %v4463 = vunpack.c.l.b16 %v4431
      %v4464 = vunpack.c.l.b16 %v4432
      %v4465 = vunpack.c.l.b16 %v4433
      %v4466 = vunpack.c.l.b16 %v4434
      %v4467 = vunpack.c.l.b16 %v4435
      %v4468 = vunpack.c.l.b16 %v4436
      %v4469 = vunpack.c.l.b16 %v4437
      %v4470 = vunpack.c.l.b16 %v4438
      %v4471 = vunpack.c.l.b16 %v4439
      %v4472 = vunpack.c.l.b16 %v4440
      %v4473 = vunpack.c.l.b16 %v4441
      %v4474 = vpack.c.b16 %v4459, %v4458
      %v4475 = vpack.c.b16 %v4461, %v4460
      %v4476 = vpack.c.b16 %v4463, %v4462
      %v4477 = vpack.c.b16 %v4465, %v4464
      %v4478 = vpack.c.b16 %v4467, %v4466
      %v4479 = vpack.c.b16 %v4469, %v4468
      %v4480 = vpack.c.b16 %v4471, %v4470
      %v4481 = vpack.c.b16 %v4473, %v4472
      %4490 = vmatprep.subr.bf16.mxu0 0
      %4491 = vmatpush1.bf16.msra.mxu0 %v4474
      %4492 = vmatprep.subr.bf16.mxu0 0
      %4493 = vmatpush1.bf16.msra.mxu0 %v4475
      %4494 = vmatprep.subr.bf16.mxu0 0
      %4495 = vmatpush1.bf16.msra.mxu0 %v4476
      %4496 = vmatprep.subr.bf16.mxu0 0
      %4497 = vmatpush1.bf16.msra.mxu0 %v4477
      %4498 = vmatprep.subr.bf16.mxu0 0
      %4499 = vmatpush1.bf16.msra.mxu0 %v4478
      %4500 = vmatprep.subr.bf16.mxu0 0
      %4501 = vmatpush1.bf16.msra.mxu0 %v4479
      %4502 = vmatprep.subr.bf16.mxu0 0
      %4503 = vmatpush1.bf16.msra.mxu0 %v4480
      %4504 = vmatprep.subr.bf16.mxu0 0
      %4505 = vmatpush1.bf16.msra.mxu0 %v4481
      %4506 = vmatprep.subr.bf16.mxu0 0
      %4507 = vmatpush1.bf16.msra.mxu0 0
      %4508 = vmatprep.subr.bf16.mxu0 0
      %4509 = vmatpush1.bf16.msra.mxu0 0
      %4510 = vmatprep.subr.bf16.mxu0 0
      %4511 = vmatpush1.bf16.msra.mxu0 0
      %4512 = vmatprep.subr.bf16.mxu0 0
      %4513 = vmatpush1.bf16.msra.mxu0 0
      %4514 = vmatprep.subr.bf16.mxu0 0
      %4515 = vmatpush1.bf16.msra.mxu0 0
      %4516 = vmatprep.subr.bf16.mxu0 0
      %4517 = vmatpush1.bf16.msra.mxu0 0
      %4518 = vmatprep.subr.bf16.mxu0 0
      %4519 = vmatpush1.bf16.msra.mxu0 0
      %4520 = vmatprep.subr.bf16.mxu0 0
      %4521 = vmatpush1.bf16.msra.mxu0 0
      %4522 = vmatprep.mubr.bf16.mxu0 0
      %4523 = vmatmul.mubr.bf16.gmra.mrb[0].mxu0 %v4021
      %v4524 = vpop.f32.mrb[0].mxu0
      %v4525 = vadd.f32 0.0, %v4524
      %v4526 = vpop.f32.mrb[0].mxu0
      %v4527 = vpop.f32.mrb[0].mxu0
      %v4528 = vpop.f32.mrb[0].mxu0
      %4529 = vdwg.mxu0
      %v4530 = vld [vmem:[%s19] sm:$0x1]
      %v4531 = vadd.f32 %v4530, %v4105
      %v4532 = vmax.f32 %v4531, 0.0
      %v4535 = vunpack.c.l.s4 1966171168
      %v4536 = vunpack.c.0.s8 %v4535
      %v4537 = vlaneseq
      %v4538 = vshrl.u32 %v4537, 7
      %v4539 = vsub.s32 %v4536, %v4538
      %v4540 = vrot.slane %v4105, %v4539
      %v4541 = vcombine.high %v4540, %v4540
      %v4543 = vunpack.c.l.s4 1966171168
      %v4544 = vunpack.c.0.s8 %v4543
      %v4545 = vlaneseq
      %v4546 = vshrl.u32 %v4545, 7
      %v4547 = vsub.s32 %v4544, %v4546
      %v4548 = vrot.slane %v4540, %v4547
      %v4550 = vunpack.c.l.s4 1966171168
      %v4551 = vunpack.c.0.s8 %v4550
      %v4552 = vlaneseq
      %v4553 = vshrl.u32 %v4552, 7
      %v4554 = vsub.s32 %v4551, %v4553
      %v4555 = vrot.slane %v4541, %v4554
      %v4557 = vadd.f32 %v4530, %v4555
      %v4558 = vadd.f32 %v4557, %v4210
      %v4559 = vmax.f32 %v4558, 0.0
      %v4560 = vcombine.high %v4548, %v4548
      %v4562 = vadd.f32 %v4530, %v4560
      %v4565 = vunpack.c.l.s4 1966171168
      %v4566 = vunpack.c.0.s8 %v4565
      %v4567 = vlaneseq
      %v4568 = vshrl.u32 %v4567, 7
      %v4569 = vsub.s32 %v4566, %v4568
      %v4570 = vrot.slane %v4210, %v4569
      %v4571 = vcombine.high %v4570, %v4570
      %v4573 = vunpack.c.l.s4 1966171168
      %v4574 = vunpack.c.0.s8 %v4573
      %v4575 = vlaneseq
      %v4576 = vshrl.u32 %v4575, 7
      %v4577 = vsub.s32 %v4574, %v4576
      %v4578 = vrot.slane %v4570, %v4577
      %v4580 = vunpack.c.l.s4 1966171168
      %v4581 = vunpack.c.0.s8 %v4580
      %v4582 = vlaneseq
      %v4583 = vshrl.u32 %v4582, 7
      %v4584 = vsub.s32 %v4581, %v4583
      %v4585 = vrot.slane %v4571, %v4584
      %v4587 = vadd.f32 %v4562, %v4585
      %v4588 = vadd.f32 %v4587, %v4315
      %v4589 = vmax.f32 %v4588, 0.0
      %v4590 = vcombine.high %v4555, %v4555
      %v4592 = vadd.f32 %v4530, %v4590
      %v4593 = vcombine.high %v4578, %v4578
      %v4595 = vadd.f32 %v4592, %v4593
      %v4598 = vunpack.c.l.s4 1966171168
      %v4599 = vunpack.c.0.s8 %v4598
      %v4600 = vlaneseq
      %v4601 = vshrl.u32 %v4600, 7
      %v4602 = vsub.s32 %v4599, %v4601
      %v4603 = vrot.slane %v4315, %v4602
      %v4604 = vcombine.high %v4603, %v4603
      %v4606 = vunpack.c.l.s4 1966171168
      %v4607 = vunpack.c.0.s8 %v4606
      %v4608 = vlaneseq
      %v4609 = vshrl.u32 %v4608, 7
      %v4610 = vsub.s32 %v4607, %v4609
      %v4611 = vrot.slane %v4603, %v4610
      %v4613 = vunpack.c.l.s4 1966171168
      %v4614 = vunpack.c.0.s8 %v4613
      %v4615 = vlaneseq
      %v4616 = vshrl.u32 %v4615, 7
      %v4617 = vsub.s32 %v4614, %v4616
      %v4618 = vrot.slane %v4604, %v4617
      %v4620 = vadd.f32 %v4595, %v4618
      %v4621 = vadd.f32 %v4620, %v4420
      %v4622 = vmax.f32 %v4621, 0.0
      %v4623 = vcombine.high %v4105, %v4105
      %v4625 = vunpack.c.l.s4 1966171168
      %v4626 = vunpack.c.0.s8 %v4625
      %v4627 = vlaneseq
      %v4628 = vshrl.u32 %v4627, 7
      %v4629 = vsub.s32 %v4626, %v4628
      %v4630 = vrot.slane %v4623, %v4629
      %v4632 = vunpack.c.l.s4 1966171168
      %v4633 = vunpack.c.0.s8 %v4632
      %v4634 = vlaneseq
      %v4635 = vshrl.u32 %v4634, 7
      %v4636 = vsub.s32 %v4633, %v4635
      %v4637 = vrot.slane %v4630, %v4636
      %v4639 = vadd.f32 %v4530, %v4637
      %v4640 = vcombine.high %v4585, %v4585
      %v4642 = vadd.f32 %v4639, %v4640
      %v4643 = vcombine.high %v4611, %v4611
      %v4645 = vadd.f32 %v4642, %v4643
      %v4648 = vunpack.c.l.s4 1966171168
      %v4649 = vunpack.c.0.s8 %v4648
      %v4650 = vlaneseq
      %v4651 = vshrl.u32 %v4650, 7
      %v4652 = vsub.s32 %v4649, %v4651
      %v4653 = vrot.slane %v4420, %v4652
      %v4654 = vcombine.high %v4653, %v4653
      %v4656 = vunpack.c.l.s4 1966171168
      %v4657 = vunpack.c.0.s8 %v4656
      %v4658 = vlaneseq
      %v4659 = vshrl.u32 %v4658, 7
      %v4660 = vsub.s32 %v4657, %v4659
      %v4661 = vrot.slane %v4653, %v4660
      %v4663 = vunpack.c.l.s4 1966171168
      %v4664 = vunpack.c.0.s8 %v4663
      %v4665 = vlaneseq
      %v4666 = vshrl.u32 %v4665, 7
      %v4667 = vsub.s32 %v4664, %v4666
      %v4668 = vrot.slane %v4654, %v4667
      %v4670 = vadd.f32 %v4645, %v4668
      %v4671 = vadd.f32 %v4670, %v4525
      %v4672 = vmax.f32 %v4671, 0.0
      %v4673 = vcombine.high %v4630, %v4630
      %v4675 = vunpack.c.l.s4 1966171168
      %v4676 = vunpack.c.0.s8 %v4675
      %v4677 = vlaneseq
      %v4678 = vshrl.u32 %v4677, 7
      %v4679 = vsub.s32 %v4676, %v4678
      %v4680 = vrot.slane %v4673, %v4679
      %v4682 = vadd.f32 %v4530, %v4680
      %v4683 = vcombine.high %v4210, %v4210
      %v4685 = vunpack.c.l.s4 1966171168
      %v4686 = vunpack.c.0.s8 %v4685
      %v4687 = vlaneseq
      %v4688 = vshrl.u32 %v4687, 7
      %v4689 = vsub.s32 %v4686, %v4688
      %v4690 = vrot.slane %v4683, %v4689
      %v4692 = vunpack.c.l.s4 1966171168
      %v4693 = vunpack.c.0.s8 %v4692
      %v4694 = vlaneseq
      %v4695 = vshrl.u32 %v4694, 7
      %v4696 = vsub.s32 %v4693, %v4695
      %v4697 = vrot.slane %v4690, %v4696
      %v4699 = vadd.f32 %v4682, %v4697
      %v4700 = vcombine.high %v4618, %v4618
      %v4702 = vadd.f32 %v4699, %v4700
      %v4703 = vcombine.high %v4661, %v4661
      %v4705 = vadd.f32 %v4702, %v4703
      %v4708 = vunpack.c.l.s4 1966171168
      %v4709 = vunpack.c.0.s8 %v4708
      %v4710 = vlaneseq
      %v4711 = vshrl.u32 %v4710, 7
      %v4712 = vsub.s32 %v4709, %v4711
      %v4713 = vrot.slane %v4525, %v4712
      %v4714 = vcombine.high %v4713, %v4713
      %v4716 = vunpack.c.l.s4 1966171168
      %v4717 = vunpack.c.0.s8 %v4716
      %v4718 = vlaneseq
      %v4719 = vshrl.u32 %v4718, 7
      %v4720 = vsub.s32 %v4717, %v4719
      %v4721 = vrot.slane %v4713, %v4720
      %v4723 = vunpack.c.l.s4 1966171168
      %v4724 = vunpack.c.0.s8 %v4723
      %v4725 = vlaneseq
      %v4726 = vshrl.u32 %v4725, 7
      %v4727 = vsub.s32 %v4724, %v4726
      %v4728 = vrot.slane %v4714, %v4727
      %v4730 = vadd.f32 %v4705, %v4728
      %v4731 = vmax.f32 %v4730, 0.0
      %v4732 = vcombine.high %v4637, %v4637
      %v4734 = vadd.f32 %v4530, %v4732
      %v4735 = vcombine.high %v4690, %v4690
      %v4737 = vunpack.c.l.s4 1966171168
      %v4738 = vunpack.c.0.s8 %v4737
      %v4739 = vlaneseq
      %v4740 = vshrl.u32 %v4739, 7
      %v4741 = vsub.s32 %v4738, %v4740
      %v4742 = vrot.slane %v4735, %v4741
      %v4744 = vadd.f32 %v4734, %v4742
      %v4745 = vcombine.high %v4315, %v4315
      %v4747 = vunpack.c.l.s4 1966171168
      %v4748 = vunpack.c.0.s8 %v4747
      %v4749 = vlaneseq
      %v4750 = vshrl.u32 %v4749, 7
      %v4751 = vsub.s32 %v4748, %v4750
      %v4752 = vrot.slane %v4745, %v4751
      %v4754 = vunpack.c.l.s4 1966171168
      %v4755 = vunpack.c.0.s8 %v4754
      %v4756 = vlaneseq
      %v4757 = vshrl.u32 %v4756, 7
      %v4758 = vsub.s32 %v4755, %v4757
      %v4759 = vrot.slane %v4752, %v4758
      %v4761 = vadd.f32 %v4744, %v4759
      %v4762 = vcombine.high %v4668, %v4668
      %v4764 = vadd.f32 %v4761, %v4762
      %v4765 = vcombine.high %v4721, %v4721
      %v4767 = vadd.f32 %v4764, %v4765
      %v4768 = vmax.f32 %v4767, 0.0
      %v4769 = vcombine.high %v4680, %v4680
      %v4771 = vadd.f32 %v4530, %v4769
      %v4772 = vcombine.high %v4697, %v4697
      %v4774 = vadd.f32 %v4771, %v4772
      %v4775 = vcombine.high %v4752, %v4752
      %v4777 = vunpack.c.l.s4 1966171168
      %v4778 = vunpack.c.0.s8 %v4777
      %v4779 = vlaneseq
      %v4780 = vshrl.u32 %v4779, 7
      %v4781 = vsub.s32 %v4778, %v4780
      %v4782 = vrot.slane %v4775, %v4781
      %v4784 = vadd.f32 %v4774, %v4782
      %v4785 = vcombine.high %v4420, %v4420
      %v4787 = vunpack.c.l.s4 1966171168
      %v4788 = vunpack.c.0.s8 %v4787
      %v4789 = vlaneseq
      %v4790 = vshrl.u32 %v4789, 7
      %v4791 = vsub.s32 %v4788, %v4790
      %v4792 = vrot.slane %v4785, %v4791
      %v4794 = vunpack.c.l.s4 1966171168
      %v4795 = vunpack.c.0.s8 %v4794
      %v4796 = vlaneseq
      %v4797 = vshrl.u32 %v4796, 7
      %v4798 = vsub.s32 %v4795, %v4797
      %v4799 = vrot.slane %v4792, %v4798
      %v4801 = vadd.f32 %v4784, %v4799
      %v4802 = vcombine.high %v4728, %v4728
      %v4804 = vadd.f32 %v4801, %v4802
      %v4805 = vmax.f32 %v4804, 0.0
      %v4806 = vcombine.high %v4742, %v4742
      %v4808 = vadd.f32 %v4530, %v4806
      %v4809 = vcombine.high %v4759, %v4759
      %v4811 = vadd.f32 %v4808, %v4809
      %v4812 = vcombine.high %v4792, %v4792
      %v4814 = vunpack.c.l.s4 1966171168
      %v4815 = vunpack.c.0.s8 %v4814
      %v4816 = vlaneseq
      %v4817 = vshrl.u32 %v4816, 7
      %v4818 = vsub.s32 %v4815, %v4817
      %v4819 = vrot.slane %v4812, %v4818
      %v4821 = vadd.f32 %v4811, %v4819
      %v4822 = vcombine.high %v4525, %v4525
      %v4824 = vunpack.c.l.s4 1966171168
      %v4825 = vunpack.c.0.s8 %v4824
      %v4826 = vlaneseq
      %v4827 = vshrl.u32 %v4826, 7
      %v4828 = vsub.s32 %v4825, %v4827
      %v4829 = vrot.slane %v4822, %v4828
      %v4831 = vunpack.c.l.s4 1966171168
      %v4832 = vunpack.c.0.s8 %v4831
      %v4833 = vlaneseq
      %v4834 = vshrl.u32 %v4833, 7
      %v4835 = vsub.s32 %v4832, %v4834
      %v4836 = vrot.slane %v4829, %v4835
      %v4838 = vadd.f32 %v4821, %v4836
      %v4839 = vmax.f32 %v4838, 0.0
      %v4840 = vcombine.high %v4782, %v4782
      %v4842 = vadd.f32 %v4530, %v4840
      %v4843 = vcombine.high %v4799, %v4799
      %v4845 = vadd.f32 %v4842, %v4843
      %v4846 = vcombine.high %v4829, %v4829
      %v4848 = vunpack.c.l.s4 1966171168
      %v4849 = vunpack.c.0.s8 %v4848
      %v4850 = vlaneseq
      %v4851 = vshrl.u32 %v4850, 7
      %v4852 = vsub.s32 %v4849, %v4851
      %v4853 = vrot.slane %v4846, %v4852
      %v4855 = vadd.f32 %v4845, %v4853
      %v4856 = vmax.f32 %v4855, 0.0
      %v4857 = vcombine.high %v4819, %v4819
      %v4859 = vadd.f32 %v4530, %v4857
      %v4860 = vcombine.high %v4836, %v4836
      %v4862 = vadd.f32 %v4859, %v4860
      %v4863 = vmax.f32 %v4862, 0.0
      %v4864 = vcombine.high %v4853, %v4853
      %v4866 = vadd.f32 %v4530, %v4864
      %v4867 = vmax.f32 %v4866, 0.0
      %v4869 = vlaneseq
      %v4870 = vshrl.u32 %v4869, 7
      %v4871 = vsub.s32 0, %v4870
      %v4872 = vrot.slane %v4559, %v4871
      %v4875 = vlaneseq
      %v4876 = vshrl.u32 %v4875, 7
      %v4877 = vsub.s32 0, %v4876
      %v4878 = vrot.slane %v4589, %v4877
      %v4881 = vlaneseq
      %v4882 = vshrl.u32 %v4881, 7
      %v4883 = vsub.s32 0, %v4882
      %v4884 = vrot.slane %v4622, %v4883
      %v4887 = vlaneseq
      %v4888 = vshrl.u32 %v4887, 7
      %v4889 = vsub.s32 0, %v4888
      %v4890 = vrot.slane %v4672, %v4889
      %v4893 = vlaneseq
      %v4894 = vshrl.u32 %v4893, 7
      %v4895 = vsub.s32 0, %v4894
      %v4896 = vrot.slane %v4731, %v4895
      %v4899 = vlaneseq
      %v4900 = vshrl.u32 %v4899, 7
      %v4901 = vsub.s32 0, %v4900
      %v4902 = vrot.slane %v4768, %v4901
      %v4905 = vlaneseq
      %v4906 = vshrl.u32 %v4905, 7
      %v4907 = vsub.s32 0, %v4906
      %v4908 = vrot.slane %v4805, %v4907
      %v4911 = vlaneseq
      %v4912 = vshrl.u32 %v4911, 7
      %v4913 = vsub.s32 0, %v4912
      %v4914 = vrot.slane %v4856, %v4913
      %v4917 = vlaneseq
      %v4918 = vshrl.u32 %v4917, 7
      %v4919 = vsub.s32 0, %v4918
      %v4920 = vrot.slane %v4863, %v4919
      %v4923 = vlaneseq
      %v4924 = vshrl.u32 %v4923, 7
      %v4925 = vsub.s32 0, %v4924
      %v4926 = vrot.slane %v4867, %v4925
      %v4928 = vsel %vm1779, %v4532, %v4872
      %v4929 = vsel %vm1781, %v4928, %v4878
      %v4930 = vsel %vm1783, %v4929, %v4884
      %v4931 = vsel %vm1785, %v4930, %v4890
      %v4932 = vsel %vm1787, %v4931, %v4896
      %v4933 = vsel %vm763, %v4932, %v4902
      %v4934 = vsel %vm1790, %v4933, %v4908
      %v4935 = vsel %vm1779, %v4839, %v4914
      %v4936 = vsel %vm1781, %v4935, %v4920
      %v4937 = vsel %vm1783, %v4936, %v4926
      %v4938 = vld [vmem:[%s20] sm:$0xf]
      %v4939 = vld [vmem:[%s20 + $0x4] sm:$0xf]
      %v4940 = vld [vmem:[%s20 + $0x8] sm:$0xf]
      %v4941 = vld [vmem:[%s20 + $0xc] sm:$0xf]
      %v4942 = vld [vmem:[%s20 + $0x10] sm:$0xf]
      %v4943 = vld [vmem:[%s20 + $0x14] sm:$0xf]
      %v4944 = vld [vmem:[%s20 + $0x18] sm:$0xf]
      %v4945 = vld [vmem:[%s20 + $0x1c] sm:$0xf]
      %v4946 = vld [vmem:[%s20 + $0x20] sm:$0xf]
      %v4947 = vpack.c.bf16 %v4937, %v4934
      %v4957 = vunpack.c.l.b16 %v4938
      %v4958 = vunpack.c.l.b16 %v4939
      %v4959 = vunpack.c.l.b16 %v4940
      %v4960 = vunpack.c.l.b16 %v4941
      %v4961 = vunpack.c.l.b16 %v4942
      %v4962 = vunpack.c.l.b16 %v4943
      %v4963 = vunpack.c.l.b16 %v4944
      %v4964 = vunpack.c.l.b16 %v4945
      %v4965 = vunpack.c.l.b16 %v4946
      %v4966 = vpack.c.b16 %v4958, %v4957
      %v4967 = vpack.c.b16 %v4960, %v4959
      %v4968 = vpack.c.b16 %v4962, %v4961
      %v4969 = vpack.c.b16 %v4964, %v4963
      %v4970 = vpack.c.b16 %v4965, %v4965
      %v4976 = vsel %vm1832, %v4947, 0
      %v4979 = vsel %vm1785, %v4970, 0
      %4981 = vmatprep.subr.bf16.mxu0 0
      %4982 = vmatpush1.bf16.msra.mxu0 %v4966
      %4983 = vmatprep.subr.bf16.mxu0 0
      %4984 = vmatpush1.bf16.msra.mxu0 %v4967
      %4985 = vmatprep.subr.bf16.mxu0 0
      %4986 = vmatpush1.bf16.msra.mxu0 %v4968
      %4987 = vmatprep.subr.bf16.mxu0 0
      %4988 = vmatpush1.bf16.msra.mxu0 %v4969
      %4989 = vmatprep.subr.bf16.mxu0 0
      %4990 = vmatpush1.bf16.msra.mxu0 %v4979
      %4991 = vmatprep.subr.bf16.mxu0 0
      %4992 = vmatpush1.bf16.msra.mxu0 0
      %4993 = vmatprep.subr.bf16.mxu0 0
      %4994 = vmatpush1.bf16.msra.mxu0 0
      %4995 = vmatprep.subr.bf16.mxu0 0
      %4996 = vmatpush1.bf16.msra.mxu0 0
      %4997 = vmatprep.subr.bf16.mxu0 0
      %4998 = vmatpush1.bf16.msra.mxu0 0
      %4999 = vmatprep.subr.bf16.mxu0 0
      %5000 = vmatpush1.bf16.msra.mxu0 0
      %5001 = vmatprep.subr.bf16.mxu0 0
      %5002 = vmatpush1.bf16.msra.mxu0 0
      %5003 = vmatprep.subr.bf16.mxu0 0
      %5004 = vmatpush1.bf16.msra.mxu0 0
      %5005 = vmatprep.subr.bf16.mxu0 0
      %5006 = vmatpush1.bf16.msra.mxu0 0
      %5007 = vmatprep.subr.bf16.mxu0 0
      %5008 = vmatpush1.bf16.msra.mxu0 0
      %5009 = vmatprep.subr.bf16.mxu0 0
      %5010 = vmatpush1.bf16.msra.mxu0 0
      %5011 = vmatprep.subr.bf16.mxu0 0
      %5012 = vmatpush1.bf16.msra.mxu0 0
      %5013 = vmatprep.mubr.bf16.mxu0 0
      %5014 = vmatmul.mubr.bf16.gmra.mrb[0].mxu0 %v4976
      %v5015 = vpop.f32.mrb[0].mxu0
      %v5016 = vadd.f32 0.0, %v5015
      %v5017 = vpop.f32.mrb[0].mxu0
      %v5018 = vpop.f32.mrb[0].mxu0
      %v5019 = vadd.f32 0.0, %v5018
      %v5020 = vpop.f32.mrb[0].mxu0
      %5021 = vdwg.mxu0
      %s5022 = scalar_lea.vmem %s20, 36
      %v5023 = vld [vmem:[%s5022] sm:$0xf]
      %v5024 = vld [vmem:[%s5022 + $0x4] sm:$0xf]
      %v5025 = vld [vmem:[%s5022 + $0x8] sm:$0xf]
      %v5026 = vld [vmem:[%s5022 + $0xc] sm:$0xf]
      %v5027 = vld [vmem:[%s5022 + $0x10] sm:$0xf]
      %v5028 = vld [vmem:[%s5022 + $0x14] sm:$0xf]
      %v5029 = vld [vmem:[%s5022 + $0x18] sm:$0xf]
      %v5030 = vld [vmem:[%s5022 + $0x1c] sm:$0xf]
      %v5031 = vld [vmem:[%s5022 + $0x20] sm:$0xf]
      %v5041 = vunpack.c.l.b16 %v5023
      %v5042 = vunpack.c.l.b16 %v5024
      %v5043 = vunpack.c.l.b16 %v5025
      %v5044 = vunpack.c.l.b16 %v5026
      %v5045 = vunpack.c.l.b16 %v5027
      %v5046 = vunpack.c.l.b16 %v5028
      %v5047 = vunpack.c.l.b16 %v5029
      %v5048 = vunpack.c.l.b16 %v5030
      %v5049 = vunpack.c.l.b16 %v5031
      %v5050 = vpack.c.b16 %v5042, %v5041
      %v5051 = vpack.c.b16 %v5044, %v5043
      %v5052 = vpack.c.b16 %v5046, %v5045
      %v5053 = vpack.c.b16 %v5048, %v5047
      %v5054 = vpack.c.b16 %v5049, %v5049
      %v5060 = vsel %vm1785, %v5054, 0
      %5062 = vmatprep.subr.bf16.mxu0 0
      %5063 = vmatpush1.bf16.msra.mxu0 %v5050
      %5064 = vmatprep.subr.bf16.mxu0 0
      %5065 = vmatpush1.bf16.msra.mxu0 %v5051
      %5066 = vmatprep.subr.bf16.mxu0 0
      %5067 = vmatpush1.bf16.msra.mxu0 %v5052
      %5068 = vmatprep.subr.bf16.mxu0 0
      %5069 = vmatpush1.bf16.msra.mxu0 %v5053
      %5070 = vmatprep.subr.bf16.mxu0 0
      %5071 = vmatpush1.bf16.msra.mxu0 %v5060
      %5072 = vmatprep.subr.bf16.mxu0 0
      %5073 = vmatpush1.bf16.msra.mxu0 0
      %5074 = vmatprep.subr.bf16.mxu0 0
      %5075 = vmatpush1.bf16.msra.mxu0 0
      %5076 = vmatprep.subr.bf16.mxu0 0
      %5077 = vmatpush1.bf16.msra.mxu0 0
      %5078 = vmatprep.subr.bf16.mxu0 0
      %5079 = vmatpush1.bf16.msra.mxu0 0
      %5080 = vmatprep.subr.bf16.mxu0 0
      %5081 = vmatpush1.bf16.msra.mxu0 0
      %5082 = vmatprep.subr.bf16.mxu0 0
      %5083 = vmatpush1.bf16.msra.mxu0 0
      %5084 = vmatprep.subr.bf16.mxu0 0
      %5085 = vmatpush1.bf16.msra.mxu0 0
      %5086 = vmatprep.subr.bf16.mxu0 0
      %5087 = vmatpush1.bf16.msra.mxu0 0
      %5088 = vmatprep.subr.bf16.mxu0 0
      %5089 = vmatpush1.bf16.msra.mxu0 0
      %5090 = vmatprep.subr.bf16.mxu0 0
      %5091 = vmatpush1.bf16.msra.mxu0 0
      %5092 = vmatprep.subr.bf16.mxu0 0
      %5093 = vmatpush1.bf16.msra.mxu0 0
      %5094 = vmatprep.mubr.bf16.mxu0 0
      %5095 = vmatmul.mubr.bf16.gmra.mrb[0].mxu0 %v4976
      %v5096 = vpop.f32.mrb[0].mxu0
      %v5097 = vadd.f32 0.0, %v5096
      %v5098 = vpop.f32.mrb[0].mxu0
      %v5099 = vpop.f32.mrb[0].mxu0
      %v5100 = vadd.f32 0.0, %v5099
      %v5101 = vpop.f32.mrb[0].mxu0
      %5102 = vdwg.mxu0
      %s5103 = scalar_lea.vmem %s20, 72
      %v5104 = vld [vmem:[%s5103] sm:$0xf]
      %v5105 = vld [vmem:[%s5103 + $0x4] sm:$0xf]
      %v5106 = vld [vmem:[%s5103 + $0x8] sm:$0xf]
      %v5107 = vld [vmem:[%s5103 + $0xc] sm:$0xf]
      %v5108 = vld [vmem:[%s5103 + $0x10] sm:$0xf]
      %v5109 = vld [vmem:[%s5103 + $0x14] sm:$0xf]
      %v5110 = vld [vmem:[%s5103 + $0x18] sm:$0xf]
      %v5111 = vld [vmem:[%s5103 + $0x1c] sm:$0xf]
      %v5112 = vld [vmem:[%s5103 + $0x20] sm:$0xf]
      %v5122 = vunpack.c.l.b16 %v5104
      %v5123 = vunpack.c.l.b16 %v5105
      %v5124 = vunpack.c.l.b16 %v5106
      %v5125 = vunpack.c.l.b16 %v5107
      %v5126 = vunpack.c.l.b16 %v5108
      %v5127 = vunpack.c.l.b16 %v5109
      %v5128 = vunpack.c.l.b16 %v5110
      %v5129 = vunpack.c.l.b16 %v5111
      %v5130 = vunpack.c.l.b16 %v5112
      %v5131 = vpack.c.b16 %v5123, %v5122
      %v5132 = vpack.c.b16 %v5125, %v5124
      %v5133 = vpack.c.b16 %v5127, %v5126
      %v5134 = vpack.c.b16 %v5129, %v5128
      %v5135 = vpack.c.b16 %v5130, %v5130
      %v5141 = vsel %vm1785, %v5135, 0
      %5143 = vmatprep.subr.bf16.mxu0 0
      %5144 = vmatpush1.bf16.msra.mxu0 %v5131
      %5145 = vmatprep.subr.bf16.mxu0 0
      %5146 = vmatpush1.bf16.msra.mxu0 %v5132
      %5147 = vmatprep.subr.bf16.mxu0 0
      %5148 = vmatpush1.bf16.msra.mxu0 %v5133
      %5149 = vmatprep.subr.bf16.mxu0 0
      %5150 = vmatpush1.bf16.msra.mxu0 %v5134
      %5151 = vmatprep.subr.bf16.mxu0 0
      %5152 = vmatpush1.bf16.msra.mxu0 %v5141
      %5153 = vmatprep.subr.bf16.mxu0 0
      %5154 = vmatpush1.bf16.msra.mxu0 0
      %5155 = vmatprep.subr.bf16.mxu0 0
      %5156 = vmatpush1.bf16.msra.mxu0 0
      %5157 = vmatprep.subr.bf16.mxu0 0
      %5158 = vmatpush1.bf16.msra.mxu0 0
      %5159 = vmatprep.subr.bf16.mxu0 0
      %5160 = vmatpush1.bf16.msra.mxu0 0
      %5161 = vmatprep.subr.bf16.mxu0 0
      %5162 = vmatpush1.bf16.msra.mxu0 0
      %5163 = vmatprep.subr.bf16.mxu0 0
      %5164 = vmatpush1.bf16.msra.mxu0 0
      %5165 = vmatprep.subr.bf16.mxu0 0
      %5166 = vmatpush1.bf16.msra.mxu0 0
      %5167 = vmatprep.subr.bf16.mxu0 0
      %5168 = vmatpush1.bf16.msra.mxu0 0
      %5169 = vmatprep.subr.bf16.mxu0 0
      %5170 = vmatpush1.bf16.msra.mxu0 0
      %5171 = vmatprep.subr.bf16.mxu0 0
      %5172 = vmatpush1.bf16.msra.mxu0 0
      %5173 = vmatprep.subr.bf16.mxu0 0
      %5174 = vmatpush1.bf16.msra.mxu0 0
      %5175 = vmatprep.mubr.bf16.mxu0 0
      %5176 = vmatmul.mubr.bf16.gmra.mrb[0].mxu0 %v4976
      %v5177 = vpop.f32.mrb[0].mxu0
      %v5178 = vadd.f32 0.0, %v5177
      %v5179 = vpop.f32.mrb[0].mxu0
      %v5180 = vpop.f32.mrb[0].mxu0
      %v5181 = vadd.f32 0.0, %v5180
      %v5182 = vpop.f32.mrb[0].mxu0
      %5183 = vdwg.mxu0
      %s5184 = scalar_lea.vmem %s20, 108
      %v5185 = vld [vmem:[%s5184] sm:$0xf]
      %v5186 = vld [vmem:[%s5184 + $0x4] sm:$0xf]
      %v5187 = vld [vmem:[%s5184 + $0x8] sm:$0xf]
      %v5188 = vld [vmem:[%s5184 + $0xc] sm:$0xf]
      %v5189 = vld [vmem:[%s5184 + $0x10] sm:$0xf]
      %v5190 = vld [vmem:[%s5184 + $0x14] sm:$0xf]
      %v5191 = vld [vmem:[%s5184 + $0x18] sm:$0xf]
      %v5192 = vld [vmem:[%s5184 + $0x1c] sm:$0xf]
      %v5193 = vld [vmem:[%s5184 + $0x20] sm:$0xf]
      %v5203 = vunpack.c.l.b16 %v5185
      %v5204 = vunpack.c.l.b16 %v5186
      %v5205 = vunpack.c.l.b16 %v5187
      %v5206 = vunpack.c.l.b16 %v5188
      %v5207 = vunpack.c.l.b16 %v5189
      %v5208 = vunpack.c.l.b16 %v5190
      %v5209 = vunpack.c.l.b16 %v5191
      %v5210 = vunpack.c.l.b16 %v5192
      %v5211 = vunpack.c.l.b16 %v5193
      %v5212 = vpack.c.b16 %v5204, %v5203
      %v5213 = vpack.c.b16 %v5206, %v5205
      %v5214 = vpack.c.b16 %v5208, %v5207
      %v5215 = vpack.c.b16 %v5210, %v5209
      %v5216 = vpack.c.b16 %v5211, %v5211
      %v5222 = vsel %vm1785, %v5216, 0
      %5224 = vmatprep.subr.bf16.mxu0 0
      %5225 = vmatpush1.bf16.msra.mxu0 %v5212
      %5226 = vmatprep.subr.bf16.mxu0 0
      %5227 = vmatpush1.bf16.msra.mxu0 %v5213
      %5228 = vmatprep.subr.bf16.mxu0 0
      %5229 = vmatpush1.bf16.msra.mxu0 %v5214
      %5230 = vmatprep.subr.bf16.mxu0 0
      %5231 = vmatpush1.bf16.msra.mxu0 %v5215
      %5232 = vmatprep.subr.bf16.mxu0 0
      %5233 = vmatpush1.bf16.msra.mxu0 %v5222
      %5234 = vmatprep.subr.bf16.mxu0 0
      %5235 = vmatpush1.bf16.msra.mxu0 0
      %5236 = vmatprep.subr.bf16.mxu0 0
      %5237 = vmatpush1.bf16.msra.mxu0 0
      %5238 = vmatprep.subr.bf16.mxu0 0
      %5239 = vmatpush1.bf16.msra.mxu0 0
      %5240 = vmatprep.subr.bf16.mxu0 0
      %5241 = vmatpush1.bf16.msra.mxu0 0
      %5242 = vmatprep.subr.bf16.mxu0 0
      %5243 = vmatpush1.bf16.msra.mxu0 0
      %5244 = vmatprep.subr.bf16.mxu0 0
      %5245 = vmatpush1.bf16.msra.mxu0 0
      %5246 = vmatprep.subr.bf16.mxu0 0
      %5247 = vmatpush1.bf16.msra.mxu0 0
      %5248 = vmatprep.subr.bf16.mxu0 0
      %5249 = vmatpush1.bf16.msra.mxu0 0
      %5250 = vmatprep.subr.bf16.mxu0 0
      %5251 = vmatpush1.bf16.msra.mxu0 0
      %5252 = vmatprep.subr.bf16.mxu0 0
      %5253 = vmatpush1.bf16.msra.mxu0 0
      %5254 = vmatprep.subr.bf16.mxu0 0
      %5255 = vmatpush1.bf16.msra.mxu0 0
      %5256 = vmatprep.mubr.bf16.mxu0 0
      %5257 = vmatmul.mubr.bf16.gmra.mrb[0].mxu0 %v4976
      %v5258 = vpop.f32.mrb[0].mxu0
      %v5259 = vadd.f32 0.0, %v5258
      %v5260 = vpop.f32.mrb[0].mxu0
      %v5261 = vpop.f32.mrb[0].mxu0
      %v5262 = vadd.f32 0.0, %v5261
      %v5263 = vpop.f32.mrb[0].mxu0
      %5264 = vdwg.mxu0
      %s5265 = scalar_lea.vmem %s20, 144
      %v5266 = vld [vmem:[%s5265] sm:$0xf]
      %v5267 = vld [vmem:[%s5265 + $0x4] sm:$0xf]
      %v5268 = vld [vmem:[%s5265 + $0x8] sm:$0xf]
      %v5269 = vld [vmem:[%s5265 + $0xc] sm:$0xf]
      %v5270 = vld [vmem:[%s5265 + $0x10] sm:$0xf]
      %v5271 = vld [vmem:[%s5265 + $0x14] sm:$0xf]
      %v5272 = vld [vmem:[%s5265 + $0x18] sm:$0xf]
      %v5273 = vld [vmem:[%s5265 + $0x1c] sm:$0xf]
      %v5274 = vld [vmem:[%s5265 + $0x20] sm:$0xf]
      %v5284 = vunpack.c.l.b16 %v5266
      %v5285 = vunpack.c.l.b16 %v5267
      %v5286 = vunpack.c.l.b16 %v5268
      %v5287 = vunpack.c.l.b16 %v5269
      %v5288 = vunpack.c.l.b16 %v5270
      %v5289 = vunpack.c.l.b16 %v5271
      %v5290 = vunpack.c.l.b16 %v5272
      %v5291 = vunpack.c.l.b16 %v5273
      %v5292 = vunpack.c.l.b16 %v5274
      %v5293 = vpack.c.b16 %v5285, %v5284
      %v5294 = vpack.c.b16 %v5287, %v5286
      %v5295 = vpack.c.b16 %v5289, %v5288
      %v5296 = vpack.c.b16 %v5291, %v5290
      %v5297 = vpack.c.b16 %v5292, %v5292
      %v5303 = vsel %vm1785, %v5297, 0
      %5305 = vmatprep.subr.bf16.mxu0 0
      %5306 = vmatpush1.bf16.msra.mxu0 %v5293
      %5307 = vmatprep.subr.bf16.mxu0 0
      %5308 = vmatpush1.bf16.msra.mxu0 %v5294
      %5309 = vmatprep.subr.bf16.mxu0 0
      %5310 = vmatpush1.bf16.msra.mxu0 %v5295
      %5311 = vmatprep.subr.bf16.mxu0 0
      %5312 = vmatpush1.bf16.msra.mxu0 %v5296
      %5313 = vmatprep.subr.bf16.mxu0 0
      %5314 = vmatpush1.bf16.msra.mxu0 %v5303
      %5315 = vmatprep.subr.bf16.mxu0 0
      %5316 = vmatpush1.bf16.msra.mxu0 0
      %5317 = vmatprep.subr.bf16.mxu0 0
      %5318 = vmatpush1.bf16.msra.mxu0 0
      %5319 = vmatprep.subr.bf16.mxu0 0
      %5320 = vmatpush1.bf16.msra.mxu0 0
      %5321 = vmatprep.subr.bf16.mxu0 0
      %5322 = vmatpush1.bf16.msra.mxu0 0
      %5323 = vmatprep.subr.bf16.mxu0 0
      %5324 = vmatpush1.bf16.msra.mxu0 0
      %5325 = vmatprep.subr.bf16.mxu0 0
      %5326 = vmatpush1.bf16.msra.mxu0 0
      %5327 = vmatprep.subr.bf16.mxu0 0
      %5328 = vmatpush1.bf16.msra.mxu0 0
      %5329 = vmatprep.subr.bf16.mxu0 0
      %5330 = vmatpush1.bf16.msra.mxu0 0
      %5331 = vmatprep.subr.bf16.mxu0 0
      %5332 = vmatpush1.bf16.msra.mxu0 0
      %5333 = vmatprep.subr.bf16.mxu0 0
      %5334 = vmatpush1.bf16.msra.mxu0 0
      %5335 = vmatprep.subr.bf16.mxu0 0
      %5336 = vmatpush1.bf16.msra.mxu0 0
      %5337 = vmatprep.mubr.bf16.mxu0 0
      %5338 = vmatmul.mubr.bf16.gmra.mrb[0].mxu0 %v4976
      %v5339 = vpop.f32.mrb[0].mxu0
      %v5340 = vadd.f32 0.0, %v5339
      %v5341 = vpop.f32.mrb[0].mxu0
      %v5342 = vpop.f32.mrb[0].mxu0
      %v5343 = vadd.f32 0.0, %v5342
      %v5344 = vpop.f32.mrb[0].mxu0
      %5345 = vdwg.mxu0
      %v5346 = vld [vmem:[%s21] sm:$0x1]
      %v5347 = vadd.f32 %v5346, %v5016
      %v5348 = vadd.f32 %v5346, %v5097
      %v5349 = vadd.f32 %v5346, %v5178
      %v5352 = vunpack.c.l.s4 1966171168
      %v5353 = vunpack.c.0.s8 %v5352
      %v5354 = vlaneseq
      %v5355 = vshrl.u32 %v5354, 7
      %v5356 = vsub.s32 %v5353, %v5355
      %v5357 = vrot.slane %v5016, %v5356
      %v5358 = vcombine.high %v5357, %v5357
      %v5360 = vunpack.c.l.s4 1966171168
      %v5361 = vunpack.c.0.s8 %v5360
      %v5362 = vlaneseq
      %v5363 = vshrl.u32 %v5362, 7
      %v5364 = vsub.s32 %v5361, %v5363
      %v5365 = vrot.slane %v5357, %v5364
      %v5367 = vunpack.c.l.s4 1966171168
      %v5368 = vunpack.c.0.s8 %v5367
      %v5369 = vlaneseq
      %v5370 = vshrl.u32 %v5369, 7
      %v5371 = vsub.s32 %v5368, %v5370
      %v5372 = vrot.slane %v5358, %v5371
      %v5374 = vadd.f32 %v5349, %v5372
      %v5375 = vadd.f32 %v5346, %v5259
      %v5378 = vunpack.c.l.s4 1966171168
      %v5379 = vunpack.c.0.s8 %v5378
      %v5380 = vlaneseq
      %v5381 = vshrl.u32 %v5380, 7
      %v5382 = vsub.s32 %v5379, %v5381
      %v5383 = vrot.slane %v5097, %v5382
      %v5384 = vcombine.high %v5383, %v5383
      %v5386 = vunpack.c.l.s4 1966171168
      %v5387 = vunpack.c.0.s8 %v5386
      %v5388 = vlaneseq
      %v5389 = vshrl.u32 %v5388, 7
      %v5390 = vsub.s32 %v5387, %v5389
      %v5391 = vrot.slane %v5383, %v5390
      %v5393 = vunpack.c.l.s4 1966171168
      %v5394 = vunpack.c.0.s8 %v5393
      %v5395 = vlaneseq
      %v5396 = vshrl.u32 %v5395, 7
      %v5397 = vsub.s32 %v5394, %v5396
      %v5398 = vrot.slane %v5384, %v5397
      %v5400 = vadd.f32 %v5375, %v5398
      %v5401 = vadd.f32 %v5346, %v5340
      %v5404 = vunpack.c.l.s4 1966171168
      %v5405 = vunpack.c.0.s8 %v5404
      %v5406 = vlaneseq
      %v5407 = vshrl.u32 %v5406, 7
      %v5408 = vsub.s32 %v5405, %v5407
      %v5409 = vrot.slane %v5178, %v5408
      %v5410 = vcombine.high %v5409, %v5409
      %v5412 = vunpack.c.l.s4 1966171168
      %v5413 = vunpack.c.0.s8 %v5412
      %v5414 = vlaneseq
      %v5415 = vshrl.u32 %v5414, 7
      %v5416 = vsub.s32 %v5413, %v5415
      %v5417 = vrot.slane %v5409, %v5416
      %v5419 = vunpack.c.l.s4 1966171168
      %v5420 = vunpack.c.0.s8 %v5419
      %v5421 = vlaneseq
      %v5422 = vshrl.u32 %v5421, 7
      %v5423 = vsub.s32 %v5420, %v5422
      %v5424 = vrot.slane %v5410, %v5423
      %v5426 = vadd.f32 %v5401, %v5424
      %v5427 = vcombine.high %v5365, %v5365
      %v5429 = vadd.f32 %v5426, %v5427
      %v5432 = vunpack.c.l.s4 1966171168
      %v5433 = vunpack.c.0.s8 %v5432
      %v5434 = vlaneseq
      %v5435 = vshrl.u32 %v5434, 7
      %v5436 = vsub.s32 %v5433, %v5435
      %v5437 = vrot.slane %v5259, %v5436
      %v5438 = vcombine.high %v5437, %v5437
      %v5440 = vunpack.c.l.s4 1966171168
      %v5441 = vunpack.c.0.s8 %v5440
      %v5442 = vlaneseq
      %v5443 = vshrl.u32 %v5442, 7
      %v5444 = vsub.s32 %v5441, %v5443
      %v5445 = vrot.slane %v5437, %v5444
      %v5447 = vunpack.c.l.s4 1966171168
      %v5448 = vunpack.c.0.s8 %v5447
      %v5449 = vlaneseq
      %v5450 = vshrl.u32 %v5449, 7
      %v5451 = vsub.s32 %v5448, %v5450
      %v5452 = vrot.slane %v5438, %v5451
      %v5454 = vadd.f32 %v5346, %v5452
      %v5455 = vcombine.high %v5391, %v5391
      %v5457 = vadd.f32 %v5454, %v5455
      %v5460 = vunpack.c.l.s4 1966171168
      %v5461 = vunpack.c.0.s8 %v5460
      %v5462 = vlaneseq
      %v5463 = vshrl.u32 %v5462, 7
      %v5464 = vsub.s32 %v5461, %v5463
      %v5465 = vrot.slane %v5340, %v5464
      %v5466 = vcombine.high %v5465, %v5465
      %v5468 = vunpack.c.l.s4 1966171168
      %v5469 = vunpack.c.0.s8 %v5468
      %v5470 = vlaneseq
      %v5471 = vshrl.u32 %v5470, 7
      %v5472 = vsub.s32 %v5469, %v5471
      %v5473 = vrot.slane %v5465, %v5472
      %v5475 = vunpack.c.l.s4 1966171168
      %v5476 = vunpack.c.0.s8 %v5475
      %v5477 = vlaneseq
      %v5478 = vshrl.u32 %v5477, 7
      %v5479 = vsub.s32 %v5476, %v5478
      %v5480 = vrot.slane %v5466, %v5479
      %v5482 = vadd.f32 %v5346, %v5480
      %v5483 = vcombine.high %v5417, %v5417
      %v5485 = vadd.f32 %v5482, %v5483
      %v5486 = vcombine.high %v5372, %v5372
      %v5488 = vadd.f32 %v5485, %v5486
      %v5489 = vcombine.high %v5445, %v5445
      %v5491 = vadd.f32 %v5346, %v5489
      %v5492 = vcombine.high %v5398, %v5398
      %v5494 = vadd.f32 %v5491, %v5492
      %v5495 = vcombine.high %v5473, %v5473
      %v5497 = vadd.f32 %v5346, %v5495
      %v5498 = vcombine.high %v5424, %v5424
      %v5500 = vadd.f32 %v5497, %v5498
      %v5501 = vcombine.high %v5016, %v5016
      %v5503 = vunpack.c.l.s4 1966171168
      %v5504 = vunpack.c.0.s8 %v5503
      %v5505 = vlaneseq
      %v5506 = vshrl.u32 %v5505, 7
      %v5507 = vsub.s32 %v5504, %v5506
      %v5508 = vrot.slane %v5501, %v5507
      %v5510 = vunpack.c.l.s4 1966171168
      %v5511 = vunpack.c.0.s8 %v5510
      %v5512 = vlaneseq
      %v5513 = vshrl.u32 %v5512, 7
      %v5514 = vsub.s32 %v5511, %v5513
      %v5515 = vrot.slane %v5508, %v5514
      %v5517 = vadd.f32 %v5500, %v5515
      %v5518 = vcombine.high %v5452, %v5452
      %v5520 = vadd.f32 %v5346, %v5518
      %v5521 = vcombine.high %v5097, %v5097
      %v5523 = vunpack.c.l.s4 1966171168
      %v5524 = vunpack.c.0.s8 %v5523
      %v5525 = vlaneseq
      %v5526 = vshrl.u32 %v5525, 7
      %v5527 = vsub.s32 %v5524, %v5526
      %v5528 = vrot.slane %v5521, %v5527
      %v5530 = vunpack.c.l.s4 1966171168
      %v5531 = vunpack.c.0.s8 %v5530
      %v5532 = vlaneseq
      %v5533 = vshrl.u32 %v5532, 7
      %v5534 = vsub.s32 %v5531, %v5533
      %v5535 = vrot.slane %v5528, %v5534
      %v5537 = vadd.f32 %v5520, %v5535
      %v5538 = vcombine.high %v5480, %v5480
      %v5540 = vadd.f32 %v5346, %v5538
      %v5541 = vcombine.high %v5178, %v5178
      %v5543 = vunpack.c.l.s4 1966171168
      %v5544 = vunpack.c.0.s8 %v5543
      %v5545 = vlaneseq
      %v5546 = vshrl.u32 %v5545, 7
      %v5547 = vsub.s32 %v5544, %v5546
      %v5548 = vrot.slane %v5541, %v5547
      %v5550 = vunpack.c.l.s4 1966171168
      %v5551 = vunpack.c.0.s8 %v5550
      %v5552 = vlaneseq
      %v5553 = vshrl.u32 %v5552, 7
      %v5554 = vsub.s32 %v5551, %v5553
      %v5555 = vrot.slane %v5548, %v5554
      %v5557 = vadd.f32 %v5540, %v5555
      %v5558 = vcombine.high %v5508, %v5508
      %v5560 = vunpack.c.l.s4 1966171168
      %v5561 = vunpack.c.0.s8 %v5560
      %v5562 = vlaneseq
      %v5563 = vshrl.u32 %v5562, 7
      %v5564 = vsub.s32 %v5561, %v5563
      %v5565 = vrot.slane %v5558, %v5564
      %v5567 = vadd.f32 %v5557, %v5565
      %v5568 = vcombine.high %v5259, %v5259
      %v5570 = vunpack.c.l.s4 1966171168
      %v5571 = vunpack.c.0.s8 %v5570
      %v5572 = vlaneseq
      %v5573 = vshrl.u32 %v5572, 7
      %v5574 = vsub.s32 %v5571, %v5573
      %v5575 = vrot.slane %v5568, %v5574
      %v5577 = vunpack.c.l.s4 1966171168
      %v5578 = vunpack.c.0.s8 %v5577
      %v5579 = vlaneseq
      %v5580 = vshrl.u32 %v5579, 7
      %v5581 = vsub.s32 %v5578, %v5580
      %v5582 = vrot.slane %v5575, %v5581
      %v5584 = vadd.f32 %v5346, %v5582
      %v5585 = vcombine.high %v5528, %v5528
      %v5587 = vunpack.c.l.s4 1966171168
      %v5588 = vunpack.c.0.s8 %v5587
      %v5589 = vlaneseq
      %v5590 = vshrl.u32 %v5589, 7
      %v5591 = vsub.s32 %v5588, %v5590
      %v5592 = vrot.slane %v5585, %v5591
      %v5594 = vadd.f32 %v5584, %v5592
      %v5595 = vcombine.high %v5340, %v5340
      %v5597 = vunpack.c.l.s4 1966171168
      %v5598 = vunpack.c.0.s8 %v5597
      %v5599 = vlaneseq
      %v5600 = vshrl.u32 %v5599, 7
      %v5601 = vsub.s32 %v5598, %v5600
      %v5602 = vrot.slane %v5595, %v5601
      %v5604 = vunpack.c.l.s4 1966171168
      %v5605 = vunpack.c.0.s8 %v5604
      %v5606 = vlaneseq
      %v5607 = vshrl.u32 %v5606, 7
      %v5608 = vsub.s32 %v5605, %v5607
      %v5609 = vrot.slane %v5602, %v5608
      %v5611 = vadd.f32 %v5346, %v5609
      %v5612 = vcombine.high %v5548, %v5548
      %v5614 = vunpack.c.l.s4 1966171168
      %v5615 = vunpack.c.0.s8 %v5614
      %v5616 = vlaneseq
      %v5617 = vshrl.u32 %v5616, 7
      %v5618 = vsub.s32 %v5615, %v5617
      %v5619 = vrot.slane %v5612, %v5618
      %v5621 = vadd.f32 %v5611, %v5619
      %v5622 = vcombine.high %v5515, %v5515
      %v5624 = vadd.f32 %v5621, %v5622
      %v5625 = vcombine.high %v5575, %v5575
      %v5627 = vunpack.c.l.s4 1966171168
      %v5628 = vunpack.c.0.s8 %v5627
      %v5629 = vlaneseq
      %v5630 = vshrl.u32 %v5629, 7
      %v5631 = vsub.s32 %v5628, %v5630
      %v5632 = vrot.slane %v5625, %v5631
      %v5634 = vadd.f32 %v5346, %v5632
      %v5635 = vcombine.high %v5535, %v5535
      %v5637 = vadd.f32 %v5634, %v5635
      %v5638 = vcombine.high %v5602, %v5602
      %v5640 = vunpack.c.l.s4 1966171168
      %v5641 = vunpack.c.0.s8 %v5640
      %v5642 = vlaneseq
      %v5643 = vshrl.u32 %v5642, 7
      %v5644 = vsub.s32 %v5641, %v5643
      %v5645 = vrot.slane %v5638, %v5644
      %v5647 = vadd.f32 %v5346, %v5645
      %v5648 = vcombine.high %v5555, %v5555
      %v5650 = vadd.f32 %v5647, %v5648
      %v5651 = vcombine.high %v5565, %v5565
      %v5653 = vadd.f32 %v5650, %v5651
      %v5654 = vcombine.high %v5582, %v5582
      %v5656 = vadd.f32 %v5346, %v5654
      %v5657 = vcombine.high %v5592, %v5592
      %v5659 = vadd.f32 %v5656, %v5657
      %v5660 = vcombine.high %v5609, %v5609
      %v5662 = vadd.f32 %v5346, %v5660
      %v5663 = vcombine.high %v5619, %v5619
      %v5665 = vadd.f32 %v5662, %v5663
      %v5666 = vadd.f32 %v5665, %v5019
      %v5667 = vcombine.high %v5632, %v5632
      %v5669 = vadd.f32 %v5346, %v5667
      %v5670 = vadd.f32 %v5669, %v5100
      %v5671 = vcombine.high %v5645, %v5645
      %v5673 = vadd.f32 %v5346, %v5671
      %v5674 = vadd.f32 %v5673, %v5181
      %v5677 = vunpack.c.l.s4 1966171168
      %v5678 = vunpack.c.0.s8 %v5677
      %v5679 = vlaneseq
      %v5680 = vshrl.u32 %v5679, 7
      %v5681 = vsub.s32 %v5678, %v5680
      %v5682 = vrot.slane %v5019, %v5681
      %v5683 = vcombine.high %v5682, %v5682
      %v5685 = vunpack.c.l.s4 1966171168
      %v5686 = vunpack.c.0.s8 %v5685
      %v5687 = vlaneseq
      %v5688 = vshrl.u32 %v5687, 7
      %v5689 = vsub.s32 %v5686, %v5688
      %v5690 = vrot.slane %v5682, %v5689
      %v5692 = vunpack.c.l.s4 1966171168
      %v5693 = vunpack.c.0.s8 %v5692
      %v5694 = vlaneseq
      %v5695 = vshrl.u32 %v5694, 7
      %v5696 = vsub.s32 %v5693, %v5695
      %v5697 = vrot.slane %v5683, %v5696
      %v5699 = vadd.f32 %v5674, %v5697
      %v5700 = vadd.f32 %v5346, %v5262
      %v5703 = vunpack.c.l.s4 1966171168
      %v5704 = vunpack.c.0.s8 %v5703
      %v5705 = vlaneseq
      %v5706 = vshrl.u32 %v5705, 7
      %v5707 = vsub.s32 %v5704, %v5706
      %v5708 = vrot.slane %v5100, %v5707
      %v5709 = vcombine.high %v5708, %v5708
      %v5711 = vunpack.c.l.s4 1966171168
      %v5712 = vunpack.c.0.s8 %v5711
      %v5713 = vlaneseq
      %v5714 = vshrl.u32 %v5713, 7
      %v5715 = vsub.s32 %v5712, %v5714
      %v5716 = vrot.slane %v5708, %v5715
      %v5718 = vunpack.c.l.s4 1966171168
      %v5719 = vunpack.c.0.s8 %v5718
      %v5720 = vlaneseq
      %v5721 = vshrl.u32 %v5720, 7
      %v5722 = vsub.s32 %v5719, %v5721
      %v5723 = vrot.slane %v5709, %v5722
      %v5725 = vadd.f32 %v5700, %v5723
      %v5726 = vadd.f32 %v5346, %v5343
      %v5729 = vunpack.c.l.s4 1966171168
      %v5730 = vunpack.c.0.s8 %v5729
      %v5731 = vlaneseq
      %v5732 = vshrl.u32 %v5731, 7
      %v5733 = vsub.s32 %v5730, %v5732
      %v5734 = vrot.slane %v5181, %v5733
      %v5735 = vcombine.high %v5734, %v5734
      %v5737 = vunpack.c.l.s4 1966171168
      %v5738 = vunpack.c.0.s8 %v5737
      %v5739 = vlaneseq
      %v5740 = vshrl.u32 %v5739, 7
      %v5741 = vsub.s32 %v5738, %v5740
      %v5742 = vrot.slane %v5734, %v5741
      %v5744 = vunpack.c.l.s4 1966171168
      %v5745 = vunpack.c.0.s8 %v5744
      %v5746 = vlaneseq
      %v5747 = vshrl.u32 %v5746, 7
      %v5748 = vsub.s32 %v5745, %v5747
      %v5749 = vrot.slane %v5735, %v5748
      %v5751 = vadd.f32 %v5726, %v5749
      %v5752 = vcombine.high %v5690, %v5690
      %v5754 = vadd.f32 %v5751, %v5752
      %v5757 = vunpack.c.l.s4 1966171168
      %v5758 = vunpack.c.0.s8 %v5757
      %v5759 = vlaneseq
      %v5760 = vshrl.u32 %v5759, 7
      %v5761 = vsub.s32 %v5758, %v5760
      %v5762 = vrot.slane %v5262, %v5761
      %v5763 = vcombine.high %v5762, %v5762
      %v5765 = vunpack.c.l.s4 1966171168
      %v5766 = vunpack.c.0.s8 %v5765
      %v5767 = vlaneseq
      %v5768 = vshrl.u32 %v5767, 7
      %v5769 = vsub.s32 %v5766, %v5768
      %v5770 = vrot.slane %v5762, %v5769
      %v5772 = vunpack.c.l.s4 1966171168
      %v5773 = vunpack.c.0.s8 %v5772
      %v5774 = vlaneseq
      %v5775 = vshrl.u32 %v5774, 7
      %v5776 = vsub.s32 %v5773, %v5775
      %v5777 = vrot.slane %v5763, %v5776
      %v5779 = vadd.f32 %v5346, %v5777
      %v5780 = vcombine.high %v5716, %v5716
      %v5782 = vadd.f32 %v5779, %v5780
      %v5785 = vunpack.c.l.s4 1966171168
      %v5786 = vunpack.c.0.s8 %v5785
      %v5787 = vlaneseq
      %v5788 = vshrl.u32 %v5787, 7
      %v5789 = vsub.s32 %v5786, %v5788
      %v5790 = vrot.slane %v5343, %v5789
      %v5791 = vcombine.high %v5790, %v5790
      %v5793 = vunpack.c.l.s4 1966171168
      %v5794 = vunpack.c.0.s8 %v5793
      %v5795 = vlaneseq
      %v5796 = vshrl.u32 %v5795, 7
      %v5797 = vsub.s32 %v5794, %v5796
      %v5798 = vrot.slane %v5790, %v5797
      %v5800 = vunpack.c.l.s4 1966171168
      %v5801 = vunpack.c.0.s8 %v5800
      %v5802 = vlaneseq
      %v5803 = vshrl.u32 %v5802, 7
      %v5804 = vsub.s32 %v5801, %v5803
      %v5805 = vrot.slane %v5791, %v5804
      %v5807 = vadd.f32 %v5346, %v5805
      %v5808 = vcombine.high %v5742, %v5742
      %v5810 = vadd.f32 %v5807, %v5808
      %v5811 = vcombine.high %v5697, %v5697
      %v5813 = vadd.f32 %v5810, %v5811
      %v5814 = vcombine.high %v5770, %v5770
      %v5816 = vadd.f32 %v5346, %v5814
      %v5817 = vcombine.high %v5723, %v5723
      %v5819 = vadd.f32 %v5816, %v5817
      %v5820 = vcombine.high %v5798, %v5798
      %v5822 = vadd.f32 %v5346, %v5820
      %v5823 = vcombine.high %v5749, %v5749
      %v5825 = vadd.f32 %v5822, %v5823
      %v5826 = vcombine.high %v5777, %v5777
      %v5828 = vadd.f32 %v5346, %v5826
      %v5829 = vcombine.high %v5805, %v5805
      %v5831 = vadd.f32 %v5346, %v5829
      %v5833 = vlaneseq
      %v5834 = vshrl.u32 %v5833, 7
      %v5835 = vsub.s32 0, %v5834
      %v5836 = vrot.slane %v5348, %v5835
      %v5839 = vlaneseq
      %v5840 = vshrl.u32 %v5839, 7
      %v5841 = vsub.s32 0, %v5840
      %v5842 = vrot.slane %v5374, %v5841
      %v5845 = vlaneseq
      %v5846 = vshrl.u32 %v5845, 7
      %v5847 = vsub.s32 0, %v5846
      %v5848 = vrot.slane %v5400, %v5847
      %v5851 = vlaneseq
      %v5852 = vshrl.u32 %v5851, 7
      %v5853 = vsub.s32 0, %v5852
      %v5854 = vrot.slane %v5429, %v5853
      %v5857 = vlaneseq
      %v5858 = vshrl.u32 %v5857, 7
      %v5859 = vsub.s32 0, %v5858
      %v5860 = vrot.slane %v5457, %v5859
      %v5863 = vlaneseq
      %v5864 = vshrl.u32 %v5863, 7
      %v5865 = vsub.s32 0, %v5864
      %v5866 = vrot.slane %v5488, %v5865
      %v5869 = vlaneseq
      %v5870 = vshrl.u32 %v5869, 7
      %v5871 = vsub.s32 0, %v5870
      %v5872 = vrot.slane %v5494, %v5871
      %v5875 = vlaneseq
      %v5876 = vshrl.u32 %v5875, 7
      %v5877 = vsub.s32 0, %v5876
      %v5878 = vrot.slane %v5537, %v5877
      %v5881 = vlaneseq
      %v5882 = vshrl.u32 %v5881, 7
      %v5883 = vsub.s32 0, %v5882
      %v5884 = vrot.slane %v5567, %v5883
      %v5887 = vlaneseq
      %v5888 = vshrl.u32 %v5887, 7
      %v5889 = vsub.s32 0, %v5888
      %v5890 = vrot.slane %v5594, %v5889
      %v5893 = vlaneseq
      %v5894 = vshrl.u32 %v5893, 7
      %v5895 = vsub.s32 0, %v5894
      %v5896 = vrot.slane %v5624, %v5895
      %v5899 = vlaneseq
      %v5900 = vshrl.u32 %v5899, 7
      %v5901 = vsub.s32 0, %v5900
      %v5902 = vrot.slane %v5637, %v5901
      %v5905 = vlaneseq
      %v5906 = vshrl.u32 %v5905, 7
      %v5907 = vsub.s32 0, %v5906
      %v5908 = vrot.slane %v5653, %v5907
      %v5911 = vlaneseq
      %v5912 = vshrl.u32 %v5911, 7
      %v5913 = vsub.s32 0, %v5912
      %v5914 = vrot.slane %v5659, %v5913
      %v5916 = vsel %vm1779, %v5347, %v5836
      %v5917 = vsel %vm1781, %v5916, %v5842
      %v5918 = vsel %vm1783, %v5917, %v5848
      %v5919 = vsel %vm1785, %v5918, %v5854
      %v5920 = vsel %vm1787, %v5919, %v5860
      %v5921 = vsel %vm763, %v5920, %v5866
      %v5922 = vsel %vm1790, %v5921, %v5872
      %v5923 = vsel %vm1779, %v5517, %v5878
      %v5924 = vsel %vm1781, %v5923, %v5884
      %v5925 = vsel %vm1783, %v5924, %v5890
      %v5926 = vsel %vm1785, %v5925, %v5896
      %v5927 = vsel %vm1787, %v5926, %v5902
      %v5928 = vsel %vm763, %v5927, %v5908
      %v5929 = vsel %vm1790, %v5928, %v5914
      %v5931 = vlaneseq
      %v5932 = vshrl.u32 %v5931, 7
      %v5933 = vsub.s32 0, %v5932
      %v5934 = vrot.slane %v5670, %v5933
      %v5937 = vlaneseq
      %v5938 = vshrl.u32 %v5937, 7
      %v5939 = vsub.s32 0, %v5938
      %v5940 = vrot.slane %v5699, %v5939
      %v5943 = vlaneseq
      %v5944 = vshrl.u32 %v5943, 7
      %v5945 = vsub.s32 0, %v5944
      %v5946 = vrot.slane %v5725, %v5945
      %v5949 = vlaneseq
      %v5950 = vshrl.u32 %v5949, 7
      %v5951 = vsub.s32 0, %v5950
      %v5952 = vrot.slane %v5754, %v5951
      %v5955 = vlaneseq
      %v5956 = vshrl.u32 %v5955, 7
      %v5957 = vsub.s32 0, %v5956
      %v5958 = vrot.slane %v5782, %v5957
      %v5961 = vlaneseq
      %v5962 = vshrl.u32 %v5961, 7
      %v5963 = vsub.s32 0, %v5962
      %v5964 = vrot.slane %v5813, %v5963
      %v5967 = vlaneseq
      %v5968 = vshrl.u32 %v5967, 7
      %v5969 = vsub.s32 0, %v5968
      %v5970 = vrot.slane %v5819, %v5969
      %v5973 = vlaneseq
      %v5974 = vshrl.u32 %v5973, 7
      %v5975 = vsub.s32 0, %v5974
      %v5976 = vrot.slane %v5828, %v5975
      %v5979 = vlaneseq
      %v5980 = vshrl.u32 %v5979, 7
      %v5981 = vsub.s32 0, %v5980
      %v5982 = vrot.slane %v5831, %v5981
      %v5985 = vlaneseq
      %v5986 = vshrl.u32 %v5985, 7
      %v5987 = vsub.s32 0, %v5986
      %v5988 = vrot.slane %v5346, %v5987
      %v5990 = vsel %vm1779, %v5666, %v5934
      %v5991 = vsel %vm1781, %v5990, %v5940
      %v5992 = vsel %vm1783, %v5991, %v5946
      %v5993 = vsel %vm1785, %v5992, %v5952
      %v5994 = vsel %vm1787, %v5993, %v5958
      %v5995 = vsel %vm763, %v5994, %v5964
      %v5996 = vsel %vm1790, %v5995, %v5970
      %v5997 = vsel %vm1779, %v5825, %v5976
      %v5998 = vsel %vm1781, %v5997, %v5982
      %v5999 = vsel %vm1783, %v5998, %v5988
      %v6000 = vand.u32 2147483647, %v5922
      %v6001 = vand.u32 2147483647, %v5929
      %v6002 = vand.u32 2147483647, %v5996
      %v6003 = vand.u32 2147483647, %v5999
      %v6004 = vsub.f32 0.0, %v6000
      %v6005 = vsub.f32 0.0, %v6001
      %v6006 = vsub.f32 0.0, %v6002
      %v6007 = vsub.f32 0.0, %v6003
      %v6008 = vmul.f32 %v6004, 1.442695
      %v6009 = vpow.pop %v6008
      %v6010 = vmul.f32 %v6005, 1.442695
      %v6011 = vpow.pop %v6010
      %v6012 = vmul.f32 %v6006, 1.442695
      %v6013 = vpow.pop %v6012
      %v6014 = vmul.f32 %v6007, 1.442695
      %v6015 = vpow.pop %v6014
      %v6016 = vadd.f32 %v6009, 1.0
      %v6017 = vadd.f32 %v6011, 1.0
      %v6018 = vadd.f32 %v6013, 1.0
      %v6019 = vadd.f32 %v6015, 1.0
      %v6020 = vrcp.pop %v6016
      %v6021 = vmul.f32 1.0, %v6020
      %v6022 = vrcp.pop %v6017
      %v6023 = vmul.f32 1.0, %v6022
      %v6024 = vrcp.pop %v6018
      %v6025 = vmul.f32 1.0, %v6024
      %v6026 = vrcp.pop %v6019
      %v6027 = vmul.f32 1.0, %v6026
      %vm6028 = vcmp.ge.f32.partialorder %v5922, 0.0
      %vm6029 = vcmp.ge.f32.partialorder %v5929, 0.0
      %vm6030 = vcmp.ge.f32.partialorder %v5996, 0.0
      %vm6031 = vcmp.ge.f32.partialorder %v5999, 0.0
      %v6032 = vmul.f32 %v6009, %v6021
      %v6033 = vmul.f32 %v6011, %v6023
      %v6034 = vmul.f32 %v6013, %v6025
      %v6035 = vmul.f32 %v6015, %v6027
      %v6036 = vsel %vm6028, %v6021, %v6032
      %v6037 = vsel %vm6029, %v6023, %v6033
      %v6038 = vsel %vm6030, %v6025, %v6034
      %v6039 = vsel %vm6031, %v6027, %v6035
      %6040 = vst.msk [vmem:[%s730] sm:$0xff] %vm756, %v6036
      %6041 = vst.msk [vmem:[%s730 + $0x8] sm:$0xff] %vm756, %v6037
      %6042 = vst.msk [vmem:[%s730 + $0x10] sm:$0xff] %vm756, %v6038
      %vm6043 = vcmask 224256
      %6044 = vst.msk [vmem:[%s730 + $0x18] sm:$0xf] %vm6043, %v6039
      %p6045 = scmp.lt.s32.totalorder %s35, 1
      %s6046 = scalar_select %p6045, %s35, 1
      %s6047 = smul.addr %s6046, 4
      %s6048 = smul.addr %s6047, 8
      %s6049 = scalar_lea.vmem %s22, %s6048
      %p6050 = scmp.lt.s32.totalorder %s35, 1
      %s6051 = scalar_select %p6050, %s35, 1
      %s6052 = scalar_lea.vmem %s23, %s6051
      // Predicated region
      $region109: #{cnn_vae_forward.1} parent=107 // pred_check
        %p6053 = pneg %p525
      $region110: #{cnn_vae_forward.1} parent=107 // pred_check_branch
        %6055 = sbr.rel (%p6053) target = $region112
      $region111: #{cnn_vae_forward.1} parent=107 // pred_region
        _
      $region112: #{cnn_vae_forward.1} parent=107 // pred_fallthru
        _
      // Predicated region
      $region113: #{cnn_vae_forward.1} parent=107 // pred_check
        %p6056 = pneg %p551
      $region114: #{cnn_vae_forward.1} parent=107 // pred_check_branch
        %6058 = sbr.rel (%p6056) target = $region116
      $region115: #{cnn_vae_forward.1} parent=107 // pred_region
        _
      $region116: #{cnn_vae_forward.1} parent=107 // pred_fallthru
        _
    $region108: #{cnn_vae_forward.1} parent=5 // pred_fallthru
      _
    %p6059 = scmp.le.s32.totalorder 2, %s30
    // Predicated region
    $region117: #{cnn_vae_forward.1} parent=5 // pred_check
      %p6060 = pneg %p6059
    $region118: #{cnn_vae_forward.1} parent=5 // pred_check_branch
      %6062 = sbr.rel (%p6060) target = $region120
    $region119: #{cnn_vae_forward.1} parent=5 // pred_region
      %s6063 = ssub.s32 %s30, 2
      // Predicated region
      $region121: #{cnn_vae_forward.1} parent=119 // pred_check
        %p6064 = pneg %p531
      $region122: #{cnn_vae_forward.1} parent=119 // pred_check_branch
        %6066 = sbr.rel (%p6064) target = $region124
      $region123: #{cnn_vae_forward.1} parent=119 // pred_region
        %p6067 = scmp.lt.s32.totalorder %s36, 1
        %s6068 = scalar_select %p6067, %s36, 1
        %s6069 = smul.addr %s6068, 4
        %s6070 = smul.addr %s6069, 8
        %s6071 = scalar_lea.vmem %s22, %s6070
      $region124: #{cnn_vae_forward.1} parent=119 // pred_fallthru
        _
      // Predicated region
      $region125: #{cnn_vae_forward.1} parent=119 // pred_check
        %p6072 = pneg %p557
      $region126: #{cnn_vae_forward.1} parent=119 // pred_check_branch
        %6074 = sbr.rel (%p6072) target = $region128
      $region127: #{cnn_vae_forward.1} parent=119 // pred_region
        %p6075 = scmp.lt.s32.totalorder %s36, 1
        %s6076 = scalar_select %p6075, %s36, 1
        %s6077 = scalar_lea.vmem %s23, %s6076
      $region128: #{cnn_vae_forward.1} parent=119 // pred_fallthru
        _
    $region120: #{cnn_vae_forward.1} parent=5 // pred_fallthru
      _
  $region6: #{cnn_vae_forward.1} parent=0 // loop_footer
    %s34 = sadd.s32 1, %s30
  $region7: #{cnn_vae_forward.1} parent=0 // loop_footer_branch
    %29 = sbr.rel target = $region3
  $region8: #{cnn_vae_forward.1} parent=0 // loop_exit
    _

</llo_original>
